<compile_context>
chip_gen: v7x
topology: tpu7x:2x2x1
jax: 0.10.0
libtpu: 0.0.40
codegen_flags: <defaults>
</compile_context>

<pallas_src>
import functools

import jax
import jax.numpy as jnp
from jax.experimental import pallas as pl
from jax.experimental.pallas import tpu as pltpu


_NEG_SLOPE = 0.2
_VMEM_LIMIT = 48 * 1024 * 1024   # < physical VMEM on v5e/v6e/v7x

_LAYER_CFGS = (
    dict(k=15, s=1, p=7,  g=1),
    dict(k=41, s=4, p=20, g=4),
    dict(k=41, s=4, p=20, g=16),
    dict(k=41, s=4, p=20, g=64),
    dict(k=41, s=4, p=20, g=256),
    dict(k=5,  s=1, p=2,  g=1),
    dict(k=3,  s=1, p=1,  g=1),
)


def _pick_time_tile(t_out, max_tile=512):
    if t_out <= max_tile:
        return t_out
    for cand in (512, 384, 256, 128):
        if t_out % cand == 0:
            return cand
    return t_out


def _fold_weight_norm(v, gain):
    # torch.nn.utils.weight_norm (dim=0): w[c] = g[c] * v[c] / ||v[c]||
    norm = jnp.sqrt(jnp.sum(v * v, axis=(1, 2), keepdims=True))
    return gain * v / norm


# ----------------------------------------------------------------------------
# Dense conv1d (groups == 1, stride == 1): layers 1, 6, 7
# ----------------------------------------------------------------------------
def _dense_conv_kernel(x_ref, w_ref, b_ref, feat_ref, xpad_ref, *,
                       kernel_size, pad, t_in, tile_t, c_in,
                       transpose_in, leaky_in, negative_slope):
    j = pl.program_id(1)   # output-channel tile
    i = pl.program_id(2)   # time tile

    # Fill the padded NTC scratch once per batch element (grid is sequential).
    @pl.when(jnp.logical_and(j == 0, i == 0))
    def _fill():
        src = x_ref[...]
        if transpose_in:                       # (C_in, T_in) -> (T_in, C_in)
            src = src.T
        if leaky_in:                           # LeakyReLU of previous layer
            src = jnp.maximum(src, negative_slope * src)
        if pad > 0:
            xpad_ref[0:pad, :] = jnp.zeros((pad, c_in), jnp.float32)
            xpad_ref[pad + t_in:pad + t_in + pad, :] = jnp.zeros(
                (pad, c_in), jnp.float32)
        xpad_ref[pad:pad + t_in, :] = src.astype(jnp.float32)

    t0 = i * tile_t
    co_blk = feat_ref.shape[0]
    acc = jnp.zeros((tile_t, co_blk), jnp.float32)
    for k in range(kernel_size):               # unrolled tap loop
        xk = xpad_ref[pl.ds(t0 + k, tile_t), :]          # (tile_t, C_in)
        wk = w_ref[k]                                    # (C_in, co_blk)
        if c_in == 1:
            acc = acc + xk * wk                          # broadcast multiply
        else:
            acc = acc + jax.lax.dot_general(
                xk, wk, (((1,), (0,)), ((), ())),
                preferred_element_type=jnp.float32,
                precision=jax.lax.Precision.HIGHEST)
    acc = acc + b_ref[...]                               # (1, co_blk)
    # Lane-dense NCT output block (co_blk, tile_t); transpose rides the XLU.
    feat_ref[...] = acc.T.astype(feat_ref.dtype)


def _dense_conv_layer(x, w_eff, bias, *, kernel_size, stride, pad,
                      transpose_in, leaky_in, negative_slope=_NEG_SLOPE):
    assert stride == 1
    if transpose_in:
        batch, c_in, t_in = x.shape
    else:
        batch, t_in, c_in = x.shape
    c_out = w_eff.shape[0]
    t_out = t_in + 2 * pad - kernel_size + 1

    tile_t = _pick_time_tile(t_out)
    n_t = t_out // tile_t
    if c_out % 256 == 0:
        co_blk = 256
    elif c_out % 128 == 0:
        co_blk = 128
    else:
        co_blk = c_out
    n_co = c_out // co_blk

    w_t = jnp.transpose(w_eff, (2, 1, 0)).astype(jnp.float32)  # (K, C_in, C_out)
    b2 = bias.reshape(1, c_out).astype(jnp.float32)

    if transpose_in:
        x_spec = pl.BlockSpec((None, c_in, t_in), lambda b, j, i: (b, 0, 0))
    else:
        x_spec = pl.BlockSpec((None, t_in, c_in), lambda b, j, i: (b, 0, 0))

    kernel = functools.partial(
        _dense_conv_kernel, kernel_size=kernel_size, pad=pad, t_in=t_in,
        tile_t=tile_t, c_in=c_in, transpose_in=transpose_in,
        leaky_in=leaky_in, negative_slope=negative_slope)

    return pl.pallas_call(
        kernel,
        out_shape=jax.ShapeDtypeStruct((batch, c_out, t_out), jnp.float32),
        grid=(batch, n_co, n_t),
        in_specs=[
            x_spec,
            pl.BlockSpec((kernel_size, c_in, co_blk), lambda b, j, i: (0, 0, j)),
            pl.BlockSpec((1, co_blk), lambda b, j, i: (0, j)),
        ],
        out_specs=pl.BlockSpec((None, co_blk, tile_t), lambda b, j, i: (b, j, i)),
        scratch_shapes=[pltpu.VMEM((t_in + 2 * pad, c_in), jnp.float32)],
        compiler_params=pltpu.CompilerParams(
            dimension_semantics=("arbitrary", "arbitrary", "arbitrary"),
            vmem_limit_bytes=_VMEM_LIMIT),
    )(x, w_t, b2)


# ----------------------------------------------------------------------------
# Grouped conv1d (in_per_group == 1, stride == 4): layers 2..5
# ----------------------------------------------------------------------------
def _grouped_conv_kernel(x_ref, w_ref, b_ref, feat_ref, xpad_ref, *,
                         kernel_size, stride, pad, t_in, tile_t,
                         groups, out_per_group, negative_slope):
    i = pl.program_id(1)   # time tile

    @pl.when(i == 0)
    def _fill():
        src = x_ref[...].T                               # (T_in, G)
        src = jnp.maximum(src, negative_slope * src)     # fused LeakyReLU
        xpad_ref[0:pad, :] = jnp.zeros((pad, groups), jnp.float32)
        xpad_ref[pad + t_in:pad + t_in + pad, :] = jnp.zeros(
            (pad, groups), jnp.float32)
        xpad_ref[pad:pad + t_in, :] = src.astype(jnp.float32)

    t0 = i * tile_t * stride
    acc = jnp.zeros((out_per_group, tile_t, groups), jnp.float32)
    for k in range(kernel_size):                         # unrolled taps
        # strided sublane read: rows t0 + k + j*stride, j = 0..tile_t-1
        xk = xpad_ref[pl.ds(t0 + k, tile_t, stride=stride), :]   # (tile_t, G)
        wk = w_ref[k]                                            # (O, G)
        acc = acc + xk[None, :, :] * wk[:, None, :]              # (O, tile_t, G)
    acc = acc + b_ref[...]                                       # (O, 1, G)

    # Assemble the (G, O, tile_t) output block (lane-dense on time); the
    # wrapper's free reshape turns it into PyTorch channel order g*O + o.
    rows = [acc[o].T for o in range(out_per_group)]              # (G, tile_t)
    feat_ref[...] = jnp.stack(rows, axis=1).astype(feat_ref.dtype)


def _grouped_conv_layer(x, w_eff, bias, *, kernel_size, stride, pad, groups,
                        negative_slope=_NEG_SLOPE):
    batch, c_in, t_in = x.shape
    c_out, in_per_group, _ = w_eff.shape
    # TODO(synk): grouped conv with in_per_group > 1 is not implemented; it
    # never occurs for the module's default n_channels=4.
    assert in_per_group == 1 and c_in == groups
    out_per_group = c_out // groups
    t_out = (t_in + 2 * pad - kernel_size) // stride + 1

    tile_t = _pick_time_tile(t_out)
    n_t = t_out // tile_t

    # (K, O, G) weights, (O, 1, G) bias, PyTorch out channel = g*O + o.
    w_g = jnp.transpose(w_eff.reshape(groups, out_per_group, kernel_size),
                        (2, 1, 0)).astype(jnp.float32)
    b_g = jnp.transpose(bias.reshape(groups, out_per_group),
                        (1, 0))[:, None, :].astype(jnp.float32)

    kernel = functools.partial(
        _grouped_conv_kernel, kernel_size=kernel_size, stride=stride, pad=pad,
        t_in=t_in, tile_t=tile_t, groups=groups, out_per_group=out_per_group,
        negative_slope=negative_slope)

    feat4 = pl.pallas_call(
        kernel,
        out_shape=jax.ShapeDtypeStruct(
            (batch, groups, out_per_group, t_out), jnp.float32),
        grid=(batch, n_t),
        in_specs=[
            pl.BlockSpec((None, c_in, t_in), lambda b, i: (b, 0, 0)),
            pl.BlockSpec((kernel_size, out_per_group, groups),
                         lambda b, i: (0, 0, 0)),
            pl.BlockSpec((out_per_group, 1, groups), lambda b, i: (0, 0, 0)),
        ],
        out_specs=pl.BlockSpec((None, groups, out_per_group, tile_t),
                               lambda b, i: (b, 0, 0, i)),
        scratch_shapes=[pltpu.VMEM((t_in + 2 * pad, c_in), jnp.float32)],
        compiler_params=pltpu.CompilerParams(
            dimension_semantics=("arbitrary", "arbitrary"),
            vmem_limit_bytes=_VMEM_LIMIT),
    )(x, w_g, b_g)
    # free reshape: channel index = g * out_per_group + o (PyTorch ordering)
    return feat4.reshape(batch, c_out, t_out)


# ----------------------------------------------------------------------------
# Full module forward
# ----------------------------------------------------------------------------
def _avg_pool1d(x, kernel, stride):
    # TODO(synk): AvgPool1d (resolution > 1) stays in plain XLA; the module's
    # default resolution=1 is an Identity and never reaches this path.
    t = x.shape[-1]
    t_out = (t - kernel) // stride + 1
    acc = jnp.zeros(x.shape[:-1] + (t_out,), x.dtype)
    for k in range(kernel):
        acc = acc + jax.lax.slice_in_dim(
            x, k, k + stride * (t_out - 1) + 1, stride=stride, axis=2)
    return acc / kernel


def wave_discriminator_forward(x, params, *, resolution=1,
                               negative_slope=_NEG_SLOPE):
    """x: (B, 1, T) float32; params: list of 7 dicts with 'v', 'g', 'b'.

    Returns the list of 7 feature maps (each (B, C_out, T_out)), matching
    WaveDiscriminator.forward (pre-activation outputs of every layer).
    """
    assert resolution >= 1
    if resolution > 1:
        x = _avg_pool1d(x, kernel=2 * resolution, stride=resolution)

    batch, _, t = x.shape
    h_layer1 = x.reshape(batch, t, 1)   # (B, 1, T) -> NTC (B, T, 1), free

    feats = []
    for li, (cfg, p) in enumerate(zip(_LAYER_CFGS, params)):
        w_eff = _fold_weight_norm(p["v"], p["g"])
        if cfg["g"] == 1:
            inp = h_layer1 if li == 0 else feats[-1]
            feat = _dense_conv_layer(
                inp, w_eff, p["b"], kernel_size=cfg["k"], stride=cfg["s"],
                pad=cfg["p"], transpose_in=(li != 0), leaky_in=(li != 0),
                negative_slope=negative_slope)
        else:
            feat = _grouped_conv_layer(
                feats[-1], w_eff, p["b"], kernel_size=cfg["k"],
                stride=cfg["s"], pad=cfg["p"], groups=cfg["g"],
                negative_slope=negative_slope)
        feats.append(feat)
    return feats


# ----------------------------------------------------------------------------
# Pure-JAX reference (same math, XLA convolutions) for sanity checking
# ----------------------------------------------------------------------------
def _reference_forward(x, params, *, resolution=1, negative_slope=_NEG_SLOPE):
    if resolution > 1:
        x = _avg_pool1d(x, kernel=2 * resolution, stride=resolution)
    feats = []
    h = x
    for li, (cfg, p) in enumerate(zip(_LAYER_CFGS, params)):
        w = _fold_weight_norm(p["v"], p["g"])
        out = jax.lax.conv_general_dilated(
            h, w, window_strides=(cfg["s"],), padding=[(cfg["p"], cfg["p"])],
            dimension_numbers=("NCH", "OIH", "NCH"),
            feature_group_count=cfg["g"],
            precision=jax.lax.Precision.HIGHEST)
        out = out + p["b"][None, :, None]
        feats.append(out)
        if li < len(_LAYER_CFGS) - 1:
            h = jnp.maximum(out, negative_slope * out)
    return feats


if __name__ == "__main__":
    n_channels = 4
    batch, t = 2, 2048

    channel_plan = [
        (1, n_channels),
        (n_channels, 4 * n_channels),
        (4 * n_channels, 16 * n_channels),
        (16 * n_channels, 64 * n_channels),
        (64 * n_channels, 256 * n_channels),
        (256 * n_channels, 256 * n_channels),
        (256 * n_channels, 1),
    ]

    key = jax.random.PRNGKey(0)
    params = []
    for (c_in, c_out), cfg in zip(channel_plan, _LAYER_CFGS):
        key, kv, kg, kb = jax.random.split(key, 4)
        fan_in = (c_in // cfg["g"]) * cfg["k"]
        v = jax.random.normal(
            kv, (c_out, c_in // cfg["g"], cfg["k"]), jnp.float32
        ) / jnp.sqrt(jnp.float32(fan_in))
        gain = 1.0 + 0.1 * jax.random.normal(kg, (c_out, 1, 1), jnp.float32)
        b = 0.1 * jax.random.normal(kb, (c_out,), jnp.float32)
        params.append(dict(v=v, g=gain, b=b))

    key, kx = jax.random.split(key)
    x = jax.random.normal(kx, (batch, 1, t), jnp.float32)

    feats = wave_discriminator_forward(x, params)
    feats = jax.block_until_ready(feats)

    ref_feats = jax.block_until_ready(_reference_forward(x, params))

    for li, (a, r) in enumerate(zip(feats, ref_feats)):
        assert a.shape == r.shape, (li, a.shape, r.shape)
        max_err = float(jnp.max(jnp.abs(a - r)))
        assert jnp.allclose(a, r, rtol=5e-3, atol=5e-3), (li, max_err)

    print("KERNEL_OK")
</pallas_src>

<mosaic_0001>
module attributes {stable_mosaic.version = 11 : i64} {
  func.func @_dense_conv_kernel(%arg0: i32, %arg1: i32, %arg2: i32, %arg3: memref<1x2048x1xf32, #tpu.memory_space<vmem>>, %arg4: memref<15x1x4xf32, #tpu.memory_space<vmem>>, %arg5: memref<1x4xf32, #tpu.memory_space<vmem>>, %arg6: memref<1x4x512xf32, #tpu.memory_space<vmem>>, %arg7: memref<2062x1xf32, #tpu.memory_space<vmem>>) attributes {dimension_semantics = [#tpu.dimension_semantics<arbitrary>, #tpu.dimension_semantics<arbitrary>, #tpu.dimension_semantics<arbitrary>], iteration_bounds = array<i64: 2, 1, 4>, scalar_prefetch = 0 : i64, scratch_operands = 1 : i64, tpu.core_type = #tpu.core_type<tc>, window_params = [{transform_indices = @transform_0, window_bounds = array<i64: 1, 2048, 1>}, {transform_indices = @transform_1, window_bounds = array<i64: 15, 1, 4>}, {transform_indices = @transform_2, window_bounds = array<i64: 1, 4>}, {transform_indices = @transform_3, window_bounds = array<i64: 1, 4, 512>}]} {
    %c0_i32 = arith.constant 0 : i32
    %0 = arith.cmpi eq, %arg1, %c0_i32 : i32
    %c0_i32_0 = arith.constant 0 : i32
    %1 = arith.cmpi eq, %arg2, %c0_i32_0 : i32
    %2 = arith.andi %0, %1 : i1
    %3 = arith.extui %2 : i1 to i32
    %c0_i32_1 = arith.constant 0 : i32
    %4 = arith.cmpi ne, %3, %c0_i32_1 : i32
    scf.if %4 {
      %c0_53 = arith.constant 0 : index
      %c0_54 = arith.constant 0 : index
      %c0_55 = arith.constant 0 : index
      %149 = vector.load %arg3[%c0_53, %c0_54, %c0_55] : memref<1x2048x1xf32, #tpu.memory_space<vmem>>, vector<1x2048x1xf32>
      %150 = vector.shape_cast %149 : vector<1x2048x1xf32> to vector<2048x1xf32>
      %cst_56 = arith.constant 0.000000e+00 : f32
      %151 = vector.broadcast %cst_56 : f32 to vector<7x1xf32>
      %c0_57 = arith.constant 0 : index
      %c0_58 = arith.constant 0 : index
      %152 = vector.load %arg7[%c0_57, %c0_58] : memref<2062x1xf32, #tpu.memory_space<vmem>>, vector<7x1xf32>
      tpu.vector_store %arg7[%c0_57, %c0_58], %151 {strides = array<i32>} : memref<2062x1xf32, #tpu.memory_space<vmem>>, vector<7x1xf32>,
      %cst_59 = arith.constant 0.000000e+00 : f32
      %153 = vector.broadcast %cst_59 : f32 to vector<7x1xf32>
      %c2055 = arith.constant 2055 : index
      %c0_60 = arith.constant 0 : index
      %154 = vector.load %arg7[%c2055, %c0_60] : memref<2062x1xf32, #tpu.memory_space<vmem>>, vector<7x1xf32>
      tpu.vector_store %arg7[%c2055, %c0_60], %153 {strides = array<i32>} : memref<2062x1xf32, #tpu.memory_space<vmem>>, vector<7x1xf32>,
      %c7_61 = arith.constant 7 : index
      %c0_62 = arith.constant 0 : index
      %155 = vector.load %arg7[%c7_61, %c0_62] : memref<2062x1xf32, #tpu.memory_space<vmem>>, vector<2048x1xf32>
      tpu.vector_store %arg7[%c7_61, %c0_62], %150 {strides = array<i32>} : memref<2062x1xf32, #tpu.memory_space<vmem>>, vector<2048x1xf32>,
    } else {
    }
    %c512_i32 = arith.constant 512 : i32
    %5 = arith.muli %arg2, %c512_i32 : i32
    %cst = arith.constant 0.000000e+00 : f32
    %6 = vector.broadcast %cst : f32 to vector<512x4xf32>
    %c0_i32_2 = arith.constant 0 : i32
    %7 = arith.addi %5, %c0_i32_2 : i32
    %8 = arith.index_cast %7 : i32 to index
    %c0 = arith.constant 0 : index
    %9 = vector.load %arg7[%8, %c0] : memref<2062x1xf32, #tpu.memory_space<vmem>>, vector<512x1xf32>
    %c0_3 = arith.constant 0 : index
    %c0_4 = arith.constant 0 : index
    %c0_5 = arith.constant 0 : index
    %10 = vector.load %arg4[%c0_3, %c0_4, %c0_5] : memref<15x1x4xf32, #tpu.memory_space<vmem>>, vector<1x1x4xf32>
    %11 = vector.shape_cast %10 : vector<1x1x4xf32> to vector<1x4xf32>
    %12 = vector.broadcast %9 : vector<512x1xf32> to vector<512x4xf32>
    %13 = vector.broadcast %11 : vector<1x4xf32> to vector<512x4xf32>
    %14 = arith.mulf %12, %13 : vector<512x4xf32>
    %15 = arith.addf %6, %14 : vector<512x4xf32>
    %c1_i32 = arith.constant 1 : i32
    %16 = arith.addi %5, %c1_i32 : i32
    %17 = arith.index_cast %16 : i32 to index
    %c0_6 = arith.constant 0 : index
    %18 = vector.load %arg7[%17, %c0_6] : memref<2062x1xf32, #tpu.memory_space<vmem>>, vector<512x1xf32>
    %c1 = arith.constant 1 : index
    %c0_7 = arith.constant 0 : index
    %c0_8 = arith.constant 0 : index
    %19 = vector.load %arg4[%c1, %c0_7, %c0_8] : memref<15x1x4xf32, #tpu.memory_space<vmem>>, vector<1x1x4xf32>
    %20 = vector.shape_cast %19 : vector<1x1x4xf32> to vector<1x4xf32>
    %21 = vector.broadcast %18 : vector<512x1xf32> to vector<512x4xf32>
    %22 = vector.broadcast %20 : vector<1x4xf32> to vector<512x4xf32>
    %23 = arith.mulf %21, %22 : vector<512x4xf32>
    %24 = arith.addf %15, %23 : vector<512x4xf32>
    %c2_i32 = arith.constant 2 : i32
    %25 = arith.addi %5, %c2_i32 : i32
    %26 = arith.index_cast %25 : i32 to index
    %c0_9 = arith.constant 0 : index
    %27 = vector.load %arg7[%26, %c0_9] : memref<2062x1xf32, #tpu.memory_space<vmem>>, vector<512x1xf32>
    %c2 = arith.constant 2 : index
    %c0_10 = arith.constant 0 : index
    %c0_11 = arith.constant 0 : index
    %28 = vector.load %arg4[%c2, %c0_10, %c0_11] : memref<15x1x4xf32, #tpu.memory_space<vmem>>, vector<1x1x4xf32>
    %29 = vector.shape_cast %28 : vector<1x1x4xf32> to vector<1x4xf32>
    %30 = vector.broadcast %27 : vector<512x1xf32> to vector<512x4xf32>
    %31 = vector.broadcast %29 : vector<1x4xf32> to vector<512x4xf32>
    %32 = arith.mulf %30, %31 : vector<512x4xf32>
    %33 = arith.addf %24, %32 : vector<512x4xf32>
    %c3_i32 = arith.constant 3 : i32
    %34 = arith.addi %5, %c3_i32 : i32
    %35 = arith.index_cast %34 : i32 to index
    %c0_12 = arith.constant 0 : index
    %36 = vector.load %arg7[%35, %c0_12] : memref<2062x1xf32, #tpu.memory_space<vmem>>, vector<512x1xf32>
    %c3 = arith.constant 3 : index
    %c0_13 = arith.constant 0 : index
    %c0_14 = arith.constant 0 : index
    %37 = vector.load %arg4[%c3, %c0_13, %c0_14] : memref<15x1x4xf32, #tpu.memory_space<vmem>>, vector<1x1x4xf32>
    %38 = vector.shape_cast %37 : vector<1x1x4xf32> to vector<1x4xf32>
    %39 = vector.broadcast %36 : vector<512x1xf32> to vector<512x4xf32>
    %40 = vector.broadcast %38 : vector<1x4xf32> to vector<512x4xf32>
    %41 = arith.mulf %39, %40 : vector<512x4xf32>
    %42 = arith.addf %33, %41 : vector<512x4xf32>
    %c4_i32 = arith.constant 4 : i32
    %43 = arith.addi %5, %c4_i32 : i32
    %44 = arith.index_cast %43 : i32 to index
    %c0_15 = arith.constant 0 : index
    %45 = vector.load %arg7[%44, %c0_15] : memref<2062x1xf32, #tpu.memory_space<vmem>>, vector<512x1xf32>
    %c4 = arith.constant 4 : index
    %c0_16 = arith.constant 0 : index
    %c0_17 = arith.constant 0 : index
    %46 = vector.load %arg4[%c4, %c0_16, %c0_17] : memref<15x1x4xf32, #tpu.memory_space<vmem>>, vector<1x1x4xf32>
    %47 = vector.shape_cast %46 : vector<1x1x4xf32> to vector<1x4xf32>
    %48 = vector.broadcast %45 : vector<512x1xf32> to vector<512x4xf32>
    %49 = vector.broadcast %47 : vector<1x4xf32> to vector<512x4xf32>
    %50 = arith.mulf %48, %49 : vector<512x4xf32>
    %51 = arith.addf %42, %50 : vector<512x4xf32>
    %c5_i32 = arith.constant 5 : i32
    %52 = arith.addi %5, %c5_i32 : i32
    %53 = arith.index_cast %52 : i32 to index
    %c0_18 = arith.constant 0 : index
    %54 = vector.load %arg7[%53, %c0_18] : memref<2062x1xf32, #tpu.memory_space<vmem>>, vector<512x1xf32>
    %c5 = arith.constant 5 : index
    %c0_19 = arith.constant 0 : index
    %c0_20 = arith.constant 0 : index
    %55 = vector.load %arg4[%c5, %c0_19, %c0_20] : memref<15x1x4xf32, #tpu.memory_space<vmem>>, vector<1x1x4xf32>
    %56 = vector.shape_cast %55 : vector<1x1x4xf32> to vector<1x4xf32>
    %57 = vector.broadcast %54 : vector<512x1xf32> to vector<512x4xf32>
    %58 = vector.broadcast %56 : vector<1x4xf32> to vector<512x4xf32>
    %59 = arith.mulf %57, %58 : vector<512x4xf32>
    %60 = arith.addf %51, %59 : vector<512x4xf32>
    %c6_i32 = arith.constant 6 : i32
    %61 = arith.addi %5, %c6_i32 : i32
    %62 = arith.index_cast %61 : i32 to index
    %c0_21 = arith.constant 0 : index
    %63 = vector.load %arg7[%62, %c0_21] : memref<2062x1xf32, #tpu.memory_space<vmem>>, vector<512x1xf32>
    %c6 = arith.constant 6 : index
    %c0_22 = arith.constant 0 : index
    %c0_23 = arith.constant 0 : index
    %64 = vector.load %arg4[%c6, %c0_22, %c0_23] : memref<15x1x4xf32, #tpu.memory_space<vmem>>, vector<1x1x4xf32>
    %65 = vector.shape_cast %64 : vector<1x1x4xf32> to vector<1x4xf32>
    %66 = vector.broadcast %63 : vector<512x1xf32> to vector<512x4xf32>
    %67 = vector.broadcast %65 : vector<1x4xf32> to vector<512x4xf32>
    %68 = arith.mulf %66, %67 : vector<512x4xf32>
    %69 = arith.addf %60, %68 : vector<512x4xf32>
    %c7_i32 = arith.constant 7 : i32
    %70 = arith.addi %5, %c7_i32 : i32
    %71 = arith.index_cast %70 : i32 to index
    %c0_24 = arith.constant 0 : index
    %72 = vector.load %arg7[%71, %c0_24] : memref<2062x1xf32, #tpu.memory_space<vmem>>, vector<512x1xf32>
    %c7 = arith.constant 7 : index
    %c0_25 = arith.constant 0 : index
    %c0_26 = arith.constant 0 : index
    %73 = vector.load %arg4[%c7, %c0_25, %c0_26] : memref<15x1x4xf32, #tpu.memory_space<vmem>>, vector<1x1x4xf32>
    %74 = vector.shape_cast %73 : vector<1x1x4xf32> to vector<1x4xf32>
    %75 = vector.broadcast %72 : vector<512x1xf32> to vector<512x4xf32>
    %76 = vector.broadcast %74 : vector<1x4xf32> to vector<512x4xf32>
    %77 = arith.mulf %75, %76 : vector<512x4xf32>
    %78 = arith.addf %69, %77 : vector<512x4xf32>
    %c8_i32 = arith.constant 8 : i32
    %79 = arith.addi %5, %c8_i32 : i32
    %80 = arith.index_cast %79 : i32 to index
    %c0_27 = arith.constant 0 : index
    %81 = vector.load %arg7[%80, %c0_27] : memref<2062x1xf32, #tpu.memory_space<vmem>>, vector<512x1xf32>
    %c8 = arith.constant 8 : index
    %c0_28 = arith.constant 0 : index
    %c0_29 = arith.constant 0 : index
    %82 = vector.load %arg4[%c8, %c0_28, %c0_29] : memref<15x1x4xf32, #tpu.memory_space<vmem>>, vector<1x1x4xf32>
    %83 = vector.shape_cast %82 : vector<1x1x4xf32> to vector<1x4xf32>
    %84 = vector.broadcast %81 : vector<512x1xf32> to vector<512x4xf32>
    %85 = vector.broadcast %83 : vector<1x4xf32> to vector<512x4xf32>
    %86 = arith.mulf %84, %85 : vector<512x4xf32>
    %87 = arith.addf %78, %86 : vector<512x4xf32>
    %c9_i32 = arith.constant 9 : i32
    %88 = arith.addi %5, %c9_i32 : i32
    %89 = arith.index_cast %88 : i32 to index
    %c0_30 = arith.constant 0 : index
    %90 = vector.load %arg7[%89, %c0_30] : memref<2062x1xf32, #tpu.memory_space<vmem>>, vector<512x1xf32>
    %c9 = arith.constant 9 : index
    %c0_31 = arith.constant 0 : index
    %c0_32 = arith.constant 0 : index
    %91 = vector.load %arg4[%c9, %c0_31, %c0_32] : memref<15x1x4xf32, #tpu.memory_space<vmem>>, vector<1x1x4xf32>
    %92 = vector.shape_cast %91 : vector<1x1x4xf32> to vector<1x4xf32>
    %93 = vector.broadcast %90 : vector<512x1xf32> to vector<512x4xf32>
    %94 = vector.broadcast %92 : vector<1x4xf32> to vector<512x4xf32>
    %95 = arith.mulf %93, %94 : vector<512x4xf32>
    %96 = arith.addf %87, %95 : vector<512x4xf32>
    %c10_i32 = arith.constant 10 : i32
    %97 = arith.addi %5, %c10_i32 : i32
    %98 = arith.index_cast %97 : i32 to index
    %c0_33 = arith.constant 0 : index
    %99 = vector.load %arg7[%98, %c0_33] : memref<2062x1xf32, #tpu.memory_space<vmem>>, vector<512x1xf32>
    %c10 = arith.constant 10 : index
    %c0_34 = arith.constant 0 : index
    %c0_35 = arith.constant 0 : index
    %100 = vector.load %arg4[%c10, %c0_34, %c0_35] : memref<15x1x4xf32, #tpu.memory_space<vmem>>, vector<1x1x4xf32>
    %101 = vector.shape_cast %100 : vector<1x1x4xf32> to vector<1x4xf32>
    %102 = vector.broadcast %99 : vector<512x1xf32> to vector<512x4xf32>
    %103 = vector.broadcast %101 : vector<1x4xf32> to vector<512x4xf32>
    %104 = arith.mulf %102, %103 : vector<512x4xf32>
    %105 = arith.addf %96, %104 : vector<512x4xf32>
    %c11_i32 = arith.constant 11 : i32
    %106 = arith.addi %5, %c11_i32 : i32
    %107 = arith.index_cast %106 : i32 to index
    %c0_36 = arith.constant 0 : index
    %108 = vector.load %arg7[%107, %c0_36] : memref<2062x1xf32, #tpu.memory_space<vmem>>, vector<512x1xf32>
    %c11 = arith.constant 11 : index
    %c0_37 = arith.constant 0 : index
    %c0_38 = arith.constant 0 : index
    %109 = vector.load %arg4[%c11, %c0_37, %c0_38] : memref<15x1x4xf32, #tpu.memory_space<vmem>>, vector<1x1x4xf32>
    %110 = vector.shape_cast %109 : vector<1x1x4xf32> to vector<1x4xf32>
    %111 = vector.broadcast %108 : vector<512x1xf32> to vector<512x4xf32>
    %112 = vector.broadcast %110 : vector<1x4xf32> to vector<512x4xf32>
    %113 = arith.mulf %111, %112 : vector<512x4xf32>
    %114 = arith.addf %105, %113 : vector<512x4xf32>
    %c12_i32 = arith.constant 12 : i32
    %115 = arith.addi %5, %c12_i32 : i32
    %116 = arith.index_cast %115 : i32 to index
    %c0_39 = arith.constant 0 : index
    %117 = vector.load %arg7[%116, %c0_39] : memref<2062x1xf32, #tpu.memory_space<vmem>>, vector<512x1xf32>
    %c12 = arith.constant 12 : index
    %c0_40 = arith.constant 0 : index
    %c0_41 = arith.constant 0 : index
    %118 = vector.load %arg4[%c12, %c0_40, %c0_41] : memref<15x1x4xf32, #tpu.memory_space<vmem>>, vector<1x1x4xf32>
    %119 = vector.shape_cast %118 : vector<1x1x4xf32> to vector<1x4xf32>
    %120 = vector.broadcast %117 : vector<512x1xf32> to vector<512x4xf32>
    %121 = vector.broadcast %119 : vector<1x4xf32> to vector<512x4xf32>
    %122 = arith.mulf %120, %121 : vector<512x4xf32>
    %123 = arith.addf %114, %122 : vector<512x4xf32>
    %c13_i32 = arith.constant 13 : i32
    %124 = arith.addi %5, %c13_i32 : i32
    %125 = arith.index_cast %124 : i32 to index
    %c0_42 = arith.constant 0 : index
    %126 = vector.load %arg7[%125, %c0_42] : memref<2062x1xf32, #tpu.memory_space<vmem>>, vector<512x1xf32>
    %c13 = arith.constant 13 : index
    %c0_43 = arith.constant 0 : index
    %c0_44 = arith.constant 0 : index
    %127 = vector.load %arg4[%c13, %c0_43, %c0_44] : memref<15x1x4xf32, #tpu.memory_space<vmem>>, vector<1x1x4xf32>
    %128 = vector.shape_cast %127 : vector<1x1x4xf32> to vector<1x4xf32>
    %129 = vector.broadcast %126 : vector<512x1xf32> to vector<512x4xf32>
    %130 = vector.broadcast %128 : vector<1x4xf32> to vector<512x4xf32>
    %131 = arith.mulf %129, %130 : vector<512x4xf32>
    %132 = arith.addf %123, %131 : vector<512x4xf32>
    %c14_i32 = arith.constant 14 : i32
    %133 = arith.addi %5, %c14_i32 : i32
    %134 = arith.index_cast %133 : i32 to index
    %c0_45 = arith.constant 0 : index
    %135 = vector.load %arg7[%134, %c0_45] : memref<2062x1xf32, #tpu.memory_space<vmem>>, vector<512x1xf32>
    %c14 = arith.constant 14 : index
    %c0_46 = arith.constant 0 : index
    %c0_47 = arith.constant 0 : index
    %136 = vector.load %arg4[%c14, %c0_46, %c0_47] : memref<15x1x4xf32, #tpu.memory_space<vmem>>, vector<1x1x4xf32>
    %137 = vector.shape_cast %136 : vector<1x1x4xf32> to vector<1x4xf32>
    %138 = vector.broadcast %135 : vector<512x1xf32> to vector<512x4xf32>
    %139 = vector.broadcast %137 : vector<1x4xf32> to vector<512x4xf32>
    %140 = arith.mulf %138, %139 : vector<512x4xf32>
    %141 = arith.addf %132, %140 : vector<512x4xf32>
    %c0_48 = arith.constant 0 : index
    %c0_49 = arith.constant 0 : index
    %142 = vector.load %arg5[%c0_48, %c0_49] : memref<1x4xf32, #tpu.memory_space<vmem>>, vector<1x4xf32>
    %143 = vector.broadcast %142 : vector<1x4xf32> to vector<512x4xf32>
    %144 = arith.addf %141, %143 : vector<512x4xf32>
    %145 = tpu.transpose %144, [1, 0] : vector<512x4xf32> -> vector<4x512xf32>
    %c0_50 = arith.constant 0 : index
    %c0_51 = arith.constant 0 : index
    %c0_52 = arith.constant 0 : index
    %146 = vector.load %arg6[%c0_50, %c0_51, %c0_52] : memref<1x4x512xf32, #tpu.memory_space<vmem>>, vector<1x4x512xf32>
    %147 = vector.shape_cast %146 : vector<1x4x512xf32> to vector<4x512xf32>
    %148 = vector.shape_cast %145 : vector<4x512xf32> to vector<1x4x512xf32>
    tpu.vector_store %arg6[%c0_50, %c0_51, %c0_52], %148 {strides = array<i32>} : memref<1x4x512xf32, #tpu.memory_space<vmem>>, vector<1x4x512xf32>,
    return
  }
  func.func @transform_0(%arg0: i32, %arg1: i32, %arg2: i32) -> (i32, i32, i32) {
    %c0_i32 = arith.constant 0 : i32
    %c0_i32_0 = arith.constant 0 : i32
    %c0_i32_1 = arith.constant 0 : i32
    return %arg0, %c0_i32, %c0_i32_0 : i32, i32, i32
  }
  func.func @transform_1(%arg0: i32, %arg1: i32, %arg2: i32) -> (i32, i32, i32) {
    %c0_i32 = arith.constant 0 : i32
    %c0_i32_0 = arith.constant 0 : i32
    %c0_i32_1 = arith.constant 0 : i32
    return %c0_i32, %c0_i32_0, %arg1 : i32, i32, i32
  }
  func.func @transform_2(%arg0: i32, %arg1: i32, %arg2: i32) -> (i32, i32) {
    %c0_i32 = arith.constant 0 : i32
    %c0_i32_0 = arith.constant 0 : i32
    return %c0_i32, %arg1 : i32, i32
  }
  func.func @transform_3(%arg0: i32, %arg1: i32, %arg2: i32) -> (i32, i32, i32) {
    %c0_i32 = arith.constant 0 : i32
    return %arg0, %arg1, %arg2 : i32, i32, i32
  }
}

</mosaic_0001>

<llo_original>
// kernel: tpu_custom_call.1
$region0: #{tpu_custom_call.1}
  #allocation0 [shape = 'u32[]', space=smem, size = 0x4, offset = 0x4, fixed_abs, tag = 'smem constant byte address 0x4 - core index']
  #allocation1 [shape = 'u32[144,128]{1,0:T(1,128)}', space=vmem, size = 0x12000, scoped, tag = 'internal scratch']
  #allocation2 [shape = 'f32[2062,1]{1,0:T(8,128)}', space=vmem, size = 0x102000, scoped, tag = 'scratch operand']
  %s0 = inlined_call_operand.vmem [shape: f32[2,2048,1], index: 0, kind: input, shape index: {}]
  %s1 = inlined_call_operand.vmem [shape: f32[15,1,4], index: 1, kind: input, shape index: {}]
  %s2 = inlined_call_operand.vmem [shape: f32[1,4], index: 2, kind: input, shape index: {}]
  %s3 = inlined_call_operand.hbm [shape: f32[2,4,2048], index: 3, kind: output, shape index: {}]
  %s4 = sld [smem:[#allocation0]]
  $region49: #{tpu_custom_call.1} parent=0
    _
  %s6 = ssub.s32 1, %s4
  %s7 = scalar_select 0, %s6, %s4
  $region1: #{tpu_custom_call.1} parent=0
    #allocation3 [shape = 'u8[16384]{0}', space=vmem, size = 0x4000, scoped, tag = 'output window, operand 0']
    #allocation4 [shape = 's32[2]{0}', space=sflag, size = 0x8, scoped, tag = 'scoped memory for tpu_custom_call.1']
    %8 = vsyncpa [#allocation4], 0
    %s9 = scalar_lea.sflag [#allocation4], 1
    %10 = vsyncpa %s9, 0
    loop: start=0, step=1, limit=10
    $region2: #{tpu_custom_call.1} parent=1 // loop_pre_header
      _
    $region3: #{tpu_custom_call.1} parent=1 // loop_header
      %s12 = sphi 0, %s16
      %p13 = scmp.ge.s32.totalorder %s12, 10
      %s19 = sphi 0, %s38
      %s20 = sphi 0, %s34
      %s21 = sphi 0, %s30
      %s22 = sphi 0, %s19
      %s23 = sphi 0, %s20
      %s24 = sphi 0, %s21
      %s25 = sphi 0, %s22
      %s26 = sphi 0, %s23
      %s27 = sphi 0, %s24
      %s41 = sphi 0, %s43
      %s44 = sphi 0, %s41
      %s45 = sphi 0, %s44
      %s61 = sphi 0, %s45
      %s67 = sphi 0, %s69
      %s70 = sphi 0, %s67
      %s71 = sphi 0, %s70
      %s87 = sphi 0, %s71
      %s93 = sphi 0, %s95
      %s96 = sphi 0, %s93
      %s97 = sphi 0, %s96
      %s113 = sphi 0, %s97
      %s123 = sphi 0, %s125
      %s126 = sphi 0, %s123
      %s127 = sphi 0, %s126
      %s143 = sphi 0, %s127
    $region4: #{tpu_custom_call.1} parent=1 // loop_header_branch
      %15 = sbr.rel (%p13) target = $region8
    $region5: #{tpu_custom_call.1} parent=1 // loop_body
      %s17 = ssub.s32 %s12, 1
      %s18 = ssub.s32 %s12, 2
      %s28 = sadd.s32 1, %s21
      %p29 = scmp.ge.s32.totalorder %s28, 4
      %s30 = scalar_select %p29, 0, %s28
      %s31 = sadd.s32 1, %s20
      %s32 = scalar_select %p29, %s31, %s20
      %p33 = scmp.ge.s32.totalorder %s32, 1
      %s34 = scalar_select %p33, 0, %s32
      %s35 = sadd.s32 1, %s19
      %s36 = scalar_select %p33, %s35, %s19
      %p37 = scmp.ge.s32.totalorder %s36, 2
      %s38 = scalar_select %p37, 0, %s36
      %s39 = ssub.s32 %s19, %s38
      %p40 = scmp.eq.s32.totalorder %s39, 0
      %s42 = sadd.s32 %s41, 1
      %s43 = scalar_select %p40, %s41, %s42
      %p46 = pneg %p40
      %p47 = scmp.eq.s32.totalorder %s12, 7
      %p48 = por %p46, %p47
      %p49 = scmp.ne.s32.totalorder %s41, %s44
      %p50 = scmp.eq.s32.totalorder %s12, 0
      %p51 = por %p49, %p50
      %p52 = scmp.ne.s32.totalorder %s41, %s44
      %p53 = scmp.eq.s32.totalorder %s17, 7
      %p54 = por %p52, %p53
      %p55 = scmp.ne.s32.totalorder %s44, %s45
      %p56 = scmp.eq.s32.totalorder %s17, 0
      %p57 = por %p55, %p56
      %p58 = scmp.ne.s32.totalorder %s44, %s45
      %p59 = scmp.eq.s32.totalorder %s18, 7
      %p60 = por %p58, %p59
      %p62 = scmp.ne.s32.totalorder %s45, %s61
      %p63 = scmp.eq.s32.totalorder %s18, 0
      %p64 = por %p62, %p63
      %s65 = ssub.s32 %s20, %s34
      %p66 = scmp.eq.s32.totalorder %s65, 0
      %s68 = sadd.s32 %s67, 1
      %s69 = scalar_select %p66, %s67, %s68
      %p72 = pneg %p66
      %p73 = scmp.eq.s32.totalorder %s12, 7
      %p74 = por %p72, %p73
      %p75 = scmp.ne.s32.totalorder %s67, %s70
      %p76 = scmp.eq.s32.totalorder %s12, 0
      %p77 = por %p75, %p76
      %p78 = scmp.ne.s32.totalorder %s67, %s70
      %p79 = scmp.eq.s32.totalorder %s17, 7
      %p80 = por %p78, %p79
      %p81 = scmp.ne.s32.totalorder %s70, %s71
      %p82 = scmp.eq.s32.totalorder %s17, 0
      %p83 = por %p81, %p82
      %p84 = scmp.ne.s32.totalorder %s70, %s71
      %p85 = scmp.eq.s32.totalorder %s18, 7
      %p86 = por %p84, %p85
      %p88 = scmp.ne.s32.totalorder %s71, %s87
      %p89 = scmp.eq.s32.totalorder %s18, 0
      %p90 = por %p88, %p89
      %s91 = ssub.s32 %s20, %s34
      %p92 = scmp.eq.s32.totalorder %s91, 0
      %s94 = sadd.s32 %s93, 1
      %s95 = scalar_select %p92, %s93, %s94
      %p98 = pneg %p92
      %p99 = scmp.eq.s32.totalorder %s12, 7
      %p100 = por %p98, %p99
      %p101 = scmp.ne.s32.totalorder %s93, %s96
      %p102 = scmp.eq.s32.totalorder %s12, 0
      %p103 = por %p101, %p102
      %p104 = scmp.ne.s32.totalorder %s93, %s96
      %p105 = scmp.eq.s32.totalorder %s17, 7
      %p106 = por %p104, %p105
      %p107 = scmp.ne.s32.totalorder %s96, %s97
      %p108 = scmp.eq.s32.totalorder %s17, 0
      %p109 = por %p107, %p108
      %p110 = scmp.ne.s32.totalorder %s96, %s97
      %p111 = scmp.eq.s32.totalorder %s18, 7
      %p112 = por %p110, %p111
      %p114 = scmp.ne.s32.totalorder %s97, %s113
      %p115 = scmp.eq.s32.totalorder %s18, 0
      %p116 = por %p114, %p115
      %s117 = ssub.s32 %s19, %s38
      %s118 = ssub.s32 %s20, %s34
      %s119 = sor.u32 %s117, %s118
      %s120 = ssub.s32 %s21, %s30
      %s121 = sor.u32 %s119, %s120
      %p122 = scmp.eq.s32.totalorder %s121, 0
      %s124 = sadd.s32 %s123, 1
      %s125 = scalar_select %p122, %s123, %s124
      %p128 = pneg %p122
      %p129 = scmp.eq.s32.totalorder %s12, 7
      %p130 = por %p128, %p129
      %p131 = scmp.ne.s32.totalorder %s123, %s126
      %p132 = scmp.eq.s32.totalorder %s12, 0
      %p133 = por %p131, %p132
      %p134 = scmp.ne.s32.totalorder %s123, %s126
      %p135 = scmp.eq.s32.totalorder %s17, 7
      %p136 = por %p134, %p135
      %p137 = scmp.ne.s32.totalorder %s126, %s127
      %p138 = scmp.eq.s32.totalorder %s17, 0
      %p139 = por %p137, %p138
      %p140 = scmp.ne.s32.totalorder %s126, %s127
      %p141 = scmp.eq.s32.totalorder %s18, 7
      %p142 = por %p140, %p141
      %p144 = scmp.ne.s32.totalorder %s127, %s143
      %p145 = scmp.eq.s32.totalorder %s18, 0
      %p146 = por %p144, %p145
      %p147 = scmp.le.s32.totalorder 1, %s12
      %p148 = scmp.lt.s32.totalorder %s12, 9
      %p149 = pnand %p147, %p148
      %p150 = pneg %p149
      // Predicated region
      $region9: #{tpu_custom_call.1} parent=5 // pred_check
        _
      $region10: #{tpu_custom_call.1} parent=5 // pred_check_branch
        %152 = sbr.rel (%p149) target = $region12
      $region11: #{tpu_custom_call.1} parent=5 // pred_region
        %s153 = ssub.s32 %s12, 1
        // Predicated region
        $region13: #{tpu_custom_call.1} parent=11 // pred_check
          %p154 = pneg %p83
        $region14: #{tpu_custom_call.1} parent=11 // pred_check_branch
          %156 = sbr.rel (%p154) target = $region16
        $region15: #{tpu_custom_call.1} parent=11 // pred_region
          %p157 = scmp.lt.s32.totalorder %s23, 0
          %s158 = scalar_select %p157, %s23, 0
          %s159 = scalar_lea.vmem %s1, %s158
        $region16: #{tpu_custom_call.1} parent=11 // pred_fallthru
          _
        // Predicated region
        $region17: #{tpu_custom_call.1} parent=11 // pred_check
          %p160 = pneg %p109
        $region18: #{tpu_custom_call.1} parent=11 // pred_check_branch
          %162 = sbr.rel (%p160) target = $region20
        $region19: #{tpu_custom_call.1} parent=11 // pred_region
          %p163 = scmp.lt.s32.totalorder %s23, 0
          %s164 = scalar_select %p163, %s23, 0
          %s165 = scalar_lea.vmem %s2, %s164
        $region20: #{tpu_custom_call.1} parent=11 // pred_fallthru
          _
      $region12: #{tpu_custom_call.1} parent=5 // pred_fallthru
        _
      %p166 = scmp.lt.s32.totalorder %s12, 8
      // Predicated region
      $region21: #{tpu_custom_call.1} parent=5 // pred_check
        %p167 = pneg %p166
      $region22: #{tpu_custom_call.1} parent=5 // pred_check_branch
        %169 = sbr.rel (%p167) target = $region24
      $region23: #{tpu_custom_call.1} parent=5 // pred_region
        // Predicated region
        $region25: #{tpu_custom_call.1} parent=23 // pred_check
          %p170 = pneg %p51
        $region26: #{tpu_custom_call.1} parent=23 // pred_check_branch
          %172 = sbr.rel (%p170) target = $region28
        $region27: #{tpu_custom_call.1} parent=23 // pred_region
          %p173 = scmp.lt.s32.totalorder %s19, 1
          %s174 = scalar_select %p173, %s19, 1
          %s175 = smul.addr %s174, 256
          %s176 = smul.addr %s175, 8
          %s177 = scalar_lea.vmem %s0, %s176
        $region28: #{tpu_custom_call.1} parent=23 // pred_fallthru
          _
      $region24: #{tpu_custom_call.1} parent=5 // pred_fallthru
        _
      %p178 = scmp.le.s32.totalorder 1, %s12
      %p179 = scmp.lt.s32.totalorder %s12, 9
      %p180 = pnand %p178, %p179
      %p181 = pneg %p180
      // Predicated region
      $region29: #{tpu_custom_call.1} parent=5 // pred_check
        _
      $region30: #{tpu_custom_call.1} parent=5 // pred_check_branch
        %183 = sbr.rel (%p180) target = $region32
      $region31: #{tpu_custom_call.1} parent=5 // pred_region
        %s184 = ssub.s32 %s12, 1
        %p185 = scmp.lt.s32.totalorder %s22, 1
        %s186 = scalar_select %p185, %s22, 1
        %s187 = smul.addr %s186, 256
        %s188 = smul.addr %s187, 8
        %s189 = scalar_lea.vmem %s0, %s188
        %p190 = pneg %p57
        %p191 = pneg %p54
        %p192 = scmp.lt.s32.totalorder %s23, 0
        %s193 = scalar_select %p192, %s23, 0
        %s194 = scalar_lea.vmem %s1, %s193
        %p195 = pneg %p83
        %p196 = pneg %p80
        %p197 = scmp.lt.s32.totalorder %s23, 0
        %s198 = scalar_select %p197, %s23, 0
        %s199 = scalar_lea.vmem %s2, %s198
        %p200 = pneg %p109
        %p201 = pneg %p106
        %p202 = pneg %p139
        %p203 = pneg %p136
        %s204 = sand.u32 %s126, 1
        %s205 = scalar_lea.sflag [#allocation4], %s204
        %s206 = sand.u32 %s126, 1
        %s207 = smul.addr %s206, 16
        %s208 = scalar_lea.vmem [#allocation3], %s207
        %p209 = scmp.lt.s32.totalorder %s22, 1
        %s210 = scalar_select %p209, %s22, 1
        %s211 = smul.addr %s210, 256
        %s212 = smul.addr %s211, 8
        %s213 = scalar_lea.vmem %s0, %s212
        %p214 = scmp.lt.s32.totalorder %s23, 0
        %s215 = scalar_select %p214, %s23, 0
        %s216 = scalar_lea.vmem %s1, %s215
        %p217 = scmp.lt.s32.totalorder %s23, 0
        %s218 = scalar_select %p217, %s23, 0
        %s219 = scalar_lea.vmem %s2, %s218
        %s220 = smul.u32 4, %s24
        %p221 = scmp.eq.s32.totalorder %s23, 0
        %p222 = scmp.eq.s32.totalorder %s24, 0
        %p223 = pnand %p221, %p222
        %p224 = pneg %p223
        // Predicated region
        $region33: #{tpu_custom_call.1} parent=31 // pred_check
          _
        $region34: #{tpu_custom_call.1} parent=31 // pred_check_branch
          %226 = sbr.rel (%p223) target = $region36
        $region35: #{tpu_custom_call.1} parent=31 // pred_region
          %v227 = vld [vmem:[%s213] sm:$0xff]
          %v228 = vld [vmem:[%s213 + $0x8] sm:$0xff]
          %v229 = vld [vmem:[%s213 + $0x10] sm:$0xff]
          %v230 = vld [vmem:[%s213 + $0x18] sm:$0xff]
          %v231 = vld [vmem:[%s213 + $0x20] sm:$0xff]
          %v232 = vld [vmem:[%s213 + $0x28] sm:$0xff]
          %v233 = vld [vmem:[%s213 + $0x30] sm:$0xff]
          %v234 = vld [vmem:[%s213 + $0x38] sm:$0xff]
          %v235 = vld [vmem:[%s213 + $0x40] sm:$0xff]
          %v236 = vld [vmem:[%s213 + $0x48] sm:$0xff]
          %v237 = vld [vmem:[%s213 + $0x50] sm:$0xff]
          %v238 = vld [vmem:[%s213 + $0x58] sm:$0xff]
          %v239 = vld [vmem:[%s213 + $0x60] sm:$0xff]
          %v240 = vld [vmem:[%s213 + $0x68] sm:$0xff]
          %v241 = vld [vmem:[%s213 + $0x70] sm:$0xff]
          %v242 = vld [vmem:[%s213 + $0x78] sm:$0xff]
          %v243 = vld [vmem:[%s213 + $0x80] sm:$0xff]
          %v244 = vld [vmem:[%s213 + $0x88] sm:$0xff]
          %v245 = vld [vmem:[%s213 + $0x90] sm:$0xff]
          %v246 = vld [vmem:[%s213 + $0x98] sm:$0xff]
          %v247 = vld [vmem:[%s213 + $0xa0] sm:$0xff]
          %v248 = vld [vmem:[%s213 + $0xa8] sm:$0xff]
          %v249 = vld [vmem:[%s213 + $0xb0] sm:$0xff]
          %v250 = vld [vmem:[%s213 + $0xb8] sm:$0xff]
          %v251 = vld [vmem:[%s213 + $0xc0] sm:$0xff]
          %v252 = vld [vmem:[%s213 + $0xc8] sm:$0xff]
          %v253 = vld [vmem:[%s213 + $0xd0] sm:$0xff]
          %v254 = vld [vmem:[%s213 + $0xd8] sm:$0xff]
          %v255 = vld [vmem:[%s213 + $0xe0] sm:$0xff]
          %v256 = vld [vmem:[%s213 + $0xe8] sm:$0xff]
          %v257 = vld [vmem:[%s213 + $0xf0] sm:$0xff]
          %v258 = vld [vmem:[%s213 + $0xf8] sm:$0xff]
          %v259 = vld [vmem:[%s213 + $0x100] sm:$0xff]
          %v260 = vld [vmem:[%s213 + $0x108] sm:$0xff]
          %v261 = vld [vmem:[%s213 + $0x110] sm:$0xff]
          %v262 = vld [vmem:[%s213 + $0x118] sm:$0xff]
          %v263 = vld [vmem:[%s213 + $0x120] sm:$0xff]
          %v264 = vld [vmem:[%s213 + $0x128] sm:$0xff]
          %v265 = vld [vmem:[%s213 + $0x130] sm:$0xff]
          %v266 = vld [vmem:[%s213 + $0x138] sm:$0xff]
          %v267 = vld [vmem:[%s213 + $0x140] sm:$0xff]
          %v268 = vld [vmem:[%s213 + $0x148] sm:$0xff]
          %v269 = vld [vmem:[%s213 + $0x150] sm:$0xff]
          %v270 = vld [vmem:[%s213 + $0x158] sm:$0xff]
          %v271 = vld [vmem:[%s213 + $0x160] sm:$0xff]
          %v272 = vld [vmem:[%s213 + $0x168] sm:$0xff]
          %v273 = vld [vmem:[%s213 + $0x170] sm:$0xff]
          %v274 = vld [vmem:[%s213 + $0x178] sm:$0xff]
          %v275 = vld [vmem:[%s213 + $0x180] sm:$0xff]
          %v276 = vld [vmem:[%s213 + $0x188] sm:$0xff]
          %v277 = vld [vmem:[%s213 + $0x190] sm:$0xff]
          %v278 = vld [vmem:[%s213 + $0x198] sm:$0xff]
          %v279 = vld [vmem:[%s213 + $0x1a0] sm:$0xff]
          %v280 = vld [vmem:[%s213 + $0x1a8] sm:$0xff]
          %v281 = vld [vmem:[%s213 + $0x1b0] sm:$0xff]
          %v282 = vld [vmem:[%s213 + $0x1b8] sm:$0xff]
          %v283 = vld [vmem:[%s213 + $0x1c0] sm:$0xff]
          %v284 = vld [vmem:[%s213 + $0x1c8] sm:$0xff]
          %v285 = vld [vmem:[%s213 + $0x1d0] sm:$0xff]
          %v286 = vld [vmem:[%s213 + $0x1d8] sm:$0xff]
          %v287 = vld [vmem:[%s213 + $0x1e0] sm:$0xff]
          %v288 = vld [vmem:[%s213 + $0x1e8] sm:$0xff]
          %v289 = vld [vmem:[%s213 + $0x1f0] sm:$0xff]
          %v290 = vld [vmem:[%s213 + $0x1f8] sm:$0xff]
          %v291 = vld [vmem:[%s213 + $0x200] sm:$0xff]
          %v292 = vld [vmem:[%s213 + $0x208] sm:$0xff]
          %v293 = vld [vmem:[%s213 + $0x210] sm:$0xff]
          %v294 = vld [vmem:[%s213 + $0x218] sm:$0xff]
          %v295 = vld [vmem:[%s213 + $0x220] sm:$0xff]
          %v296 = vld [vmem:[%s213 + $0x228] sm:$0xff]
          %v297 = vld [vmem:[%s213 + $0x230] sm:$0xff]
          %v298 = vld [vmem:[%s213 + $0x238] sm:$0xff]
          %v299 = vld [vmem:[%s213 + $0x240] sm:$0xff]
          %v300 = vld [vmem:[%s213 + $0x248] sm:$0xff]
          %v301 = vld [vmem:[%s213 + $0x250] sm:$0xff]
          %v302 = vld [vmem:[%s213 + $0x258] sm:$0xff]
          %v303 = vld [vmem:[%s213 + $0x260] sm:$0xff]
          %v304 = vld [vmem:[%s213 + $0x268] sm:$0xff]
          %v305 = vld [vmem:[%s213 + $0x270] sm:$0xff]
          %v306 = vld [vmem:[%s213 + $0x278] sm:$0xff]
          %v307 = vld [vmem:[%s213 + $0x280] sm:$0xff]
          %v308 = vld [vmem:[%s213 + $0x288] sm:$0xff]
          %v309 = vld [vmem:[%s213 + $0x290] sm:$0xff]
          %v310 = vld [vmem:[%s213 + $0x298] sm:$0xff]
          %v311 = vld [vmem:[%s213 + $0x2a0] sm:$0xff]
          %v312 = vld [vmem:[%s213 + $0x2a8] sm:$0xff]
          %v313 = vld [vmem:[%s213 + $0x2b0] sm:$0xff]
          %v314 = vld [vmem:[%s213 + $0x2b8] sm:$0xff]
          %v315 = vld [vmem:[%s213 + $0x2c0] sm:$0xff]
          %v316 = vld [vmem:[%s213 + $0x2c8] sm:$0xff]
          %v317 = vld [vmem:[%s213 + $0x2d0] sm:$0xff]
          %v318 = vld [vmem:[%s213 + $0x2d8] sm:$0xff]
          %v319 = vld [vmem:[%s213 + $0x2e0] sm:$0xff]
          %v320 = vld [vmem:[%s213 + $0x2e8] sm:$0xff]
          %v321 = vld [vmem:[%s213 + $0x2f0] sm:$0xff]
          %v322 = vld [vmem:[%s213 + $0x2f8] sm:$0xff]
          %v323 = vld [vmem:[%s213 + $0x300] sm:$0xff]
          %v324 = vld [vmem:[%s213 + $0x308] sm:$0xff]
          %v325 = vld [vmem:[%s213 + $0x310] sm:$0xff]
          %v326 = vld [vmem:[%s213 + $0x318] sm:$0xff]
          %v327 = vld [vmem:[%s213 + $0x320] sm:$0xff]
          %v328 = vld [vmem:[%s213 + $0x328] sm:$0xff]
          %v329 = vld [vmem:[%s213 + $0x330] sm:$0xff]
          %v330 = vld [vmem:[%s213 + $0x338] sm:$0xff]
          %v331 = vld [vmem:[%s213 + $0x340] sm:$0xff]
          %v332 = vld [vmem:[%s213 + $0x348] sm:$0xff]
          %v333 = vld [vmem:[%s213 + $0x350] sm:$0xff]
          %v334 = vld [vmem:[%s213 + $0x358] sm:$0xff]
          %v335 = vld [vmem:[%s213 + $0x360] sm:$0xff]
          %v336 = vld [vmem:[%s213 + $0x368] sm:$0xff]
          %v337 = vld [vmem:[%s213 + $0x370] sm:$0xff]
          %v338 = vld [vmem:[%s213 + $0x378] sm:$0xff]
          %v339 = vld [vmem:[%s213 + $0x380] sm:$0xff]
          %v340 = vld [vmem:[%s213 + $0x388] sm:$0xff]
          %v341 = vld [vmem:[%s213 + $0x390] sm:$0xff]
          %v342 = vld [vmem:[%s213 + $0x398] sm:$0xff]
          %v343 = vld [vmem:[%s213 + $0x3a0] sm:$0xff]
          %v344 = vld [vmem:[%s213 + $0x3a8] sm:$0xff]
          %v345 = vld [vmem:[%s213 + $0x3b0] sm:$0xff]
          %v346 = vld [vmem:[%s213 + $0x3b8] sm:$0xff]
          %v347 = vld [vmem:[%s213 + $0x3c0] sm:$0xff]
          %v348 = vld [vmem:[%s213 + $0x3c8] sm:$0xff]
          %v349 = vld [vmem:[%s213 + $0x3d0] sm:$0xff]
          %v350 = vld [vmem:[%s213 + $0x3d8] sm:$0xff]
          %v351 = vld [vmem:[%s213 + $0x3e0] sm:$0xff]
          %v352 = vld [vmem:[%s213 + $0x3e8] sm:$0xff]
          %v353 = vld [vmem:[%s213 + $0x3f0] sm:$0xff]
          %v354 = vld [vmem:[%s213 + $0x3f8] sm:$0xff]
          %v355 = vld [vmem:[%s213 + $0x400] sm:$0xff]
          %v356 = vld [vmem:[%s213 + $0x408] sm:$0xff]
          %v357 = vld [vmem:[%s213 + $0x410] sm:$0xff]
          %v358 = vld [vmem:[%s213 + $0x418] sm:$0xff]
          %v359 = vld [vmem:[%s213 + $0x420] sm:$0xff]
          %v360 = vld [vmem:[%s213 + $0x428] sm:$0xff]
          %v361 = vld [vmem:[%s213 + $0x430] sm:$0xff]
          %v362 = vld [vmem:[%s213 + $0x438] sm:$0xff]
          %v363 = vld [vmem:[%s213 + $0x440] sm:$0xff]
          %v364 = vld [vmem:[%s213 + $0x448] sm:$0xff]
          %v365 = vld [vmem:[%s213 + $0x450] sm:$0xff]
          %v366 = vld [vmem:[%s213 + $0x458] sm:$0xff]
          %v367 = vld [vmem:[%s213 + $0x460] sm:$0xff]
          %v368 = vld [vmem:[%s213 + $0x468] sm:$0xff]
          %v369 = vld [vmem:[%s213 + $0x470] sm:$0xff]
          %v370 = vld [vmem:[%s213 + $0x478] sm:$0xff]
          %v371 = vld [vmem:[%s213 + $0x480] sm:$0xff]
          %v372 = vld [vmem:[%s213 + $0x488] sm:$0xff]
          %v373 = vld [vmem:[%s213 + $0x490] sm:$0xff]
          %v374 = vld [vmem:[%s213 + $0x498] sm:$0xff]
          %v375 = vld [vmem:[%s213 + $0x4a0] sm:$0xff]
          %v376 = vld [vmem:[%s213 + $0x4a8] sm:$0xff]
          %v377 = vld [vmem:[%s213 + $0x4b0] sm:$0xff]
          %v378 = vld [vmem:[%s213 + $0x4b8] sm:$0xff]
          %v379 = vld [vmem:[%s213 + $0x4c0] sm:$0xff]
          %v380 = vld [vmem:[%s213 + $0x4c8] sm:$0xff]
          %v381 = vld [vmem:[%s213 + $0x4d0] sm:$0xff]
          %v382 = vld [vmem:[%s213 + $0x4d8] sm:$0xff]
          %v383 = vld [vmem:[%s213 + $0x4e0] sm:$0xff]
          %v384 = vld [vmem:[%s213 + $0x4e8] sm:$0xff]
          %v385 = vld [vmem:[%s213 + $0x4f0] sm:$0xff]
          %v386 = vld [vmem:[%s213 + $0x4f8] sm:$0xff]
          %v387 = vld [vmem:[%s213 + $0x500] sm:$0xff]
          %v388 = vld [vmem:[%s213 + $0x508] sm:$0xff]
          %v389 = vld [vmem:[%s213 + $0x510] sm:$0xff]
          %v390 = vld [vmem:[%s213 + $0x518] sm:$0xff]
          %v391 = vld [vmem:[%s213 + $0x520] sm:$0xff]
          %v392 = vld [vmem:[%s213 + $0x528] sm:$0xff]
          %v393 = vld [vmem:[%s213 + $0x530] sm:$0xff]
          %v394 = vld [vmem:[%s213 + $0x538] sm:$0xff]
          %v395 = vld [vmem:[%s213 + $0x540] sm:$0xff]
          %v396 = vld [vmem:[%s213 + $0x548] sm:$0xff]
          %v397 = vld [vmem:[%s213 + $0x550] sm:$0xff]
          %v398 = vld [vmem:[%s213 + $0x558] sm:$0xff]
          %v399 = vld [vmem:[%s213 + $0x560] sm:$0xff]
          %v400 = vld [vmem:[%s213 + $0x568] sm:$0xff]
          %v401 = vld [vmem:[%s213 + $0x570] sm:$0xff]
          %v402 = vld [vmem:[%s213 + $0x578] sm:$0xff]
          %v403 = vld [vmem:[%s213 + $0x580] sm:$0xff]
          %v404 = vld [vmem:[%s213 + $0x588] sm:$0xff]
          %v405 = vld [vmem:[%s213 + $0x590] sm:$0xff]
          %v406 = vld [vmem:[%s213 + $0x598] sm:$0xff]
          %v407 = vld [vmem:[%s213 + $0x5a0] sm:$0xff]
          %v408 = vld [vmem:[%s213 + $0x5a8] sm:$0xff]
          %v409 = vld [vmem:[%s213 + $0x5b0] sm:$0xff]
          %v410 = vld [vmem:[%s213 + $0x5b8] sm:$0xff]
          %v411 = vld [vmem:[%s213 + $0x5c0] sm:$0xff]
          %v412 = vld [vmem:[%s213 + $0x5c8] sm:$0xff]
          %v413 = vld [vmem:[%s213 + $0x5d0] sm:$0xff]
          %v414 = vld [vmem:[%s213 + $0x5d8] sm:$0xff]
          %v415 = vld [vmem:[%s213 + $0x5e0] sm:$0xff]
          %v416 = vld [vmem:[%s213 + $0x5e8] sm:$0xff]
          %v417 = vld [vmem:[%s213 + $0x5f0] sm:$0xff]
          %v418 = vld [vmem:[%s213 + $0x5f8] sm:$0xff]
          %v419 = vld [vmem:[%s213 + $0x600] sm:$0xff]
          %v420 = vld [vmem:[%s213 + $0x608] sm:$0xff]
          %v421 = vld [vmem:[%s213 + $0x610] sm:$0xff]
          %v422 = vld [vmem:[%s213 + $0x618] sm:$0xff]
          %v423 = vld [vmem:[%s213 + $0x620] sm:$0xff]
          %v424 = vld [vmem:[%s213 + $0x628] sm:$0xff]
          %v425 = vld [vmem:[%s213 + $0x630] sm:$0xff]
          %v426 = vld [vmem:[%s213 + $0x638] sm:$0xff]
          %v427 = vld [vmem:[%s213 + $0x640] sm:$0xff]
          %v428 = vld [vmem:[%s213 + $0x648] sm:$0xff]
          %v429 = vld [vmem:[%s213 + $0x650] sm:$0xff]
          %v430 = vld [vmem:[%s213 + $0x658] sm:$0xff]
          %v431 = vld [vmem:[%s213 + $0x660] sm:$0xff]
          %v432 = vld [vmem:[%s213 + $0x668] sm:$0xff]
          %v433 = vld [vmem:[%s213 + $0x670] sm:$0xff]
          %v434 = vld [vmem:[%s213 + $0x678] sm:$0xff]
          %v435 = vld [vmem:[%s213 + $0x680] sm:$0xff]
          %v436 = vld [vmem:[%s213 + $0x688] sm:$0xff]
          %v437 = vld [vmem:[%s213 + $0x690] sm:$0xff]
          %v438 = vld [vmem:[%s213 + $0x698] sm:$0xff]
          %v439 = vld [vmem:[%s213 + $0x6a0] sm:$0xff]
          %v440 = vld [vmem:[%s213 + $0x6a8] sm:$0xff]
          %v441 = vld [vmem:[%s213 + $0x6b0] sm:$0xff]
          %v442 = vld [vmem:[%s213 + $0x6b8] sm:$0xff]
          %v443 = vld [vmem:[%s213 + $0x6c0] sm:$0xff]
          %v444 = vld [vmem:[%s213 + $0x6c8] sm:$0xff]
          %v445 = vld [vmem:[%s213 + $0x6d0] sm:$0xff]
          %v446 = vld [vmem:[%s213 + $0x6d8] sm:$0xff]
          %v447 = vld [vmem:[%s213 + $0x6e0] sm:$0xff]
          %v448 = vld [vmem:[%s213 + $0x6e8] sm:$0xff]
          %v449 = vld [vmem:[%s213 + $0x6f0] sm:$0xff]
          %v450 = vld [vmem:[%s213 + $0x6f8] sm:$0xff]
          %v451 = vld [vmem:[%s213 + $0x700] sm:$0xff]
          %v452 = vld [vmem:[%s213 + $0x708] sm:$0xff]
          %v453 = vld [vmem:[%s213 + $0x710] sm:$0xff]
          %v454 = vld [vmem:[%s213 + $0x718] sm:$0xff]
          %v455 = vld [vmem:[%s213 + $0x720] sm:$0xff]
          %v456 = vld [vmem:[%s213 + $0x728] sm:$0xff]
          %v457 = vld [vmem:[%s213 + $0x730] sm:$0xff]
          %v458 = vld [vmem:[%s213 + $0x738] sm:$0xff]
          %v459 = vld [vmem:[%s213 + $0x740] sm:$0xff]
          %v460 = vld [vmem:[%s213 + $0x748] sm:$0xff]
          %v461 = vld [vmem:[%s213 + $0x750] sm:$0xff]
          %v462 = vld [vmem:[%s213 + $0x758] sm:$0xff]
          %v463 = vld [vmem:[%s213 + $0x760] sm:$0xff]
          %v464 = vld [vmem:[%s213 + $0x768] sm:$0xff]
          %v465 = vld [vmem:[%s213 + $0x770] sm:$0xff]
          %v466 = vld [vmem:[%s213 + $0x778] sm:$0xff]
          %v467 = vld [vmem:[%s213 + $0x780] sm:$0xff]
          %v468 = vld [vmem:[%s213 + $0x788] sm:$0xff]
          %v469 = vld [vmem:[%s213 + $0x790] sm:$0xff]
          %v470 = vld [vmem:[%s213 + $0x798] sm:$0xff]
          %v471 = vld [vmem:[%s213 + $0x7a0] sm:$0xff]
          %v472 = vld [vmem:[%s213 + $0x7a8] sm:$0xff]
          %v473 = vld [vmem:[%s213 + $0x7b0] sm:$0xff]
          %v474 = vld [vmem:[%s213 + $0x7b8] sm:$0xff]
          %v475 = vld [vmem:[%s213 + $0x7c0] sm:$0xff]
          %v476 = vld [vmem:[%s213 + $0x7c8] sm:$0xff]
          %v477 = vld [vmem:[%s213 + $0x7d0] sm:$0xff]
          %v478 = vld [vmem:[%s213 + $0x7d8] sm:$0xff]
          %v479 = vld [vmem:[%s213 + $0x7e0] sm:$0xff]
          %v480 = vld [vmem:[%s213 + $0x7e8] sm:$0xff]
          %v481 = vld [vmem:[%s213 + $0x7f0] sm:$0xff]
          %v482 = vld [vmem:[%s213 + $0x7f8] sm:$0xff]
          %vm483 = vcmask 6144
          %484 = vst.msk [vmem:[#allocation2] sm:$0x7f] %vm483, 0.0
          %485 = vst.msk [vmem:[#allocation2 + $0x807] sm:$0x7f] %vm483, 0.0
          %vm486 = vcmask 7168
          %487 = vst.msk [vmem:[#allocation2 + $0x7] sm:$0xff] %vm486, %v227
          %488 = vst.msk [vmem:[#allocation2 + $0xf] sm:$0xff] %vm486, %v228
          %489 = vst.msk [vmem:[#allocation2 + $0x17] sm:$0xff] %vm486, %v229
          %490 = vst.msk [vmem:[#allocation2 + $0x1f] sm:$0xff] %vm486, %v230
          %491 = vst.msk [vmem:[#allocation2 + $0x27] sm:$0xff] %vm486, %v231
          %492 = vst.msk [vmem:[#allocation2 + $0x2f] sm:$0xff] %vm486, %v232
          %493 = vst.msk [vmem:[#allocation2 + $0x37] sm:$0xff] %vm486, %v233
          %494 = vst.msk [vmem:[#allocation2 + $0x3f] sm:$0xff] %vm486, %v234
          %495 = vst.msk [vmem:[#allocation2 + $0x47] sm:$0xff] %vm486, %v235
          %496 = vst.msk [vmem:[#allocation2 + $0x4f] sm:$0xff] %vm486, %v236
          %497 = vst.msk [vmem:[#allocation2 + $0x57] sm:$0xff] %vm486, %v237
          %498 = vst.msk [vmem:[#allocation2 + $0x5f] sm:$0xff] %vm486, %v238
          %499 = vst.msk [vmem:[#allocation2 + $0x67] sm:$0xff] %vm486, %v239
          %500 = vst.msk [vmem:[#allocation2 + $0x6f] sm:$0xff] %vm486, %v240
          %501 = vst.msk [vmem:[#allocation2 + $0x77] sm:$0xff] %vm486, %v241
          %502 = vst.msk [vmem:[#allocation2 + $0x7f] sm:$0xff] %vm486, %v242
          %503 = vst.msk [vmem:[#allocation2 + $0x87] sm:$0xff] %vm486, %v243
          %504 = vst.msk [vmem:[#allocation2 + $0x8f] sm:$0xff] %vm486, %v244
          %505 = vst.msk [vmem:[#allocation2 + $0x97] sm:$0xff] %vm486, %v245
          %506 = vst.msk [vmem:[#allocation2 + $0x9f] sm:$0xff] %vm486, %v246
          %507 = vst.msk [vmem:[#allocation2 + $0xa7] sm:$0xff] %vm486, %v247
          %508 = vst.msk [vmem:[#allocation2 + $0xaf] sm:$0xff] %vm486, %v248
          %509 = vst.msk [vmem:[#allocation2 + $0xb7] sm:$0xff] %vm486, %v249
          %510 = vst.msk [vmem:[#allocation2 + $0xbf] sm:$0xff] %vm486, %v250
          %511 = vst.msk [vmem:[#allocation2 + $0xc7] sm:$0xff] %vm486, %v251
          %512 = vst.msk [vmem:[#allocation2 + $0xcf] sm:$0xff] %vm486, %v252
          %513 = vst.msk [vmem:[#allocation2 + $0xd7] sm:$0xff] %vm486, %v253
          %514 = vst.msk [vmem:[#allocation2 + $0xdf] sm:$0xff] %vm486, %v254
          %515 = vst.msk [vmem:[#allocation2 + $0xe7] sm:$0xff] %vm486, %v255
          %516 = vst.msk [vmem:[#allocation2 + $0xef] sm:$0xff] %vm486, %v256
          %517 = vst.msk [vmem:[#allocation2 + $0xf7] sm:$0xff] %vm486, %v257
          %518 = vst.msk [vmem:[#allocation2 + $0xff] sm:$0xff] %vm486, %v258
          %519 = vst.msk [vmem:[#allocation2 + $0x107] sm:$0xff] %vm486, %v259
          %520 = vst.msk [vmem:[#allocation2 + $0x10f] sm:$0xff] %vm486, %v260
          %521 = vst.msk [vmem:[#allocation2 + $0x117] sm:$0xff] %vm486, %v261
          %522 = vst.msk [vmem:[#allocation2 + $0x11f] sm:$0xff] %vm486, %v262
          %523 = vst.msk [vmem:[#allocation2 + $0x127] sm:$0xff] %vm486, %v263
          %524 = vst.msk [vmem:[#allocation2 + $0x12f] sm:$0xff] %vm486, %v264
          %525 = vst.msk [vmem:[#allocation2 + $0x137] sm:$0xff] %vm486, %v265
          %526 = vst.msk [vmem:[#allocation2 + $0x13f] sm:$0xff] %vm486, %v266
          %527 = vst.msk [vmem:[#allocation2 + $0x147] sm:$0xff] %vm486, %v267
          %528 = vst.msk [vmem:[#allocation2 + $0x14f] sm:$0xff] %vm486, %v268
          %529 = vst.msk [vmem:[#allocation2 + $0x157] sm:$0xff] %vm486, %v269
          %530 = vst.msk [vmem:[#allocation2 + $0x15f] sm:$0xff] %vm486, %v270
          %531 = vst.msk [vmem:[#allocation2 + $0x167] sm:$0xff] %vm486, %v271
          %532 = vst.msk [vmem:[#allocation2 + $0x16f] sm:$0xff] %vm486, %v272
          %533 = vst.msk [vmem:[#allocation2 + $0x177] sm:$0xff] %vm486, %v273
          %534 = vst.msk [vmem:[#allocation2 + $0x17f] sm:$0xff] %vm486, %v274
          %535 = vst.msk [vmem:[#allocation2 + $0x187] sm:$0xff] %vm486, %v275
          %536 = vst.msk [vmem:[#allocation2 + $0x18f] sm:$0xff] %vm486, %v276
          %537 = vst.msk [vmem:[#allocation2 + $0x197] sm:$0xff] %vm486, %v277
          %538 = vst.msk [vmem:[#allocation2 + $0x19f] sm:$0xff] %vm486, %v278
          %539 = vst.msk [vmem:[#allocation2 + $0x1a7] sm:$0xff] %vm486, %v279
          %540 = vst.msk [vmem:[#allocation2 + $0x1af] sm:$0xff] %vm486, %v280
          %541 = vst.msk [vmem:[#allocation2 + $0x1b7] sm:$0xff] %vm486, %v281
          %542 = vst.msk [vmem:[#allocation2 + $0x1bf] sm:$0xff] %vm486, %v282
          %543 = vst.msk [vmem:[#allocation2 + $0x1c7] sm:$0xff] %vm486, %v283
          %544 = vst.msk [vmem:[#allocation2 + $0x1cf] sm:$0xff] %vm486, %v284
          %545 = vst.msk [vmem:[#allocation2 + $0x1d7] sm:$0xff] %vm486, %v285
          %546 = vst.msk [vmem:[#allocation2 + $0x1df] sm:$0xff] %vm486, %v286
          %547 = vst.msk [vmem:[#allocation2 + $0x1e7] sm:$0xff] %vm486, %v287
          %548 = vst.msk [vmem:[#allocation2 + $0x1ef] sm:$0xff] %vm486, %v288
          %549 = vst.msk [vmem:[#allocation2 + $0x1f7] sm:$0xff] %vm486, %v289
          %550 = vst.msk [vmem:[#allocation2 + $0x1ff] sm:$0xff] %vm486, %v290
          %551 = vst.msk [vmem:[#allocation2 + $0x207] sm:$0xff] %vm486, %v291
          %552 = vst.msk [vmem:[#allocation2 + $0x20f] sm:$0xff] %vm486, %v292
          %553 = vst.msk [vmem:[#allocation2 + $0x217] sm:$0xff] %vm486, %v293
          %554 = vst.msk [vmem:[#allocation2 + $0x21f] sm:$0xff] %vm486, %v294
          %555 = vst.msk [vmem:[#allocation2 + $0x227] sm:$0xff] %vm486, %v295
          %556 = vst.msk [vmem:[#allocation2 + $0x22f] sm:$0xff] %vm486, %v296
          %557 = vst.msk [vmem:[#allocation2 + $0x237] sm:$0xff] %vm486, %v297
          %558 = vst.msk [vmem:[#allocation2 + $0x23f] sm:$0xff] %vm486, %v298
          %559 = vst.msk [vmem:[#allocation2 + $0x247] sm:$0xff] %vm486, %v299
          %560 = vst.msk [vmem:[#allocation2 + $0x24f] sm:$0xff] %vm486, %v300
          %561 = vst.msk [vmem:[#allocation2 + $0x257] sm:$0xff] %vm486, %v301
          %562 = vst.msk [vmem:[#allocation2 + $0x25f] sm:$0xff] %vm486, %v302
          %563 = vst.msk [vmem:[#allocation2 + $0x267] sm:$0xff] %vm486, %v303
          %564 = vst.msk [vmem:[#allocation2 + $0x26f] sm:$0xff] %vm486, %v304
          %565 = vst.msk [vmem:[#allocation2 + $0x277] sm:$0xff] %vm486, %v305
          %566 = vst.msk [vmem:[#allocation2 + $0x27f] sm:$0xff] %vm486, %v306
          %567 = vst.msk [vmem:[#allocation2 + $0x287] sm:$0xff] %vm486, %v307
          %568 = vst.msk [vmem:[#allocation2 + $0x28f] sm:$0xff] %vm486, %v308
          %569 = vst.msk [vmem:[#allocation2 + $0x297] sm:$0xff] %vm486, %v309
          %570 = vst.msk [vmem:[#allocation2 + $0x29f] sm:$0xff] %vm486, %v310
          %571 = vst.msk [vmem:[#allocation2 + $0x2a7] sm:$0xff] %vm486, %v311
          %572 = vst.msk [vmem:[#allocation2 + $0x2af] sm:$0xff] %vm486, %v312
          %573 = vst.msk [vmem:[#allocation2 + $0x2b7] sm:$0xff] %vm486, %v313
          %574 = vst.msk [vmem:[#allocation2 + $0x2bf] sm:$0xff] %vm486, %v314
          %575 = vst.msk [vmem:[#allocation2 + $0x2c7] sm:$0xff] %vm486, %v315
          %576 = vst.msk [vmem:[#allocation2 + $0x2cf] sm:$0xff] %vm486, %v316
          %577 = vst.msk [vmem:[#allocation2 + $0x2d7] sm:$0xff] %vm486, %v317
          %578 = vst.msk [vmem:[#allocation2 + $0x2df] sm:$0xff] %vm486, %v318
          %579 = vst.msk [vmem:[#allocation2 + $0x2e7] sm:$0xff] %vm486, %v319
          %580 = vst.msk [vmem:[#allocation2 + $0x2ef] sm:$0xff] %vm486, %v320
          %581 = vst.msk [vmem:[#allocation2 + $0x2f7] sm:$0xff] %vm486, %v321
          %582 = vst.msk [vmem:[#allocation2 + $0x2ff] sm:$0xff] %vm486, %v322
          %583 = vst.msk [vmem:[#allocation2 + $0x307] sm:$0xff] %vm486, %v323
          %584 = vst.msk [vmem:[#allocation2 + $0x30f] sm:$0xff] %vm486, %v324
          %585 = vst.msk [vmem:[#allocation2 + $0x317] sm:$0xff] %vm486, %v325
          %586 = vst.msk [vmem:[#allocation2 + $0x31f] sm:$0xff] %vm486, %v326
          %587 = vst.msk [vmem:[#allocation2 + $0x327] sm:$0xff] %vm486, %v327
          %588 = vst.msk [vmem:[#allocation2 + $0x32f] sm:$0xff] %vm486, %v328
          %589 = vst.msk [vmem:[#allocation2 + $0x337] sm:$0xff] %vm486, %v329
          %590 = vst.msk [vmem:[#allocation2 + $0x33f] sm:$0xff] %vm486, %v330
          %591 = vst.msk [vmem:[#allocation2 + $0x347] sm:$0xff] %vm486, %v331
          %592 = vst.msk [vmem:[#allocation2 + $0x34f] sm:$0xff] %vm486, %v332
          %593 = vst.msk [vmem:[#allocation2 + $0x357] sm:$0xff] %vm486, %v333
          %594 = vst.msk [vmem:[#allocation2 + $0x35f] sm:$0xff] %vm486, %v334
          %595 = vst.msk [vmem:[#allocation2 + $0x367] sm:$0xff] %vm486, %v335
          %596 = vst.msk [vmem:[#allocation2 + $0x36f] sm:$0xff] %vm486, %v336
          %597 = vst.msk [vmem:[#allocation2 + $0x377] sm:$0xff] %vm486, %v337
          %598 = vst.msk [vmem:[#allocation2 + $0x37f] sm:$0xff] %vm486, %v338
          %599 = vst.msk [vmem:[#allocation2 + $0x387] sm:$0xff] %vm486, %v339
          %600 = vst.msk [vmem:[#allocation2 + $0x38f] sm:$0xff] %vm486, %v340
          %601 = vst.msk [vmem:[#allocation2 + $0x397] sm:$0xff] %vm486, %v341
          %602 = vst.msk [vmem:[#allocation2 + $0x39f] sm:$0xff] %vm486, %v342
          %603 = vst.msk [vmem:[#allocation2 + $0x3a7] sm:$0xff] %vm486, %v343
          %604 = vst.msk [vmem:[#allocation2 + $0x3af] sm:$0xff] %vm486, %v344
          %605 = vst.msk [vmem:[#allocation2 + $0x3b7] sm:$0xff] %vm486, %v345
          %606 = vst.msk [vmem:[#allocation2 + $0x3bf] sm:$0xff] %vm486, %v346
          %607 = vst.msk [vmem:[#allocation2 + $0x3c7] sm:$0xff] %vm486, %v347
          %608 = vst.msk [vmem:[#allocation2 + $0x3cf] sm:$0xff] %vm486, %v348
          %609 = vst.msk [vmem:[#allocation2 + $0x3d7] sm:$0xff] %vm486, %v349
          %610 = vst.msk [vmem:[#allocation2 + $0x3df] sm:$0xff] %vm486, %v350
          %611 = vst.msk [vmem:[#allocation2 + $0x3e7] sm:$0xff] %vm486, %v351
          %612 = vst.msk [vmem:[#allocation2 + $0x3ef] sm:$0xff] %vm486, %v352
          %613 = vst.msk [vmem:[#allocation2 + $0x3f7] sm:$0xff] %vm486, %v353
          %614 = vst.msk [vmem:[#allocation2 + $0x3ff] sm:$0xff] %vm486, %v354
          %615 = vst.msk [vmem:[#allocation2 + $0x407] sm:$0xff] %vm486, %v355
          %616 = vst.msk [vmem:[#allocation2 + $0x40f] sm:$0xff] %vm486, %v356
          %617 = vst.msk [vmem:[#allocation2 + $0x417] sm:$0xff] %vm486, %v357
          %618 = vst.msk [vmem:[#allocation2 + $0x41f] sm:$0xff] %vm486, %v358
          %619 = vst.msk [vmem:[#allocation2 + $0x427] sm:$0xff] %vm486, %v359
          %620 = vst.msk [vmem:[#allocation2 + $0x42f] sm:$0xff] %vm486, %v360
          %621 = vst.msk [vmem:[#allocation2 + $0x437] sm:$0xff] %vm486, %v361
          %622 = vst.msk [vmem:[#allocation2 + $0x43f] sm:$0xff] %vm486, %v362
          %623 = vst.msk [vmem:[#allocation2 + $0x447] sm:$0xff] %vm486, %v363
          %624 = vst.msk [vmem:[#allocation2 + $0x44f] sm:$0xff] %vm486, %v364
          %625 = vst.msk [vmem:[#allocation2 + $0x457] sm:$0xff] %vm486, %v365
          %626 = vst.msk [vmem:[#allocation2 + $0x45f] sm:$0xff] %vm486, %v366
          %627 = vst.msk [vmem:[#allocation2 + $0x467] sm:$0xff] %vm486, %v367
          %628 = vst.msk [vmem:[#allocation2 + $0x46f] sm:$0xff] %vm486, %v368
          %629 = vst.msk [vmem:[#allocation2 + $0x477] sm:$0xff] %vm486, %v369
          %630 = vst.msk [vmem:[#allocation2 + $0x47f] sm:$0xff] %vm486, %v370
          %631 = vst.msk [vmem:[#allocation2 + $0x487] sm:$0xff] %vm486, %v371
          %632 = vst.msk [vmem:[#allocation2 + $0x48f] sm:$0xff] %vm486, %v372
          %633 = vst.msk [vmem:[#allocation2 + $0x497] sm:$0xff] %vm486, %v373
          %634 = vst.msk [vmem:[#allocation2 + $0x49f] sm:$0xff] %vm486, %v374
          %635 = vst.msk [vmem:[#allocation2 + $0x4a7] sm:$0xff] %vm486, %v375
          %636 = vst.msk [vmem:[#allocation2 + $0x4af] sm:$0xff] %vm486, %v376
          %637 = vst.msk [vmem:[#allocation2 + $0x4b7] sm:$0xff] %vm486, %v377
          %638 = vst.msk [vmem:[#allocation2 + $0x4bf] sm:$0xff] %vm486, %v378
          %639 = vst.msk [vmem:[#allocation2 + $0x4c7] sm:$0xff] %vm486, %v379
          %640 = vst.msk [vmem:[#allocation2 + $0x4cf] sm:$0xff] %vm486, %v380
          %641 = vst.msk [vmem:[#allocation2 + $0x4d7] sm:$0xff] %vm486, %v381
          %642 = vst.msk [vmem:[#allocation2 + $0x4df] sm:$0xff] %vm486, %v382
          %643 = vst.msk [vmem:[#allocation2 + $0x4e7] sm:$0xff] %vm486, %v383
          %644 = vst.msk [vmem:[#allocation2 + $0x4ef] sm:$0xff] %vm486, %v384
          %645 = vst.msk [vmem:[#allocation2 + $0x4f7] sm:$0xff] %vm486, %v385
          %646 = vst.msk [vmem:[#allocation2 + $0x4ff] sm:$0xff] %vm486, %v386
          %647 = vst.msk [vmem:[#allocation2 + $0x507] sm:$0xff] %vm486, %v387
          %648 = vst.msk [vmem:[#allocation2 + $0x50f] sm:$0xff] %vm486, %v388
          %649 = vst.msk [vmem:[#allocation2 + $0x517] sm:$0xff] %vm486, %v389
          %650 = vst.msk [vmem:[#allocation2 + $0x51f] sm:$0xff] %vm486, %v390
          %651 = vst.msk [vmem:[#allocation2 + $0x527] sm:$0xff] %vm486, %v391
          %652 = vst.msk [vmem:[#allocation2 + $0x52f] sm:$0xff] %vm486, %v392
          %653 = vst.msk [vmem:[#allocation2 + $0x537] sm:$0xff] %vm486, %v393
          %654 = vst.msk [vmem:[#allocation2 + $0x53f] sm:$0xff] %vm486, %v394
          %655 = vst.msk [vmem:[#allocation2 + $0x547] sm:$0xff] %vm486, %v395
          %656 = vst.msk [vmem:[#allocation2 + $0x54f] sm:$0xff] %vm486, %v396
          %657 = vst.msk [vmem:[#allocation2 + $0x557] sm:$0xff] %vm486, %v397
          %658 = vst.msk [vmem:[#allocation2 + $0x55f] sm:$0xff] %vm486, %v398
          %659 = vst.msk [vmem:[#allocation2 + $0x567] sm:$0xff] %vm486, %v399
          %660 = vst.msk [vmem:[#allocation2 + $0x56f] sm:$0xff] %vm486, %v400
          %661 = vst.msk [vmem:[#allocation2 + $0x577] sm:$0xff] %vm486, %v401
          %662 = vst.msk [vmem:[#allocation2 + $0x57f] sm:$0xff] %vm486, %v402
          %663 = vst.msk [vmem:[#allocation2 + $0x587] sm:$0xff] %vm486, %v403
          %664 = vst.msk [vmem:[#allocation2 + $0x58f] sm:$0xff] %vm486, %v404
          %665 = vst.msk [vmem:[#allocation2 + $0x597] sm:$0xff] %vm486, %v405
          %666 = vst.msk [vmem:[#allocation2 + $0x59f] sm:$0xff] %vm486, %v406
          %667 = vst.msk [vmem:[#allocation2 + $0x5a7] sm:$0xff] %vm486, %v407
          %668 = vst.msk [vmem:[#allocation2 + $0x5af] sm:$0xff] %vm486, %v408
          %669 = vst.msk [vmem:[#allocation2 + $0x5b7] sm:$0xff] %vm486, %v409
          %670 = vst.msk [vmem:[#allocation2 + $0x5bf] sm:$0xff] %vm486, %v410
          %671 = vst.msk [vmem:[#allocation2 + $0x5c7] sm:$0xff] %vm486, %v411
          %672 = vst.msk [vmem:[#allocation2 + $0x5cf] sm:$0xff] %vm486, %v412
          %673 = vst.msk [vmem:[#allocation2 + $0x5d7] sm:$0xff] %vm486, %v413
          %674 = vst.msk [vmem:[#allocation2 + $0x5df] sm:$0xff] %vm486, %v414
          %675 = vst.msk [vmem:[#allocation2 + $0x5e7] sm:$0xff] %vm486, %v415
          %676 = vst.msk [vmem:[#allocation2 + $0x5ef] sm:$0xff] %vm486, %v416
          %677 = vst.msk [vmem:[#allocation2 + $0x5f7] sm:$0xff] %vm486, %v417
          %678 = vst.msk [vmem:[#allocation2 + $0x5ff] sm:$0xff] %vm486, %v418
          %679 = vst.msk [vmem:[#allocation2 + $0x607] sm:$0xff] %vm486, %v419
          %680 = vst.msk [vmem:[#allocation2 + $0x60f] sm:$0xff] %vm486, %v420
          %681 = vst.msk [vmem:[#allocation2 + $0x617] sm:$0xff] %vm486, %v421
          %682 = vst.msk [vmem:[#allocation2 + $0x61f] sm:$0xff] %vm486, %v422
          %683 = vst.msk [vmem:[#allocation2 + $0x627] sm:$0xff] %vm486, %v423
          %684 = vst.msk [vmem:[#allocation2 + $0x62f] sm:$0xff] %vm486, %v424
          %685 = vst.msk [vmem:[#allocation2 + $0x637] sm:$0xff] %vm486, %v425
          %686 = vst.msk [vmem:[#allocation2 + $0x63f] sm:$0xff] %vm486, %v426
          %687 = vst.msk [vmem:[#allocation2 + $0x647] sm:$0xff] %vm486, %v427
          %688 = vst.msk [vmem:[#allocation2 + $0x64f] sm:$0xff] %vm486, %v428
          %689 = vst.msk [vmem:[#allocation2 + $0x657] sm:$0xff] %vm486, %v429
          %690 = vst.msk [vmem:[#allocation2 + $0x65f] sm:$0xff] %vm486, %v430
          %691 = vst.msk [vmem:[#allocation2 + $0x667] sm:$0xff] %vm486, %v431
          %692 = vst.msk [vmem:[#allocation2 + $0x66f] sm:$0xff] %vm486, %v432
          %693 = vst.msk [vmem:[#allocation2 + $0x677] sm:$0xff] %vm486, %v433
          %694 = vst.msk [vmem:[#allocation2 + $0x67f] sm:$0xff] %vm486, %v434
          %695 = vst.msk [vmem:[#allocation2 + $0x687] sm:$0xff] %vm486, %v435
          %696 = vst.msk [vmem:[#allocation2 + $0x68f] sm:$0xff] %vm486, %v436
          %697 = vst.msk [vmem:[#allocation2 + $0x697] sm:$0xff] %vm486, %v437
          %698 = vst.msk [vmem:[#allocation2 + $0x69f] sm:$0xff] %vm486, %v438
          %699 = vst.msk [vmem:[#allocation2 + $0x6a7] sm:$0xff] %vm486, %v439
          %700 = vst.msk [vmem:[#allocation2 + $0x6af] sm:$0xff] %vm486, %v440
          %701 = vst.msk [vmem:[#allocation2 + $0x6b7] sm:$0xff] %vm486, %v441
          %702 = vst.msk [vmem:[#allocation2 + $0x6bf] sm:$0xff] %vm486, %v442
          %703 = vst.msk [vmem:[#allocation2 + $0x6c7] sm:$0xff] %vm486, %v443
          %704 = vst.msk [vmem:[#allocation2 + $0x6cf] sm:$0xff] %vm486, %v444
          %705 = vst.msk [vmem:[#allocation2 + $0x6d7] sm:$0xff] %vm486, %v445
          %706 = vst.msk [vmem:[#allocation2 + $0x6df] sm:$0xff] %vm486, %v446
          %707 = vst.msk [vmem:[#allocation2 + $0x6e7] sm:$0xff] %vm486, %v447
          %708 = vst.msk [vmem:[#allocation2 + $0x6ef] sm:$0xff] %vm486, %v448
          %709 = vst.msk [vmem:[#allocation2 + $0x6f7] sm:$0xff] %vm486, %v449
          %710 = vst.msk [vmem:[#allocation2 + $0x6ff] sm:$0xff] %vm486, %v450
          %711 = vst.msk [vmem:[#allocation2 + $0x707] sm:$0xff] %vm486, %v451
          %712 = vst.msk [vmem:[#allocation2 + $0x70f] sm:$0xff] %vm486, %v452
          %713 = vst.msk [vmem:[#allocation2 + $0x717] sm:$0xff] %vm486, %v453
          %714 = vst.msk [vmem:[#allocation2 + $0x71f] sm:$0xff] %vm486, %v454
          %715 = vst.msk [vmem:[#allocation2 + $0x727] sm:$0xff] %vm486, %v455
          %716 = vst.msk [vmem:[#allocation2 + $0x72f] sm:$0xff] %vm486, %v456
          %717 = vst.msk [vmem:[#allocation2 + $0x737] sm:$0xff] %vm486, %v457
          %718 = vst.msk [vmem:[#allocation2 + $0x73f] sm:$0xff] %vm486, %v458
          %719 = vst.msk [vmem:[#allocation2 + $0x747] sm:$0xff] %vm486, %v459
          %720 = vst.msk [vmem:[#allocation2 + $0x74f] sm:$0xff] %vm486, %v460
          %721 = vst.msk [vmem:[#allocation2 + $0x757] sm:$0xff] %vm486, %v461
          %722 = vst.msk [vmem:[#allocation2 + $0x75f] sm:$0xff] %vm486, %v462
          %723 = vst.msk [vmem:[#allocation2 + $0x767] sm:$0xff] %vm486, %v463
          %724 = vst.msk [vmem:[#allocation2 + $0x76f] sm:$0xff] %vm486, %v464
          %725 = vst.msk [vmem:[#allocation2 + $0x777] sm:$0xff] %vm486, %v465
          %726 = vst.msk [vmem:[#allocation2 + $0x77f] sm:$0xff] %vm486, %v466
          %727 = vst.msk [vmem:[#allocation2 + $0x787] sm:$0xff] %vm486, %v467
          %728 = vst.msk [vmem:[#allocation2 + $0x78f] sm:$0xff] %vm486, %v468
          %729 = vst.msk [vmem:[#allocation2 + $0x797] sm:$0xff] %vm486, %v469
          %730 = vst.msk [vmem:[#allocation2 + $0x79f] sm:$0xff] %vm486, %v470
          %731 = vst.msk [vmem:[#allocation2 + $0x7a7] sm:$0xff] %vm486, %v471
          %732 = vst.msk [vmem:[#allocation2 + $0x7af] sm:$0xff] %vm486, %v472
          %733 = vst.msk [vmem:[#allocation2 + $0x7b7] sm:$0xff] %vm486, %v473
          %734 = vst.msk [vmem:[#allocation2 + $0x7bf] sm:$0xff] %vm486, %v474
          %735 = vst.msk [vmem:[#allocation2 + $0x7c7] sm:$0xff] %vm486, %v475
          %736 = vst.msk [vmem:[#allocation2 + $0x7cf] sm:$0xff] %vm486, %v476
          %737 = vst.msk [vmem:[#allocation2 + $0x7d7] sm:$0xff] %vm486, %v477
          %738 = vst.msk [vmem:[#allocation2 + $0x7df] sm:$0xff] %vm486, %v478
          %739 = vst.msk [vmem:[#allocation2 + $0x7e7] sm:$0xff] %vm486, %v479
          %740 = vst.msk [vmem:[#allocation2 + $0x7ef] sm:$0xff] %vm486, %v480
          %741 = vst.msk [vmem:[#allocation2 + $0x7f7] sm:$0xff] %vm486, %v481
          %742 = vst.msk [vmem:[#allocation2 + $0x7ff] sm:$0xff] %vm486, %v482
        $region36: #{tpu_custom_call.1} parent=31 // pred_fallthru
          _
        %s743 = smul.u32 %s24, 512
        %s744 = scalar_lea.vmem [#allocation2], %s743
        %v745 = vld [vmem:[%s744] sm:$0xff]
        %v746 = vld [vmem:[%s744 + $0x8] sm:$0xff]
        %v747 = vld [vmem:[%s744 + $0x10] sm:$0xff]
        %v748 = vld [vmem:[%s744 + $0x18] sm:$0xff]
        %v749 = vld [vmem:[%s744 + $0x20] sm:$0xff]
        %v750 = vld [vmem:[%s744 + $0x28] sm:$0xff]
        %v751 = vld [vmem:[%s744 + $0x30] sm:$0xff]
        %v752 = vld [vmem:[%s744 + $0x38] sm:$0xff]
        %v753 = vld [vmem:[%s744 + $0x40] sm:$0xff]
        %v754 = vld [vmem:[%s744 + $0x48] sm:$0xff]
        %v755 = vld [vmem:[%s744 + $0x50] sm:$0xff]
        %v756 = vld [vmem:[%s744 + $0x58] sm:$0xff]
        %v757 = vld [vmem:[%s744 + $0x60] sm:$0xff]
        %v758 = vld [vmem:[%s744 + $0x68] sm:$0xff]
        %v759 = vld [vmem:[%s744 + $0x70] sm:$0xff]
        %v760 = vld [vmem:[%s744 + $0x78] sm:$0xff]
        %v761 = vld [vmem:[%s744 + $0x80] sm:$0xff]
        %v762 = vld [vmem:[%s744 + $0x88] sm:$0xff]
        %v763 = vld [vmem:[%s744 + $0x90] sm:$0xff]
        %v764 = vld [vmem:[%s744 + $0x98] sm:$0xff]
        %v765 = vld [vmem:[%s744 + $0xa0] sm:$0xff]
        %v766 = vld [vmem:[%s744 + $0xa8] sm:$0xff]
        %v767 = vld [vmem:[%s744 + $0xb0] sm:$0xff]
        %v768 = vld [vmem:[%s744 + $0xb8] sm:$0xff]
        %v769 = vld [vmem:[%s744 + $0xc0] sm:$0xff]
        %v770 = vld [vmem:[%s744 + $0xc8] sm:$0xff]
        %v771 = vld [vmem:[%s744 + $0xd0] sm:$0xff]
        %v772 = vld [vmem:[%s744 + $0xd8] sm:$0xff]
        %v773 = vld [vmem:[%s744 + $0xe0] sm:$0xff]
        %v774 = vld [vmem:[%s744 + $0xe8] sm:$0xff]
        %v775 = vld [vmem:[%s744 + $0xf0] sm:$0xff]
        %v776 = vld [vmem:[%s744 + $0xf8] sm:$0xff]
        %v777 = vld [vmem:[%s744 + $0x100] sm:$0xff]
        %v778 = vld [vmem:[%s744 + $0x108] sm:$0xff]
        %v779 = vld [vmem:[%s744 + $0x110] sm:$0xff]
        %v780 = vld [vmem:[%s744 + $0x118] sm:$0xff]
        %v781 = vld [vmem:[%s744 + $0x120] sm:$0xff]
        %v782 = vld [vmem:[%s744 + $0x128] sm:$0xff]
        %v783 = vld [vmem:[%s744 + $0x130] sm:$0xff]
        %v784 = vld [vmem:[%s744 + $0x138] sm:$0xff]
        %v785 = vld [vmem:[%s744 + $0x140] sm:$0xff]
        %v786 = vld [vmem:[%s744 + $0x148] sm:$0xff]
        %v787 = vld [vmem:[%s744 + $0x150] sm:$0xff]
        %v788 = vld [vmem:[%s744 + $0x158] sm:$0xff]
        %v789 = vld [vmem:[%s744 + $0x160] sm:$0xff]
        %v790 = vld [vmem:[%s744 + $0x168] sm:$0xff]
        %v791 = vld [vmem:[%s744 + $0x170] sm:$0xff]
        %v792 = vld [vmem:[%s744 + $0x178] sm:$0xff]
        %v793 = vld [vmem:[%s744 + $0x180] sm:$0xff]
        %v794 = vld [vmem:[%s744 + $0x188] sm:$0xff]
        %v795 = vld [vmem:[%s744 + $0x190] sm:$0xff]
        %v796 = vld [vmem:[%s744 + $0x198] sm:$0xff]
        %v797 = vld [vmem:[%s744 + $0x1a0] sm:$0xff]
        %v798 = vld [vmem:[%s744 + $0x1a8] sm:$0xff]
        %v799 = vld [vmem:[%s744 + $0x1b0] sm:$0xff]
        %v800 = vld [vmem:[%s744 + $0x1b8] sm:$0xff]
        %v801 = vld [vmem:[%s744 + $0x1c0] sm:$0xff]
        %v802 = vld [vmem:[%s744 + $0x1c8] sm:$0xff]
        %v803 = vld [vmem:[%s744 + $0x1d0] sm:$0xff]
        %v804 = vld [vmem:[%s744 + $0x1d8] sm:$0xff]
        %v805 = vld [vmem:[%s744 + $0x1e0] sm:$0xff]
        %v806 = vld [vmem:[%s744 + $0x1e8] sm:$0xff]
        %v807 = vld [vmem:[%s744 + $0x1f0] sm:$0xff]
        %v808 = vld [vmem:[%s744 + $0x1f8] sm:$0xff]
        %v809 = vld [vmem:[%s216] sm:$0x1]
        %811 = vset.pattern.permute.xlu0 0
        %812 = vperm.xlu0 %811, %v745
        %v813 = vpop.permute.xlu0 %812
        %816 = vset.pattern.permute.xlu0 0
        %817 = vperm.xlu0 %816, %v746
        %v818 = vpop.permute.xlu0 %817
        %821 = vset.pattern.permute.xlu0 0
        %822 = vperm.xlu0 %821, %v747
        %v823 = vpop.permute.xlu0 %822
        %826 = vset.pattern.permute.xlu0 0
        %827 = vperm.xlu0 %826, %v748
        %v828 = vpop.permute.xlu0 %827
        %831 = vset.pattern.permute.xlu0 0
        %832 = vperm.xlu0 %831, %v749
        %v833 = vpop.permute.xlu0 %832
        %836 = vset.pattern.permute.xlu0 0
        %837 = vperm.xlu0 %836, %v750
        %v838 = vpop.permute.xlu0 %837
        %841 = vset.pattern.permute.xlu0 0
        %842 = vperm.xlu0 %841, %v751
        %v843 = vpop.permute.xlu0 %842
        %846 = vset.pattern.permute.xlu0 0
        %847 = vperm.xlu0 %846, %v752
        %v848 = vpop.permute.xlu0 %847
        %851 = vset.pattern.permute.xlu0 0
        %852 = vperm.xlu0 %851, %v753
        %v853 = vpop.permute.xlu0 %852
        %856 = vset.pattern.permute.xlu0 0
        %857 = vperm.xlu0 %856, %v754
        %v858 = vpop.permute.xlu0 %857
        %861 = vset.pattern.permute.xlu0 0
        %862 = vperm.xlu0 %861, %v755
        %v863 = vpop.permute.xlu0 %862
        %866 = vset.pattern.permute.xlu0 0
        %867 = vperm.xlu0 %866, %v756
        %v868 = vpop.permute.xlu0 %867
        %871 = vset.pattern.permute.xlu0 0
        %872 = vperm.xlu0 %871, %v757
        %v873 = vpop.permute.xlu0 %872
        %876 = vset.pattern.permute.xlu0 0
        %877 = vperm.xlu0 %876, %v758
        %v878 = vpop.permute.xlu0 %877
        %881 = vset.pattern.permute.xlu0 0
        %882 = vperm.xlu0 %881, %v759
        %v883 = vpop.permute.xlu0 %882
        %886 = vset.pattern.permute.xlu0 0
        %887 = vperm.xlu0 %886, %v760
        %v888 = vpop.permute.xlu0 %887
        %891 = vset.pattern.permute.xlu0 0
        %892 = vperm.xlu0 %891, %v761
        %v893 = vpop.permute.xlu0 %892
        %896 = vset.pattern.permute.xlu0 0
        %897 = vperm.xlu0 %896, %v762
        %v898 = vpop.permute.xlu0 %897
        %901 = vset.pattern.permute.xlu0 0
        %902 = vperm.xlu0 %901, %v763
        %v903 = vpop.permute.xlu0 %902
        %906 = vset.pattern.permute.xlu0 0
        %907 = vperm.xlu0 %906, %v764
        %v908 = vpop.permute.xlu0 %907
        %911 = vset.pattern.permute.xlu0 0
        %912 = vperm.xlu0 %911, %v765
        %v913 = vpop.permute.xlu0 %912
        %916 = vset.pattern.permute.xlu0 0
        %917 = vperm.xlu0 %916, %v766
        %v918 = vpop.permute.xlu0 %917
        %921 = vset.pattern.permute.xlu0 0
        %922 = vperm.xlu0 %921, %v767
        %v923 = vpop.permute.xlu0 %922
        %926 = vset.pattern.permute.xlu0 0
        %927 = vperm.xlu0 %926, %v768
        %v928 = vpop.permute.xlu0 %927
        %931 = vset.pattern.permute.xlu0 0
        %932 = vperm.xlu0 %931, %v769
        %v933 = vpop.permute.xlu0 %932
        %936 = vset.pattern.permute.xlu0 0
        %937 = vperm.xlu0 %936, %v770
        %v938 = vpop.permute.xlu0 %937
        %941 = vset.pattern.permute.xlu0 0
        %942 = vperm.xlu0 %941, %v771
        %v943 = vpop.permute.xlu0 %942
        %946 = vset.pattern.permute.xlu0 0
        %947 = vperm.xlu0 %946, %v772
        %v948 = vpop.permute.xlu0 %947
        %951 = vset.pattern.permute.xlu0 0
        %952 = vperm.xlu0 %951, %v773
        %v953 = vpop.permute.xlu0 %952
        %956 = vset.pattern.permute.xlu0 0
        %957 = vperm.xlu0 %956, %v774
        %v958 = vpop.permute.xlu0 %957
        %961 = vset.pattern.permute.xlu0 0
        %962 = vperm.xlu0 %961, %v775
        %v963 = vpop.permute.xlu0 %962
        %966 = vset.pattern.permute.xlu0 0
        %967 = vperm.xlu0 %966, %v776
        %v968 = vpop.permute.xlu0 %967
        %971 = vset.pattern.permute.xlu0 0
        %972 = vperm.xlu0 %971, %v777
        %v973 = vpop.permute.xlu0 %972
        %976 = vset.pattern.permute.xlu0 0
        %977 = vperm.xlu0 %976, %v778
        %v978 = vpop.permute.xlu0 %977
        %981 = vset.pattern.permute.xlu0 0
        %982 = vperm.xlu0 %981, %v779
        %v983 = vpop.permute.xlu0 %982
        %986 = vset.pattern.permute.xlu0 0
        %987 = vperm.xlu0 %986, %v780
        %v988 = vpop.permute.xlu0 %987
        %991 = vset.pattern.permute.xlu0 0
        %992 = vperm.xlu0 %991, %v781
        %v993 = vpop.permute.xlu0 %992
        %996 = vset.pattern.permute.xlu0 0
        %997 = vperm.xlu0 %996, %v782
        %v998 = vpop.permute.xlu0 %997
        %1001 = vset.pattern.permute.xlu0 0
        %1002 = vperm.xlu0 %1001, %v783
        %v1003 = vpop.permute.xlu0 %1002
        %1006 = vset.pattern.permute.xlu0 0
        %1007 = vperm.xlu0 %1006, %v784
        %v1008 = vpop.permute.xlu0 %1007
        %1011 = vset.pattern.permute.xlu0 0
        %1012 = vperm.xlu0 %1011, %v785
        %v1013 = vpop.permute.xlu0 %1012
        %1016 = vset.pattern.permute.xlu0 0
        %1017 = vperm.xlu0 %1016, %v786
        %v1018 = vpop.permute.xlu0 %1017
        %1021 = vset.pattern.permute.xlu0 0
        %1022 = vperm.xlu0 %1021, %v787
        %v1023 = vpop.permute.xlu0 %1022
        %1026 = vset.pattern.permute.xlu0 0
        %1027 = vperm.xlu0 %1026, %v788
        %v1028 = vpop.permute.xlu0 %1027
        %1031 = vset.pattern.permute.xlu0 0
        %1032 = vperm.xlu0 %1031, %v789
        %v1033 = vpop.permute.xlu0 %1032
        %1036 = vset.pattern.permute.xlu0 0
        %1037 = vperm.xlu0 %1036, %v790
        %v1038 = vpop.permute.xlu0 %1037
        %1041 = vset.pattern.permute.xlu0 0
        %1042 = vperm.xlu0 %1041, %v791
        %v1043 = vpop.permute.xlu0 %1042
        %1046 = vset.pattern.permute.xlu0 0
        %1047 = vperm.xlu0 %1046, %v792
        %v1048 = vpop.permute.xlu0 %1047
        %1051 = vset.pattern.permute.xlu0 0
        %1052 = vperm.xlu0 %1051, %v793
        %v1053 = vpop.permute.xlu0 %1052
        %1056 = vset.pattern.permute.xlu0 0
        %1057 = vperm.xlu0 %1056, %v794
        %v1058 = vpop.permute.xlu0 %1057
        %1061 = vset.pattern.permute.xlu0 0
        %1062 = vperm.xlu0 %1061, %v795
        %v1063 = vpop.permute.xlu0 %1062
        %1066 = vset.pattern.permute.xlu0 0
        %1067 = vperm.xlu0 %1066, %v796
        %v1068 = vpop.permute.xlu0 %1067
        %1071 = vset.pattern.permute.xlu0 0
        %1072 = vperm.xlu0 %1071, %v797
        %v1073 = vpop.permute.xlu0 %1072
        %1076 = vset.pattern.permute.xlu0 0
        %1077 = vperm.xlu0 %1076, %v798
        %v1078 = vpop.permute.xlu0 %1077
        %1081 = vset.pattern.permute.xlu0 0
        %1082 = vperm.xlu0 %1081, %v799
        %v1083 = vpop.permute.xlu0 %1082
        %1086 = vset.pattern.permute.xlu0 0
        %1087 = vperm.xlu0 %1086, %v800
        %v1088 = vpop.permute.xlu0 %1087
        %1091 = vset.pattern.permute.xlu0 0
        %1092 = vperm.xlu0 %1091, %v801
        %v1093 = vpop.permute.xlu0 %1092
        %1096 = vset.pattern.permute.xlu0 0
        %1097 = vperm.xlu0 %1096, %v802
        %v1098 = vpop.permute.xlu0 %1097
        %1101 = vset.pattern.permute.xlu0 0
        %1102 = vperm.xlu0 %1101, %v803
        %v1103 = vpop.permute.xlu0 %1102
        %1106 = vset.pattern.permute.xlu0 0
        %1107 = vperm.xlu0 %1106, %v804
        %v1108 = vpop.permute.xlu0 %1107
        %1111 = vset.pattern.permute.xlu0 0
        %1112 = vperm.xlu0 %1111, %v805
        %v1113 = vpop.permute.xlu0 %1112
        %1116 = vset.pattern.permute.xlu0 0
        %1117 = vperm.xlu0 %1116, %v806
        %v1118 = vpop.permute.xlu0 %1117
        %1121 = vset.pattern.permute.xlu0 0
        %1122 = vperm.xlu0 %1121, %v807
        %v1123 = vpop.permute.xlu0 %1122
        %1126 = vset.pattern.permute.xlu0 0
        %1127 = vperm.xlu0 %1126, %v808
        %v1128 = vpop.permute.xlu0 %1127
        %v1131 = vlaneseq
        %v1132 = vshrl.u32 %v1131, 7
        %v1133 = vsub.s32 0, %v1132
        %v1134 = vrot.slane %v809, %v1133
        %v1136 = vmul.f32 %v813, %v1134
        %v1137 = vmul.f32 %v818, %v1134
        %v1138 = vmul.f32 %v823, %v1134
        %v1139 = vmul.f32 %v828, %v1134
        %v1140 = vmul.f32 %v833, %v1134
        %v1141 = vmul.f32 %v838, %v1134
        %v1142 = vmul.f32 %v843, %v1134
        %v1143 = vmul.f32 %v848, %v1134
        %v1144 = vmul.f32 %v853, %v1134
        %v1145 = vmul.f32 %v858, %v1134
        %v1146 = vmul.f32 %v863, %v1134
        %v1147 = vmul.f32 %v868, %v1134
        %v1148 = vmul.f32 %v873, %v1134
        %v1149 = vmul.f32 %v878, %v1134
        %v1150 = vmul.f32 %v883, %v1134
        %v1151 = vmul.f32 %v888, %v1134
        %v1152 = vmul.f32 %v893, %v1134
        %v1153 = vmul.f32 %v898, %v1134
        %v1154 = vmul.f32 %v903, %v1134
        %v1155 = vmul.f32 %v908, %v1134
        %v1156 = vmul.f32 %v913, %v1134
        %v1157 = vmul.f32 %v918, %v1134
        %v1158 = vmul.f32 %v923, %v1134
        %v1159 = vmul.f32 %v928, %v1134
        %v1160 = vmul.f32 %v933, %v1134
        %v1161 = vmul.f32 %v938, %v1134
        %v1162 = vmul.f32 %v943, %v1134
        %v1163 = vmul.f32 %v948, %v1134
        %v1164 = vmul.f32 %v953, %v1134
        %v1165 = vmul.f32 %v958, %v1134
        %v1166 = vmul.f32 %v963, %v1134
        %v1167 = vmul.f32 %v968, %v1134
        %v1168 = vmul.f32 %v973, %v1134
        %v1169 = vmul.f32 %v978, %v1134
        %v1170 = vmul.f32 %v983, %v1134
        %v1171 = vmul.f32 %v988, %v1134
        %v1172 = vmul.f32 %v993, %v1134
        %v1173 = vmul.f32 %v998, %v1134
        %v1174 = vmul.f32 %v1003, %v1134
        %v1175 = vmul.f32 %v1008, %v1134
        %v1176 = vmul.f32 %v1013, %v1134
        %v1177 = vmul.f32 %v1018, %v1134
        %v1178 = vmul.f32 %v1023, %v1134
        %v1179 = vmul.f32 %v1028, %v1134
        %v1180 = vmul.f32 %v1033, %v1134
        %v1181 = vmul.f32 %v1038, %v1134
        %v1182 = vmul.f32 %v1043, %v1134
        %v1183 = vmul.f32 %v1048, %v1134
        %v1184 = vmul.f32 %v1053, %v1134
        %v1185 = vmul.f32 %v1058, %v1134
        %v1186 = vmul.f32 %v1063, %v1134
        %v1187 = vmul.f32 %v1068, %v1134
        %v1188 = vmul.f32 %v1073, %v1134
        %v1189 = vmul.f32 %v1078, %v1134
        %v1190 = vmul.f32 %v1083, %v1134
        %v1191 = vmul.f32 %v1088, %v1134
        %v1192 = vmul.f32 %v1093, %v1134
        %v1193 = vmul.f32 %v1098, %v1134
        %v1194 = vmul.f32 %v1103, %v1134
        %v1195 = vmul.f32 %v1108, %v1134
        %v1196 = vmul.f32 %v1113, %v1134
        %v1197 = vmul.f32 %v1118, %v1134
        %v1198 = vmul.f32 %v1123, %v1134
        %v1199 = vmul.f32 %v1128, %v1134
        %v1200 = vadd.f32 %v1136, 0.0
        %v1201 = vadd.f32 %v1137, 0.0
        %v1202 = vadd.f32 %v1138, 0.0
        %v1203 = vadd.f32 %v1139, 0.0
        %v1204 = vadd.f32 %v1140, 0.0
        %v1205 = vadd.f32 %v1141, 0.0
        %v1206 = vadd.f32 %v1142, 0.0
        %v1207 = vadd.f32 %v1143, 0.0
        %v1208 = vadd.f32 %v1144, 0.0
        %v1209 = vadd.f32 %v1145, 0.0
        %v1210 = vadd.f32 %v1146, 0.0
        %v1211 = vadd.f32 %v1147, 0.0
        %v1212 = vadd.f32 %v1148, 0.0
        %v1213 = vadd.f32 %v1149, 0.0
        %v1214 = vadd.f32 %v1150, 0.0
        %v1215 = vadd.f32 %v1151, 0.0
        %v1216 = vadd.f32 %v1152, 0.0
        %v1217 = vadd.f32 %v1153, 0.0
        %v1218 = vadd.f32 %v1154, 0.0
        %v1219 = vadd.f32 %v1155, 0.0
        %v1220 = vadd.f32 %v1156, 0.0
        %v1221 = vadd.f32 %v1157, 0.0
        %v1222 = vadd.f32 %v1158, 0.0
        %v1223 = vadd.f32 %v1159, 0.0
        %v1224 = vadd.f32 %v1160, 0.0
        %v1225 = vadd.f32 %v1161, 0.0
        %v1226 = vadd.f32 %v1162, 0.0
        %v1227 = vadd.f32 %v1163, 0.0
        %v1228 = vadd.f32 %v1164, 0.0
        %v1229 = vadd.f32 %v1165, 0.0
        %v1230 = vadd.f32 %v1166, 0.0
        %v1231 = vadd.f32 %v1167, 0.0
        %v1232 = vadd.f32 %v1168, 0.0
        %v1233 = vadd.f32 %v1169, 0.0
        %v1234 = vadd.f32 %v1170, 0.0
        %v1235 = vadd.f32 %v1171, 0.0
        %v1236 = vadd.f32 %v1172, 0.0
        %v1237 = vadd.f32 %v1173, 0.0
        %v1238 = vadd.f32 %v1174, 0.0
        %v1239 = vadd.f32 %v1175, 0.0
        %v1240 = vadd.f32 %v1176, 0.0
        %v1241 = vadd.f32 %v1177, 0.0
        %v1242 = vadd.f32 %v1178, 0.0
        %v1243 = vadd.f32 %v1179, 0.0
        %v1244 = vadd.f32 %v1180, 0.0
        %v1245 = vadd.f32 %v1181, 0.0
        %v1246 = vadd.f32 %v1182, 0.0
        %v1247 = vadd.f32 %v1183, 0.0
        %v1248 = vadd.f32 %v1184, 0.0
        %v1249 = vadd.f32 %v1185, 0.0
        %v1250 = vadd.f32 %v1186, 0.0
        %v1251 = vadd.f32 %v1187, 0.0
        %v1252 = vadd.f32 %v1188, 0.0
        %v1253 = vadd.f32 %v1189, 0.0
        %v1254 = vadd.f32 %v1190, 0.0
        %v1255 = vadd.f32 %v1191, 0.0
        %v1256 = vadd.f32 %v1192, 0.0
        %v1257 = vadd.f32 %v1193, 0.0
        %v1258 = vadd.f32 %v1194, 0.0
        %v1259 = vadd.f32 %v1195, 0.0
        %v1260 = vadd.f32 %v1196, 0.0
        %v1261 = vadd.f32 %v1197, 0.0
        %v1262 = vadd.f32 %v1198, 0.0
        %v1263 = vadd.f32 %v1199, 0.0
        %s1264 = sadd.s32 %s743, 1
        %s1265 = scalar_lea.vmem [#allocation2], %s1264
        %v1266 = vld [vmem:[%s1265] sm:$0xff]
        %v1267 = vld [vmem:[%s1265 + $0x8] sm:$0xff]
        %v1268 = vld [vmem:[%s1265 + $0x10] sm:$0xff]
        %v1269 = vld [vmem:[%s1265 + $0x18] sm:$0xff]
        %v1270 = vld [vmem:[%s1265 + $0x20] sm:$0xff]
        %v1271 = vld [vmem:[%s1265 + $0x28] sm:$0xff]
        %v1272 = vld [vmem:[%s1265 + $0x30] sm:$0xff]
        %v1273 = vld [vmem:[%s1265 + $0x38] sm:$0xff]
        %v1274 = vld [vmem:[%s1265 + $0x40] sm:$0xff]
        %v1275 = vld [vmem:[%s1265 + $0x48] sm:$0xff]
        %v1276 = vld [vmem:[%s1265 + $0x50] sm:$0xff]
        %v1277 = vld [vmem:[%s1265 + $0x58] sm:$0xff]
        %v1278 = vld [vmem:[%s1265 + $0x60] sm:$0xff]
        %v1279 = vld [vmem:[%s1265 + $0x68] sm:$0xff]
        %v1280 = vld [vmem:[%s1265 + $0x70] sm:$0xff]
        %v1281 = vld [vmem:[%s1265 + $0x78] sm:$0xff]
        %v1282 = vld [vmem:[%s1265 + $0x80] sm:$0xff]
        %v1283 = vld [vmem:[%s1265 + $0x88] sm:$0xff]
        %v1284 = vld [vmem:[%s1265 + $0x90] sm:$0xff]
        %v1285 = vld [vmem:[%s1265 + $0x98] sm:$0xff]
        %v1286 = vld [vmem:[%s1265 + $0xa0] sm:$0xff]
        %v1287 = vld [vmem:[%s1265 + $0xa8] sm:$0xff]
        %v1288 = vld [vmem:[%s1265 + $0xb0] sm:$0xff]
        %v1289 = vld [vmem:[%s1265 + $0xb8] sm:$0xff]
        %v1290 = vld [vmem:[%s1265 + $0xc0] sm:$0xff]
        %v1291 = vld [vmem:[%s1265 + $0xc8] sm:$0xff]
        %v1292 = vld [vmem:[%s1265 + $0xd0] sm:$0xff]
        %v1293 = vld [vmem:[%s1265 + $0xd8] sm:$0xff]
        %v1294 = vld [vmem:[%s1265 + $0xe0] sm:$0xff]
        %v1295 = vld [vmem:[%s1265 + $0xe8] sm:$0xff]
        %v1296 = vld [vmem:[%s1265 + $0xf0] sm:$0xff]
        %v1297 = vld [vmem:[%s1265 + $0xf8] sm:$0xff]
        %v1298 = vld [vmem:[%s1265 + $0x100] sm:$0xff]
        %v1299 = vld [vmem:[%s1265 + $0x108] sm:$0xff]
        %v1300 = vld [vmem:[%s1265 + $0x110] sm:$0xff]
        %v1301 = vld [vmem:[%s1265 + $0x118] sm:$0xff]
        %v1302 = vld [vmem:[%s1265 + $0x120] sm:$0xff]
        %v1303 = vld [vmem:[%s1265 + $0x128] sm:$0xff]
        %v1304 = vld [vmem:[%s1265 + $0x130] sm:$0xff]
        %v1305 = vld [vmem:[%s1265 + $0x138] sm:$0xff]
        %v1306 = vld [vmem:[%s1265 + $0x140] sm:$0xff]
        %v1307 = vld [vmem:[%s1265 + $0x148] sm:$0xff]
        %v1308 = vld [vmem:[%s1265 + $0x150] sm:$0xff]
        %v1309 = vld [vmem:[%s1265 + $0x158] sm:$0xff]
        %v1310 = vld [vmem:[%s1265 + $0x160] sm:$0xff]
        %v1311 = vld [vmem:[%s1265 + $0x168] sm:$0xff]
        %v1312 = vld [vmem:[%s1265 + $0x170] sm:$0xff]
        %v1313 = vld [vmem:[%s1265 + $0x178] sm:$0xff]
        %v1314 = vld [vmem:[%s1265 + $0x180] sm:$0xff]
        %v1315 = vld [vmem:[%s1265 + $0x188] sm:$0xff]
        %v1316 = vld [vmem:[%s1265 + $0x190] sm:$0xff]
        %v1317 = vld [vmem:[%s1265 + $0x198] sm:$0xff]
        %v1318 = vld [vmem:[%s1265 + $0x1a0] sm:$0xff]
        %v1319 = vld [vmem:[%s1265 + $0x1a8] sm:$0xff]
        %v1320 = vld [vmem:[%s1265 + $0x1b0] sm:$0xff]
        %v1321 = vld [vmem:[%s1265 + $0x1b8] sm:$0xff]
        %v1322 = vld [vmem:[%s1265 + $0x1c0] sm:$0xff]
        %v1323 = vld [vmem:[%s1265 + $0x1c8] sm:$0xff]
        %v1324 = vld [vmem:[%s1265 + $0x1d0] sm:$0xff]
        %v1325 = vld [vmem:[%s1265 + $0x1d8] sm:$0xff]
        %v1326 = vld [vmem:[%s1265 + $0x1e0] sm:$0xff]
        %v1327 = vld [vmem:[%s1265 + $0x1e8] sm:$0xff]
        %v1328 = vld [vmem:[%s1265 + $0x1f0] sm:$0xff]
        %v1329 = vld [vmem:[%s1265 + $0x1f8] sm:$0xff]
        %s1330 = scalar_lea.vmem %s216, 1
        %v1331 = vld [vmem:[%s1330] sm:$0x1]
        %1333 = vset.pattern.permute.xlu0 0
        %1334 = vperm.xlu0 %1333, %v1266
        %v1335 = vpop.permute.xlu0 %1334
        %1338 = vset.pattern.permute.xlu0 0
        %1339 = vperm.xlu0 %1338, %v1267
        %v1340 = vpop.permute.xlu0 %1339
        %1343 = vset.pattern.permute.xlu0 0
        %1344 = vperm.xlu0 %1343, %v1268
        %v1345 = vpop.permute.xlu0 %1344
        %1348 = vset.pattern.permute.xlu0 0
        %1349 = vperm.xlu0 %1348, %v1269
        %v1350 = vpop.permute.xlu0 %1349
        %1353 = vset.pattern.permute.xlu0 0
        %1354 = vperm.xlu0 %1353, %v1270
        %v1355 = vpop.permute.xlu0 %1354
        %1358 = vset.pattern.permute.xlu0 0
        %1359 = vperm.xlu0 %1358, %v1271
        %v1360 = vpop.permute.xlu0 %1359
        %1363 = vset.pattern.permute.xlu0 0
        %1364 = vperm.xlu0 %1363, %v1272
        %v1365 = vpop.permute.xlu0 %1364
        %1368 = vset.pattern.permute.xlu0 0
        %1369 = vperm.xlu0 %1368, %v1273
        %v1370 = vpop.permute.xlu0 %1369
        %1373 = vset.pattern.permute.xlu0 0
        %1374 = vperm.xlu0 %1373, %v1274
        %v1375 = vpop.permute.xlu0 %1374
        %1378 = vset.pattern.permute.xlu0 0
        %1379 = vperm.xlu0 %1378, %v1275
        %v1380 = vpop.permute.xlu0 %1379
        %1383 = vset.pattern.permute.xlu0 0
        %1384 = vperm.xlu0 %1383, %v1276
        %v1385 = vpop.permute.xlu0 %1384
        %1388 = vset.pattern.permute.xlu0 0
        %1389 = vperm.xlu0 %1388, %v1277
        %v1390 = vpop.permute.xlu0 %1389
        %1393 = vset.pattern.permute.xlu0 0
        %1394 = vperm.xlu0 %1393, %v1278
        %v1395 = vpop.permute.xlu0 %1394
        %1398 = vset.pattern.permute.xlu0 0
        %1399 = vperm.xlu0 %1398, %v1279
        %v1400 = vpop.permute.xlu0 %1399
        %1403 = vset.pattern.permute.xlu0 0
        %1404 = vperm.xlu0 %1403, %v1280
        %v1405 = vpop.permute.xlu0 %1404
        %1408 = vset.pattern.permute.xlu0 0
        %1409 = vperm.xlu0 %1408, %v1281
        %v1410 = vpop.permute.xlu0 %1409
        %1413 = vset.pattern.permute.xlu0 0
        %1414 = vperm.xlu0 %1413, %v1282
        %v1415 = vpop.permute.xlu0 %1414
        %1418 = vset.pattern.permute.xlu0 0
        %1419 = vperm.xlu0 %1418, %v1283
        %v1420 = vpop.permute.xlu0 %1419
        %1423 = vset.pattern.permute.xlu0 0
        %1424 = vperm.xlu0 %1423, %v1284
        %v1425 = vpop.permute.xlu0 %1424
        %1428 = vset.pattern.permute.xlu0 0
        %1429 = vperm.xlu0 %1428, %v1285
        %v1430 = vpop.permute.xlu0 %1429
        %1433 = vset.pattern.permute.xlu0 0
        %1434 = vperm.xlu0 %1433, %v1286
        %v1435 = vpop.permute.xlu0 %1434
        %1438 = vset.pattern.permute.xlu0 0
        %1439 = vperm.xlu0 %1438, %v1287
        %v1440 = vpop.permute.xlu0 %1439
        %1443 = vset.pattern.permute.xlu0 0
        %1444 = vperm.xlu0 %1443, %v1288
        %v1445 = vpop.permute.xlu0 %1444
        %1448 = vset.pattern.permute.xlu0 0
        %1449 = vperm.xlu0 %1448, %v1289
        %v1450 = vpop.permute.xlu0 %1449
        %1453 = vset.pattern.permute.xlu0 0
        %1454 = vperm.xlu0 %1453, %v1290
        %v1455 = vpop.permute.xlu0 %1454
        %1458 = vset.pattern.permute.xlu0 0
        %1459 = vperm.xlu0 %1458, %v1291
        %v1460 = vpop.permute.xlu0 %1459
        %1463 = vset.pattern.permute.xlu0 0
        %1464 = vperm.xlu0 %1463, %v1292
        %v1465 = vpop.permute.xlu0 %1464
        %1468 = vset.pattern.permute.xlu0 0
        %1469 = vperm.xlu0 %1468, %v1293
        %v1470 = vpop.permute.xlu0 %1469
        %1473 = vset.pattern.permute.xlu0 0
        %1474 = vperm.xlu0 %1473, %v1294
        %v1475 = vpop.permute.xlu0 %1474
        %1478 = vset.pattern.permute.xlu0 0
        %1479 = vperm.xlu0 %1478, %v1295
        %v1480 = vpop.permute.xlu0 %1479
        %1483 = vset.pattern.permute.xlu0 0
        %1484 = vperm.xlu0 %1483, %v1296
        %v1485 = vpop.permute.xlu0 %1484
        %1488 = vset.pattern.permute.xlu0 0
        %1489 = vperm.xlu0 %1488, %v1297
        %v1490 = vpop.permute.xlu0 %1489
        %1493 = vset.pattern.permute.xlu0 0
        %1494 = vperm.xlu0 %1493, %v1298
        %v1495 = vpop.permute.xlu0 %1494
        %1498 = vset.pattern.permute.xlu0 0
        %1499 = vperm.xlu0 %1498, %v1299
        %v1500 = vpop.permute.xlu0 %1499
        %1503 = vset.pattern.permute.xlu0 0
        %1504 = vperm.xlu0 %1503, %v1300
        %v1505 = vpop.permute.xlu0 %1504
        %1508 = vset.pattern.permute.xlu0 0
        %1509 = vperm.xlu0 %1508, %v1301
        %v1510 = vpop.permute.xlu0 %1509
        %1513 = vset.pattern.permute.xlu0 0
        %1514 = vperm.xlu0 %1513, %v1302
        %v1515 = vpop.permute.xlu0 %1514
        %1518 = vset.pattern.permute.xlu0 0
        %1519 = vperm.xlu0 %1518, %v1303
        %v1520 = vpop.permute.xlu0 %1519
        %1523 = vset.pattern.permute.xlu0 0
        %1524 = vperm.xlu0 %1523, %v1304
        %v1525 = vpop.permute.xlu0 %1524
        %1528 = vset.pattern.permute.xlu0 0
        %1529 = vperm.xlu0 %1528, %v1305
        %v1530 = vpop.permute.xlu0 %1529
        %1533 = vset.pattern.permute.xlu0 0
        %1534 = vperm.xlu0 %1533, %v1306
        %v1535 = vpop.permute.xlu0 %1534
        %1538 = vset.pattern.permute.xlu0 0
        %1539 = vperm.xlu0 %1538, %v1307
        %v1540 = vpop.permute.xlu0 %1539
        %1543 = vset.pattern.permute.xlu0 0
        %1544 = vperm.xlu0 %1543, %v1308
        %v1545 = vpop.permute.xlu0 %1544
        %1548 = vset.pattern.permute.xlu0 0
        %1549 = vperm.xlu0 %1548, %v1309
        %v1550 = vpop.permute.xlu0 %1549
        %1553 = vset.pattern.permute.xlu0 0
        %1554 = vperm.xlu0 %1553, %v1310
        %v1555 = vpop.permute.xlu0 %1554
        %1558 = vset.pattern.permute.xlu0 0
        %1559 = vperm.xlu0 %1558, %v1311
        %v1560 = vpop.permute.xlu0 %1559
        %1563 = vset.pattern.permute.xlu0 0
        %1564 = vperm.xlu0 %1563, %v1312
        %v1565 = vpop.permute.xlu0 %1564
        %1568 = vset.pattern.permute.xlu0 0
        %1569 = vperm.xlu0 %1568, %v1313
        %v1570 = vpop.permute.xlu0 %1569
        %1573 = vset.pattern.permute.xlu0 0
        %1574 = vperm.xlu0 %1573, %v1314
        %v1575 = vpop.permute.xlu0 %1574
        %1578 = vset.pattern.permute.xlu0 0
        %1579 = vperm.xlu0 %1578, %v1315
        %v1580 = vpop.permute.xlu0 %1579
        %1583 = vset.pattern.permute.xlu0 0
        %1584 = vperm.xlu0 %1583, %v1316
        %v1585 = vpop.permute.xlu0 %1584
        %1588 = vset.pattern.permute.xlu0 0
        %1589 = vperm.xlu0 %1588, %v1317
        %v1590 = vpop.permute.xlu0 %1589
        %1593 = vset.pattern.permute.xlu0 0
        %1594 = vperm.xlu0 %1593, %v1318
        %v1595 = vpop.permute.xlu0 %1594
        %1598 = vset.pattern.permute.xlu0 0
        %1599 = vperm.xlu0 %1598, %v1319
        %v1600 = vpop.permute.xlu0 %1599
        %1603 = vset.pattern.permute.xlu0 0
        %1604 = vperm.xlu0 %1603, %v1320
        %v1605 = vpop.permute.xlu0 %1604
        %1608 = vset.pattern.permute.xlu0 0
        %1609 = vperm.xlu0 %1608, %v1321
        %v1610 = vpop.permute.xlu0 %1609
        %1613 = vset.pattern.permute.xlu0 0
        %1614 = vperm.xlu0 %1613, %v1322
        %v1615 = vpop.permute.xlu0 %1614
        %1618 = vset.pattern.permute.xlu0 0
        %1619 = vperm.xlu0 %1618, %v1323
        %v1620 = vpop.permute.xlu0 %1619
        %1623 = vset.pattern.permute.xlu0 0
        %1624 = vperm.xlu0 %1623, %v1324
        %v1625 = vpop.permute.xlu0 %1624
        %1628 = vset.pattern.permute.xlu0 0
        %1629 = vperm.xlu0 %1628, %v1325
        %v1630 = vpop.permute.xlu0 %1629
        %1633 = vset.pattern.permute.xlu0 0
        %1634 = vperm.xlu0 %1633, %v1326
        %v1635 = vpop.permute.xlu0 %1634
        %1638 = vset.pattern.permute.xlu0 0
        %1639 = vperm.xlu0 %1638, %v1327
        %v1640 = vpop.permute.xlu0 %1639
        %1643 = vset.pattern.permute.xlu0 0
        %1644 = vperm.xlu0 %1643, %v1328
        %v1645 = vpop.permute.xlu0 %1644
        %1648 = vset.pattern.permute.xlu0 0
        %1649 = vperm.xlu0 %1648, %v1329
        %v1650 = vpop.permute.xlu0 %1649
        %v1653 = vlaneseq
        %v1654 = vshrl.u32 %v1653, 7
        %v1655 = vsub.s32 0, %v1654
        %v1656 = vrot.slane %v1331, %v1655
        %v1658 = vmul.f32 %v1335, %v1656
        %v1659 = vmul.f32 %v1340, %v1656
        %v1660 = vmul.f32 %v1345, %v1656
        %v1661 = vmul.f32 %v1350, %v1656
        %v1662 = vmul.f32 %v1355, %v1656
        %v1663 = vmul.f32 %v1360, %v1656
        %v1664 = vmul.f32 %v1365, %v1656
        %v1665 = vmul.f32 %v1370, %v1656
        %v1666 = vmul.f32 %v1375, %v1656
        %v1667 = vmul.f32 %v1380, %v1656
        %v1668 = vmul.f32 %v1385, %v1656
        %v1669 = vmul.f32 %v1390, %v1656
        %v1670 = vmul.f32 %v1395, %v1656
        %v1671 = vmul.f32 %v1400, %v1656
        %v1672 = vmul.f32 %v1405, %v1656
        %v1673 = vmul.f32 %v1410, %v1656
        %v1674 = vmul.f32 %v1415, %v1656
        %v1675 = vmul.f32 %v1420, %v1656
        %v1676 = vmul.f32 %v1425, %v1656
        %v1677 = vmul.f32 %v1430, %v1656
        %v1678 = vmul.f32 %v1435, %v1656
        %v1679 = vmul.f32 %v1440, %v1656
        %v1680 = vmul.f32 %v1445, %v1656
        %v1681 = vmul.f32 %v1450, %v1656
        %v1682 = vmul.f32 %v1455, %v1656
        %v1683 = vmul.f32 %v1460, %v1656
        %v1684 = vmul.f32 %v1465, %v1656
        %v1685 = vmul.f32 %v1470, %v1656
        %v1686 = vmul.f32 %v1475, %v1656
        %v1687 = vmul.f32 %v1480, %v1656
        %v1688 = vmul.f32 %v1485, %v1656
        %v1689 = vmul.f32 %v1490, %v1656
        %v1690 = vmul.f32 %v1495, %v1656
        %v1691 = vmul.f32 %v1500, %v1656
        %v1692 = vmul.f32 %v1505, %v1656
        %v1693 = vmul.f32 %v1510, %v1656
        %v1694 = vmul.f32 %v1515, %v1656
        %v1695 = vmul.f32 %v1520, %v1656
        %v1696 = vmul.f32 %v1525, %v1656
        %v1697 = vmul.f32 %v1530, %v1656
        %v1698 = vmul.f32 %v1535, %v1656
        %v1699 = vmul.f32 %v1540, %v1656
        %v1700 = vmul.f32 %v1545, %v1656
        %v1701 = vmul.f32 %v1550, %v1656
        %v1702 = vmul.f32 %v1555, %v1656
        %v1703 = vmul.f32 %v1560, %v1656
        %v1704 = vmul.f32 %v1565, %v1656
        %v1705 = vmul.f32 %v1570, %v1656
        %v1706 = vmul.f32 %v1575, %v1656
        %v1707 = vmul.f32 %v1580, %v1656
        %v1708 = vmul.f32 %v1585, %v1656
        %v1709 = vmul.f32 %v1590, %v1656
        %v1710 = vmul.f32 %v1595, %v1656
        %v1711 = vmul.f32 %v1600, %v1656
        %v1712 = vmul.f32 %v1605, %v1656
        %v1713 = vmul.f32 %v1610, %v1656
        %v1714 = vmul.f32 %v1615, %v1656
        %v1715 = vmul.f32 %v1620, %v1656
        %v1716 = vmul.f32 %v1625, %v1656
        %v1717 = vmul.f32 %v1630, %v1656
        %v1718 = vmul.f32 %v1635, %v1656
        %v1719 = vmul.f32 %v1640, %v1656
        %v1720 = vmul.f32 %v1645, %v1656
        %v1721 = vmul.f32 %v1650, %v1656
        %v1722 = vadd.f32 %v1200, %v1658
        %v1723 = vadd.f32 %v1201, %v1659
        %v1724 = vadd.f32 %v1202, %v1660
        %v1725 = vadd.f32 %v1203, %v1661
        %v1726 = vadd.f32 %v1204, %v1662
        %v1727 = vadd.f32 %v1205, %v1663
        %v1728 = vadd.f32 %v1206, %v1664
        %v1729 = vadd.f32 %v1207, %v1665
        %v1730 = vadd.f32 %v1208, %v1666
        %v1731 = vadd.f32 %v1209, %v1667
        %v1732 = vadd.f32 %v1210, %v1668
        %v1733 = vadd.f32 %v1211, %v1669
        %v1734 = vadd.f32 %v1212, %v1670
        %v1735 = vadd.f32 %v1213, %v1671
        %v1736 = vadd.f32 %v1214, %v1672
        %v1737 = vadd.f32 %v1215, %v1673
        %v1738 = vadd.f32 %v1216, %v1674
        %v1739 = vadd.f32 %v1217, %v1675
        %v1740 = vadd.f32 %v1218, %v1676
        %v1741 = vadd.f32 %v1219, %v1677
        %v1742 = vadd.f32 %v1220, %v1678
        %v1743 = vadd.f32 %v1221, %v1679
        %v1744 = vadd.f32 %v1222, %v1680
        %v1745 = vadd.f32 %v1223, %v1681
        %v1746 = vadd.f32 %v1224, %v1682
        %v1747 = vadd.f32 %v1225, %v1683
        %v1748 = vadd.f32 %v1226, %v1684
        %v1749 = vadd.f32 %v1227, %v1685
        %v1750 = vadd.f32 %v1228, %v1686
        %v1751 = vadd.f32 %v1229, %v1687
        %v1752 = vadd.f32 %v1230, %v1688
        %v1753 = vadd.f32 %v1231, %v1689
        %v1754 = vadd.f32 %v1232, %v1690
        %v1755 = vadd.f32 %v1233, %v1691
        %v1756 = vadd.f32 %v1234, %v1692
        %v1757 = vadd.f32 %v1235, %v1693
        %v1758 = vadd.f32 %v1236, %v1694
        %v1759 = vadd.f32 %v1237, %v1695
        %v1760 = vadd.f32 %v1238, %v1696
        %v1761 = vadd.f32 %v1239, %v1697
        %v1762 = vadd.f32 %v1240, %v1698
        %v1763 = vadd.f32 %v1241, %v1699
        %v1764 = vadd.f32 %v1242, %v1700
        %v1765 = vadd.f32 %v1243, %v1701
        %v1766 = vadd.f32 %v1244, %v1702
        %v1767 = vadd.f32 %v1245, %v1703
        %v1768 = vadd.f32 %v1246, %v1704
        %v1769 = vadd.f32 %v1247, %v1705
        %v1770 = vadd.f32 %v1248, %v1706
        %v1771 = vadd.f32 %v1249, %v1707
        %v1772 = vadd.f32 %v1250, %v1708
        %v1773 = vadd.f32 %v1251, %v1709
        %v1774 = vadd.f32 %v1252, %v1710
        %v1775 = vadd.f32 %v1253, %v1711
        %v1776 = vadd.f32 %v1254, %v1712
        %v1777 = vadd.f32 %v1255, %v1713
        %v1778 = vadd.f32 %v1256, %v1714
        %v1779 = vadd.f32 %v1257, %v1715
        %v1780 = vadd.f32 %v1258, %v1716
        %v1781 = vadd.f32 %v1259, %v1717
        %v1782 = vadd.f32 %v1260, %v1718
        %v1783 = vadd.f32 %v1261, %v1719
        %v1784 = vadd.f32 %v1262, %v1720
        %v1785 = vadd.f32 %v1263, %v1721
        %s1786 = sadd.s32 %s743, 2
        %s1787 = scalar_lea.vmem [#allocation2], %s1786
        %v1788 = vld [vmem:[%s1787] sm:$0xff]
        %v1789 = vld [vmem:[%s1787 + $0x8] sm:$0xff]
        %v1790 = vld [vmem:[%s1787 + $0x10] sm:$0xff]
        %v1791 = vld [vmem:[%s1787 + $0x18] sm:$0xff]
        %v1792 = vld [vmem:[%s1787 + $0x20] sm:$0xff]
        %v1793 = vld [vmem:[%s1787 + $0x28] sm:$0xff]
        %v1794 = vld [vmem:[%s1787 + $0x30] sm:$0xff]
        %v1795 = vld [vmem:[%s1787 + $0x38] sm:$0xff]
        %v1796 = vld [vmem:[%s1787 + $0x40] sm:$0xff]
        %v1797 = vld [vmem:[%s1787 + $0x48] sm:$0xff]
        %v1798 = vld [vmem:[%s1787 + $0x50] sm:$0xff]
        %v1799 = vld [vmem:[%s1787 + $0x58] sm:$0xff]
        %v1800 = vld [vmem:[%s1787 + $0x60] sm:$0xff]
        %v1801 = vld [vmem:[%s1787 + $0x68] sm:$0xff]
        %v1802 = vld [vmem:[%s1787 + $0x70] sm:$0xff]
        %v1803 = vld [vmem:[%s1787 + $0x78] sm:$0xff]
        %v1804 = vld [vmem:[%s1787 + $0x80] sm:$0xff]
        %v1805 = vld [vmem:[%s1787 + $0x88] sm:$0xff]
        %v1806 = vld [vmem:[%s1787 + $0x90] sm:$0xff]
        %v1807 = vld [vmem:[%s1787 + $0x98] sm:$0xff]
        %v1808 = vld [vmem:[%s1787 + $0xa0] sm:$0xff]
        %v1809 = vld [vmem:[%s1787 + $0xa8] sm:$0xff]
        %v1810 = vld [vmem:[%s1787 + $0xb0] sm:$0xff]
        %v1811 = vld [vmem:[%s1787 + $0xb8] sm:$0xff]
        %v1812 = vld [vmem:[%s1787 + $0xc0] sm:$0xff]
        %v1813 = vld [vmem:[%s1787 + $0xc8] sm:$0xff]
        %v1814 = vld [vmem:[%s1787 + $0xd0] sm:$0xff]
        %v1815 = vld [vmem:[%s1787 + $0xd8] sm:$0xff]
        %v1816 = vld [vmem:[%s1787 + $0xe0] sm:$0xff]
        %v1817 = vld [vmem:[%s1787 + $0xe8] sm:$0xff]
        %v1818 = vld [vmem:[%s1787 + $0xf0] sm:$0xff]
        %v1819 = vld [vmem:[%s1787 + $0xf8] sm:$0xff]
        %v1820 = vld [vmem:[%s1787 + $0x100] sm:$0xff]
        %v1821 = vld [vmem:[%s1787 + $0x108] sm:$0xff]
        %v1822 = vld [vmem:[%s1787 + $0x110] sm:$0xff]
        %v1823 = vld [vmem:[%s1787 + $0x118] sm:$0xff]
        %v1824 = vld [vmem:[%s1787 + $0x120] sm:$0xff]
        %v1825 = vld [vmem:[%s1787 + $0x128] sm:$0xff]
        %v1826 = vld [vmem:[%s1787 + $0x130] sm:$0xff]
        %v1827 = vld [vmem:[%s1787 + $0x138] sm:$0xff]
        %v1828 = vld [vmem:[%s1787 + $0x140] sm:$0xff]
        %v1829 = vld [vmem:[%s1787 + $0x148] sm:$0xff]
        %v1830 = vld [vmem:[%s1787 + $0x150] sm:$0xff]
        %v1831 = vld [vmem:[%s1787 + $0x158] sm:$0xff]
        %v1832 = vld [vmem:[%s1787 + $0x160] sm:$0xff]
        %v1833 = vld [vmem:[%s1787 + $0x168] sm:$0xff]
        %v1834 = vld [vmem:[%s1787 + $0x170] sm:$0xff]
        %v1835 = vld [vmem:[%s1787 + $0x178] sm:$0xff]
        %v1836 = vld [vmem:[%s1787 + $0x180] sm:$0xff]
        %v1837 = vld [vmem:[%s1787 + $0x188] sm:$0xff]
        %v1838 = vld [vmem:[%s1787 + $0x190] sm:$0xff]
        %v1839 = vld [vmem:[%s1787 + $0x198] sm:$0xff]
        %v1840 = vld [vmem:[%s1787 + $0x1a0] sm:$0xff]
        %v1841 = vld [vmem:[%s1787 + $0x1a8] sm:$0xff]
        %v1842 = vld [vmem:[%s1787 + $0x1b0] sm:$0xff]
        %v1843 = vld [vmem:[%s1787 + $0x1b8] sm:$0xff]
        %v1844 = vld [vmem:[%s1787 + $0x1c0] sm:$0xff]
        %v1845 = vld [vmem:[%s1787 + $0x1c8] sm:$0xff]
        %v1846 = vld [vmem:[%s1787 + $0x1d0] sm:$0xff]
        %v1847 = vld [vmem:[%s1787 + $0x1d8] sm:$0xff]
        %v1848 = vld [vmem:[%s1787 + $0x1e0] sm:$0xff]
        %v1849 = vld [vmem:[%s1787 + $0x1e8] sm:$0xff]
        %v1850 = vld [vmem:[%s1787 + $0x1f0] sm:$0xff]
        %v1851 = vld [vmem:[%s1787 + $0x1f8] sm:$0xff]
        %s1852 = scalar_lea.vmem %s216, 2
        %v1853 = vld [vmem:[%s1852] sm:$0x1]
        %1855 = vset.pattern.permute.xlu0 0
        %1856 = vperm.xlu0 %1855, %v1788
        %v1857 = vpop.permute.xlu0 %1856
        %1860 = vset.pattern.permute.xlu0 0
        %1861 = vperm.xlu0 %1860, %v1789
        %v1862 = vpop.permute.xlu0 %1861
        %1865 = vset.pattern.permute.xlu0 0
        %1866 = vperm.xlu0 %1865, %v1790
        %v1867 = vpop.permute.xlu0 %1866
        %1870 = vset.pattern.permute.xlu0 0
        %1871 = vperm.xlu0 %1870, %v1791
        %v1872 = vpop.permute.xlu0 %1871
        %1875 = vset.pattern.permute.xlu0 0
        %1876 = vperm.xlu0 %1875, %v1792
        %v1877 = vpop.permute.xlu0 %1876
        %1880 = vset.pattern.permute.xlu0 0
        %1881 = vperm.xlu0 %1880, %v1793
        %v1882 = vpop.permute.xlu0 %1881
        %1885 = vset.pattern.permute.xlu0 0
        %1886 = vperm.xlu0 %1885, %v1794
        %v1887 = vpop.permute.xlu0 %1886
        %1890 = vset.pattern.permute.xlu0 0
        %1891 = vperm.xlu0 %1890, %v1795
        %v1892 = vpop.permute.xlu0 %1891
        %1895 = vset.pattern.permute.xlu0 0
        %1896 = vperm.xlu0 %1895, %v1796
        %v1897 = vpop.permute.xlu0 %1896
        %1900 = vset.pattern.permute.xlu0 0
        %1901 = vperm.xlu0 %1900, %v1797
        %v1902 = vpop.permute.xlu0 %1901
        %1905 = vset.pattern.permute.xlu0 0
        %1906 = vperm.xlu0 %1905, %v1798
        %v1907 = vpop.permute.xlu0 %1906
        %1910 = vset.pattern.permute.xlu0 0
        %1911 = vperm.xlu0 %1910, %v1799
        %v1912 = vpop.permute.xlu0 %1911
        %1915 = vset.pattern.permute.xlu0 0
        %1916 = vperm.xlu0 %1915, %v1800
        %v1917 = vpop.permute.xlu0 %1916
        %1920 = vset.pattern.permute.xlu0 0
        %1921 = vperm.xlu0 %1920, %v1801
        %v1922 = vpop.permute.xlu0 %1921
        %1925 = vset.pattern.permute.xlu0 0
        %1926 = vperm.xlu0 %1925, %v1802
        %v1927 = vpop.permute.xlu0 %1926
        %1930 = vset.pattern.permute.xlu0 0
        %1931 = vperm.xlu0 %1930, %v1803
        %v1932 = vpop.permute.xlu0 %1931
        %1935 = vset.pattern.permute.xlu0 0
        %1936 = vperm.xlu0 %1935, %v1804
        %v1937 = vpop.permute.xlu0 %1936
        %1940 = vset.pattern.permute.xlu0 0
        %1941 = vperm.xlu0 %1940, %v1805
        %v1942 = vpop.permute.xlu0 %1941
        %1945 = vset.pattern.permute.xlu0 0
        %1946 = vperm.xlu0 %1945, %v1806
        %v1947 = vpop.permute.xlu0 %1946
        %1950 = vset.pattern.permute.xlu0 0
        %1951 = vperm.xlu0 %1950, %v1807
        %v1952 = vpop.permute.xlu0 %1951
        %1955 = vset.pattern.permute.xlu0 0
        %1956 = vperm.xlu0 %1955, %v1808
        %v1957 = vpop.permute.xlu0 %1956
        %1960 = vset.pattern.permute.xlu0 0
        %1961 = vperm.xlu0 %1960, %v1809
        %v1962 = vpop.permute.xlu0 %1961
        %1965 = vset.pattern.permute.xlu0 0
        %1966 = vperm.xlu0 %1965, %v1810
        %v1967 = vpop.permute.xlu0 %1966
        %1970 = vset.pattern.permute.xlu0 0
        %1971 = vperm.xlu0 %1970, %v1811
        %v1972 = vpop.permute.xlu0 %1971
        %1975 = vset.pattern.permute.xlu0 0
        %1976 = vperm.xlu0 %1975, %v1812
        %v1977 = vpop.permute.xlu0 %1976
        %1980 = vset.pattern.permute.xlu0 0
        %1981 = vperm.xlu0 %1980, %v1813
        %v1982 = vpop.permute.xlu0 %1981
        %1985 = vset.pattern.permute.xlu0 0
        %1986 = vperm.xlu0 %1985, %v1814
        %v1987 = vpop.permute.xlu0 %1986
        %1990 = vset.pattern.permute.xlu0 0
        %1991 = vperm.xlu0 %1990, %v1815
        %v1992 = vpop.permute.xlu0 %1991
        %1995 = vset.pattern.permute.xlu0 0
        %1996 = vperm.xlu0 %1995, %v1816
        %v1997 = vpop.permute.xlu0 %1996
        %2000 = vset.pattern.permute.xlu0 0
        %2001 = vperm.xlu0 %2000, %v1817
        %v2002 = vpop.permute.xlu0 %2001
        %2005 = vset.pattern.permute.xlu0 0
        %2006 = vperm.xlu0 %2005, %v1818
        %v2007 = vpop.permute.xlu0 %2006
        %2010 = vset.pattern.permute.xlu0 0
        %2011 = vperm.xlu0 %2010, %v1819
        %v2012 = vpop.permute.xlu0 %2011
        %2015 = vset.pattern.permute.xlu0 0
        %2016 = vperm.xlu0 %2015, %v1820
        %v2017 = vpop.permute.xlu0 %2016
        %2020 = vset.pattern.permute.xlu0 0
        %2021 = vperm.xlu0 %2020, %v1821
        %v2022 = vpop.permute.xlu0 %2021
        %2025 = vset.pattern.permute.xlu0 0
        %2026 = vperm.xlu0 %2025, %v1822
        %v2027 = vpop.permute.xlu0 %2026
        %2030 = vset.pattern.permute.xlu0 0
        %2031 = vperm.xlu0 %2030, %v1823
        %v2032 = vpop.permute.xlu0 %2031
        %2035 = vset.pattern.permute.xlu0 0
        %2036 = vperm.xlu0 %2035, %v1824
        %v2037 = vpop.permute.xlu0 %2036
        %2040 = vset.pattern.permute.xlu0 0
        %2041 = vperm.xlu0 %2040, %v1825
        %v2042 = vpop.permute.xlu0 %2041
        %2045 = vset.pattern.permute.xlu0 0
        %2046 = vperm.xlu0 %2045, %v1826
        %v2047 = vpop.permute.xlu0 %2046
        %2050 = vset.pattern.permute.xlu0 0
        %2051 = vperm.xlu0 %2050, %v1827
        %v2052 = vpop.permute.xlu0 %2051
        %2055 = vset.pattern.permute.xlu0 0
        %2056 = vperm.xlu0 %2055, %v1828
        %v2057 = vpop.permute.xlu0 %2056
        %2060 = vset.pattern.permute.xlu0 0
        %2061 = vperm.xlu0 %2060, %v1829
        %v2062 = vpop.permute.xlu0 %2061
        %2065 = vset.pattern.permute.xlu0 0
        %2066 = vperm.xlu0 %2065, %v1830
        %v2067 = vpop.permute.xlu0 %2066
        %2070 = vset.pattern.permute.xlu0 0
        %2071 = vperm.xlu0 %2070, %v1831
        %v2072 = vpop.permute.xlu0 %2071
        %2075 = vset.pattern.permute.xlu0 0
        %2076 = vperm.xlu0 %2075, %v1832
        %v2077 = vpop.permute.xlu0 %2076
        %2080 = vset.pattern.permute.xlu0 0
        %2081 = vperm.xlu0 %2080, %v1833
        %v2082 = vpop.permute.xlu0 %2081
        %2085 = vset.pattern.permute.xlu0 0
        %2086 = vperm.xlu0 %2085, %v1834
        %v2087 = vpop.permute.xlu0 %2086
        %2090 = vset.pattern.permute.xlu0 0
        %2091 = vperm.xlu0 %2090, %v1835
        %v2092 = vpop.permute.xlu0 %2091
        %2095 = vset.pattern.permute.xlu0 0
        %2096 = vperm.xlu0 %2095, %v1836
        %v2097 = vpop.permute.xlu0 %2096
        %2100 = vset.pattern.permute.xlu0 0
        %2101 = vperm.xlu0 %2100, %v1837
        %v2102 = vpop.permute.xlu0 %2101
        %2105 = vset.pattern.permute.xlu0 0
        %2106 = vperm.xlu0 %2105, %v1838
        %v2107 = vpop.permute.xlu0 %2106
        %2110 = vset.pattern.permute.xlu0 0
        %2111 = vperm.xlu0 %2110, %v1839
        %v2112 = vpop.permute.xlu0 %2111
        %2115 = vset.pattern.permute.xlu0 0
        %2116 = vperm.xlu0 %2115, %v1840
        %v2117 = vpop.permute.xlu0 %2116
        %2120 = vset.pattern.permute.xlu0 0
        %2121 = vperm.xlu0 %2120, %v1841
        %v2122 = vpop.permute.xlu0 %2121
        %2125 = vset.pattern.permute.xlu0 0
        %2126 = vperm.xlu0 %2125, %v1842
        %v2127 = vpop.permute.xlu0 %2126
        %2130 = vset.pattern.permute.xlu0 0
        %2131 = vperm.xlu0 %2130, %v1843
        %v2132 = vpop.permute.xlu0 %2131
        %2135 = vset.pattern.permute.xlu0 0
        %2136 = vperm.xlu0 %2135, %v1844
        %v2137 = vpop.permute.xlu0 %2136
        %2140 = vset.pattern.permute.xlu0 0
        %2141 = vperm.xlu0 %2140, %v1845
        %v2142 = vpop.permute.xlu0 %2141
        %2145 = vset.pattern.permute.xlu0 0
        %2146 = vperm.xlu0 %2145, %v1846
        %v2147 = vpop.permute.xlu0 %2146
        %2150 = vset.pattern.permute.xlu0 0
        %2151 = vperm.xlu0 %2150, %v1847
        %v2152 = vpop.permute.xlu0 %2151
        %2155 = vset.pattern.permute.xlu0 0
        %2156 = vperm.xlu0 %2155, %v1848
        %v2157 = vpop.permute.xlu0 %2156
        %2160 = vset.pattern.permute.xlu0 0
        %2161 = vperm.xlu0 %2160, %v1849
        %v2162 = vpop.permute.xlu0 %2161
        %2165 = vset.pattern.permute.xlu0 0
        %2166 = vperm.xlu0 %2165, %v1850
        %v2167 = vpop.permute.xlu0 %2166
        %2170 = vset.pattern.permute.xlu0 0
        %2171 = vperm.xlu0 %2170, %v1851
        %v2172 = vpop.permute.xlu0 %2171
        %v2175 = vlaneseq
        %v2176 = vshrl.u32 %v2175, 7
        %v2177 = vsub.s32 0, %v2176
        %v2178 = vrot.slane %v1853, %v2177
        %v2180 = vmul.f32 %v1857, %v2178
        %v2181 = vmul.f32 %v1862, %v2178
        %v2182 = vmul.f32 %v1867, %v2178
        %v2183 = vmul.f32 %v1872, %v2178
        %v2184 = vmul.f32 %v1877, %v2178
        %v2185 = vmul.f32 %v1882, %v2178
        %v2186 = vmul.f32 %v1887, %v2178
        %v2187 = vmul.f32 %v1892, %v2178
        %v2188 = vmul.f32 %v1897, %v2178
        %v2189 = vmul.f32 %v1902, %v2178
        %v2190 = vmul.f32 %v1907, %v2178
        %v2191 = vmul.f32 %v1912, %v2178
        %v2192 = vmul.f32 %v1917, %v2178
        %v2193 = vmul.f32 %v1922, %v2178
        %v2194 = vmul.f32 %v1927, %v2178
        %v2195 = vmul.f32 %v1932, %v2178
        %v2196 = vmul.f32 %v1937, %v2178
        %v2197 = vmul.f32 %v1942, %v2178
        %v2198 = vmul.f32 %v1947, %v2178
        %v2199 = vmul.f32 %v1952, %v2178
        %v2200 = vmul.f32 %v1957, %v2178
        %v2201 = vmul.f32 %v1962, %v2178
        %v2202 = vmul.f32 %v1967, %v2178
        %v2203 = vmul.f32 %v1972, %v2178
        %v2204 = vmul.f32 %v1977, %v2178
        %v2205 = vmul.f32 %v1982, %v2178
        %v2206 = vmul.f32 %v1987, %v2178
        %v2207 = vmul.f32 %v1992, %v2178
        %v2208 = vmul.f32 %v1997, %v2178
        %v2209 = vmul.f32 %v2002, %v2178
        %v2210 = vmul.f32 %v2007, %v2178
        %v2211 = vmul.f32 %v2012, %v2178
        %v2212 = vmul.f32 %v2017, %v2178
        %v2213 = vmul.f32 %v2022, %v2178
        %v2214 = vmul.f32 %v2027, %v2178
        %v2215 = vmul.f32 %v2032, %v2178
        %v2216 = vmul.f32 %v2037, %v2178
        %v2217 = vmul.f32 %v2042, %v2178
        %v2218 = vmul.f32 %v2047, %v2178
        %v2219 = vmul.f32 %v2052, %v2178
        %v2220 = vmul.f32 %v2057, %v2178
        %v2221 = vmul.f32 %v2062, %v2178
        %v2222 = vmul.f32 %v2067, %v2178
        %v2223 = vmul.f32 %v2072, %v2178
        %v2224 = vmul.f32 %v2077, %v2178
        %v2225 = vmul.f32 %v2082, %v2178
        %v2226 = vmul.f32 %v2087, %v2178
        %v2227 = vmul.f32 %v2092, %v2178
        %v2228 = vmul.f32 %v2097, %v2178
        %v2229 = vmul.f32 %v2102, %v2178
        %v2230 = vmul.f32 %v2107, %v2178
        %v2231 = vmul.f32 %v2112, %v2178
        %v2232 = vmul.f32 %v2117, %v2178
        %v2233 = vmul.f32 %v2122, %v2178
        %v2234 = vmul.f32 %v2127, %v2178
        %v2235 = vmul.f32 %v2132, %v2178
        %v2236 = vmul.f32 %v2137, %v2178
        %v2237 = vmul.f32 %v2142, %v2178
        %v2238 = vmul.f32 %v2147, %v2178
        %v2239 = vmul.f32 %v2152, %v2178
        %v2240 = vmul.f32 %v2157, %v2178
        %v2241 = vmul.f32 %v2162, %v2178
        %v2242 = vmul.f32 %v2167, %v2178
        %v2243 = vmul.f32 %v2172, %v2178
        %v2244 = vadd.f32 %v1722, %v2180
        %v2245 = vadd.f32 %v1723, %v2181
        %v2246 = vadd.f32 %v1724, %v2182
        %v2247 = vadd.f32 %v1725, %v2183
        %v2248 = vadd.f32 %v1726, %v2184
        %v2249 = vadd.f32 %v1727, %v2185
        %v2250 = vadd.f32 %v1728, %v2186
        %v2251 = vadd.f32 %v1729, %v2187
        %v2252 = vadd.f32 %v1730, %v2188
        %v2253 = vadd.f32 %v1731, %v2189
        %v2254 = vadd.f32 %v1732, %v2190
        %v2255 = vadd.f32 %v1733, %v2191
        %v2256 = vadd.f32 %v1734, %v2192
        %v2257 = vadd.f32 %v1735, %v2193
        %v2258 = vadd.f32 %v1736, %v2194
        %v2259 = vadd.f32 %v1737, %v2195
        %v2260 = vadd.f32 %v1738, %v2196
        %v2261 = vadd.f32 %v1739, %v2197
        %v2262 = vadd.f32 %v1740, %v2198
        %v2263 = vadd.f32 %v1741, %v2199
        %v2264 = vadd.f32 %v1742, %v2200
        %v2265 = vadd.f32 %v1743, %v2201
        %v2266 = vadd.f32 %v1744, %v2202
        %v2267 = vadd.f32 %v1745, %v2203
        %v2268 = vadd.f32 %v1746, %v2204
        %v2269 = vadd.f32 %v1747, %v2205
        %v2270 = vadd.f32 %v1748, %v2206
        %v2271 = vadd.f32 %v1749, %v2207
        %v2272 = vadd.f32 %v1750, %v2208
        %v2273 = vadd.f32 %v1751, %v2209
        %v2274 = vadd.f32 %v1752, %v2210
        %v2275 = vadd.f32 %v1753, %v2211
        %v2276 = vadd.f32 %v1754, %v2212
        %v2277 = vadd.f32 %v1755, %v2213
        %v2278 = vadd.f32 %v1756, %v2214
        %v2279 = vadd.f32 %v1757, %v2215
        %v2280 = vadd.f32 %v1758, %v2216
        %v2281 = vadd.f32 %v1759, %v2217
        %v2282 = vadd.f32 %v1760, %v2218
        %v2283 = vadd.f32 %v1761, %v2219
        %v2284 = vadd.f32 %v1762, %v2220
        %v2285 = vadd.f32 %v1763, %v2221
        %v2286 = vadd.f32 %v1764, %v2222
        %v2287 = vadd.f32 %v1765, %v2223
        %v2288 = vadd.f32 %v1766, %v2224
        %v2289 = vadd.f32 %v1767, %v2225
        %v2290 = vadd.f32 %v1768, %v2226
        %v2291 = vadd.f32 %v1769, %v2227
        %v2292 = vadd.f32 %v1770, %v2228
        %v2293 = vadd.f32 %v1771, %v2229
        %v2294 = vadd.f32 %v1772, %v2230
        %v2295 = vadd.f32 %v1773, %v2231
        %v2296 = vadd.f32 %v1774, %v2232
        %v2297 = vadd.f32 %v1775, %v2233
        %v2298 = vadd.f32 %v1776, %v2234
        %v2299 = vadd.f32 %v1777, %v2235
        %v2300 = vadd.f32 %v1778, %v2236
        %v2301 = vadd.f32 %v1779, %v2237
        %v2302 = vadd.f32 %v1780, %v2238
        %v2303 = vadd.f32 %v1781, %v2239
        %v2304 = vadd.f32 %v1782, %v2240
        %v2305 = vadd.f32 %v1783, %v2241
        %v2306 = vadd.f32 %v1784, %v2242
        %v2307 = vadd.f32 %v1785, %v2243
        %s2308 = sadd.s32 %s743, 3
        %s2309 = scalar_lea.vmem [#allocation2], %s2308
        %v2310 = vld [vmem:[%s2309] sm:$0xff]
        %v2311 = vld [vmem:[%s2309 + $0x8] sm:$0xff]
        %v2312 = vld [vmem:[%s2309 + $0x10] sm:$0xff]
        %v2313 = vld [vmem:[%s2309 + $0x18] sm:$0xff]
        %v2314 = vld [vmem:[%s2309 + $0x20] sm:$0xff]
        %v2315 = vld [vmem:[%s2309 + $0x28] sm:$0xff]
        %v2316 = vld [vmem:[%s2309 + $0x30] sm:$0xff]
        %v2317 = vld [vmem:[%s2309 + $0x38] sm:$0xff]
        %v2318 = vld [vmem:[%s2309 + $0x40] sm:$0xff]
        %v2319 = vld [vmem:[%s2309 + $0x48] sm:$0xff]
        %v2320 = vld [vmem:[%s2309 + $0x50] sm:$0xff]
        %v2321 = vld [vmem:[%s2309 + $0x58] sm:$0xff]
        %v2322 = vld [vmem:[%s2309 + $0x60] sm:$0xff]
        %v2323 = vld [vmem:[%s2309 + $0x68] sm:$0xff]
        %v2324 = vld [vmem:[%s2309 + $0x70] sm:$0xff]
        %v2325 = vld [vmem:[%s2309 + $0x78] sm:$0xff]
        %v2326 = vld [vmem:[%s2309 + $0x80] sm:$0xff]
        %v2327 = vld [vmem:[%s2309 + $0x88] sm:$0xff]
        %v2328 = vld [vmem:[%s2309 + $0x90] sm:$0xff]
        %v2329 = vld [vmem:[%s2309 + $0x98] sm:$0xff]
        %v2330 = vld [vmem:[%s2309 + $0xa0] sm:$0xff]
        %v2331 = vld [vmem:[%s2309 + $0xa8] sm:$0xff]
        %v2332 = vld [vmem:[%s2309 + $0xb0] sm:$0xff]
        %v2333 = vld [vmem:[%s2309 + $0xb8] sm:$0xff]
        %v2334 = vld [vmem:[%s2309 + $0xc0] sm:$0xff]
        %v2335 = vld [vmem:[%s2309 + $0xc8] sm:$0xff]
        %v2336 = vld [vmem:[%s2309 + $0xd0] sm:$0xff]
        %v2337 = vld [vmem:[%s2309 + $0xd8] sm:$0xff]
        %v2338 = vld [vmem:[%s2309 + $0xe0] sm:$0xff]
        %v2339 = vld [vmem:[%s2309 + $0xe8] sm:$0xff]
        %v2340 = vld [vmem:[%s2309 + $0xf0] sm:$0xff]
        %v2341 = vld [vmem:[%s2309 + $0xf8] sm:$0xff]
        %v2342 = vld [vmem:[%s2309 + $0x100] sm:$0xff]
        %v2343 = vld [vmem:[%s2309 + $0x108] sm:$0xff]
        %v2344 = vld [vmem:[%s2309 + $0x110] sm:$0xff]
        %v2345 = vld [vmem:[%s2309 + $0x118] sm:$0xff]
        %v2346 = vld [vmem:[%s2309 + $0x120] sm:$0xff]
        %v2347 = vld [vmem:[%s2309 + $0x128] sm:$0xff]
        %v2348 = vld [vmem:[%s2309 + $0x130] sm:$0xff]
        %v2349 = vld [vmem:[%s2309 + $0x138] sm:$0xff]
        %v2350 = vld [vmem:[%s2309 + $0x140] sm:$0xff]
        %v2351 = vld [vmem:[%s2309 + $0x148] sm:$0xff]
        %v2352 = vld [vmem:[%s2309 + $0x150] sm:$0xff]
        %v2353 = vld [vmem:[%s2309 + $0x158] sm:$0xff]
        %v2354 = vld [vmem:[%s2309 + $0x160] sm:$0xff]
        %v2355 = vld [vmem:[%s2309 + $0x168] sm:$0xff]
        %v2356 = vld [vmem:[%s2309 + $0x170] sm:$0xff]
        %v2357 = vld [vmem:[%s2309 + $0x178] sm:$0xff]
        %v2358 = vld [vmem:[%s2309 + $0x180] sm:$0xff]
        %v2359 = vld [vmem:[%s2309 + $0x188] sm:$0xff]
        %v2360 = vld [vmem:[%s2309 + $0x190] sm:$0xff]
        %v2361 = vld [vmem:[%s2309 + $0x198] sm:$0xff]
        %v2362 = vld [vmem:[%s2309 + $0x1a0] sm:$0xff]
        %v2363 = vld [vmem:[%s2309 + $0x1a8] sm:$0xff]
        %v2364 = vld [vmem:[%s2309 + $0x1b0] sm:$0xff]
        %v2365 = vld [vmem:[%s2309 + $0x1b8] sm:$0xff]
        %v2366 = vld [vmem:[%s2309 + $0x1c0] sm:$0xff]
        %v2367 = vld [vmem:[%s2309 + $0x1c8] sm:$0xff]
        %v2368 = vld [vmem:[%s2309 + $0x1d0] sm:$0xff]
        %v2369 = vld [vmem:[%s2309 + $0x1d8] sm:$0xff]
        %v2370 = vld [vmem:[%s2309 + $0x1e0] sm:$0xff]
        %v2371 = vld [vmem:[%s2309 + $0x1e8] sm:$0xff]
        %v2372 = vld [vmem:[%s2309 + $0x1f0] sm:$0xff]
        %v2373 = vld [vmem:[%s2309 + $0x1f8] sm:$0xff]
        %s2374 = scalar_lea.vmem %s216, 3
        %v2375 = vld [vmem:[%s2374] sm:$0x1]
        %2377 = vset.pattern.permute.xlu0 0
        %2378 = vperm.xlu0 %2377, %v2310
        %v2379 = vpop.permute.xlu0 %2378
        %2382 = vset.pattern.permute.xlu0 0
        %2383 = vperm.xlu0 %2382, %v2311
        %v2384 = vpop.permute.xlu0 %2383
        %2387 = vset.pattern.permute.xlu0 0
        %2388 = vperm.xlu0 %2387, %v2312
        %v2389 = vpop.permute.xlu0 %2388
        %2392 = vset.pattern.permute.xlu0 0
        %2393 = vperm.xlu0 %2392, %v2313
        %v2394 = vpop.permute.xlu0 %2393
        %2397 = vset.pattern.permute.xlu0 0
        %2398 = vperm.xlu0 %2397, %v2314
        %v2399 = vpop.permute.xlu0 %2398
        %2402 = vset.pattern.permute.xlu0 0
        %2403 = vperm.xlu0 %2402, %v2315
        %v2404 = vpop.permute.xlu0 %2403
        %2407 = vset.pattern.permute.xlu0 0
        %2408 = vperm.xlu0 %2407, %v2316
        %v2409 = vpop.permute.xlu0 %2408
        %2412 = vset.pattern.permute.xlu0 0
        %2413 = vperm.xlu0 %2412, %v2317
        %v2414 = vpop.permute.xlu0 %2413
        %2417 = vset.pattern.permute.xlu0 0
        %2418 = vperm.xlu0 %2417, %v2318
        %v2419 = vpop.permute.xlu0 %2418
        %2422 = vset.pattern.permute.xlu0 0
        %2423 = vperm.xlu0 %2422, %v2319
        %v2424 = vpop.permute.xlu0 %2423
        %2427 = vset.pattern.permute.xlu0 0
        %2428 = vperm.xlu0 %2427, %v2320
        %v2429 = vpop.permute.xlu0 %2428
        %2432 = vset.pattern.permute.xlu0 0
        %2433 = vperm.xlu0 %2432, %v2321
        %v2434 = vpop.permute.xlu0 %2433
        %2437 = vset.pattern.permute.xlu0 0
        %2438 = vperm.xlu0 %2437, %v2322
        %v2439 = vpop.permute.xlu0 %2438
        %2442 = vset.pattern.permute.xlu0 0
        %2443 = vperm.xlu0 %2442, %v2323
        %v2444 = vpop.permute.xlu0 %2443
        %2447 = vset.pattern.permute.xlu0 0
        %2448 = vperm.xlu0 %2447, %v2324
        %v2449 = vpop.permute.xlu0 %2448
        %2452 = vset.pattern.permute.xlu0 0
        %2453 = vperm.xlu0 %2452, %v2325
        %v2454 = vpop.permute.xlu0 %2453
        %2457 = vset.pattern.permute.xlu0 0
        %2458 = vperm.xlu0 %2457, %v2326
        %v2459 = vpop.permute.xlu0 %2458
        %2462 = vset.pattern.permute.xlu0 0
        %2463 = vperm.xlu0 %2462, %v2327
        %v2464 = vpop.permute.xlu0 %2463
        %2467 = vset.pattern.permute.xlu0 0
        %2468 = vperm.xlu0 %2467, %v2328
        %v2469 = vpop.permute.xlu0 %2468
        %2472 = vset.pattern.permute.xlu0 0
        %2473 = vperm.xlu0 %2472, %v2329
        %v2474 = vpop.permute.xlu0 %2473
        %2477 = vset.pattern.permute.xlu0 0
        %2478 = vperm.xlu0 %2477, %v2330
        %v2479 = vpop.permute.xlu0 %2478
        %2482 = vset.pattern.permute.xlu0 0
        %2483 = vperm.xlu0 %2482, %v2331
        %v2484 = vpop.permute.xlu0 %2483
        %2487 = vset.pattern.permute.xlu0 0
        %2488 = vperm.xlu0 %2487, %v2332
        %v2489 = vpop.permute.xlu0 %2488
        %2492 = vset.pattern.permute.xlu0 0
        %2493 = vperm.xlu0 %2492, %v2333
        %v2494 = vpop.permute.xlu0 %2493
        %2497 = vset.pattern.permute.xlu0 0
        %2498 = vperm.xlu0 %2497, %v2334
        %v2499 = vpop.permute.xlu0 %2498
        %2502 = vset.pattern.permute.xlu0 0
        %2503 = vperm.xlu0 %2502, %v2335
        %v2504 = vpop.permute.xlu0 %2503
        %2507 = vset.pattern.permute.xlu0 0
        %2508 = vperm.xlu0 %2507, %v2336
        %v2509 = vpop.permute.xlu0 %2508
        %2512 = vset.pattern.permute.xlu0 0
        %2513 = vperm.xlu0 %2512, %v2337
        %v2514 = vpop.permute.xlu0 %2513
        %2517 = vset.pattern.permute.xlu0 0
        %2518 = vperm.xlu0 %2517, %v2338
        %v2519 = vpop.permute.xlu0 %2518
        %2522 = vset.pattern.permute.xlu0 0
        %2523 = vperm.xlu0 %2522, %v2339
        %v2524 = vpop.permute.xlu0 %2523
        %2527 = vset.pattern.permute.xlu0 0
        %2528 = vperm.xlu0 %2527, %v2340
        %v2529 = vpop.permute.xlu0 %2528
        %2532 = vset.pattern.permute.xlu0 0
        %2533 = vperm.xlu0 %2532, %v2341
        %v2534 = vpop.permute.xlu0 %2533
        %2537 = vset.pattern.permute.xlu0 0
        %2538 = vperm.xlu0 %2537, %v2342
        %v2539 = vpop.permute.xlu0 %2538
        %2542 = vset.pattern.permute.xlu0 0
        %2543 = vperm.xlu0 %2542, %v2343
        %v2544 = vpop.permute.xlu0 %2543
        %2547 = vset.pattern.permute.xlu0 0
        %2548 = vperm.xlu0 %2547, %v2344
        %v2549 = vpop.permute.xlu0 %2548
        %2552 = vset.pattern.permute.xlu0 0
        %2553 = vperm.xlu0 %2552, %v2345
        %v2554 = vpop.permute.xlu0 %2553
        %2557 = vset.pattern.permute.xlu0 0
        %2558 = vperm.xlu0 %2557, %v2346
        %v2559 = vpop.permute.xlu0 %2558
        %2562 = vset.pattern.permute.xlu0 0
        %2563 = vperm.xlu0 %2562, %v2347
        %v2564 = vpop.permute.xlu0 %2563
        %2567 = vset.pattern.permute.xlu0 0
        %2568 = vperm.xlu0 %2567, %v2348
        %v2569 = vpop.permute.xlu0 %2568
        %2572 = vset.pattern.permute.xlu0 0
        %2573 = vperm.xlu0 %2572, %v2349
        %v2574 = vpop.permute.xlu0 %2573
        %2577 = vset.pattern.permute.xlu0 0
        %2578 = vperm.xlu0 %2577, %v2350
        %v2579 = vpop.permute.xlu0 %2578
        %2582 = vset.pattern.permute.xlu0 0
        %2583 = vperm.xlu0 %2582, %v2351
        %v2584 = vpop.permute.xlu0 %2583
        %2587 = vset.pattern.permute.xlu0 0
        %2588 = vperm.xlu0 %2587, %v2352
        %v2589 = vpop.permute.xlu0 %2588
        %2592 = vset.pattern.permute.xlu0 0
        %2593 = vperm.xlu0 %2592, %v2353
        %v2594 = vpop.permute.xlu0 %2593
        %2597 = vset.pattern.permute.xlu0 0
        %2598 = vperm.xlu0 %2597, %v2354
        %v2599 = vpop.permute.xlu0 %2598
        %2602 = vset.pattern.permute.xlu0 0
        %2603 = vperm.xlu0 %2602, %v2355
        %v2604 = vpop.permute.xlu0 %2603
        %2607 = vset.pattern.permute.xlu0 0
        %2608 = vperm.xlu0 %2607, %v2356
        %v2609 = vpop.permute.xlu0 %2608
        %2612 = vset.pattern.permute.xlu0 0
        %2613 = vperm.xlu0 %2612, %v2357
        %v2614 = vpop.permute.xlu0 %2613
        %2617 = vset.pattern.permute.xlu0 0
        %2618 = vperm.xlu0 %2617, %v2358
        %v2619 = vpop.permute.xlu0 %2618
        %2622 = vset.pattern.permute.xlu0 0
        %2623 = vperm.xlu0 %2622, %v2359
        %v2624 = vpop.permute.xlu0 %2623
        %2627 = vset.pattern.permute.xlu0 0
        %2628 = vperm.xlu0 %2627, %v2360
        %v2629 = vpop.permute.xlu0 %2628
        %2632 = vset.pattern.permute.xlu0 0
        %2633 = vperm.xlu0 %2632, %v2361
        %v2634 = vpop.permute.xlu0 %2633
        %2637 = vset.pattern.permute.xlu0 0
        %2638 = vperm.xlu0 %2637, %v2362
        %v2639 = vpop.permute.xlu0 %2638
        %2642 = vset.pattern.permute.xlu0 0
        %2643 = vperm.xlu0 %2642, %v2363
        %v2644 = vpop.permute.xlu0 %2643
        %2647 = vset.pattern.permute.xlu0 0
        %2648 = vperm.xlu0 %2647, %v2364
        %v2649 = vpop.permute.xlu0 %2648
        %2652 = vset.pattern.permute.xlu0 0
        %2653 = vperm.xlu0 %2652, %v2365
        %v2654 = vpop.permute.xlu0 %2653
        %2657 = vset.pattern.permute.xlu0 0
        %2658 = vperm.xlu0 %2657, %v2366
        %v2659 = vpop.permute.xlu0 %2658
        %2662 = vset.pattern.permute.xlu0 0
        %2663 = vperm.xlu0 %2662, %v2367
        %v2664 = vpop.permute.xlu0 %2663
        %2667 = vset.pattern.permute.xlu0 0
        %2668 = vperm.xlu0 %2667, %v2368
        %v2669 = vpop.permute.xlu0 %2668
        %2672 = vset.pattern.permute.xlu0 0
        %2673 = vperm.xlu0 %2672, %v2369
        %v2674 = vpop.permute.xlu0 %2673
        %2677 = vset.pattern.permute.xlu0 0
        %2678 = vperm.xlu0 %2677, %v2370
        %v2679 = vpop.permute.xlu0 %2678
        %2682 = vset.pattern.permute.xlu0 0
        %2683 = vperm.xlu0 %2682, %v2371
        %v2684 = vpop.permute.xlu0 %2683
        %2687 = vset.pattern.permute.xlu0 0
        %2688 = vperm.xlu0 %2687, %v2372
        %v2689 = vpop.permute.xlu0 %2688
        %2692 = vset.pattern.permute.xlu0 0
        %2693 = vperm.xlu0 %2692, %v2373
        %v2694 = vpop.permute.xlu0 %2693
        %v2697 = vlaneseq
        %v2698 = vshrl.u32 %v2697, 7
        %v2699 = vsub.s32 0, %v2698
        %v2700 = vrot.slane %v2375, %v2699
        %v2702 = vmul.f32 %v2379, %v2700
        %v2703 = vmul.f32 %v2384, %v2700
        %v2704 = vmul.f32 %v2389, %v2700
        %v2705 = vmul.f32 %v2394, %v2700
        %v2706 = vmul.f32 %v2399, %v2700
        %v2707 = vmul.f32 %v2404, %v2700
        %v2708 = vmul.f32 %v2409, %v2700
        %v2709 = vmul.f32 %v2414, %v2700
        %v2710 = vmul.f32 %v2419, %v2700
        %v2711 = vmul.f32 %v2424, %v2700
        %v2712 = vmul.f32 %v2429, %v2700
        %v2713 = vmul.f32 %v2434, %v2700
        %v2714 = vmul.f32 %v2439, %v2700
        %v2715 = vmul.f32 %v2444, %v2700
        %v2716 = vmul.f32 %v2449, %v2700
        %v2717 = vmul.f32 %v2454, %v2700
        %v2718 = vmul.f32 %v2459, %v2700
        %v2719 = vmul.f32 %v2464, %v2700
        %v2720 = vmul.f32 %v2469, %v2700
        %v2721 = vmul.f32 %v2474, %v2700
        %v2722 = vmul.f32 %v2479, %v2700
        %v2723 = vmul.f32 %v2484, %v2700
        %v2724 = vmul.f32 %v2489, %v2700
        %v2725 = vmul.f32 %v2494, %v2700
        %v2726 = vmul.f32 %v2499, %v2700
        %v2727 = vmul.f32 %v2504, %v2700
        %v2728 = vmul.f32 %v2509, %v2700
        %v2729 = vmul.f32 %v2514, %v2700
        %v2730 = vmul.f32 %v2519, %v2700
        %v2731 = vmul.f32 %v2524, %v2700
        %v2732 = vmul.f32 %v2529, %v2700
        %v2733 = vmul.f32 %v2534, %v2700
        %v2734 = vmul.f32 %v2539, %v2700
        %v2735 = vmul.f32 %v2544, %v2700
        %v2736 = vmul.f32 %v2549, %v2700
        %v2737 = vmul.f32 %v2554, %v2700
        %v2738 = vmul.f32 %v2559, %v2700
        %v2739 = vmul.f32 %v2564, %v2700
        %v2740 = vmul.f32 %v2569, %v2700
        %v2741 = vmul.f32 %v2574, %v2700
        %v2742 = vmul.f32 %v2579, %v2700
        %v2743 = vmul.f32 %v2584, %v2700
        %v2744 = vmul.f32 %v2589, %v2700
        %v2745 = vmul.f32 %v2594, %v2700
        %v2746 = vmul.f32 %v2599, %v2700
        %v2747 = vmul.f32 %v2604, %v2700
        %v2748 = vmul.f32 %v2609, %v2700
        %v2749 = vmul.f32 %v2614, %v2700
        %v2750 = vmul.f32 %v2619, %v2700
        %v2751 = vmul.f32 %v2624, %v2700
        %v2752 = vmul.f32 %v2629, %v2700
        %v2753 = vmul.f32 %v2634, %v2700
        %v2754 = vmul.f32 %v2639, %v2700
        %v2755 = vmul.f32 %v2644, %v2700
        %v2756 = vmul.f32 %v2649, %v2700
        %v2757 = vmul.f32 %v2654, %v2700
        %v2758 = vmul.f32 %v2659, %v2700
        %v2759 = vmul.f32 %v2664, %v2700
        %v2760 = vmul.f32 %v2669, %v2700
        %v2761 = vmul.f32 %v2674, %v2700
        %v2762 = vmul.f32 %v2679, %v2700
        %v2763 = vmul.f32 %v2684, %v2700
        %v2764 = vmul.f32 %v2689, %v2700
        %v2765 = vmul.f32 %v2694, %v2700
        %v2766 = vadd.f32 %v2244, %v2702
        %v2767 = vadd.f32 %v2245, %v2703
        %v2768 = vadd.f32 %v2246, %v2704
        %v2769 = vadd.f32 %v2247, %v2705
        %v2770 = vadd.f32 %v2248, %v2706
        %v2771 = vadd.f32 %v2249, %v2707
        %v2772 = vadd.f32 %v2250, %v2708
        %v2773 = vadd.f32 %v2251, %v2709
        %v2774 = vadd.f32 %v2252, %v2710
        %v2775 = vadd.f32 %v2253, %v2711
        %v2776 = vadd.f32 %v2254, %v2712
        %v2777 = vadd.f32 %v2255, %v2713
        %v2778 = vadd.f32 %v2256, %v2714
        %v2779 = vadd.f32 %v2257, %v2715
        %v2780 = vadd.f32 %v2258, %v2716
        %v2781 = vadd.f32 %v2259, %v2717
        %v2782 = vadd.f32 %v2260, %v2718
        %v2783 = vadd.f32 %v2261, %v2719
        %v2784 = vadd.f32 %v2262, %v2720
        %v2785 = vadd.f32 %v2263, %v2721
        %v2786 = vadd.f32 %v2264, %v2722
        %v2787 = vadd.f32 %v2265, %v2723
        %v2788 = vadd.f32 %v2266, %v2724
        %v2789 = vadd.f32 %v2267, %v2725
        %v2790 = vadd.f32 %v2268, %v2726
        %v2791 = vadd.f32 %v2269, %v2727
        %v2792 = vadd.f32 %v2270, %v2728
        %v2793 = vadd.f32 %v2271, %v2729
        %v2794 = vadd.f32 %v2272, %v2730
        %v2795 = vadd.f32 %v2273, %v2731
        %v2796 = vadd.f32 %v2274, %v2732
        %v2797 = vadd.f32 %v2275, %v2733
        %v2798 = vadd.f32 %v2276, %v2734
        %v2799 = vadd.f32 %v2277, %v2735
        %v2800 = vadd.f32 %v2278, %v2736
        %v2801 = vadd.f32 %v2279, %v2737
        %v2802 = vadd.f32 %v2280, %v2738
        %v2803 = vadd.f32 %v2281, %v2739
        %v2804 = vadd.f32 %v2282, %v2740
        %v2805 = vadd.f32 %v2283, %v2741
        %v2806 = vadd.f32 %v2284, %v2742
        %v2807 = vadd.f32 %v2285, %v2743
        %v2808 = vadd.f32 %v2286, %v2744
        %v2809 = vadd.f32 %v2287, %v2745
        %v2810 = vadd.f32 %v2288, %v2746
        %v2811 = vadd.f32 %v2289, %v2747
        %v2812 = vadd.f32 %v2290, %v2748
        %v2813 = vadd.f32 %v2291, %v2749
        %v2814 = vadd.f32 %v2292, %v2750
        %v2815 = vadd.f32 %v2293, %v2751
        %v2816 = vadd.f32 %v2294, %v2752
        %v2817 = vadd.f32 %v2295, %v2753
        %v2818 = vadd.f32 %v2296, %v2754
        %v2819 = vadd.f32 %v2297, %v2755
        %v2820 = vadd.f32 %v2298, %v2756
        %v2821 = vadd.f32 %v2299, %v2757
        %v2822 = vadd.f32 %v2300, %v2758
        %v2823 = vadd.f32 %v2301, %v2759
        %v2824 = vadd.f32 %v2302, %v2760
        %v2825 = vadd.f32 %v2303, %v2761
        %v2826 = vadd.f32 %v2304, %v2762
        %v2827 = vadd.f32 %v2305, %v2763
        %v2828 = vadd.f32 %v2306, %v2764
        %v2829 = vadd.f32 %v2307, %v2765
        %s2830 = sadd.s32 %s743, 4
        %s2831 = scalar_lea.vmem [#allocation2], %s2830
        %v2832 = vld [vmem:[%s2831] sm:$0xff]
        %v2833 = vld [vmem:[%s2831 + $0x8] sm:$0xff]
        %v2834 = vld [vmem:[%s2831 + $0x10] sm:$0xff]
        %v2835 = vld [vmem:[%s2831 + $0x18] sm:$0xff]
        %v2836 = vld [vmem:[%s2831 + $0x20] sm:$0xff]
        %v2837 = vld [vmem:[%s2831 + $0x28] sm:$0xff]
        %v2838 = vld [vmem:[%s2831 + $0x30] sm:$0xff]
        %v2839 = vld [vmem:[%s2831 + $0x38] sm:$0xff]
        %v2840 = vld [vmem:[%s2831 + $0x40] sm:$0xff]
        %v2841 = vld [vmem:[%s2831 + $0x48] sm:$0xff]
        %v2842 = vld [vmem:[%s2831 + $0x50] sm:$0xff]
        %v2843 = vld [vmem:[%s2831 + $0x58] sm:$0xff]
        %v2844 = vld [vmem:[%s2831 + $0x60] sm:$0xff]
        %v2845 = vld [vmem:[%s2831 + $0x68] sm:$0xff]
        %v2846 = vld [vmem:[%s2831 + $0x70] sm:$0xff]
        %v2847 = vld [vmem:[%s2831 + $0x78] sm:$0xff]
        %v2848 = vld [vmem:[%s2831 + $0x80] sm:$0xff]
        %v2849 = vld [vmem:[%s2831 + $0x88] sm:$0xff]
        %v2850 = vld [vmem:[%s2831 + $0x90] sm:$0xff]
        %v2851 = vld [vmem:[%s2831 + $0x98] sm:$0xff]
        %v2852 = vld [vmem:[%s2831 + $0xa0] sm:$0xff]
        %v2853 = vld [vmem:[%s2831 + $0xa8] sm:$0xff]
        %v2854 = vld [vmem:[%s2831 + $0xb0] sm:$0xff]
        %v2855 = vld [vmem:[%s2831 + $0xb8] sm:$0xff]
        %v2856 = vld [vmem:[%s2831 + $0xc0] sm:$0xff]
        %v2857 = vld [vmem:[%s2831 + $0xc8] sm:$0xff]
        %v2858 = vld [vmem:[%s2831 + $0xd0] sm:$0xff]
        %v2859 = vld [vmem:[%s2831 + $0xd8] sm:$0xff]
        %v2860 = vld [vmem:[%s2831 + $0xe0] sm:$0xff]
        %v2861 = vld [vmem:[%s2831 + $0xe8] sm:$0xff]
        %v2862 = vld [vmem:[%s2831 + $0xf0] sm:$0xff]
        %v2863 = vld [vmem:[%s2831 + $0xf8] sm:$0xff]
        %v2864 = vld [vmem:[%s2831 + $0x100] sm:$0xff]
        %v2865 = vld [vmem:[%s2831 + $0x108] sm:$0xff]
        %v2866 = vld [vmem:[%s2831 + $0x110] sm:$0xff]
        %v2867 = vld [vmem:[%s2831 + $0x118] sm:$0xff]
        %v2868 = vld [vmem:[%s2831 + $0x120] sm:$0xff]
        %v2869 = vld [vmem:[%s2831 + $0x128] sm:$0xff]
        %v2870 = vld [vmem:[%s2831 + $0x130] sm:$0xff]
        %v2871 = vld [vmem:[%s2831 + $0x138] sm:$0xff]
        %v2872 = vld [vmem:[%s2831 + $0x140] sm:$0xff]
        %v2873 = vld [vmem:[%s2831 + $0x148] sm:$0xff]
        %v2874 = vld [vmem:[%s2831 + $0x150] sm:$0xff]
        %v2875 = vld [vmem:[%s2831 + $0x158] sm:$0xff]
        %v2876 = vld [vmem:[%s2831 + $0x160] sm:$0xff]
        %v2877 = vld [vmem:[%s2831 + $0x168] sm:$0xff]
        %v2878 = vld [vmem:[%s2831 + $0x170] sm:$0xff]
        %v2879 = vld [vmem:[%s2831 + $0x178] sm:$0xff]
        %v2880 = vld [vmem:[%s2831 + $0x180] sm:$0xff]
        %v2881 = vld [vmem:[%s2831 + $0x188] sm:$0xff]
        %v2882 = vld [vmem:[%s2831 + $0x190] sm:$0xff]
        %v2883 = vld [vmem:[%s2831 + $0x198] sm:$0xff]
        %v2884 = vld [vmem:[%s2831 + $0x1a0] sm:$0xff]
        %v2885 = vld [vmem:[%s2831 + $0x1a8] sm:$0xff]
        %v2886 = vld [vmem:[%s2831 + $0x1b0] sm:$0xff]
        %v2887 = vld [vmem:[%s2831 + $0x1b8] sm:$0xff]
        %v2888 = vld [vmem:[%s2831 + $0x1c0] sm:$0xff]
        %v2889 = vld [vmem:[%s2831 + $0x1c8] sm:$0xff]
        %v2890 = vld [vmem:[%s2831 + $0x1d0] sm:$0xff]
        %v2891 = vld [vmem:[%s2831 + $0x1d8] sm:$0xff]
        %v2892 = vld [vmem:[%s2831 + $0x1e0] sm:$0xff]
        %v2893 = vld [vmem:[%s2831 + $0x1e8] sm:$0xff]
        %v2894 = vld [vmem:[%s2831 + $0x1f0] sm:$0xff]
        %v2895 = vld [vmem:[%s2831 + $0x1f8] sm:$0xff]
        %s2896 = scalar_lea.vmem %s216, 4
        %v2897 = vld [vmem:[%s2896] sm:$0x1]
        %2899 = vset.pattern.permute.xlu0 0
        %2900 = vperm.xlu0 %2899, %v2832
        %v2901 = vpop.permute.xlu0 %2900
        %2904 = vset.pattern.permute.xlu0 0
        %2905 = vperm.xlu0 %2904, %v2833
        %v2906 = vpop.permute.xlu0 %2905
        %2909 = vset.pattern.permute.xlu0 0
        %2910 = vperm.xlu0 %2909, %v2834
        %v2911 = vpop.permute.xlu0 %2910
        %2914 = vset.pattern.permute.xlu0 0
        %2915 = vperm.xlu0 %2914, %v2835
        %v2916 = vpop.permute.xlu0 %2915
        %2919 = vset.pattern.permute.xlu0 0
        %2920 = vperm.xlu0 %2919, %v2836
        %v2921 = vpop.permute.xlu0 %2920
        %2924 = vset.pattern.permute.xlu0 0
        %2925 = vperm.xlu0 %2924, %v2837
        %v2926 = vpop.permute.xlu0 %2925
        %2929 = vset.pattern.permute.xlu0 0
        %2930 = vperm.xlu0 %2929, %v2838
        %v2931 = vpop.permute.xlu0 %2930
        %2934 = vset.pattern.permute.xlu0 0
        %2935 = vperm.xlu0 %2934, %v2839
        %v2936 = vpop.permute.xlu0 %2935
        %2939 = vset.pattern.permute.xlu0 0
        %2940 = vperm.xlu0 %2939, %v2840
        %v2941 = vpop.permute.xlu0 %2940
        %2944 = vset.pattern.permute.xlu0 0
        %2945 = vperm.xlu0 %2944, %v2841
        %v2946 = vpop.permute.xlu0 %2945
        %2949 = vset.pattern.permute.xlu0 0
        %2950 = vperm.xlu0 %2949, %v2842
        %v2951 = vpop.permute.xlu0 %2950
        %2954 = vset.pattern.permute.xlu0 0
        %2955 = vperm.xlu0 %2954, %v2843
        %v2956 = vpop.permute.xlu0 %2955
        %2959 = vset.pattern.permute.xlu0 0
        %2960 = vperm.xlu0 %2959, %v2844
        %v2961 = vpop.permute.xlu0 %2960
        %2964 = vset.pattern.permute.xlu0 0
        %2965 = vperm.xlu0 %2964, %v2845
        %v2966 = vpop.permute.xlu0 %2965
        %2969 = vset.pattern.permute.xlu0 0
        %2970 = vperm.xlu0 %2969, %v2846
        %v2971 = vpop.permute.xlu0 %2970
        %2974 = vset.pattern.permute.xlu0 0
        %2975 = vperm.xlu0 %2974, %v2847
        %v2976 = vpop.permute.xlu0 %2975
        %2979 = vset.pattern.permute.xlu0 0
        %2980 = vperm.xlu0 %2979, %v2848
        %v2981 = vpop.permute.xlu0 %2980
        %2984 = vset.pattern.permute.xlu0 0
        %2985 = vperm.xlu0 %2984, %v2849
        %v2986 = vpop.permute.xlu0 %2985
        %2989 = vset.pattern.permute.xlu0 0
        %2990 = vperm.xlu0 %2989, %v2850
        %v2991 = vpop.permute.xlu0 %2990
        %2994 = vset.pattern.permute.xlu0 0
        %2995 = vperm.xlu0 %2994, %v2851
        %v2996 = vpop.permute.xlu0 %2995
        %2999 = vset.pattern.permute.xlu0 0
        %3000 = vperm.xlu0 %2999, %v2852
        %v3001 = vpop.permute.xlu0 %3000
        %3004 = vset.pattern.permute.xlu0 0
        %3005 = vperm.xlu0 %3004, %v2853
        %v3006 = vpop.permute.xlu0 %3005
        %3009 = vset.pattern.permute.xlu0 0
        %3010 = vperm.xlu0 %3009, %v2854
        %v3011 = vpop.permute.xlu0 %3010
        %3014 = vset.pattern.permute.xlu0 0
        %3015 = vperm.xlu0 %3014, %v2855
        %v3016 = vpop.permute.xlu0 %3015
        %3019 = vset.pattern.permute.xlu0 0
        %3020 = vperm.xlu0 %3019, %v2856
        %v3021 = vpop.permute.xlu0 %3020
        %3024 = vset.pattern.permute.xlu0 0
        %3025 = vperm.xlu0 %3024, %v2857
        %v3026 = vpop.permute.xlu0 %3025
        %3029 = vset.pattern.permute.xlu0 0
        %3030 = vperm.xlu0 %3029, %v2858
        %v3031 = vpop.permute.xlu0 %3030
        %3034 = vset.pattern.permute.xlu0 0
        %3035 = vperm.xlu0 %3034, %v2859
        %v3036 = vpop.permute.xlu0 %3035
        %3039 = vset.pattern.permute.xlu0 0
        %3040 = vperm.xlu0 %3039, %v2860
        %v3041 = vpop.permute.xlu0 %3040
        %3044 = vset.pattern.permute.xlu0 0
        %3045 = vperm.xlu0 %3044, %v2861
        %v3046 = vpop.permute.xlu0 %3045
        %3049 = vset.pattern.permute.xlu0 0
        %3050 = vperm.xlu0 %3049, %v2862
        %v3051 = vpop.permute.xlu0 %3050
        %3054 = vset.pattern.permute.xlu0 0
        %3055 = vperm.xlu0 %3054, %v2863
        %v3056 = vpop.permute.xlu0 %3055
        %3059 = vset.pattern.permute.xlu0 0
        %3060 = vperm.xlu0 %3059, %v2864
        %v3061 = vpop.permute.xlu0 %3060
        %3064 = vset.pattern.permute.xlu0 0
        %3065 = vperm.xlu0 %3064, %v2865
        %v3066 = vpop.permute.xlu0 %3065
        %3069 = vset.pattern.permute.xlu0 0
        %3070 = vperm.xlu0 %3069, %v2866
        %v3071 = vpop.permute.xlu0 %3070
        %3074 = vset.pattern.permute.xlu0 0
        %3075 = vperm.xlu0 %3074, %v2867
        %v3076 = vpop.permute.xlu0 %3075
        %3079 = vset.pattern.permute.xlu0 0
        %3080 = vperm.xlu0 %3079, %v2868
        %v3081 = vpop.permute.xlu0 %3080
        %3084 = vset.pattern.permute.xlu0 0
        %3085 = vperm.xlu0 %3084, %v2869
        %v3086 = vpop.permute.xlu0 %3085
        %3089 = vset.pattern.permute.xlu0 0
        %3090 = vperm.xlu0 %3089, %v2870
        %v3091 = vpop.permute.xlu0 %3090
        %3094 = vset.pattern.permute.xlu0 0
        %3095 = vperm.xlu0 %3094, %v2871
        %v3096 = vpop.permute.xlu0 %3095
        %3099 = vset.pattern.permute.xlu0 0
        %3100 = vperm.xlu0 %3099, %v2872
        %v3101 = vpop.permute.xlu0 %3100
        %3104 = vset.pattern.permute.xlu0 0
        %3105 = vperm.xlu0 %3104, %v2873
        %v3106 = vpop.permute.xlu0 %3105
        %3109 = vset.pattern.permute.xlu0 0
        %3110 = vperm.xlu0 %3109, %v2874
        %v3111 = vpop.permute.xlu0 %3110
        %3114 = vset.pattern.permute.xlu0 0
        %3115 = vperm.xlu0 %3114, %v2875
        %v3116 = vpop.permute.xlu0 %3115
        %3119 = vset.pattern.permute.xlu0 0
        %3120 = vperm.xlu0 %3119, %v2876
        %v3121 = vpop.permute.xlu0 %3120
        %3124 = vset.pattern.permute.xlu0 0
        %3125 = vperm.xlu0 %3124, %v2877
        %v3126 = vpop.permute.xlu0 %3125
        %3129 = vset.pattern.permute.xlu0 0
        %3130 = vperm.xlu0 %3129, %v2878
        %v3131 = vpop.permute.xlu0 %3130
        %3134 = vset.pattern.permute.xlu0 0
        %3135 = vperm.xlu0 %3134, %v2879
        %v3136 = vpop.permute.xlu0 %3135
        %3139 = vset.pattern.permute.xlu0 0
        %3140 = vperm.xlu0 %3139, %v2880
        %v3141 = vpop.permute.xlu0 %3140
        %3144 = vset.pattern.permute.xlu0 0
        %3145 = vperm.xlu0 %3144, %v2881
        %v3146 = vpop.permute.xlu0 %3145
        %3149 = vset.pattern.permute.xlu0 0
        %3150 = vperm.xlu0 %3149, %v2882
        %v3151 = vpop.permute.xlu0 %3150
        %3154 = vset.pattern.permute.xlu0 0
        %3155 = vperm.xlu0 %3154, %v2883
        %v3156 = vpop.permute.xlu0 %3155
        %3159 = vset.pattern.permute.xlu0 0
        %3160 = vperm.xlu0 %3159, %v2884
        %v3161 = vpop.permute.xlu0 %3160
        %3164 = vset.pattern.permute.xlu0 0
        %3165 = vperm.xlu0 %3164, %v2885
        %v3166 = vpop.permute.xlu0 %3165
        %3169 = vset.pattern.permute.xlu0 0
        %3170 = vperm.xlu0 %3169, %v2886
        %v3171 = vpop.permute.xlu0 %3170
        %3174 = vset.pattern.permute.xlu0 0
        %3175 = vperm.xlu0 %3174, %v2887
        %v3176 = vpop.permute.xlu0 %3175
        %3179 = vset.pattern.permute.xlu0 0
        %3180 = vperm.xlu0 %3179, %v2888
        %v3181 = vpop.permute.xlu0 %3180
        %3184 = vset.pattern.permute.xlu0 0
        %3185 = vperm.xlu0 %3184, %v2889
        %v3186 = vpop.permute.xlu0 %3185
        %3189 = vset.pattern.permute.xlu0 0
        %3190 = vperm.xlu0 %3189, %v2890
        %v3191 = vpop.permute.xlu0 %3190
        %3194 = vset.pattern.permute.xlu0 0
        %3195 = vperm.xlu0 %3194, %v2891
        %v3196 = vpop.permute.xlu0 %3195
        %3199 = vset.pattern.permute.xlu0 0
        %3200 = vperm.xlu0 %3199, %v2892
        %v3201 = vpop.permute.xlu0 %3200
        %3204 = vset.pattern.permute.xlu0 0
        %3205 = vperm.xlu0 %3204, %v2893
        %v3206 = vpop.permute.xlu0 %3205
        %3209 = vset.pattern.permute.xlu0 0
        %3210 = vperm.xlu0 %3209, %v2894
        %v3211 = vpop.permute.xlu0 %3210
        %3214 = vset.pattern.permute.xlu0 0
        %3215 = vperm.xlu0 %3214, %v2895
        %v3216 = vpop.permute.xlu0 %3215
        %v3219 = vlaneseq
        %v3220 = vshrl.u32 %v3219, 7
        %v3221 = vsub.s32 0, %v3220
        %v3222 = vrot.slane %v2897, %v3221
        %v3224 = vmul.f32 %v2901, %v3222
        %v3225 = vmul.f32 %v2906, %v3222
        %v3226 = vmul.f32 %v2911, %v3222
        %v3227 = vmul.f32 %v2916, %v3222
        %v3228 = vmul.f32 %v2921, %v3222
        %v3229 = vmul.f32 %v2926, %v3222
        %v3230 = vmul.f32 %v2931, %v3222
        %v3231 = vmul.f32 %v2936, %v3222
        %v3232 = vmul.f32 %v2941, %v3222
        %v3233 = vmul.f32 %v2946, %v3222
        %v3234 = vmul.f32 %v2951, %v3222
        %v3235 = vmul.f32 %v2956, %v3222
        %v3236 = vmul.f32 %v2961, %v3222
        %v3237 = vmul.f32 %v2966, %v3222
        %v3238 = vmul.f32 %v2971, %v3222
        %v3239 = vmul.f32 %v2976, %v3222
        %v3240 = vmul.f32 %v2981, %v3222
        %v3241 = vmul.f32 %v2986, %v3222
        %v3242 = vmul.f32 %v2991, %v3222
        %v3243 = vmul.f32 %v2996, %v3222
        %v3244 = vmul.f32 %v3001, %v3222
        %v3245 = vmul.f32 %v3006, %v3222
        %v3246 = vmul.f32 %v3011, %v3222
        %v3247 = vmul.f32 %v3016, %v3222
        %v3248 = vmul.f32 %v3021, %v3222
        %v3249 = vmul.f32 %v3026, %v3222
        %v3250 = vmul.f32 %v3031, %v3222
        %v3251 = vmul.f32 %v3036, %v3222
        %v3252 = vmul.f32 %v3041, %v3222
        %v3253 = vmul.f32 %v3046, %v3222
        %v3254 = vmul.f32 %v3051, %v3222
        %v3255 = vmul.f32 %v3056, %v3222
        %v3256 = vmul.f32 %v3061, %v3222
        %v3257 = vmul.f32 %v3066, %v3222
        %v3258 = vmul.f32 %v3071, %v3222
        %v3259 = vmul.f32 %v3076, %v3222
        %v3260 = vmul.f32 %v3081, %v3222
        %v3261 = vmul.f32 %v3086, %v3222
        %v3262 = vmul.f32 %v3091, %v3222
        %v3263 = vmul.f32 %v3096, %v3222
        %v3264 = vmul.f32 %v3101, %v3222
        %v3265 = vmul.f32 %v3106, %v3222
        %v3266 = vmul.f32 %v3111, %v3222
        %v3267 = vmul.f32 %v3116, %v3222
        %v3268 = vmul.f32 %v3121, %v3222
        %v3269 = vmul.f32 %v3126, %v3222
        %v3270 = vmul.f32 %v3131, %v3222
        %v3271 = vmul.f32 %v3136, %v3222
        %v3272 = vmul.f32 %v3141, %v3222
        %v3273 = vmul.f32 %v3146, %v3222
        %v3274 = vmul.f32 %v3151, %v3222
        %v3275 = vmul.f32 %v3156, %v3222
        %v3276 = vmul.f32 %v3161, %v3222
        %v3277 = vmul.f32 %v3166, %v3222
        %v3278 = vmul.f32 %v3171, %v3222
        %v3279 = vmul.f32 %v3176, %v3222
        %v3280 = vmul.f32 %v3181, %v3222
        %v3281 = vmul.f32 %v3186, %v3222
        %v3282 = vmul.f32 %v3191, %v3222
        %v3283 = vmul.f32 %v3196, %v3222
        %v3284 = vmul.f32 %v3201, %v3222
        %v3285 = vmul.f32 %v3206, %v3222
        %v3286 = vmul.f32 %v3211, %v3222
        %v3287 = vmul.f32 %v3216, %v3222
        %v3288 = vadd.f32 %v2766, %v3224
        %v3289 = vadd.f32 %v2767, %v3225
        %v3290 = vadd.f32 %v2768, %v3226
        %v3291 = vadd.f32 %v2769, %v3227
        %v3292 = vadd.f32 %v2770, %v3228
        %v3293 = vadd.f32 %v2771, %v3229
        %v3294 = vadd.f32 %v2772, %v3230
        %v3295 = vadd.f32 %v2773, %v3231
        %v3296 = vadd.f32 %v2774, %v3232
        %v3297 = vadd.f32 %v2775, %v3233
        %v3298 = vadd.f32 %v2776, %v3234
        %v3299 = vadd.f32 %v2777, %v3235
        %v3300 = vadd.f32 %v2778, %v3236
        %v3301 = vadd.f32 %v2779, %v3237
        %v3302 = vadd.f32 %v2780, %v3238
        %v3303 = vadd.f32 %v2781, %v3239
        %v3304 = vadd.f32 %v2782, %v3240
        %v3305 = vadd.f32 %v2783, %v3241
        %v3306 = vadd.f32 %v2784, %v3242
        %v3307 = vadd.f32 %v2785, %v3243
        %v3308 = vadd.f32 %v2786, %v3244
        %v3309 = vadd.f32 %v2787, %v3245
        %v3310 = vadd.f32 %v2788, %v3246
        %v3311 = vadd.f32 %v2789, %v3247
        %v3312 = vadd.f32 %v2790, %v3248
        %v3313 = vadd.f32 %v2791, %v3249
        %v3314 = vadd.f32 %v2792, %v3250
        %v3315 = vadd.f32 %v2793, %v3251
        %v3316 = vadd.f32 %v2794, %v3252
        %v3317 = vadd.f32 %v2795, %v3253
        %v3318 = vadd.f32 %v2796, %v3254
        %v3319 = vadd.f32 %v2797, %v3255
        %v3320 = vadd.f32 %v2798, %v3256
        %v3321 = vadd.f32 %v2799, %v3257
        %v3322 = vadd.f32 %v2800, %v3258
        %v3323 = vadd.f32 %v2801, %v3259
        %v3324 = vadd.f32 %v2802, %v3260
        %v3325 = vadd.f32 %v2803, %v3261
        %v3326 = vadd.f32 %v2804, %v3262
        %v3327 = vadd.f32 %v2805, %v3263
        %v3328 = vadd.f32 %v2806, %v3264
        %v3329 = vadd.f32 %v2807, %v3265
        %v3330 = vadd.f32 %v2808, %v3266
        %v3331 = vadd.f32 %v2809, %v3267
        %v3332 = vadd.f32 %v2810, %v3268
        %v3333 = vadd.f32 %v2811, %v3269
        %v3334 = vadd.f32 %v2812, %v3270
        %v3335 = vadd.f32 %v2813, %v3271
        %v3336 = vadd.f32 %v2814, %v3272
        %v3337 = vadd.f32 %v2815, %v3273
        %v3338 = vadd.f32 %v2816, %v3274
        %v3339 = vadd.f32 %v2817, %v3275
        %v3340 = vadd.f32 %v2818, %v3276
        %v3341 = vadd.f32 %v2819, %v3277
        %v3342 = vadd.f32 %v2820, %v3278
        %v3343 = vadd.f32 %v2821, %v3279
        %v3344 = vadd.f32 %v2822, %v3280
        %v3345 = vadd.f32 %v2823, %v3281
        %v3346 = vadd.f32 %v2824, %v3282
        %v3347 = vadd.f32 %v2825, %v3283
        %v3348 = vadd.f32 %v2826, %v3284
        %v3349 = vadd.f32 %v2827, %v3285
        %v3350 = vadd.f32 %v2828, %v3286
        %v3351 = vadd.f32 %v2829, %v3287
        %s3352 = sadd.s32 %s743, 5
        %s3353 = scalar_lea.vmem [#allocation2], %s3352
        %v3354 = vld [vmem:[%s3353] sm:$0xff]
        %v3355 = vld [vmem:[%s3353 + $0x8] sm:$0xff]
        %v3356 = vld [vmem:[%s3353 + $0x10] sm:$0xff]
        %v3357 = vld [vmem:[%s3353 + $0x18] sm:$0xff]
        %v3358 = vld [vmem:[%s3353 + $0x20] sm:$0xff]
        %v3359 = vld [vmem:[%s3353 + $0x28] sm:$0xff]
        %v3360 = vld [vmem:[%s3353 + $0x30] sm:$0xff]
        %v3361 = vld [vmem:[%s3353 + $0x38] sm:$0xff]
        %v3362 = vld [vmem:[%s3353 + $0x40] sm:$0xff]
        %v3363 = vld [vmem:[%s3353 + $0x48] sm:$0xff]
        %v3364 = vld [vmem:[%s3353 + $0x50] sm:$0xff]
        %v3365 = vld [vmem:[%s3353 + $0x58] sm:$0xff]
        %v3366 = vld [vmem:[%s3353 + $0x60] sm:$0xff]
        %v3367 = vld [vmem:[%s3353 + $0x68] sm:$0xff]
        %v3368 = vld [vmem:[%s3353 + $0x70] sm:$0xff]
        %v3369 = vld [vmem:[%s3353 + $0x78] sm:$0xff]
        %v3370 = vld [vmem:[%s3353 + $0x80] sm:$0xff]
        %v3371 = vld [vmem:[%s3353 + $0x88] sm:$0xff]
        %v3372 = vld [vmem:[%s3353 + $0x90] sm:$0xff]
        %v3373 = vld [vmem:[%s3353 + $0x98] sm:$0xff]
        %v3374 = vld [vmem:[%s3353 + $0xa0] sm:$0xff]
        %v3375 = vld [vmem:[%s3353 + $0xa8] sm:$0xff]
        %v3376 = vld [vmem:[%s3353 + $0xb0] sm:$0xff]
        %v3377 = vld [vmem:[%s3353 + $0xb8] sm:$0xff]
        %v3378 = vld [vmem:[%s3353 + $0xc0] sm:$0xff]
        %v3379 = vld [vmem:[%s3353 + $0xc8] sm:$0xff]
        %v3380 = vld [vmem:[%s3353 + $0xd0] sm:$0xff]
        %v3381 = vld [vmem:[%s3353 + $0xd8] sm:$0xff]
        %v3382 = vld [vmem:[%s3353 + $0xe0] sm:$0xff]
        %v3383 = vld [vmem:[%s3353 + $0xe8] sm:$0xff]
        %v3384 = vld [vmem:[%s3353 + $0xf0] sm:$0xff]
        %v3385 = vld [vmem:[%s3353 + $0xf8] sm:$0xff]
        %v3386 = vld [vmem:[%s3353 + $0x100] sm:$0xff]
        %v3387 = vld [vmem:[%s3353 + $0x108] sm:$0xff]
        %v3388 = vld [vmem:[%s3353 + $0x110] sm:$0xff]
        %v3389 = vld [vmem:[%s3353 + $0x118] sm:$0xff]
        %v3390 = vld [vmem:[%s3353 + $0x120] sm:$0xff]
        %v3391 = vld [vmem:[%s3353 + $0x128] sm:$0xff]
        %v3392 = vld [vmem:[%s3353 + $0x130] sm:$0xff]
        %v3393 = vld [vmem:[%s3353 + $0x138] sm:$0xff]
        %v3394 = vld [vmem:[%s3353 + $0x140] sm:$0xff]
        %v3395 = vld [vmem:[%s3353 + $0x148] sm:$0xff]
        %v3396 = vld [vmem:[%s3353 + $0x150] sm:$0xff]
        %v3397 = vld [vmem:[%s3353 + $0x158] sm:$0xff]
        %v3398 = vld [vmem:[%s3353 + $0x160] sm:$0xff]
        %v3399 = vld [vmem:[%s3353 + $0x168] sm:$0xff]
        %v3400 = vld [vmem:[%s3353 + $0x170] sm:$0xff]
        %v3401 = vld [vmem:[%s3353 + $0x178] sm:$0xff]
        %v3402 = vld [vmem:[%s3353 + $0x180] sm:$0xff]
        %v3403 = vld [vmem:[%s3353 + $0x188] sm:$0xff]
        %v3404 = vld [vmem:[%s3353 + $0x190] sm:$0xff]
        %v3405 = vld [vmem:[%s3353 + $0x198] sm:$0xff]
        %v3406 = vld [vmem:[%s3353 + $0x1a0] sm:$0xff]
        %v3407 = vld [vmem:[%s3353 + $0x1a8] sm:$0xff]
        %v3408 = vld [vmem:[%s3353 + $0x1b0] sm:$0xff]
        %v3409 = vld [vmem:[%s3353 + $0x1b8] sm:$0xff]
        %v3410 = vld [vmem:[%s3353 + $0x1c0] sm:$0xff]
        %v3411 = vld [vmem:[%s3353 + $0x1c8] sm:$0xff]
        %v3412 = vld [vmem:[%s3353 + $0x1d0] sm:$0xff]
        %v3413 = vld [vmem:[%s3353 + $0x1d8] sm:$0xff]
        %v3414 = vld [vmem:[%s3353 + $0x1e0] sm:$0xff]
        %v3415 = vld [vmem:[%s3353 + $0x1e8] sm:$0xff]
        %v3416 = vld [vmem:[%s3353 + $0x1f0] sm:$0xff]
        %v3417 = vld [vmem:[%s3353 + $0x1f8] sm:$0xff]
        %s3418 = scalar_lea.vmem %s216, 5
        %v3419 = vld [vmem:[%s3418] sm:$0x1]
        %3421 = vset.pattern.permute.xlu0 0
        %3422 = vperm.xlu0 %3421, %v3354
        %v3423 = vpop.permute.xlu0 %3422
        %3426 = vset.pattern.permute.xlu0 0
        %3427 = vperm.xlu0 %3426, %v3355
        %v3428 = vpop.permute.xlu0 %3427
        %3431 = vset.pattern.permute.xlu0 0
        %3432 = vperm.xlu0 %3431, %v3356
        %v3433 = vpop.permute.xlu0 %3432
        %3436 = vset.pattern.permute.xlu0 0
        %3437 = vperm.xlu0 %3436, %v3357
        %v3438 = vpop.permute.xlu0 %3437
        %3441 = vset.pattern.permute.xlu0 0
        %3442 = vperm.xlu0 %3441, %v3358
        %v3443 = vpop.permute.xlu0 %3442
        %3446 = vset.pattern.permute.xlu0 0
        %3447 = vperm.xlu0 %3446, %v3359
        %v3448 = vpop.permute.xlu0 %3447
        %3451 = vset.pattern.permute.xlu0 0
        %3452 = vperm.xlu0 %3451, %v3360
        %v3453 = vpop.permute.xlu0 %3452
        %3456 = vset.pattern.permute.xlu0 0
        %3457 = vperm.xlu0 %3456, %v3361
        %v3458 = vpop.permute.xlu0 %3457
        %3461 = vset.pattern.permute.xlu0 0
        %3462 = vperm.xlu0 %3461, %v3362
        %v3463 = vpop.permute.xlu0 %3462
        %3466 = vset.pattern.permute.xlu0 0
        %3467 = vperm.xlu0 %3466, %v3363
        %v3468 = vpop.permute.xlu0 %3467
        %3471 = vset.pattern.permute.xlu0 0
        %3472 = vperm.xlu0 %3471, %v3364
        %v3473 = vpop.permute.xlu0 %3472
        %3476 = vset.pattern.permute.xlu0 0
        %3477 = vperm.xlu0 %3476, %v3365
        %v3478 = vpop.permute.xlu0 %3477
        %3481 = vset.pattern.permute.xlu0 0
        %3482 = vperm.xlu0 %3481, %v3366
        %v3483 = vpop.permute.xlu0 %3482
        %3486 = vset.pattern.permute.xlu0 0
        %3487 = vperm.xlu0 %3486, %v3367
        %v3488 = vpop.permute.xlu0 %3487
        %3491 = vset.pattern.permute.xlu0 0
        %3492 = vperm.xlu0 %3491, %v3368
        %v3493 = vpop.permute.xlu0 %3492
        %3496 = vset.pattern.permute.xlu0 0
        %3497 = vperm.xlu0 %3496, %v3369
        %v3498 = vpop.permute.xlu0 %3497
        %3501 = vset.pattern.permute.xlu0 0
        %3502 = vperm.xlu0 %3501, %v3370
        %v3503 = vpop.permute.xlu0 %3502
        %3506 = vset.pattern.permute.xlu0 0
        %3507 = vperm.xlu0 %3506, %v3371
        %v3508 = vpop.permute.xlu0 %3507
        %3511 = vset.pattern.permute.xlu0 0
        %3512 = vperm.xlu0 %3511, %v3372
        %v3513 = vpop.permute.xlu0 %3512
        %3516 = vset.pattern.permute.xlu0 0
        %3517 = vperm.xlu0 %3516, %v3373
        %v3518 = vpop.permute.xlu0 %3517
        %3521 = vset.pattern.permute.xlu0 0
        %3522 = vperm.xlu0 %3521, %v3374
        %v3523 = vpop.permute.xlu0 %3522
        %3526 = vset.pattern.permute.xlu0 0
        %3527 = vperm.xlu0 %3526, %v3375
        %v3528 = vpop.permute.xlu0 %3527
        %3531 = vset.pattern.permute.xlu0 0
        %3532 = vperm.xlu0 %3531, %v3376
        %v3533 = vpop.permute.xlu0 %3532
        %3536 = vset.pattern.permute.xlu0 0
        %3537 = vperm.xlu0 %3536, %v3377
        %v3538 = vpop.permute.xlu0 %3537
        %3541 = vset.pattern.permute.xlu0 0
        %3542 = vperm.xlu0 %3541, %v3378
        %v3543 = vpop.permute.xlu0 %3542
        %3546 = vset.pattern.permute.xlu0 0
        %3547 = vperm.xlu0 %3546, %v3379
        %v3548 = vpop.permute.xlu0 %3547
        %3551 = vset.pattern.permute.xlu0 0
        %3552 = vperm.xlu0 %3551, %v3380
        %v3553 = vpop.permute.xlu0 %3552
        %3556 = vset.pattern.permute.xlu0 0
        %3557 = vperm.xlu0 %3556, %v3381
        %v3558 = vpop.permute.xlu0 %3557
        %3561 = vset.pattern.permute.xlu0 0
        %3562 = vperm.xlu0 %3561, %v3382
        %v3563 = vpop.permute.xlu0 %3562
        %3566 = vset.pattern.permute.xlu0 0
        %3567 = vperm.xlu0 %3566, %v3383
        %v3568 = vpop.permute.xlu0 %3567
        %3571 = vset.pattern.permute.xlu0 0
        %3572 = vperm.xlu0 %3571, %v3384
        %v3573 = vpop.permute.xlu0 %3572
        %3576 = vset.pattern.permute.xlu0 0
        %3577 = vperm.xlu0 %3576, %v3385
        %v3578 = vpop.permute.xlu0 %3577
        %3581 = vset.pattern.permute.xlu0 0
        %3582 = vperm.xlu0 %3581, %v3386
        %v3583 = vpop.permute.xlu0 %3582
        %3586 = vset.pattern.permute.xlu0 0
        %3587 = vperm.xlu0 %3586, %v3387
        %v3588 = vpop.permute.xlu0 %3587
        %3591 = vset.pattern.permute.xlu0 0
        %3592 = vperm.xlu0 %3591, %v3388
        %v3593 = vpop.permute.xlu0 %3592
        %3596 = vset.pattern.permute.xlu0 0
        %3597 = vperm.xlu0 %3596, %v3389
        %v3598 = vpop.permute.xlu0 %3597
        %3601 = vset.pattern.permute.xlu0 0
        %3602 = vperm.xlu0 %3601, %v3390
        %v3603 = vpop.permute.xlu0 %3602
        %3606 = vset.pattern.permute.xlu0 0
        %3607 = vperm.xlu0 %3606, %v3391
        %v3608 = vpop.permute.xlu0 %3607
        %3611 = vset.pattern.permute.xlu0 0
        %3612 = vperm.xlu0 %3611, %v3392
        %v3613 = vpop.permute.xlu0 %3612
        %3616 = vset.pattern.permute.xlu0 0
        %3617 = vperm.xlu0 %3616, %v3393
        %v3618 = vpop.permute.xlu0 %3617
        %3621 = vset.pattern.permute.xlu0 0
        %3622 = vperm.xlu0 %3621, %v3394
        %v3623 = vpop.permute.xlu0 %3622
        %3626 = vset.pattern.permute.xlu0 0
        %3627 = vperm.xlu0 %3626, %v3395
        %v3628 = vpop.permute.xlu0 %3627
        %3631 = vset.pattern.permute.xlu0 0
        %3632 = vperm.xlu0 %3631, %v3396
        %v3633 = vpop.permute.xlu0 %3632
        %3636 = vset.pattern.permute.xlu0 0
        %3637 = vperm.xlu0 %3636, %v3397
        %v3638 = vpop.permute.xlu0 %3637
        %3641 = vset.pattern.permute.xlu0 0
        %3642 = vperm.xlu0 %3641, %v3398
        %v3643 = vpop.permute.xlu0 %3642
        %3646 = vset.pattern.permute.xlu0 0
        %3647 = vperm.xlu0 %3646, %v3399
        %v3648 = vpop.permute.xlu0 %3647
        %3651 = vset.pattern.permute.xlu0 0
        %3652 = vperm.xlu0 %3651, %v3400
        %v3653 = vpop.permute.xlu0 %3652
        %3656 = vset.pattern.permute.xlu0 0
        %3657 = vperm.xlu0 %3656, %v3401
        %v3658 = vpop.permute.xlu0 %3657
        %3661 = vset.pattern.permute.xlu0 0
        %3662 = vperm.xlu0 %3661, %v3402
        %v3663 = vpop.permute.xlu0 %3662
        %3666 = vset.pattern.permute.xlu0 0
        %3667 = vperm.xlu0 %3666, %v3403
        %v3668 = vpop.permute.xlu0 %3667
        %3671 = vset.pattern.permute.xlu0 0
        %3672 = vperm.xlu0 %3671, %v3404
        %v3673 = vpop.permute.xlu0 %3672
        %3676 = vset.pattern.permute.xlu0 0
        %3677 = vperm.xlu0 %3676, %v3405
        %v3678 = vpop.permute.xlu0 %3677
        %3681 = vset.pattern.permute.xlu0 0
        %3682 = vperm.xlu0 %3681, %v3406
        %v3683 = vpop.permute.xlu0 %3682
        %3686 = vset.pattern.permute.xlu0 0
        %3687 = vperm.xlu0 %3686, %v3407
        %v3688 = vpop.permute.xlu0 %3687
        %3691 = vset.pattern.permute.xlu0 0
        %3692 = vperm.xlu0 %3691, %v3408
        %v3693 = vpop.permute.xlu0 %3692
        %3696 = vset.pattern.permute.xlu0 0
        %3697 = vperm.xlu0 %3696, %v3409
        %v3698 = vpop.permute.xlu0 %3697
        %3701 = vset.pattern.permute.xlu0 0
        %3702 = vperm.xlu0 %3701, %v3410
        %v3703 = vpop.permute.xlu0 %3702
        %3706 = vset.pattern.permute.xlu0 0
        %3707 = vperm.xlu0 %3706, %v3411
        %v3708 = vpop.permute.xlu0 %3707
        %3711 = vset.pattern.permute.xlu0 0
        %3712 = vperm.xlu0 %3711, %v3412
        %v3713 = vpop.permute.xlu0 %3712
        %3716 = vset.pattern.permute.xlu0 0
        %3717 = vperm.xlu0 %3716, %v3413
        %v3718 = vpop.permute.xlu0 %3717
        %3721 = vset.pattern.permute.xlu0 0
        %3722 = vperm.xlu0 %3721, %v3414
        %v3723 = vpop.permute.xlu0 %3722
        %3726 = vset.pattern.permute.xlu0 0
        %3727 = vperm.xlu0 %3726, %v3415
        %v3728 = vpop.permute.xlu0 %3727
        %3731 = vset.pattern.permute.xlu0 0
        %3732 = vperm.xlu0 %3731, %v3416
        %v3733 = vpop.permute.xlu0 %3732
        %3736 = vset.pattern.permute.xlu0 0
        %3737 = vperm.xlu0 %3736, %v3417
        %v3738 = vpop.permute.xlu0 %3737
        %v3741 = vlaneseq
        %v3742 = vshrl.u32 %v3741, 7
        %v3743 = vsub.s32 0, %v3742
        %v3744 = vrot.slane %v3419, %v3743
        %v3746 = vmul.f32 %v3423, %v3744
        %v3747 = vmul.f32 %v3428, %v3744
        %v3748 = vmul.f32 %v3433, %v3744
        %v3749 = vmul.f32 %v3438, %v3744
        %v3750 = vmul.f32 %v3443, %v3744
        %v3751 = vmul.f32 %v3448, %v3744
        %v3752 = vmul.f32 %v3453, %v3744
        %v3753 = vmul.f32 %v3458, %v3744
        %v3754 = vmul.f32 %v3463, %v3744
        %v3755 = vmul.f32 %v3468, %v3744
        %v3756 = vmul.f32 %v3473, %v3744
        %v3757 = vmul.f32 %v3478, %v3744
        %v3758 = vmul.f32 %v3483, %v3744
        %v3759 = vmul.f32 %v3488, %v3744
        %v3760 = vmul.f32 %v3493, %v3744
        %v3761 = vmul.f32 %v3498, %v3744
        %v3762 = vmul.f32 %v3503, %v3744
        %v3763 = vmul.f32 %v3508, %v3744
        %v3764 = vmul.f32 %v3513, %v3744
        %v3765 = vmul.f32 %v3518, %v3744
        %v3766 = vmul.f32 %v3523, %v3744
        %v3767 = vmul.f32 %v3528, %v3744
        %v3768 = vmul.f32 %v3533, %v3744
        %v3769 = vmul.f32 %v3538, %v3744
        %v3770 = vmul.f32 %v3543, %v3744
        %v3771 = vmul.f32 %v3548, %v3744
        %v3772 = vmul.f32 %v3553, %v3744
        %v3773 = vmul.f32 %v3558, %v3744
        %v3774 = vmul.f32 %v3563, %v3744
        %v3775 = vmul.f32 %v3568, %v3744
        %v3776 = vmul.f32 %v3573, %v3744
        %v3777 = vmul.f32 %v3578, %v3744
        %v3778 = vmul.f32 %v3583, %v3744
        %v3779 = vmul.f32 %v3588, %v3744
        %v3780 = vmul.f32 %v3593, %v3744
        %v3781 = vmul.f32 %v3598, %v3744
        %v3782 = vmul.f32 %v3603, %v3744
        %v3783 = vmul.f32 %v3608, %v3744
        %v3784 = vmul.f32 %v3613, %v3744
        %v3785 = vmul.f32 %v3618, %v3744
        %v3786 = vmul.f32 %v3623, %v3744
        %v3787 = vmul.f32 %v3628, %v3744
        %v3788 = vmul.f32 %v3633, %v3744
        %v3789 = vmul.f32 %v3638, %v3744
        %v3790 = vmul.f32 %v3643, %v3744
        %v3791 = vmul.f32 %v3648, %v3744
        %v3792 = vmul.f32 %v3653, %v3744
        %v3793 = vmul.f32 %v3658, %v3744
        %v3794 = vmul.f32 %v3663, %v3744
        %v3795 = vmul.f32 %v3668, %v3744
        %v3796 = vmul.f32 %v3673, %v3744
        %v3797 = vmul.f32 %v3678, %v3744
        %v3798 = vmul.f32 %v3683, %v3744
        %v3799 = vmul.f32 %v3688, %v3744
        %v3800 = vmul.f32 %v3693, %v3744
        %v3801 = vmul.f32 %v3698, %v3744
        %v3802 = vmul.f32 %v3703, %v3744
        %v3803 = vmul.f32 %v3708, %v3744
        %v3804 = vmul.f32 %v3713, %v3744
        %v3805 = vmul.f32 %v3718, %v3744
        %v3806 = vmul.f32 %v3723, %v3744
        %v3807 = vmul.f32 %v3728, %v3744
        %v3808 = vmul.f32 %v3733, %v3744
        %v3809 = vmul.f32 %v3738, %v3744
        %v3810 = vadd.f32 %v3288, %v3746
        %v3811 = vadd.f32 %v3289, %v3747
        %v3812 = vadd.f32 %v3290, %v3748
        %v3813 = vadd.f32 %v3291, %v3749
        %v3814 = vadd.f32 %v3292, %v3750
        %v3815 = vadd.f32 %v3293, %v3751
        %v3816 = vadd.f32 %v3294, %v3752
        %v3817 = vadd.f32 %v3295, %v3753
        %v3818 = vadd.f32 %v3296, %v3754
        %v3819 = vadd.f32 %v3297, %v3755
        %v3820 = vadd.f32 %v3298, %v3756
        %v3821 = vadd.f32 %v3299, %v3757
        %v3822 = vadd.f32 %v3300, %v3758
        %v3823 = vadd.f32 %v3301, %v3759
        %v3824 = vadd.f32 %v3302, %v3760
        %v3825 = vadd.f32 %v3303, %v3761
        %v3826 = vadd.f32 %v3304, %v3762
        %v3827 = vadd.f32 %v3305, %v3763
        %v3828 = vadd.f32 %v3306, %v3764
        %v3829 = vadd.f32 %v3307, %v3765
        %v3830 = vadd.f32 %v3308, %v3766
        %v3831 = vadd.f32 %v3309, %v3767
        %v3832 = vadd.f32 %v3310, %v3768
        %v3833 = vadd.f32 %v3311, %v3769
        %v3834 = vadd.f32 %v3312, %v3770
        %v3835 = vadd.f32 %v3313, %v3771
        %v3836 = vadd.f32 %v3314, %v3772
        %v3837 = vadd.f32 %v3315, %v3773
        %v3838 = vadd.f32 %v3316, %v3774
        %v3839 = vadd.f32 %v3317, %v3775
        %v3840 = vadd.f32 %v3318, %v3776
        %v3841 = vadd.f32 %v3319, %v3777
        %v3842 = vadd.f32 %v3320, %v3778
        %v3843 = vadd.f32 %v3321, %v3779
        %v3844 = vadd.f32 %v3322, %v3780
        %v3845 = vadd.f32 %v3323, %v3781
        %v3846 = vadd.f32 %v3324, %v3782
        %v3847 = vadd.f32 %v3325, %v3783
        %v3848 = vadd.f32 %v3326, %v3784
        %v3849 = vadd.f32 %v3327, %v3785
        %v3850 = vadd.f32 %v3328, %v3786
        %v3851 = vadd.f32 %v3329, %v3787
        %v3852 = vadd.f32 %v3330, %v3788
        %v3853 = vadd.f32 %v3331, %v3789
        %v3854 = vadd.f32 %v3332, %v3790
        %v3855 = vadd.f32 %v3333, %v3791
        %v3856 = vadd.f32 %v3334, %v3792
        %v3857 = vadd.f32 %v3335, %v3793
        %v3858 = vadd.f32 %v3336, %v3794
        %v3859 = vadd.f32 %v3337, %v3795
        %v3860 = vadd.f32 %v3338, %v3796
        %v3861 = vadd.f32 %v3339, %v3797
        %v3862 = vadd.f32 %v3340, %v3798
        %v3863 = vadd.f32 %v3341, %v3799
        %v3864 = vadd.f32 %v3342, %v3800
        %v3865 = vadd.f32 %v3343, %v3801
        %v3866 = vadd.f32 %v3344, %v3802
        %v3867 = vadd.f32 %v3345, %v3803
        %v3868 = vadd.f32 %v3346, %v3804
        %v3869 = vadd.f32 %v3347, %v3805
        %v3870 = vadd.f32 %v3348, %v3806
        %v3871 = vadd.f32 %v3349, %v3807
        %v3872 = vadd.f32 %v3350, %v3808
        %v3873 = vadd.f32 %v3351, %v3809
        %s3874 = sadd.s32 %s743, 6
        %s3875 = scalar_lea.vmem [#allocation2], %s3874
        %v3876 = vld [vmem:[%s3875] sm:$0xff]
        %v3877 = vld [vmem:[%s3875 + $0x8] sm:$0xff]
        %v3878 = vld [vmem:[%s3875 + $0x10] sm:$0xff]
        %v3879 = vld [vmem:[%s3875 + $0x18] sm:$0xff]
        %v3880 = vld [vmem:[%s3875 + $0x20] sm:$0xff]
        %v3881 = vld [vmem:[%s3875 + $0x28] sm:$0xff]
        %v3882 = vld [vmem:[%s3875 + $0x30] sm:$0xff]
        %v3883 = vld [vmem:[%s3875 + $0x38] sm:$0xff]
        %v3884 = vld [vmem:[%s3875 + $0x40] sm:$0xff]
        %v3885 = vld [vmem:[%s3875 + $0x48] sm:$0xff]
        %v3886 = vld [vmem:[%s3875 + $0x50] sm:$0xff]
        %v3887 = vld [vmem:[%s3875 + $0x58] sm:$0xff]
        %v3888 = vld [vmem:[%s3875 + $0x60] sm:$0xff]
        %v3889 = vld [vmem:[%s3875 + $0x68] sm:$0xff]
        %v3890 = vld [vmem:[%s3875 + $0x70] sm:$0xff]
        %v3891 = vld [vmem:[%s3875 + $0x78] sm:$0xff]
        %v3892 = vld [vmem:[%s3875 + $0x80] sm:$0xff]
        %v3893 = vld [vmem:[%s3875 + $0x88] sm:$0xff]
        %v3894 = vld [vmem:[%s3875 + $0x90] sm:$0xff]
        %v3895 = vld [vmem:[%s3875 + $0x98] sm:$0xff]
        %v3896 = vld [vmem:[%s3875 + $0xa0] sm:$0xff]
        %v3897 = vld [vmem:[%s3875 + $0xa8] sm:$0xff]
        %v3898 = vld [vmem:[%s3875 + $0xb0] sm:$0xff]
        %v3899 = vld [vmem:[%s3875 + $0xb8] sm:$0xff]
        %v3900 = vld [vmem:[%s3875 + $0xc0] sm:$0xff]
        %v3901 = vld [vmem:[%s3875 + $0xc8] sm:$0xff]
        %v3902 = vld [vmem:[%s3875 + $0xd0] sm:$0xff]
        %v3903 = vld [vmem:[%s3875 + $0xd8] sm:$0xff]
        %v3904 = vld [vmem:[%s3875 + $0xe0] sm:$0xff]
        %v3905 = vld [vmem:[%s3875 + $0xe8] sm:$0xff]
        %v3906 = vld [vmem:[%s3875 + $0xf0] sm:$0xff]
        %v3907 = vld [vmem:[%s3875 + $0xf8] sm:$0xff]
        %v3908 = vld [vmem:[%s3875 + $0x100] sm:$0xff]
        %v3909 = vld [vmem:[%s3875 + $0x108] sm:$0xff]
        %v3910 = vld [vmem:[%s3875 + $0x110] sm:$0xff]
        %v3911 = vld [vmem:[%s3875 + $0x118] sm:$0xff]
        %v3912 = vld [vmem:[%s3875 + $0x120] sm:$0xff]
        %v3913 = vld [vmem:[%s3875 + $0x128] sm:$0xff]
        %v3914 = vld [vmem:[%s3875 + $0x130] sm:$0xff]
        %v3915 = vld [vmem:[%s3875 + $0x138] sm:$0xff]
        %v3916 = vld [vmem:[%s3875 + $0x140] sm:$0xff]
        %v3917 = vld [vmem:[%s3875 + $0x148] sm:$0xff]
        %v3918 = vld [vmem:[%s3875 + $0x150] sm:$0xff]
        %v3919 = vld [vmem:[%s3875 + $0x158] sm:$0xff]
        %v3920 = vld [vmem:[%s3875 + $0x160] sm:$0xff]
        %v3921 = vld [vmem:[%s3875 + $0x168] sm:$0xff]
        %v3922 = vld [vmem:[%s3875 + $0x170] sm:$0xff]
        %v3923 = vld [vmem:[%s3875 + $0x178] sm:$0xff]
        %v3924 = vld [vmem:[%s3875 + $0x180] sm:$0xff]
        %v3925 = vld [vmem:[%s3875 + $0x188] sm:$0xff]
        %v3926 = vld [vmem:[%s3875 + $0x190] sm:$0xff]
        %v3927 = vld [vmem:[%s3875 + $0x198] sm:$0xff]
        %v3928 = vld [vmem:[%s3875 + $0x1a0] sm:$0xff]
        %v3929 = vld [vmem:[%s3875 + $0x1a8] sm:$0xff]
        %v3930 = vld [vmem:[%s3875 + $0x1b0] sm:$0xff]
        %v3931 = vld [vmem:[%s3875 + $0x1b8] sm:$0xff]
        %v3932 = vld [vmem:[%s3875 + $0x1c0] sm:$0xff]
        %v3933 = vld [vmem:[%s3875 + $0x1c8] sm:$0xff]
        %v3934 = vld [vmem:[%s3875 + $0x1d0] sm:$0xff]
        %v3935 = vld [vmem:[%s3875 + $0x1d8] sm:$0xff]
        %v3936 = vld [vmem:[%s3875 + $0x1e0] sm:$0xff]
        %v3937 = vld [vmem:[%s3875 + $0x1e8] sm:$0xff]
        %v3938 = vld [vmem:[%s3875 + $0x1f0] sm:$0xff]
        %v3939 = vld [vmem:[%s3875 + $0x1f8] sm:$0xff]
        %s3940 = scalar_lea.vmem %s216, 6
        %v3941 = vld [vmem:[%s3940] sm:$0x1]
        %3943 = vset.pattern.permute.xlu0 0
        %3944 = vperm.xlu0 %3943, %v3876
        %v3945 = vpop.permute.xlu0 %3944
        %3948 = vset.pattern.permute.xlu0 0
        %3949 = vperm.xlu0 %3948, %v3877
        %v3950 = vpop.permute.xlu0 %3949
        %3953 = vset.pattern.permute.xlu0 0
        %3954 = vperm.xlu0 %3953, %v3878
        %v3955 = vpop.permute.xlu0 %3954
        %3958 = vset.pattern.permute.xlu0 0
        %3959 = vperm.xlu0 %3958, %v3879
        %v3960 = vpop.permute.xlu0 %3959
        %3963 = vset.pattern.permute.xlu0 0
        %3964 = vperm.xlu0 %3963, %v3880
        %v3965 = vpop.permute.xlu0 %3964
        %3968 = vset.pattern.permute.xlu0 0
        %3969 = vperm.xlu0 %3968, %v3881
        %v3970 = vpop.permute.xlu0 %3969
        %3973 = vset.pattern.permute.xlu0 0
        %3974 = vperm.xlu0 %3973, %v3882
        %v3975 = vpop.permute.xlu0 %3974
        %3978 = vset.pattern.permute.xlu0 0
        %3979 = vperm.xlu0 %3978, %v3883
        %v3980 = vpop.permute.xlu0 %3979
        %3983 = vset.pattern.permute.xlu0 0
        %3984 = vperm.xlu0 %3983, %v3884
        %v3985 = vpop.permute.xlu0 %3984
        %3988 = vset.pattern.permute.xlu0 0
        %3989 = vperm.xlu0 %3988, %v3885
        %v3990 = vpop.permute.xlu0 %3989
        %3993 = vset.pattern.permute.xlu0 0
        %3994 = vperm.xlu0 %3993, %v3886
        %v3995 = vpop.permute.xlu0 %3994
        %3998 = vset.pattern.permute.xlu0 0
        %3999 = vperm.xlu0 %3998, %v3887
        %v4000 = vpop.permute.xlu0 %3999
        %4003 = vset.pattern.permute.xlu0 0
        %4004 = vperm.xlu0 %4003, %v3888
        %v4005 = vpop.permute.xlu0 %4004
        %4008 = vset.pattern.permute.xlu0 0
        %4009 = vperm.xlu0 %4008, %v3889
        %v4010 = vpop.permute.xlu0 %4009
        %4013 = vset.pattern.permute.xlu0 0
        %4014 = vperm.xlu0 %4013, %v3890
        %v4015 = vpop.permute.xlu0 %4014
        %4018 = vset.pattern.permute.xlu0 0
        %4019 = vperm.xlu0 %4018, %v3891
        %v4020 = vpop.permute.xlu0 %4019
        %4023 = vset.pattern.permute.xlu0 0
        %4024 = vperm.xlu0 %4023, %v3892
        %v4025 = vpop.permute.xlu0 %4024
        %4028 = vset.pattern.permute.xlu0 0
        %4029 = vperm.xlu0 %4028, %v3893
        %v4030 = vpop.permute.xlu0 %4029
        %4033 = vset.pattern.permute.xlu0 0
        %4034 = vperm.xlu0 %4033, %v3894
        %v4035 = vpop.permute.xlu0 %4034
        %4038 = vset.pattern.permute.xlu0 0
        %4039 = vperm.xlu0 %4038, %v3895
        %v4040 = vpop.permute.xlu0 %4039
        %4043 = vset.pattern.permute.xlu0 0
        %4044 = vperm.xlu0 %4043, %v3896
        %v4045 = vpop.permute.xlu0 %4044
        %4048 = vset.pattern.permute.xlu0 0
        %4049 = vperm.xlu0 %4048, %v3897
        %v4050 = vpop.permute.xlu0 %4049
        %4053 = vset.pattern.permute.xlu0 0
        %4054 = vperm.xlu0 %4053, %v3898
        %v4055 = vpop.permute.xlu0 %4054
        %4058 = vset.pattern.permute.xlu0 0
        %4059 = vperm.xlu0 %4058, %v3899
        %v4060 = vpop.permute.xlu0 %4059
        %4063 = vset.pattern.permute.xlu0 0
        %4064 = vperm.xlu0 %4063, %v3900
        %v4065 = vpop.permute.xlu0 %4064
        %4068 = vset.pattern.permute.xlu0 0
        %4069 = vperm.xlu0 %4068, %v3901
        %v4070 = vpop.permute.xlu0 %4069
        %4073 = vset.pattern.permute.xlu0 0
        %4074 = vperm.xlu0 %4073, %v3902
        %v4075 = vpop.permute.xlu0 %4074
        %4078 = vset.pattern.permute.xlu0 0
        %4079 = vperm.xlu0 %4078, %v3903
        %v4080 = vpop.permute.xlu0 %4079
        %4083 = vset.pattern.permute.xlu0 0
        %4084 = vperm.xlu0 %4083, %v3904
        %v4085 = vpop.permute.xlu0 %4084
        %4088 = vset.pattern.permute.xlu0 0
        %4089 = vperm.xlu0 %4088, %v3905
        %v4090 = vpop.permute.xlu0 %4089
        %4093 = vset.pattern.permute.xlu0 0
        %4094 = vperm.xlu0 %4093, %v3906
        %v4095 = vpop.permute.xlu0 %4094
        %4098 = vset.pattern.permute.xlu0 0
        %4099 = vperm.xlu0 %4098, %v3907
        %v4100 = vpop.permute.xlu0 %4099
        %4103 = vset.pattern.permute.xlu0 0
        %4104 = vperm.xlu0 %4103, %v3908
        %v4105 = vpop.permute.xlu0 %4104
        %4108 = vset.pattern.permute.xlu0 0
        %4109 = vperm.xlu0 %4108, %v3909
        %v4110 = vpop.permute.xlu0 %4109
        %4113 = vset.pattern.permute.xlu0 0
        %4114 = vperm.xlu0 %4113, %v3910
        %v4115 = vpop.permute.xlu0 %4114
        %4118 = vset.pattern.permute.xlu0 0
        %4119 = vperm.xlu0 %4118, %v3911
        %v4120 = vpop.permute.xlu0 %4119
        %4123 = vset.pattern.permute.xlu0 0
        %4124 = vperm.xlu0 %4123, %v3912
        %v4125 = vpop.permute.xlu0 %4124
        %4128 = vset.pattern.permute.xlu0 0
        %4129 = vperm.xlu0 %4128, %v3913
        %v4130 = vpop.permute.xlu0 %4129
        %4133 = vset.pattern.permute.xlu0 0
        %4134 = vperm.xlu0 %4133, %v3914
        %v4135 = vpop.permute.xlu0 %4134
        %4138 = vset.pattern.permute.xlu0 0
        %4139 = vperm.xlu0 %4138, %v3915
        %v4140 = vpop.permute.xlu0 %4139
        %4143 = vset.pattern.permute.xlu0 0
        %4144 = vperm.xlu0 %4143, %v3916
        %v4145 = vpop.permute.xlu0 %4144
        %4148 = vset.pattern.permute.xlu0 0
        %4149 = vperm.xlu0 %4148, %v3917
        %v4150 = vpop.permute.xlu0 %4149
        %4153 = vset.pattern.permute.xlu0 0
        %4154 = vperm.xlu0 %4153, %v3918
        %v4155 = vpop.permute.xlu0 %4154
        %4158 = vset.pattern.permute.xlu0 0
        %4159 = vperm.xlu0 %4158, %v3919
        %v4160 = vpop.permute.xlu0 %4159
        %4163 = vset.pattern.permute.xlu0 0
        %4164 = vperm.xlu0 %4163, %v3920
        %v4165 = vpop.permute.xlu0 %4164
        %4168 = vset.pattern.permute.xlu0 0
        %4169 = vperm.xlu0 %4168, %v3921
        %v4170 = vpop.permute.xlu0 %4169
        %4173 = vset.pattern.permute.xlu0 0
        %4174 = vperm.xlu0 %4173, %v3922
        %v4175 = vpop.permute.xlu0 %4174
        %4178 = vset.pattern.permute.xlu0 0
        %4179 = vperm.xlu0 %4178, %v3923
        %v4180 = vpop.permute.xlu0 %4179
        %4183 = vset.pattern.permute.xlu0 0
        %4184 = vperm.xlu0 %4183, %v3924
        %v4185 = vpop.permute.xlu0 %4184
        %4188 = vset.pattern.permute.xlu0 0
        %4189 = vperm.xlu0 %4188, %v3925
        %v4190 = vpop.permute.xlu0 %4189
        %4193 = vset.pattern.permute.xlu0 0
        %4194 = vperm.xlu0 %4193, %v3926
        %v4195 = vpop.permute.xlu0 %4194
        %4198 = vset.pattern.permute.xlu0 0
        %4199 = vperm.xlu0 %4198, %v3927
        %v4200 = vpop.permute.xlu0 %4199
        %4203 = vset.pattern.permute.xlu0 0
        %4204 = vperm.xlu0 %4203, %v3928
        %v4205 = vpop.permute.xlu0 %4204
        %4208 = vset.pattern.permute.xlu0 0
        %4209 = vperm.xlu0 %4208, %v3929
        %v4210 = vpop.permute.xlu0 %4209
        %4213 = vset.pattern.permute.xlu0 0
        %4214 = vperm.xlu0 %4213, %v3930
        %v4215 = vpop.permute.xlu0 %4214
        %4218 = vset.pattern.permute.xlu0 0
        %4219 = vperm.xlu0 %4218, %v3931
        %v4220 = vpop.permute.xlu0 %4219
        %4223 = vset.pattern.permute.xlu0 0
        %4224 = vperm.xlu0 %4223, %v3932
        %v4225 = vpop.permute.xlu0 %4224
        %4228 = vset.pattern.permute.xlu0 0
        %4229 = vperm.xlu0 %4228, %v3933
        %v4230 = vpop.permute.xlu0 %4229
        %4233 = vset.pattern.permute.xlu0 0
        %4234 = vperm.xlu0 %4233, %v3934
        %v4235 = vpop.permute.xlu0 %4234
        %4238 = vset.pattern.permute.xlu0 0
        %4239 = vperm.xlu0 %4238, %v3935
        %v4240 = vpop.permute.xlu0 %4239
        %4243 = vset.pattern.permute.xlu0 0
        %4244 = vperm.xlu0 %4243, %v3936
        %v4245 = vpop.permute.xlu0 %4244
        %4248 = vset.pattern.permute.xlu0 0
        %4249 = vperm.xlu0 %4248, %v3937
        %v4250 = vpop.permute.xlu0 %4249
        %4253 = vset.pattern.permute.xlu0 0
        %4254 = vperm.xlu0 %4253, %v3938
        %v4255 = vpop.permute.xlu0 %4254
        %4258 = vset.pattern.permute.xlu0 0
        %4259 = vperm.xlu0 %4258, %v3939
        %v4260 = vpop.permute.xlu0 %4259
        %v4263 = vlaneseq
        %v4264 = vshrl.u32 %v4263, 7
        %v4265 = vsub.s32 0, %v4264
        %v4266 = vrot.slane %v3941, %v4265
        %v4268 = vmul.f32 %v3945, %v4266
        %v4269 = vmul.f32 %v3950, %v4266
        %v4270 = vmul.f32 %v3955, %v4266
        %v4271 = vmul.f32 %v3960, %v4266
        %v4272 = vmul.f32 %v3965, %v4266
        %v4273 = vmul.f32 %v3970, %v4266
        %v4274 = vmul.f32 %v3975, %v4266
        %v4275 = vmul.f32 %v3980, %v4266
        %v4276 = vmul.f32 %v3985, %v4266
        %v4277 = vmul.f32 %v3990, %v4266
        %v4278 = vmul.f32 %v3995, %v4266
        %v4279 = vmul.f32 %v4000, %v4266
        %v4280 = vmul.f32 %v4005, %v4266
        %v4281 = vmul.f32 %v4010, %v4266
        %v4282 = vmul.f32 %v4015, %v4266
        %v4283 = vmul.f32 %v4020, %v4266
        %v4284 = vmul.f32 %v4025, %v4266
        %v4285 = vmul.f32 %v4030, %v4266
        %v4286 = vmul.f32 %v4035, %v4266
        %v4287 = vmul.f32 %v4040, %v4266
        %v4288 = vmul.f32 %v4045, %v4266
        %v4289 = vmul.f32 %v4050, %v4266
        %v4290 = vmul.f32 %v4055, %v4266
        %v4291 = vmul.f32 %v4060, %v4266
        %v4292 = vmul.f32 %v4065, %v4266
        %v4293 = vmul.f32 %v4070, %v4266
        %v4294 = vmul.f32 %v4075, %v4266
        %v4295 = vmul.f32 %v4080, %v4266
        %v4296 = vmul.f32 %v4085, %v4266
        %v4297 = vmul.f32 %v4090, %v4266
        %v4298 = vmul.f32 %v4095, %v4266
        %v4299 = vmul.f32 %v4100, %v4266
        %v4300 = vmul.f32 %v4105, %v4266
        %v4301 = vmul.f32 %v4110, %v4266
        %v4302 = vmul.f32 %v4115, %v4266
        %v4303 = vmul.f32 %v4120, %v4266
        %v4304 = vmul.f32 %v4125, %v4266
        %v4305 = vmul.f32 %v4130, %v4266
        %v4306 = vmul.f32 %v4135, %v4266
        %v4307 = vmul.f32 %v4140, %v4266
        %v4308 = vmul.f32 %v4145, %v4266
        %v4309 = vmul.f32 %v4150, %v4266
        %v4310 = vmul.f32 %v4155, %v4266
        %v4311 = vmul.f32 %v4160, %v4266
        %v4312 = vmul.f32 %v4165, %v4266
        %v4313 = vmul.f32 %v4170, %v4266
        %v4314 = vmul.f32 %v4175, %v4266
        %v4315 = vmul.f32 %v4180, %v4266
        %v4316 = vmul.f32 %v4185, %v4266
        %v4317 = vmul.f32 %v4190, %v4266
        %v4318 = vmul.f32 %v4195, %v4266
        %v4319 = vmul.f32 %v4200, %v4266
        %v4320 = vmul.f32 %v4205, %v4266
        %v4321 = vmul.f32 %v4210, %v4266
        %v4322 = vmul.f32 %v4215, %v4266
        %v4323 = vmul.f32 %v4220, %v4266
        %v4324 = vmul.f32 %v4225, %v4266
        %v4325 = vmul.f32 %v4230, %v4266
        %v4326 = vmul.f32 %v4235, %v4266
        %v4327 = vmul.f32 %v4240, %v4266
        %v4328 = vmul.f32 %v4245, %v4266
        %v4329 = vmul.f32 %v4250, %v4266
        %v4330 = vmul.f32 %v4255, %v4266
        %v4331 = vmul.f32 %v4260, %v4266
        %v4332 = vadd.f32 %v3810, %v4268
        %v4333 = vadd.f32 %v3811, %v4269
        %v4334 = vadd.f32 %v3812, %v4270
        %v4335 = vadd.f32 %v3813, %v4271
        %v4336 = vadd.f32 %v3814, %v4272
        %v4337 = vadd.f32 %v3815, %v4273
        %v4338 = vadd.f32 %v3816, %v4274
        %v4339 = vadd.f32 %v3817, %v4275
        %v4340 = vadd.f32 %v3818, %v4276
        %v4341 = vadd.f32 %v3819, %v4277
        %v4342 = vadd.f32 %v3820, %v4278
        %v4343 = vadd.f32 %v3821, %v4279
        %v4344 = vadd.f32 %v3822, %v4280
        %v4345 = vadd.f32 %v3823, %v4281
        %v4346 = vadd.f32 %v3824, %v4282
        %v4347 = vadd.f32 %v3825, %v4283
        %v4348 = vadd.f32 %v3826, %v4284
        %v4349 = vadd.f32 %v3827, %v4285
        %v4350 = vadd.f32 %v3828, %v4286
        %v4351 = vadd.f32 %v3829, %v4287
        %v4352 = vadd.f32 %v3830, %v4288
        %v4353 = vadd.f32 %v3831, %v4289
        %v4354 = vadd.f32 %v3832, %v4290
        %v4355 = vadd.f32 %v3833, %v4291
        %v4356 = vadd.f32 %v3834, %v4292
        %v4357 = vadd.f32 %v3835, %v4293
        %v4358 = vadd.f32 %v3836, %v4294
        %v4359 = vadd.f32 %v3837, %v4295
        %v4360 = vadd.f32 %v3838, %v4296
        %v4361 = vadd.f32 %v3839, %v4297
        %v4362 = vadd.f32 %v3840, %v4298
        %v4363 = vadd.f32 %v3841, %v4299
        %v4364 = vadd.f32 %v3842, %v4300
        %v4365 = vadd.f32 %v3843, %v4301
        %v4366 = vadd.f32 %v3844, %v4302
        %v4367 = vadd.f32 %v3845, %v4303
        %v4368 = vadd.f32 %v3846, %v4304
        %v4369 = vadd.f32 %v3847, %v4305
        %v4370 = vadd.f32 %v3848, %v4306
        %v4371 = vadd.f32 %v3849, %v4307
        %v4372 = vadd.f32 %v3850, %v4308
        %v4373 = vadd.f32 %v3851, %v4309
        %v4374 = vadd.f32 %v3852, %v4310
        %v4375 = vadd.f32 %v3853, %v4311
        %v4376 = vadd.f32 %v3854, %v4312
        %v4377 = vadd.f32 %v3855, %v4313
        %v4378 = vadd.f32 %v3856, %v4314
        %v4379 = vadd.f32 %v3857, %v4315
        %v4380 = vadd.f32 %v3858, %v4316
        %v4381 = vadd.f32 %v3859, %v4317
        %v4382 = vadd.f32 %v3860, %v4318
        %v4383 = vadd.f32 %v3861, %v4319
        %v4384 = vadd.f32 %v3862, %v4320
        %v4385 = vadd.f32 %v3863, %v4321
        %v4386 = vadd.f32 %v3864, %v4322
        %v4387 = vadd.f32 %v3865, %v4323
        %v4388 = vadd.f32 %v3866, %v4324
        %v4389 = vadd.f32 %v3867, %v4325
        %v4390 = vadd.f32 %v3868, %v4326
        %v4391 = vadd.f32 %v3869, %v4327
        %v4392 = vadd.f32 %v3870, %v4328
        %v4393 = vadd.f32 %v3871, %v4329
        %v4394 = vadd.f32 %v3872, %v4330
        %v4395 = vadd.f32 %v3873, %v4331
        %s4396 = sadd.s32 %s743, 7
        %s4397 = scalar_lea.vmem [#allocation2], %s4396
        %v4398 = vld [vmem:[%s4397] sm:$0xff]
        %v4399 = vld [vmem:[%s4397 + $0x8] sm:$0xff]
        %v4400 = vld [vmem:[%s4397 + $0x10] sm:$0xff]
        %v4401 = vld [vmem:[%s4397 + $0x18] sm:$0xff]
        %v4402 = vld [vmem:[%s4397 + $0x20] sm:$0xff]
        %v4403 = vld [vmem:[%s4397 + $0x28] sm:$0xff]
        %v4404 = vld [vmem:[%s4397 + $0x30] sm:$0xff]
        %v4405 = vld [vmem:[%s4397 + $0x38] sm:$0xff]
        %v4406 = vld [vmem:[%s4397 + $0x40] sm:$0xff]
        %v4407 = vld [vmem:[%s4397 + $0x48] sm:$0xff]
        %v4408 = vld [vmem:[%s4397 + $0x50] sm:$0xff]
        %v4409 = vld [vmem:[%s4397 + $0x58] sm:$0xff]
        %v4410 = vld [vmem:[%s4397 + $0x60] sm:$0xff]
        %v4411 = vld [vmem:[%s4397 + $0x68] sm:$0xff]
        %v4412 = vld [vmem:[%s4397 + $0x70] sm:$0xff]
        %v4413 = vld [vmem:[%s4397 + $0x78] sm:$0xff]
        %v4414 = vld [vmem:[%s4397 + $0x80] sm:$0xff]
        %v4415 = vld [vmem:[%s4397 + $0x88] sm:$0xff]
        %v4416 = vld [vmem:[%s4397 + $0x90] sm:$0xff]
        %v4417 = vld [vmem:[%s4397 + $0x98] sm:$0xff]
        %v4418 = vld [vmem:[%s4397 + $0xa0] sm:$0xff]
        %v4419 = vld [vmem:[%s4397 + $0xa8] sm:$0xff]
        %v4420 = vld [vmem:[%s4397 + $0xb0] sm:$0xff]
        %v4421 = vld [vmem:[%s4397 + $0xb8] sm:$0xff]
        %v4422 = vld [vmem:[%s4397 + $0xc0] sm:$0xff]
        %v4423 = vld [vmem:[%s4397 + $0xc8] sm:$0xff]
        %v4424 = vld [vmem:[%s4397 + $0xd0] sm:$0xff]
        %v4425 = vld [vmem:[%s4397 + $0xd8] sm:$0xff]
        %v4426 = vld [vmem:[%s4397 + $0xe0] sm:$0xff]
        %v4427 = vld [vmem:[%s4397 + $0xe8] sm:$0xff]
        %v4428 = vld [vmem:[%s4397 + $0xf0] sm:$0xff]
        %v4429 = vld [vmem:[%s4397 + $0xf8] sm:$0xff]
        %v4430 = vld [vmem:[%s4397 + $0x100] sm:$0xff]
        %v4431 = vld [vmem:[%s4397 + $0x108] sm:$0xff]
        %v4432 = vld [vmem:[%s4397 + $0x110] sm:$0xff]
        %v4433 = vld [vmem:[%s4397 + $0x118] sm:$0xff]
        %v4434 = vld [vmem:[%s4397 + $0x120] sm:$0xff]
        %v4435 = vld [vmem:[%s4397 + $0x128] sm:$0xff]
        %v4436 = vld [vmem:[%s4397 + $0x130] sm:$0xff]
        %v4437 = vld [vmem:[%s4397 + $0x138] sm:$0xff]
        %v4438 = vld [vmem:[%s4397 + $0x140] sm:$0xff]
        %v4439 = vld [vmem:[%s4397 + $0x148] sm:$0xff]
        %v4440 = vld [vmem:[%s4397 + $0x150] sm:$0xff]
        %v4441 = vld [vmem:[%s4397 + $0x158] sm:$0xff]
        %v4442 = vld [vmem:[%s4397 + $0x160] sm:$0xff]
        %v4443 = vld [vmem:[%s4397 + $0x168] sm:$0xff]
        %v4444 = vld [vmem:[%s4397 + $0x170] sm:$0xff]
        %v4445 = vld [vmem:[%s4397 + $0x178] sm:$0xff]
        %v4446 = vld [vmem:[%s4397 + $0x180] sm:$0xff]
        %v4447 = vld [vmem:[%s4397 + $0x188] sm:$0xff]
        %v4448 = vld [vmem:[%s4397 + $0x190] sm:$0xff]
        %v4449 = vld [vmem:[%s4397 + $0x198] sm:$0xff]
        %v4450 = vld [vmem:[%s4397 + $0x1a0] sm:$0xff]
        %v4451 = vld [vmem:[%s4397 + $0x1a8] sm:$0xff]
        %v4452 = vld [vmem:[%s4397 + $0x1b0] sm:$0xff]
        %v4453 = vld [vmem:[%s4397 + $0x1b8] sm:$0xff]
        %v4454 = vld [vmem:[%s4397 + $0x1c0] sm:$0xff]
        %v4455 = vld [vmem:[%s4397 + $0x1c8] sm:$0xff]
        %v4456 = vld [vmem:[%s4397 + $0x1d0] sm:$0xff]
        %v4457 = vld [vmem:[%s4397 + $0x1d8] sm:$0xff]
        %v4458 = vld [vmem:[%s4397 + $0x1e0] sm:$0xff]
        %v4459 = vld [vmem:[%s4397 + $0x1e8] sm:$0xff]
        %v4460 = vld [vmem:[%s4397 + $0x1f0] sm:$0xff]
        %v4461 = vld [vmem:[%s4397 + $0x1f8] sm:$0xff]
        %s4462 = scalar_lea.vmem %s216, 7
        %v4463 = vld [vmem:[%s4462] sm:$0x1]
        %4465 = vset.pattern.permute.xlu0 0
        %4466 = vperm.xlu0 %4465, %v4398
        %v4467 = vpop.permute.xlu0 %4466
        %4470 = vset.pattern.permute.xlu0 0
        %4471 = vperm.xlu0 %4470, %v4399
        %v4472 = vpop.permute.xlu0 %4471
        %4475 = vset.pattern.permute.xlu0 0
        %4476 = vperm.xlu0 %4475, %v4400
        %v4477 = vpop.permute.xlu0 %4476
        %4480 = vset.pattern.permute.xlu0 0
        %4481 = vperm.xlu0 %4480, %v4401
        %v4482 = vpop.permute.xlu0 %4481
        %4485 = vset.pattern.permute.xlu0 0
        %4486 = vperm.xlu0 %4485, %v4402
        %v4487 = vpop.permute.xlu0 %4486
        %4490 = vset.pattern.permute.xlu0 0
        %4491 = vperm.xlu0 %4490, %v4403
        %v4492 = vpop.permute.xlu0 %4491
        %4495 = vset.pattern.permute.xlu0 0
        %4496 = vperm.xlu0 %4495, %v4404
        %v4497 = vpop.permute.xlu0 %4496
        %4500 = vset.pattern.permute.xlu0 0
        %4501 = vperm.xlu0 %4500, %v4405
        %v4502 = vpop.permute.xlu0 %4501
        %4505 = vset.pattern.permute.xlu0 0
        %4506 = vperm.xlu0 %4505, %v4406
        %v4507 = vpop.permute.xlu0 %4506
        %4510 = vset.pattern.permute.xlu0 0
        %4511 = vperm.xlu0 %4510, %v4407
        %v4512 = vpop.permute.xlu0 %4511
        %4515 = vset.pattern.permute.xlu0 0
        %4516 = vperm.xlu0 %4515, %v4408
        %v4517 = vpop.permute.xlu0 %4516
        %4520 = vset.pattern.permute.xlu0 0
        %4521 = vperm.xlu0 %4520, %v4409
        %v4522 = vpop.permute.xlu0 %4521
        %4525 = vset.pattern.permute.xlu0 0
        %4526 = vperm.xlu0 %4525, %v4410
        %v4527 = vpop.permute.xlu0 %4526
        %4530 = vset.pattern.permute.xlu0 0
        %4531 = vperm.xlu0 %4530, %v4411
        %v4532 = vpop.permute.xlu0 %4531
        %4535 = vset.pattern.permute.xlu0 0
        %4536 = vperm.xlu0 %4535, %v4412
        %v4537 = vpop.permute.xlu0 %4536
        %4540 = vset.pattern.permute.xlu0 0
        %4541 = vperm.xlu0 %4540, %v4413
        %v4542 = vpop.permute.xlu0 %4541
        %4545 = vset.pattern.permute.xlu0 0
        %4546 = vperm.xlu0 %4545, %v4414
        %v4547 = vpop.permute.xlu0 %4546
        %4550 = vset.pattern.permute.xlu0 0
        %4551 = vperm.xlu0 %4550, %v4415
        %v4552 = vpop.permute.xlu0 %4551
        %4555 = vset.pattern.permute.xlu0 0
        %4556 = vperm.xlu0 %4555, %v4416
        %v4557 = vpop.permute.xlu0 %4556
        %4560 = vset.pattern.permute.xlu0 0
        %4561 = vperm.xlu0 %4560, %v4417
        %v4562 = vpop.permute.xlu0 %4561
        %4565 = vset.pattern.permute.xlu0 0
        %4566 = vperm.xlu0 %4565, %v4418
        %v4567 = vpop.permute.xlu0 %4566
        %4570 = vset.pattern.permute.xlu0 0
        %4571 = vperm.xlu0 %4570, %v4419
        %v4572 = vpop.permute.xlu0 %4571
        %4575 = vset.pattern.permute.xlu0 0
        %4576 = vperm.xlu0 %4575, %v4420
        %v4577 = vpop.permute.xlu0 %4576
        %4580 = vset.pattern.permute.xlu0 0
        %4581 = vperm.xlu0 %4580, %v4421
        %v4582 = vpop.permute.xlu0 %4581
        %4585 = vset.pattern.permute.xlu0 0
        %4586 = vperm.xlu0 %4585, %v4422
        %v4587 = vpop.permute.xlu0 %4586
        %4590 = vset.pattern.permute.xlu0 0
        %4591 = vperm.xlu0 %4590, %v4423
        %v4592 = vpop.permute.xlu0 %4591
        %4595 = vset.pattern.permute.xlu0 0
        %4596 = vperm.xlu0 %4595, %v4424
        %v4597 = vpop.permute.xlu0 %4596
        %4600 = vset.pattern.permute.xlu0 0
        %4601 = vperm.xlu0 %4600, %v4425
        %v4602 = vpop.permute.xlu0 %4601
        %4605 = vset.pattern.permute.xlu0 0
        %4606 = vperm.xlu0 %4605, %v4426
        %v4607 = vpop.permute.xlu0 %4606
        %4610 = vset.pattern.permute.xlu0 0
        %4611 = vperm.xlu0 %4610, %v4427
        %v4612 = vpop.permute.xlu0 %4611
        %4615 = vset.pattern.permute.xlu0 0
        %4616 = vperm.xlu0 %4615, %v4428
        %v4617 = vpop.permute.xlu0 %4616
        %4620 = vset.pattern.permute.xlu0 0
        %4621 = vperm.xlu0 %4620, %v4429
        %v4622 = vpop.permute.xlu0 %4621
        %4625 = vset.pattern.permute.xlu0 0
        %4626 = vperm.xlu0 %4625, %v4430
        %v4627 = vpop.permute.xlu0 %4626
        %4630 = vset.pattern.permute.xlu0 0
        %4631 = vperm.xlu0 %4630, %v4431
        %v4632 = vpop.permute.xlu0 %4631
        %4635 = vset.pattern.permute.xlu0 0
        %4636 = vperm.xlu0 %4635, %v4432
        %v4637 = vpop.permute.xlu0 %4636
        %4640 = vset.pattern.permute.xlu0 0
        %4641 = vperm.xlu0 %4640, %v4433
        %v4642 = vpop.permute.xlu0 %4641
        %4645 = vset.pattern.permute.xlu0 0
        %4646 = vperm.xlu0 %4645, %v4434
        %v4647 = vpop.permute.xlu0 %4646
        %4650 = vset.pattern.permute.xlu0 0
        %4651 = vperm.xlu0 %4650, %v4435
        %v4652 = vpop.permute.xlu0 %4651
        %4655 = vset.pattern.permute.xlu0 0
        %4656 = vperm.xlu0 %4655, %v4436
        %v4657 = vpop.permute.xlu0 %4656
        %4660 = vset.pattern.permute.xlu0 0
        %4661 = vperm.xlu0 %4660, %v4437
        %v4662 = vpop.permute.xlu0 %4661
        %4665 = vset.pattern.permute.xlu0 0
        %4666 = vperm.xlu0 %4665, %v4438
        %v4667 = vpop.permute.xlu0 %4666
        %4670 = vset.pattern.permute.xlu0 0
        %4671 = vperm.xlu0 %4670, %v4439
        %v4672 = vpop.permute.xlu0 %4671
        %4675 = vset.pattern.permute.xlu0 0
        %4676 = vperm.xlu0 %4675, %v4440
        %v4677 = vpop.permute.xlu0 %4676
        %4680 = vset.pattern.permute.xlu0 0
        %4681 = vperm.xlu0 %4680, %v4441
        %v4682 = vpop.permute.xlu0 %4681
        %4685 = vset.pattern.permute.xlu0 0
        %4686 = vperm.xlu0 %4685, %v4442
        %v4687 = vpop.permute.xlu0 %4686
        %4690 = vset.pattern.permute.xlu0 0
        %4691 = vperm.xlu0 %4690, %v4443
        %v4692 = vpop.permute.xlu0 %4691
        %4695 = vset.pattern.permute.xlu0 0
        %4696 = vperm.xlu0 %4695, %v4444
        %v4697 = vpop.permute.xlu0 %4696
        %4700 = vset.pattern.permute.xlu0 0
        %4701 = vperm.xlu0 %4700, %v4445
        %v4702 = vpop.permute.xlu0 %4701
        %4705 = vset.pattern.permute.xlu0 0
        %4706 = vperm.xlu0 %4705, %v4446
        %v4707 = vpop.permute.xlu0 %4706
        %4710 = vset.pattern.permute.xlu0 0
        %4711 = vperm.xlu0 %4710, %v4447
        %v4712 = vpop.permute.xlu0 %4711
        %4715 = vset.pattern.permute.xlu0 0
        %4716 = vperm.xlu0 %4715, %v4448
        %v4717 = vpop.permute.xlu0 %4716
        %4720 = vset.pattern.permute.xlu0 0
        %4721 = vperm.xlu0 %4720, %v4449
        %v4722 = vpop.permute.xlu0 %4721
        %4725 = vset.pattern.permute.xlu0 0
        %4726 = vperm.xlu0 %4725, %v4450
        %v4727 = vpop.permute.xlu0 %4726
        %4730 = vset.pattern.permute.xlu0 0
        %4731 = vperm.xlu0 %4730, %v4451
        %v4732 = vpop.permute.xlu0 %4731
        %4735 = vset.pattern.permute.xlu0 0
        %4736 = vperm.xlu0 %4735, %v4452
        %v4737 = vpop.permute.xlu0 %4736
        %4740 = vset.pattern.permute.xlu0 0
        %4741 = vperm.xlu0 %4740, %v4453
        %v4742 = vpop.permute.xlu0 %4741
        %4745 = vset.pattern.permute.xlu0 0
        %4746 = vperm.xlu0 %4745, %v4454
        %v4747 = vpop.permute.xlu0 %4746
        %4750 = vset.pattern.permute.xlu0 0
        %4751 = vperm.xlu0 %4750, %v4455
        %v4752 = vpop.permute.xlu0 %4751
        %4755 = vset.pattern.permute.xlu0 0
        %4756 = vperm.xlu0 %4755, %v4456
        %v4757 = vpop.permute.xlu0 %4756
        %4760 = vset.pattern.permute.xlu0 0
        %4761 = vperm.xlu0 %4760, %v4457
        %v4762 = vpop.permute.xlu0 %4761
        %4765 = vset.pattern.permute.xlu0 0
        %4766 = vperm.xlu0 %4765, %v4458
        %v4767 = vpop.permute.xlu0 %4766
        %4770 = vset.pattern.permute.xlu0 0
        %4771 = vperm.xlu0 %4770, %v4459
        %v4772 = vpop.permute.xlu0 %4771
        %4775 = vset.pattern.permute.xlu0 0
        %4776 = vperm.xlu0 %4775, %v4460
        %v4777 = vpop.permute.xlu0 %4776
        %4780 = vset.pattern.permute.xlu0 0
        %4781 = vperm.xlu0 %4780, %v4461
        %v4782 = vpop.permute.xlu0 %4781
        %v4785 = vlaneseq
        %v4786 = vshrl.u32 %v4785, 7
        %v4787 = vsub.s32 0, %v4786
        %v4788 = vrot.slane %v4463, %v4787
        %v4790 = vmul.f32 %v4467, %v4788
        %v4791 = vmul.f32 %v4472, %v4788
        %v4792 = vmul.f32 %v4477, %v4788
        %v4793 = vmul.f32 %v4482, %v4788
        %v4794 = vmul.f32 %v4487, %v4788
        %v4795 = vmul.f32 %v4492, %v4788
        %v4796 = vmul.f32 %v4497, %v4788
        %v4797 = vmul.f32 %v4502, %v4788
        %v4798 = vmul.f32 %v4507, %v4788
        %v4799 = vmul.f32 %v4512, %v4788
        %v4800 = vmul.f32 %v4517, %v4788
        %v4801 = vmul.f32 %v4522, %v4788
        %v4802 = vmul.f32 %v4527, %v4788
        %v4803 = vmul.f32 %v4532, %v4788
        %v4804 = vmul.f32 %v4537, %v4788
        %v4805 = vmul.f32 %v4542, %v4788
        %v4806 = vmul.f32 %v4547, %v4788
        %v4807 = vmul.f32 %v4552, %v4788
        %v4808 = vmul.f32 %v4557, %v4788
        %v4809 = vmul.f32 %v4562, %v4788
        %v4810 = vmul.f32 %v4567, %v4788
        %v4811 = vmul.f32 %v4572, %v4788
        %v4812 = vmul.f32 %v4577, %v4788
        %v4813 = vmul.f32 %v4582, %v4788
        %v4814 = vmul.f32 %v4587, %v4788
        %v4815 = vmul.f32 %v4592, %v4788
        %v4816 = vmul.f32 %v4597, %v4788
        %v4817 = vmul.f32 %v4602, %v4788
        %v4818 = vmul.f32 %v4607, %v4788
        %v4819 = vmul.f32 %v4612, %v4788
        %v4820 = vmul.f32 %v4617, %v4788
        %v4821 = vmul.f32 %v4622, %v4788
        %v4822 = vmul.f32 %v4627, %v4788
        %v4823 = vmul.f32 %v4632, %v4788
        %v4824 = vmul.f32 %v4637, %v4788
        %v4825 = vmul.f32 %v4642, %v4788
        %v4826 = vmul.f32 %v4647, %v4788
        %v4827 = vmul.f32 %v4652, %v4788
        %v4828 = vmul.f32 %v4657, %v4788
        %v4829 = vmul.f32 %v4662, %v4788
        %v4830 = vmul.f32 %v4667, %v4788
        %v4831 = vmul.f32 %v4672, %v4788
        %v4832 = vmul.f32 %v4677, %v4788
        %v4833 = vmul.f32 %v4682, %v4788
        %v4834 = vmul.f32 %v4687, %v4788
        %v4835 = vmul.f32 %v4692, %v4788
        %v4836 = vmul.f32 %v4697, %v4788
        %v4837 = vmul.f32 %v4702, %v4788
        %v4838 = vmul.f32 %v4707, %v4788
        %v4839 = vmul.f32 %v4712, %v4788
        %v4840 = vmul.f32 %v4717, %v4788
        %v4841 = vmul.f32 %v4722, %v4788
        %v4842 = vmul.f32 %v4727, %v4788
        %v4843 = vmul.f32 %v4732, %v4788
        %v4844 = vmul.f32 %v4737, %v4788
        %v4845 = vmul.f32 %v4742, %v4788
        %v4846 = vmul.f32 %v4747, %v4788
        %v4847 = vmul.f32 %v4752, %v4788
        %v4848 = vmul.f32 %v4757, %v4788
        %v4849 = vmul.f32 %v4762, %v4788
        %v4850 = vmul.f32 %v4767, %v4788
        %v4851 = vmul.f32 %v4772, %v4788
        %v4852 = vmul.f32 %v4777, %v4788
        %v4853 = vmul.f32 %v4782, %v4788
        %v4854 = vadd.f32 %v4332, %v4790
        %v4855 = vadd.f32 %v4333, %v4791
        %v4856 = vadd.f32 %v4334, %v4792
        %v4857 = vadd.f32 %v4335, %v4793
        %v4858 = vadd.f32 %v4336, %v4794
        %v4859 = vadd.f32 %v4337, %v4795
        %v4860 = vadd.f32 %v4338, %v4796
        %v4861 = vadd.f32 %v4339, %v4797
        %v4862 = vadd.f32 %v4340, %v4798
        %v4863 = vadd.f32 %v4341, %v4799
        %v4864 = vadd.f32 %v4342, %v4800
        %v4865 = vadd.f32 %v4343, %v4801
        %v4866 = vadd.f32 %v4344, %v4802
        %v4867 = vadd.f32 %v4345, %v4803
        %v4868 = vadd.f32 %v4346, %v4804
        %v4869 = vadd.f32 %v4347, %v4805
        %v4870 = vadd.f32 %v4348, %v4806
        %v4871 = vadd.f32 %v4349, %v4807
        %v4872 = vadd.f32 %v4350, %v4808
        %v4873 = vadd.f32 %v4351, %v4809
        %v4874 = vadd.f32 %v4352, %v4810
        %v4875 = vadd.f32 %v4353, %v4811
        %v4876 = vadd.f32 %v4354, %v4812
        %v4877 = vadd.f32 %v4355, %v4813
        %v4878 = vadd.f32 %v4356, %v4814
        %v4879 = vadd.f32 %v4357, %v4815
        %v4880 = vadd.f32 %v4358, %v4816
        %v4881 = vadd.f32 %v4359, %v4817
        %v4882 = vadd.f32 %v4360, %v4818
        %v4883 = vadd.f32 %v4361, %v4819
        %v4884 = vadd.f32 %v4362, %v4820
        %v4885 = vadd.f32 %v4363, %v4821
        %v4886 = vadd.f32 %v4364, %v4822
        %v4887 = vadd.f32 %v4365, %v4823
        %v4888 = vadd.f32 %v4366, %v4824
        %v4889 = vadd.f32 %v4367, %v4825
        %v4890 = vadd.f32 %v4368, %v4826
        %v4891 = vadd.f32 %v4369, %v4827
        %v4892 = vadd.f32 %v4370, %v4828
        %v4893 = vadd.f32 %v4371, %v4829
        %v4894 = vadd.f32 %v4372, %v4830
        %v4895 = vadd.f32 %v4373, %v4831
        %v4896 = vadd.f32 %v4374, %v4832
        %v4897 = vadd.f32 %v4375, %v4833
        %v4898 = vadd.f32 %v4376, %v4834
        %v4899 = vadd.f32 %v4377, %v4835
        %v4900 = vadd.f32 %v4378, %v4836
        %v4901 = vadd.f32 %v4379, %v4837
        %v4902 = vadd.f32 %v4380, %v4838
        %v4903 = vadd.f32 %v4381, %v4839
        %v4904 = vadd.f32 %v4382, %v4840
        %v4905 = vadd.f32 %v4383, %v4841
        %v4906 = vadd.f32 %v4384, %v4842
        %v4907 = vadd.f32 %v4385, %v4843
        %v4908 = vadd.f32 %v4386, %v4844
        %v4909 = vadd.f32 %v4387, %v4845
        %v4910 = vadd.f32 %v4388, %v4846
        %v4911 = vadd.f32 %v4389, %v4847
        %v4912 = vadd.f32 %v4390, %v4848
        %v4913 = vadd.f32 %v4391, %v4849
        %v4914 = vadd.f32 %v4392, %v4850
        %v4915 = vadd.f32 %v4393, %v4851
        %v4916 = vadd.f32 %v4394, %v4852
        %v4917 = vadd.f32 %v4395, %v4853
        %s4918 = sadd.s32 %s743, 8
        %s4919 = scalar_lea.vmem [#allocation2], %s4918
        %v4920 = vld [vmem:[%s4919] sm:$0xff]
        %v4921 = vld [vmem:[%s4919 + $0x8] sm:$0xff]
        %v4922 = vld [vmem:[%s4919 + $0x10] sm:$0xff]
        %v4923 = vld [vmem:[%s4919 + $0x18] sm:$0xff]
        %v4924 = vld [vmem:[%s4919 + $0x20] sm:$0xff]
        %v4925 = vld [vmem:[%s4919 + $0x28] sm:$0xff]
        %v4926 = vld [vmem:[%s4919 + $0x30] sm:$0xff]
        %v4927 = vld [vmem:[%s4919 + $0x38] sm:$0xff]
        %v4928 = vld [vmem:[%s4919 + $0x40] sm:$0xff]
        %v4929 = vld [vmem:[%s4919 + $0x48] sm:$0xff]
        %v4930 = vld [vmem:[%s4919 + $0x50] sm:$0xff]
        %v4931 = vld [vmem:[%s4919 + $0x58] sm:$0xff]
        %v4932 = vld [vmem:[%s4919 + $0x60] sm:$0xff]
        %v4933 = vld [vmem:[%s4919 + $0x68] sm:$0xff]
        %v4934 = vld [vmem:[%s4919 + $0x70] sm:$0xff]
        %v4935 = vld [vmem:[%s4919 + $0x78] sm:$0xff]
        %v4936 = vld [vmem:[%s4919 + $0x80] sm:$0xff]
        %v4937 = vld [vmem:[%s4919 + $0x88] sm:$0xff]
        %v4938 = vld [vmem:[%s4919 + $0x90] sm:$0xff]
        %v4939 = vld [vmem:[%s4919 + $0x98] sm:$0xff]
        %v4940 = vld [vmem:[%s4919 + $0xa0] sm:$0xff]
        %v4941 = vld [vmem:[%s4919 + $0xa8] sm:$0xff]
        %v4942 = vld [vmem:[%s4919 + $0xb0] sm:$0xff]
        %v4943 = vld [vmem:[%s4919 + $0xb8] sm:$0xff]
        %v4944 = vld [vmem:[%s4919 + $0xc0] sm:$0xff]
        %v4945 = vld [vmem:[%s4919 + $0xc8] sm:$0xff]
        %v4946 = vld [vmem:[%s4919 + $0xd0] sm:$0xff]
        %v4947 = vld [vmem:[%s4919 + $0xd8] sm:$0xff]
        %v4948 = vld [vmem:[%s4919 + $0xe0] sm:$0xff]
        %v4949 = vld [vmem:[%s4919 + $0xe8] sm:$0xff]
        %v4950 = vld [vmem:[%s4919 + $0xf0] sm:$0xff]
        %v4951 = vld [vmem:[%s4919 + $0xf8] sm:$0xff]
        %v4952 = vld [vmem:[%s4919 + $0x100] sm:$0xff]
        %v4953 = vld [vmem:[%s4919 + $0x108] sm:$0xff]
        %v4954 = vld [vmem:[%s4919 + $0x110] sm:$0xff]
        %v4955 = vld [vmem:[%s4919 + $0x118] sm:$0xff]
        %v4956 = vld [vmem:[%s4919 + $0x120] sm:$0xff]
        %v4957 = vld [vmem:[%s4919 + $0x128] sm:$0xff]
        %v4958 = vld [vmem:[%s4919 + $0x130] sm:$0xff]
        %v4959 = vld [vmem:[%s4919 + $0x138] sm:$0xff]
        %v4960 = vld [vmem:[%s4919 + $0x140] sm:$0xff]
        %v4961 = vld [vmem:[%s4919 + $0x148] sm:$0xff]
        %v4962 = vld [vmem:[%s4919 + $0x150] sm:$0xff]
        %v4963 = vld [vmem:[%s4919 + $0x158] sm:$0xff]
        %v4964 = vld [vmem:[%s4919 + $0x160] sm:$0xff]
        %v4965 = vld [vmem:[%s4919 + $0x168] sm:$0xff]
        %v4966 = vld [vmem:[%s4919 + $0x170] sm:$0xff]
        %v4967 = vld [vmem:[%s4919 + $0x178] sm:$0xff]
        %v4968 = vld [vmem:[%s4919 + $0x180] sm:$0xff]
        %v4969 = vld [vmem:[%s4919 + $0x188] sm:$0xff]
        %v4970 = vld [vmem:[%s4919 + $0x190] sm:$0xff]
        %v4971 = vld [vmem:[%s4919 + $0x198] sm:$0xff]
        %v4972 = vld [vmem:[%s4919 + $0x1a0] sm:$0xff]
        %v4973 = vld [vmem:[%s4919 + $0x1a8] sm:$0xff]
        %v4974 = vld [vmem:[%s4919 + $0x1b0] sm:$0xff]
        %v4975 = vld [vmem:[%s4919 + $0x1b8] sm:$0xff]
        %v4976 = vld [vmem:[%s4919 + $0x1c0] sm:$0xff]
        %v4977 = vld [vmem:[%s4919 + $0x1c8] sm:$0xff]
        %v4978 = vld [vmem:[%s4919 + $0x1d0] sm:$0xff]
        %v4979 = vld [vmem:[%s4919 + $0x1d8] sm:$0xff]
        %v4980 = vld [vmem:[%s4919 + $0x1e0] sm:$0xff]
        %v4981 = vld [vmem:[%s4919 + $0x1e8] sm:$0xff]
        %v4982 = vld [vmem:[%s4919 + $0x1f0] sm:$0xff]
        %v4983 = vld [vmem:[%s4919 + $0x1f8] sm:$0xff]
        %s4984 = scalar_lea.vmem %s216, 8
        %v4985 = vld [vmem:[%s4984] sm:$0x1]
        %4987 = vset.pattern.permute.xlu0 0
        %4988 = vperm.xlu0 %4987, %v4920
        %v4989 = vpop.permute.xlu0 %4988
        %4992 = vset.pattern.permute.xlu0 0
        %4993 = vperm.xlu0 %4992, %v4921
        %v4994 = vpop.permute.xlu0 %4993
        %4997 = vset.pattern.permute.xlu0 0
        %4998 = vperm.xlu0 %4997, %v4922
        %v4999 = vpop.permute.xlu0 %4998
        %5002 = vset.pattern.permute.xlu0 0
        %5003 = vperm.xlu0 %5002, %v4923
        %v5004 = vpop.permute.xlu0 %5003
        %5007 = vset.pattern.permute.xlu0 0
        %5008 = vperm.xlu0 %5007, %v4924
        %v5009 = vpop.permute.xlu0 %5008
        %5012 = vset.pattern.permute.xlu0 0
        %5013 = vperm.xlu0 %5012, %v4925
        %v5014 = vpop.permute.xlu0 %5013
        %5017 = vset.pattern.permute.xlu0 0
        %5018 = vperm.xlu0 %5017, %v4926
        %v5019 = vpop.permute.xlu0 %5018
        %5022 = vset.pattern.permute.xlu0 0
        %5023 = vperm.xlu0 %5022, %v4927
        %v5024 = vpop.permute.xlu0 %5023
        %5027 = vset.pattern.permute.xlu0 0
        %5028 = vperm.xlu0 %5027, %v4928
        %v5029 = vpop.permute.xlu0 %5028
        %5032 = vset.pattern.permute.xlu0 0
        %5033 = vperm.xlu0 %5032, %v4929
        %v5034 = vpop.permute.xlu0 %5033
        %5037 = vset.pattern.permute.xlu0 0
        %5038 = vperm.xlu0 %5037, %v4930
        %v5039 = vpop.permute.xlu0 %5038
        %5042 = vset.pattern.permute.xlu0 0
        %5043 = vperm.xlu0 %5042, %v4931
        %v5044 = vpop.permute.xlu0 %5043
        %5047 = vset.pattern.permute.xlu0 0
        %5048 = vperm.xlu0 %5047, %v4932
        %v5049 = vpop.permute.xlu0 %5048
        %5052 = vset.pattern.permute.xlu0 0
        %5053 = vperm.xlu0 %5052, %v4933
        %v5054 = vpop.permute.xlu0 %5053
        %5057 = vset.pattern.permute.xlu0 0
        %5058 = vperm.xlu0 %5057, %v4934
        %v5059 = vpop.permute.xlu0 %5058
        %5062 = vset.pattern.permute.xlu0 0
        %5063 = vperm.xlu0 %5062, %v4935
        %v5064 = vpop.permute.xlu0 %5063
        %5067 = vset.pattern.permute.xlu0 0
        %5068 = vperm.xlu0 %5067, %v4936
        %v5069 = vpop.permute.xlu0 %5068
        %5072 = vset.pattern.permute.xlu0 0
        %5073 = vperm.xlu0 %5072, %v4937
        %v5074 = vpop.permute.xlu0 %5073
        %5077 = vset.pattern.permute.xlu0 0
        %5078 = vperm.xlu0 %5077, %v4938
        %v5079 = vpop.permute.xlu0 %5078
        %5082 = vset.pattern.permute.xlu0 0
        %5083 = vperm.xlu0 %5082, %v4939
        %v5084 = vpop.permute.xlu0 %5083
        %5087 = vset.pattern.permute.xlu0 0
        %5088 = vperm.xlu0 %5087, %v4940
        %v5089 = vpop.permute.xlu0 %5088
        %5092 = vset.pattern.permute.xlu0 0
        %5093 = vperm.xlu0 %5092, %v4941
        %v5094 = vpop.permute.xlu0 %5093
        %5097 = vset.pattern.permute.xlu0 0
        %5098 = vperm.xlu0 %5097, %v4942
        %v5099 = vpop.permute.xlu0 %5098
        %5102 = vset.pattern.permute.xlu0 0
        %5103 = vperm.xlu0 %5102, %v4943
        %v5104 = vpop.permute.xlu0 %5103
        %5107 = vset.pattern.permute.xlu0 0
        %5108 = vperm.xlu0 %5107, %v4944
        %v5109 = vpop.permute.xlu0 %5108
        %5112 = vset.pattern.permute.xlu0 0
        %5113 = vperm.xlu0 %5112, %v4945
        %v5114 = vpop.permute.xlu0 %5113
        %5117 = vset.pattern.permute.xlu0 0
        %5118 = vperm.xlu0 %5117, %v4946
        %v5119 = vpop.permute.xlu0 %5118
        %5122 = vset.pattern.permute.xlu0 0
        %5123 = vperm.xlu0 %5122, %v4947
        %v5124 = vpop.permute.xlu0 %5123
        %5127 = vset.pattern.permute.xlu0 0
        %5128 = vperm.xlu0 %5127, %v4948
        %v5129 = vpop.permute.xlu0 %5128
        %5132 = vset.pattern.permute.xlu0 0
        %5133 = vperm.xlu0 %5132, %v4949
        %v5134 = vpop.permute.xlu0 %5133
        %5137 = vset.pattern.permute.xlu0 0
        %5138 = vperm.xlu0 %5137, %v4950
        %v5139 = vpop.permute.xlu0 %5138
        %5142 = vset.pattern.permute.xlu0 0
        %5143 = vperm.xlu0 %5142, %v4951
        %v5144 = vpop.permute.xlu0 %5143
        %5147 = vset.pattern.permute.xlu0 0
        %5148 = vperm.xlu0 %5147, %v4952
        %v5149 = vpop.permute.xlu0 %5148
        %5152 = vset.pattern.permute.xlu0 0
        %5153 = vperm.xlu0 %5152, %v4953
        %v5154 = vpop.permute.xlu0 %5153
        %5157 = vset.pattern.permute.xlu0 0
        %5158 = vperm.xlu0 %5157, %v4954
        %v5159 = vpop.permute.xlu0 %5158
        %5162 = vset.pattern.permute.xlu0 0
        %5163 = vperm.xlu0 %5162, %v4955
        %v5164 = vpop.permute.xlu0 %5163
        %5167 = vset.pattern.permute.xlu0 0
        %5168 = vperm.xlu0 %5167, %v4956
        %v5169 = vpop.permute.xlu0 %5168
        %5172 = vset.pattern.permute.xlu0 0
        %5173 = vperm.xlu0 %5172, %v4957
        %v5174 = vpop.permute.xlu0 %5173
        %5177 = vset.pattern.permute.xlu0 0
        %5178 = vperm.xlu0 %5177, %v4958
        %v5179 = vpop.permute.xlu0 %5178
        %5182 = vset.pattern.permute.xlu0 0
        %5183 = vperm.xlu0 %5182, %v4959
        %v5184 = vpop.permute.xlu0 %5183
        %5187 = vset.pattern.permute.xlu0 0
        %5188 = vperm.xlu0 %5187, %v4960
        %v5189 = vpop.permute.xlu0 %5188
        %5192 = vset.pattern.permute.xlu0 0
        %5193 = vperm.xlu0 %5192, %v4961
        %v5194 = vpop.permute.xlu0 %5193
        %5197 = vset.pattern.permute.xlu0 0
        %5198 = vperm.xlu0 %5197, %v4962
        %v5199 = vpop.permute.xlu0 %5198
        %5202 = vset.pattern.permute.xlu0 0
        %5203 = vperm.xlu0 %5202, %v4963
        %v5204 = vpop.permute.xlu0 %5203
        %5207 = vset.pattern.permute.xlu0 0
        %5208 = vperm.xlu0 %5207, %v4964
        %v5209 = vpop.permute.xlu0 %5208
        %5212 = vset.pattern.permute.xlu0 0
        %5213 = vperm.xlu0 %5212, %v4965
        %v5214 = vpop.permute.xlu0 %5213
        %5217 = vset.pattern.permute.xlu0 0
        %5218 = vperm.xlu0 %5217, %v4966
        %v5219 = vpop.permute.xlu0 %5218
        %5222 = vset.pattern.permute.xlu0 0
        %5223 = vperm.xlu0 %5222, %v4967
        %v5224 = vpop.permute.xlu0 %5223
        %5227 = vset.pattern.permute.xlu0 0
        %5228 = vperm.xlu0 %5227, %v4968
        %v5229 = vpop.permute.xlu0 %5228
        %5232 = vset.pattern.permute.xlu0 0
        %5233 = vperm.xlu0 %5232, %v4969
        %v5234 = vpop.permute.xlu0 %5233
        %5237 = vset.pattern.permute.xlu0 0
        %5238 = vperm.xlu0 %5237, %v4970
        %v5239 = vpop.permute.xlu0 %5238
        %5242 = vset.pattern.permute.xlu0 0
        %5243 = vperm.xlu0 %5242, %v4971
        %v5244 = vpop.permute.xlu0 %5243
        %5247 = vset.pattern.permute.xlu0 0
        %5248 = vperm.xlu0 %5247, %v4972
        %v5249 = vpop.permute.xlu0 %5248
        %5252 = vset.pattern.permute.xlu0 0
        %5253 = vperm.xlu0 %5252, %v4973
        %v5254 = vpop.permute.xlu0 %5253
        %5257 = vset.pattern.permute.xlu0 0
        %5258 = vperm.xlu0 %5257, %v4974
        %v5259 = vpop.permute.xlu0 %5258
        %5262 = vset.pattern.permute.xlu0 0
        %5263 = vperm.xlu0 %5262, %v4975
        %v5264 = vpop.permute.xlu0 %5263
        %5267 = vset.pattern.permute.xlu0 0
        %5268 = vperm.xlu0 %5267, %v4976
        %v5269 = vpop.permute.xlu0 %5268
        %5272 = vset.pattern.permute.xlu0 0
        %5273 = vperm.xlu0 %5272, %v4977
        %v5274 = vpop.permute.xlu0 %5273
        %5277 = vset.pattern.permute.xlu0 0
        %5278 = vperm.xlu0 %5277, %v4978
        %v5279 = vpop.permute.xlu0 %5278
        %5282 = vset.pattern.permute.xlu0 0
        %5283 = vperm.xlu0 %5282, %v4979
        %v5284 = vpop.permute.xlu0 %5283
        %5287 = vset.pattern.permute.xlu0 0
        %5288 = vperm.xlu0 %5287, %v4980
        %v5289 = vpop.permute.xlu0 %5288
        %5292 = vset.pattern.permute.xlu0 0
        %5293 = vperm.xlu0 %5292, %v4981
        %v5294 = vpop.permute.xlu0 %5293
        %5297 = vset.pattern.permute.xlu0 0
        %5298 = vperm.xlu0 %5297, %v4982
        %v5299 = vpop.permute.xlu0 %5298
        %5302 = vset.pattern.permute.xlu0 0
        %5303 = vperm.xlu0 %5302, %v4983
        %v5304 = vpop.permute.xlu0 %5303
        %v5307 = vlaneseq
        %v5308 = vshrl.u32 %v5307, 7
        %v5309 = vsub.s32 0, %v5308
        %v5310 = vrot.slane %v4985, %v5309
        %v5312 = vmul.f32 %v4989, %v5310
        %v5313 = vmul.f32 %v4994, %v5310
        %v5314 = vmul.f32 %v4999, %v5310
        %v5315 = vmul.f32 %v5004, %v5310
        %v5316 = vmul.f32 %v5009, %v5310
        %v5317 = vmul.f32 %v5014, %v5310
        %v5318 = vmul.f32 %v5019, %v5310
        %v5319 = vmul.f32 %v5024, %v5310
        %v5320 = vmul.f32 %v5029, %v5310
        %v5321 = vmul.f32 %v5034, %v5310
        %v5322 = vmul.f32 %v5039, %v5310
        %v5323 = vmul.f32 %v5044, %v5310
        %v5324 = vmul.f32 %v5049, %v5310
        %v5325 = vmul.f32 %v5054, %v5310
        %v5326 = vmul.f32 %v5059, %v5310
        %v5327 = vmul.f32 %v5064, %v5310
        %v5328 = vmul.f32 %v5069, %v5310
        %v5329 = vmul.f32 %v5074, %v5310
        %v5330 = vmul.f32 %v5079, %v5310
        %v5331 = vmul.f32 %v5084, %v5310
        %v5332 = vmul.f32 %v5089, %v5310
        %v5333 = vmul.f32 %v5094, %v5310
        %v5334 = vmul.f32 %v5099, %v5310
        %v5335 = vmul.f32 %v5104, %v5310
        %v5336 = vmul.f32 %v5109, %v5310
        %v5337 = vmul.f32 %v5114, %v5310
        %v5338 = vmul.f32 %v5119, %v5310
        %v5339 = vmul.f32 %v5124, %v5310
        %v5340 = vmul.f32 %v5129, %v5310
        %v5341 = vmul.f32 %v5134, %v5310
        %v5342 = vmul.f32 %v5139, %v5310
        %v5343 = vmul.f32 %v5144, %v5310
        %v5344 = vmul.f32 %v5149, %v5310
        %v5345 = vmul.f32 %v5154, %v5310
        %v5346 = vmul.f32 %v5159, %v5310
        %v5347 = vmul.f32 %v5164, %v5310
        %v5348 = vmul.f32 %v5169, %v5310
        %v5349 = vmul.f32 %v5174, %v5310
        %v5350 = vmul.f32 %v5179, %v5310
        %v5351 = vmul.f32 %v5184, %v5310
        %v5352 = vmul.f32 %v5189, %v5310
        %v5353 = vmul.f32 %v5194, %v5310
        %v5354 = vmul.f32 %v5199, %v5310
        %v5355 = vmul.f32 %v5204, %v5310
        %v5356 = vmul.f32 %v5209, %v5310
        %v5357 = vmul.f32 %v5214, %v5310
        %v5358 = vmul.f32 %v5219, %v5310
        %v5359 = vmul.f32 %v5224, %v5310
        %v5360 = vmul.f32 %v5229, %v5310
        %v5361 = vmul.f32 %v5234, %v5310
        %v5362 = vmul.f32 %v5239, %v5310
        %v5363 = vmul.f32 %v5244, %v5310
        %v5364 = vmul.f32 %v5249, %v5310
        %v5365 = vmul.f32 %v5254, %v5310
        %v5366 = vmul.f32 %v5259, %v5310
        %v5367 = vmul.f32 %v5264, %v5310
        %v5368 = vmul.f32 %v5269, %v5310
        %v5369 = vmul.f32 %v5274, %v5310
        %v5370 = vmul.f32 %v5279, %v5310
        %v5371 = vmul.f32 %v5284, %v5310
        %v5372 = vmul.f32 %v5289, %v5310
        %v5373 = vmul.f32 %v5294, %v5310
        %v5374 = vmul.f32 %v5299, %v5310
        %v5375 = vmul.f32 %v5304, %v5310
        %v5376 = vadd.f32 %v4854, %v5312
        %v5377 = vadd.f32 %v4855, %v5313
        %v5378 = vadd.f32 %v4856, %v5314
        %v5379 = vadd.f32 %v4857, %v5315
        %v5380 = vadd.f32 %v4858, %v5316
        %v5381 = vadd.f32 %v4859, %v5317
        %v5382 = vadd.f32 %v4860, %v5318
        %v5383 = vadd.f32 %v4861, %v5319
        %v5384 = vadd.f32 %v4862, %v5320
        %v5385 = vadd.f32 %v4863, %v5321
        %v5386 = vadd.f32 %v4864, %v5322
        %v5387 = vadd.f32 %v4865, %v5323
        %v5388 = vadd.f32 %v4866, %v5324
        %v5389 = vadd.f32 %v4867, %v5325
        %v5390 = vadd.f32 %v4868, %v5326
        %v5391 = vadd.f32 %v4869, %v5327
        %v5392 = vadd.f32 %v4870, %v5328
        %v5393 = vadd.f32 %v4871, %v5329
        %v5394 = vadd.f32 %v4872, %v5330
        %v5395 = vadd.f32 %v4873, %v5331
        %v5396 = vadd.f32 %v4874, %v5332
        %v5397 = vadd.f32 %v4875, %v5333
        %v5398 = vadd.f32 %v4876, %v5334
        %v5399 = vadd.f32 %v4877, %v5335
        %v5400 = vadd.f32 %v4878, %v5336
        %v5401 = vadd.f32 %v4879, %v5337
        %v5402 = vadd.f32 %v4880, %v5338
        %v5403 = vadd.f32 %v4881, %v5339
        %v5404 = vadd.f32 %v4882, %v5340
        %v5405 = vadd.f32 %v4883, %v5341
        %v5406 = vadd.f32 %v4884, %v5342
        %v5407 = vadd.f32 %v4885, %v5343
        %v5408 = vadd.f32 %v4886, %v5344
        %v5409 = vadd.f32 %v4887, %v5345
        %v5410 = vadd.f32 %v4888, %v5346
        %v5411 = vadd.f32 %v4889, %v5347
        %v5412 = vadd.f32 %v4890, %v5348
        %v5413 = vadd.f32 %v4891, %v5349
        %v5414 = vadd.f32 %v4892, %v5350
        %v5415 = vadd.f32 %v4893, %v5351
        %v5416 = vadd.f32 %v4894, %v5352
        %v5417 = vadd.f32 %v4895, %v5353
        %v5418 = vadd.f32 %v4896, %v5354
        %v5419 = vadd.f32 %v4897, %v5355
        %v5420 = vadd.f32 %v4898, %v5356
        %v5421 = vadd.f32 %v4899, %v5357
        %v5422 = vadd.f32 %v4900, %v5358
        %v5423 = vadd.f32 %v4901, %v5359
        %v5424 = vadd.f32 %v4902, %v5360
        %v5425 = vadd.f32 %v4903, %v5361
        %v5426 = vadd.f32 %v4904, %v5362
        %v5427 = vadd.f32 %v4905, %v5363
        %v5428 = vadd.f32 %v4906, %v5364
        %v5429 = vadd.f32 %v4907, %v5365
        %v5430 = vadd.f32 %v4908, %v5366
        %v5431 = vadd.f32 %v4909, %v5367
        %v5432 = vadd.f32 %v4910, %v5368
        %v5433 = vadd.f32 %v4911, %v5369
        %v5434 = vadd.f32 %v4912, %v5370
        %v5435 = vadd.f32 %v4913, %v5371
        %v5436 = vadd.f32 %v4914, %v5372
        %v5437 = vadd.f32 %v4915, %v5373
        %v5438 = vadd.f32 %v4916, %v5374
        %v5439 = vadd.f32 %v4917, %v5375
        %s5440 = sadd.s32 %s743, 9
        %s5441 = scalar_lea.vmem [#allocation2], %s5440
        %v5442 = vld [vmem:[%s5441] sm:$0xff]
        %v5443 = vld [vmem:[%s5441 + $0x8] sm:$0xff]
        %v5444 = vld [vmem:[%s5441 + $0x10] sm:$0xff]
        %v5445 = vld [vmem:[%s5441 + $0x18] sm:$0xff]
        %v5446 = vld [vmem:[%s5441 + $0x20] sm:$0xff]
        %v5447 = vld [vmem:[%s5441 + $0x28] sm:$0xff]
        %v5448 = vld [vmem:[%s5441 + $0x30] sm:$0xff]
        %v5449 = vld [vmem:[%s5441 + $0x38] sm:$0xff]
        %v5450 = vld [vmem:[%s5441 + $0x40] sm:$0xff]
        %v5451 = vld [vmem:[%s5441 + $0x48] sm:$0xff]
        %v5452 = vld [vmem:[%s5441 + $0x50] sm:$0xff]
        %v5453 = vld [vmem:[%s5441 + $0x58] sm:$0xff]
        %v5454 = vld [vmem:[%s5441 + $0x60] sm:$0xff]
        %v5455 = vld [vmem:[%s5441 + $0x68] sm:$0xff]
        %v5456 = vld [vmem:[%s5441 + $0x70] sm:$0xff]
        %v5457 = vld [vmem:[%s5441 + $0x78] sm:$0xff]
        %v5458 = vld [vmem:[%s5441 + $0x80] sm:$0xff]
        %v5459 = vld [vmem:[%s5441 + $0x88] sm:$0xff]
        %v5460 = vld [vmem:[%s5441 + $0x90] sm:$0xff]
        %v5461 = vld [vmem:[%s5441 + $0x98] sm:$0xff]
        %v5462 = vld [vmem:[%s5441 + $0xa0] sm:$0xff]
        %v5463 = vld [vmem:[%s5441 + $0xa8] sm:$0xff]
        %v5464 = vld [vmem:[%s5441 + $0xb0] sm:$0xff]
        %v5465 = vld [vmem:[%s5441 + $0xb8] sm:$0xff]
        %v5466 = vld [vmem:[%s5441 + $0xc0] sm:$0xff]
        %v5467 = vld [vmem:[%s5441 + $0xc8] sm:$0xff]
        %v5468 = vld [vmem:[%s5441 + $0xd0] sm:$0xff]
        %v5469 = vld [vmem:[%s5441 + $0xd8] sm:$0xff]
        %v5470 = vld [vmem:[%s5441 + $0xe0] sm:$0xff]
        %v5471 = vld [vmem:[%s5441 + $0xe8] sm:$0xff]
        %v5472 = vld [vmem:[%s5441 + $0xf0] sm:$0xff]
        %v5473 = vld [vmem:[%s5441 + $0xf8] sm:$0xff]
        %v5474 = vld [vmem:[%s5441 + $0x100] sm:$0xff]
        %v5475 = vld [vmem:[%s5441 + $0x108] sm:$0xff]
        %v5476 = vld [vmem:[%s5441 + $0x110] sm:$0xff]
        %v5477 = vld [vmem:[%s5441 + $0x118] sm:$0xff]
        %v5478 = vld [vmem:[%s5441 + $0x120] sm:$0xff]
        %v5479 = vld [vmem:[%s5441 + $0x128] sm:$0xff]
        %v5480 = vld [vmem:[%s5441 + $0x130] sm:$0xff]
        %v5481 = vld [vmem:[%s5441 + $0x138] sm:$0xff]
        %v5482 = vld [vmem:[%s5441 + $0x140] sm:$0xff]
        %v5483 = vld [vmem:[%s5441 + $0x148] sm:$0xff]
        %v5484 = vld [vmem:[%s5441 + $0x150] sm:$0xff]
        %v5485 = vld [vmem:[%s5441 + $0x158] sm:$0xff]
        %v5486 = vld [vmem:[%s5441 + $0x160] sm:$0xff]
        %v5487 = vld [vmem:[%s5441 + $0x168] sm:$0xff]
        %v5488 = vld [vmem:[%s5441 + $0x170] sm:$0xff]
        %v5489 = vld [vmem:[%s5441 + $0x178] sm:$0xff]
        %v5490 = vld [vmem:[%s5441 + $0x180] sm:$0xff]
        %v5491 = vld [vmem:[%s5441 + $0x188] sm:$0xff]
        %v5492 = vld [vmem:[%s5441 + $0x190] sm:$0xff]
        %v5493 = vld [vmem:[%s5441 + $0x198] sm:$0xff]
        %v5494 = vld [vmem:[%s5441 + $0x1a0] sm:$0xff]
        %v5495 = vld [vmem:[%s5441 + $0x1a8] sm:$0xff]
        %v5496 = vld [vmem:[%s5441 + $0x1b0] sm:$0xff]
        %v5497 = vld [vmem:[%s5441 + $0x1b8] sm:$0xff]
        %v5498 = vld [vmem:[%s5441 + $0x1c0] sm:$0xff]
        %v5499 = vld [vmem:[%s5441 + $0x1c8] sm:$0xff]
        %v5500 = vld [vmem:[%s5441 + $0x1d0] sm:$0xff]
        %v5501 = vld [vmem:[%s5441 + $0x1d8] sm:$0xff]
        %v5502 = vld [vmem:[%s5441 + $0x1e0] sm:$0xff]
        %v5503 = vld [vmem:[%s5441 + $0x1e8] sm:$0xff]
        %v5504 = vld [vmem:[%s5441 + $0x1f0] sm:$0xff]
        %v5505 = vld [vmem:[%s5441 + $0x1f8] sm:$0xff]
        %s5506 = scalar_lea.vmem %s216, 9
        %v5507 = vld [vmem:[%s5506] sm:$0x1]
        %5509 = vset.pattern.permute.xlu0 0
        %5510 = vperm.xlu0 %5509, %v5442
        %v5511 = vpop.permute.xlu0 %5510
        %5514 = vset.pattern.permute.xlu0 0
        %5515 = vperm.xlu0 %5514, %v5443
        %v5516 = vpop.permute.xlu0 %5515
        %5519 = vset.pattern.permute.xlu0 0
        %5520 = vperm.xlu0 %5519, %v5444
        %v5521 = vpop.permute.xlu0 %5520
        %5524 = vset.pattern.permute.xlu0 0
        %5525 = vperm.xlu0 %5524, %v5445
        %v5526 = vpop.permute.xlu0 %5525
        %5529 = vset.pattern.permute.xlu0 0
        %5530 = vperm.xlu0 %5529, %v5446
        %v5531 = vpop.permute.xlu0 %5530
        %5534 = vset.pattern.permute.xlu0 0
        %5535 = vperm.xlu0 %5534, %v5447
        %v5536 = vpop.permute.xlu0 %5535
        %5539 = vset.pattern.permute.xlu0 0
        %5540 = vperm.xlu0 %5539, %v5448
        %v5541 = vpop.permute.xlu0 %5540
        %5544 = vset.pattern.permute.xlu0 0
        %5545 = vperm.xlu0 %5544, %v5449
        %v5546 = vpop.permute.xlu0 %5545
        %5549 = vset.pattern.permute.xlu0 0
        %5550 = vperm.xlu0 %5549, %v5450
        %v5551 = vpop.permute.xlu0 %5550
        %5554 = vset.pattern.permute.xlu0 0
        %5555 = vperm.xlu0 %5554, %v5451
        %v5556 = vpop.permute.xlu0 %5555
        %5559 = vset.pattern.permute.xlu0 0
        %5560 = vperm.xlu0 %5559, %v5452
        %v5561 = vpop.permute.xlu0 %5560
        %5564 = vset.pattern.permute.xlu0 0
        %5565 = vperm.xlu0 %5564, %v5453
        %v5566 = vpop.permute.xlu0 %5565
        %5569 = vset.pattern.permute.xlu0 0
        %5570 = vperm.xlu0 %5569, %v5454
        %v5571 = vpop.permute.xlu0 %5570
        %5574 = vset.pattern.permute.xlu0 0
        %5575 = vperm.xlu0 %5574, %v5455
        %v5576 = vpop.permute.xlu0 %5575
        %5579 = vset.pattern.permute.xlu0 0
        %5580 = vperm.xlu0 %5579, %v5456
        %v5581 = vpop.permute.xlu0 %5580
        %5584 = vset.pattern.permute.xlu0 0
        %5585 = vperm.xlu0 %5584, %v5457
        %v5586 = vpop.permute.xlu0 %5585
        %5589 = vset.pattern.permute.xlu0 0
        %5590 = vperm.xlu0 %5589, %v5458
        %v5591 = vpop.permute.xlu0 %5590
        %5594 = vset.pattern.permute.xlu0 0
        %5595 = vperm.xlu0 %5594, %v5459
        %v5596 = vpop.permute.xlu0 %5595
        %5599 = vset.pattern.permute.xlu0 0
        %5600 = vperm.xlu0 %5599, %v5460
        %v5601 = vpop.permute.xlu0 %5600
        %5604 = vset.pattern.permute.xlu0 0
        %5605 = vperm.xlu0 %5604, %v5461
        %v5606 = vpop.permute.xlu0 %5605
        %5609 = vset.pattern.permute.xlu0 0
        %5610 = vperm.xlu0 %5609, %v5462
        %v5611 = vpop.permute.xlu0 %5610
        %5614 = vset.pattern.permute.xlu0 0
        %5615 = vperm.xlu0 %5614, %v5463
        %v5616 = vpop.permute.xlu0 %5615
        %5619 = vset.pattern.permute.xlu0 0
        %5620 = vperm.xlu0 %5619, %v5464
        %v5621 = vpop.permute.xlu0 %5620
        %5624 = vset.pattern.permute.xlu0 0
        %5625 = vperm.xlu0 %5624, %v5465
        %v5626 = vpop.permute.xlu0 %5625
        %5629 = vset.pattern.permute.xlu0 0
        %5630 = vperm.xlu0 %5629, %v5466
        %v5631 = vpop.permute.xlu0 %5630
        %5634 = vset.pattern.permute.xlu0 0
        %5635 = vperm.xlu0 %5634, %v5467
        %v5636 = vpop.permute.xlu0 %5635
        %5639 = vset.pattern.permute.xlu0 0
        %5640 = vperm.xlu0 %5639, %v5468
        %v5641 = vpop.permute.xlu0 %5640
        %5644 = vset.pattern.permute.xlu0 0
        %5645 = vperm.xlu0 %5644, %v5469
        %v5646 = vpop.permute.xlu0 %5645
        %5649 = vset.pattern.permute.xlu0 0
        %5650 = vperm.xlu0 %5649, %v5470
        %v5651 = vpop.permute.xlu0 %5650
        %5654 = vset.pattern.permute.xlu0 0
        %5655 = vperm.xlu0 %5654, %v5471
        %v5656 = vpop.permute.xlu0 %5655
        %5659 = vset.pattern.permute.xlu0 0
        %5660 = vperm.xlu0 %5659, %v5472
        %v5661 = vpop.permute.xlu0 %5660
        %5664 = vset.pattern.permute.xlu0 0
        %5665 = vperm.xlu0 %5664, %v5473
        %v5666 = vpop.permute.xlu0 %5665
        %5669 = vset.pattern.permute.xlu0 0
        %5670 = vperm.xlu0 %5669, %v5474
        %v5671 = vpop.permute.xlu0 %5670
        %5674 = vset.pattern.permute.xlu0 0
        %5675 = vperm.xlu0 %5674, %v5475
        %v5676 = vpop.permute.xlu0 %5675
        %5679 = vset.pattern.permute.xlu0 0
        %5680 = vperm.xlu0 %5679, %v5476
        %v5681 = vpop.permute.xlu0 %5680
        %5684 = vset.pattern.permute.xlu0 0
        %5685 = vperm.xlu0 %5684, %v5477
        %v5686 = vpop.permute.xlu0 %5685
        %5689 = vset.pattern.permute.xlu0 0
        %5690 = vperm.xlu0 %5689, %v5478
        %v5691 = vpop.permute.xlu0 %5690
        %5694 = vset.pattern.permute.xlu0 0
        %5695 = vperm.xlu0 %5694, %v5479
        %v5696 = vpop.permute.xlu0 %5695
        %5699 = vset.pattern.permute.xlu0 0
        %5700 = vperm.xlu0 %5699, %v5480
        %v5701 = vpop.permute.xlu0 %5700
        %5704 = vset.pattern.permute.xlu0 0
        %5705 = vperm.xlu0 %5704, %v5481
        %v5706 = vpop.permute.xlu0 %5705
        %5709 = vset.pattern.permute.xlu0 0
        %5710 = vperm.xlu0 %5709, %v5482
        %v5711 = vpop.permute.xlu0 %5710
        %5714 = vset.pattern.permute.xlu0 0
        %5715 = vperm.xlu0 %5714, %v5483
        %v5716 = vpop.permute.xlu0 %5715
        %5719 = vset.pattern.permute.xlu0 0
        %5720 = vperm.xlu0 %5719, %v5484
        %v5721 = vpop.permute.xlu0 %5720
        %5724 = vset.pattern.permute.xlu0 0
        %5725 = vperm.xlu0 %5724, %v5485
        %v5726 = vpop.permute.xlu0 %5725
        %5729 = vset.pattern.permute.xlu0 0
        %5730 = vperm.xlu0 %5729, %v5486
        %v5731 = vpop.permute.xlu0 %5730
        %5734 = vset.pattern.permute.xlu0 0
        %5735 = vperm.xlu0 %5734, %v5487
        %v5736 = vpop.permute.xlu0 %5735
        %5739 = vset.pattern.permute.xlu0 0
        %5740 = vperm.xlu0 %5739, %v5488
        %v5741 = vpop.permute.xlu0 %5740
        %5744 = vset.pattern.permute.xlu0 0
        %5745 = vperm.xlu0 %5744, %v5489
        %v5746 = vpop.permute.xlu0 %5745
        %5749 = vset.pattern.permute.xlu0 0
        %5750 = vperm.xlu0 %5749, %v5490
        %v5751 = vpop.permute.xlu0 %5750
        %5754 = vset.pattern.permute.xlu0 0
        %5755 = vperm.xlu0 %5754, %v5491
        %v5756 = vpop.permute.xlu0 %5755
        %5759 = vset.pattern.permute.xlu0 0
        %5760 = vperm.xlu0 %5759, %v5492
        %v5761 = vpop.permute.xlu0 %5760
        %5764 = vset.pattern.permute.xlu0 0
        %5765 = vperm.xlu0 %5764, %v5493
        %v5766 = vpop.permute.xlu0 %5765
        %5769 = vset.pattern.permute.xlu0 0
        %5770 = vperm.xlu0 %5769, %v5494
        %v5771 = vpop.permute.xlu0 %5770
        %5774 = vset.pattern.permute.xlu0 0
        %5775 = vperm.xlu0 %5774, %v5495
        %v5776 = vpop.permute.xlu0 %5775
        %5779 = vset.pattern.permute.xlu0 0
        %5780 = vperm.xlu0 %5779, %v5496
        %v5781 = vpop.permute.xlu0 %5780
        %5784 = vset.pattern.permute.xlu0 0
        %5785 = vperm.xlu0 %5784, %v5497
        %v5786 = vpop.permute.xlu0 %5785
        %5789 = vset.pattern.permute.xlu0 0
        %5790 = vperm.xlu0 %5789, %v5498
        %v5791 = vpop.permute.xlu0 %5790
        %5794 = vset.pattern.permute.xlu0 0
        %5795 = vperm.xlu0 %5794, %v5499
        %v5796 = vpop.permute.xlu0 %5795
        %5799 = vset.pattern.permute.xlu0 0
        %5800 = vperm.xlu0 %5799, %v5500
        %v5801 = vpop.permute.xlu0 %5800
        %5804 = vset.pattern.permute.xlu0 0
        %5805 = vperm.xlu0 %5804, %v5501
        %v5806 = vpop.permute.xlu0 %5805
        %5809 = vset.pattern.permute.xlu0 0
        %5810 = vperm.xlu0 %5809, %v5502
        %v5811 = vpop.permute.xlu0 %5810
        %5814 = vset.pattern.permute.xlu0 0
        %5815 = vperm.xlu0 %5814, %v5503
        %v5816 = vpop.permute.xlu0 %5815
        %5819 = vset.pattern.permute.xlu0 0
        %5820 = vperm.xlu0 %5819, %v5504
        %v5821 = vpop.permute.xlu0 %5820
        %5824 = vset.pattern.permute.xlu0 0
        %5825 = vperm.xlu0 %5824, %v5505
        %v5826 = vpop.permute.xlu0 %5825
        %v5829 = vlaneseq
        %v5830 = vshrl.u32 %v5829, 7
        %v5831 = vsub.s32 0, %v5830
        %v5832 = vrot.slane %v5507, %v5831
        %v5834 = vmul.f32 %v5511, %v5832
        %v5835 = vmul.f32 %v5516, %v5832
        %v5836 = vmul.f32 %v5521, %v5832
        %v5837 = vmul.f32 %v5526, %v5832
        %v5838 = vmul.f32 %v5531, %v5832
        %v5839 = vmul.f32 %v5536, %v5832
        %v5840 = vmul.f32 %v5541, %v5832
        %v5841 = vmul.f32 %v5546, %v5832
        %v5842 = vmul.f32 %v5551, %v5832
        %v5843 = vmul.f32 %v5556, %v5832
        %v5844 = vmul.f32 %v5561, %v5832
        %v5845 = vmul.f32 %v5566, %v5832
        %v5846 = vmul.f32 %v5571, %v5832
        %v5847 = vmul.f32 %v5576, %v5832
        %v5848 = vmul.f32 %v5581, %v5832
        %v5849 = vmul.f32 %v5586, %v5832
        %v5850 = vmul.f32 %v5591, %v5832
        %v5851 = vmul.f32 %v5596, %v5832
        %v5852 = vmul.f32 %v5601, %v5832
        %v5853 = vmul.f32 %v5606, %v5832
        %v5854 = vmul.f32 %v5611, %v5832
        %v5855 = vmul.f32 %v5616, %v5832
        %v5856 = vmul.f32 %v5621, %v5832
        %v5857 = vmul.f32 %v5626, %v5832
        %v5858 = vmul.f32 %v5631, %v5832
        %v5859 = vmul.f32 %v5636, %v5832
        %v5860 = vmul.f32 %v5641, %v5832
        %v5861 = vmul.f32 %v5646, %v5832
        %v5862 = vmul.f32 %v5651, %v5832
        %v5863 = vmul.f32 %v5656, %v5832
        %v5864 = vmul.f32 %v5661, %v5832
        %v5865 = vmul.f32 %v5666, %v5832
        %v5866 = vmul.f32 %v5671, %v5832
        %v5867 = vmul.f32 %v5676, %v5832
        %v5868 = vmul.f32 %v5681, %v5832
        %v5869 = vmul.f32 %v5686, %v5832
        %v5870 = vmul.f32 %v5691, %v5832
        %v5871 = vmul.f32 %v5696, %v5832
        %v5872 = vmul.f32 %v5701, %v5832
        %v5873 = vmul.f32 %v5706, %v5832
        %v5874 = vmul.f32 %v5711, %v5832
        %v5875 = vmul.f32 %v5716, %v5832
        %v5876 = vmul.f32 %v5721, %v5832
        %v5877 = vmul.f32 %v5726, %v5832
        %v5878 = vmul.f32 %v5731, %v5832
        %v5879 = vmul.f32 %v5736, %v5832
        %v5880 = vmul.f32 %v5741, %v5832
        %v5881 = vmul.f32 %v5746, %v5832
        %v5882 = vmul.f32 %v5751, %v5832
        %v5883 = vmul.f32 %v5756, %v5832
        %v5884 = vmul.f32 %v5761, %v5832
        %v5885 = vmul.f32 %v5766, %v5832
        %v5886 = vmul.f32 %v5771, %v5832
        %v5887 = vmul.f32 %v5776, %v5832
        %v5888 = vmul.f32 %v5781, %v5832
        %v5889 = vmul.f32 %v5786, %v5832
        %v5890 = vmul.f32 %v5791, %v5832
        %v5891 = vmul.f32 %v5796, %v5832
        %v5892 = vmul.f32 %v5801, %v5832
        %v5893 = vmul.f32 %v5806, %v5832
        %v5894 = vmul.f32 %v5811, %v5832
        %v5895 = vmul.f32 %v5816, %v5832
        %v5896 = vmul.f32 %v5821, %v5832
        %v5897 = vmul.f32 %v5826, %v5832
        %v5898 = vadd.f32 %v5376, %v5834
        %v5899 = vadd.f32 %v5377, %v5835
        %v5900 = vadd.f32 %v5378, %v5836
        %v5901 = vadd.f32 %v5379, %v5837
        %v5902 = vadd.f32 %v5380, %v5838
        %v5903 = vadd.f32 %v5381, %v5839
        %v5904 = vadd.f32 %v5382, %v5840
        %v5905 = vadd.f32 %v5383, %v5841
        %v5906 = vadd.f32 %v5384, %v5842
        %v5907 = vadd.f32 %v5385, %v5843
        %v5908 = vadd.f32 %v5386, %v5844
        %v5909 = vadd.f32 %v5387, %v5845
        %v5910 = vadd.f32 %v5388, %v5846
        %v5911 = vadd.f32 %v5389, %v5847
        %v5912 = vadd.f32 %v5390, %v5848
        %v5913 = vadd.f32 %v5391, %v5849
        %v5914 = vadd.f32 %v5392, %v5850
        %v5915 = vadd.f32 %v5393, %v5851
        %v5916 = vadd.f32 %v5394, %v5852
        %v5917 = vadd.f32 %v5395, %v5853
        %v5918 = vadd.f32 %v5396, %v5854
        %v5919 = vadd.f32 %v5397, %v5855
        %v5920 = vadd.f32 %v5398, %v5856
        %v5921 = vadd.f32 %v5399, %v5857
        %v5922 = vadd.f32 %v5400, %v5858
        %v5923 = vadd.f32 %v5401, %v5859
        %v5924 = vadd.f32 %v5402, %v5860
        %v5925 = vadd.f32 %v5403, %v5861
        %v5926 = vadd.f32 %v5404, %v5862
        %v5927 = vadd.f32 %v5405, %v5863
        %v5928 = vadd.f32 %v5406, %v5864
        %v5929 = vadd.f32 %v5407, %v5865
        %v5930 = vadd.f32 %v5408, %v5866
        %v5931 = vadd.f32 %v5409, %v5867
        %v5932 = vadd.f32 %v5410, %v5868
        %v5933 = vadd.f32 %v5411, %v5869
        %v5934 = vadd.f32 %v5412, %v5870
        %v5935 = vadd.f32 %v5413, %v5871
        %v5936 = vadd.f32 %v5414, %v5872
        %v5937 = vadd.f32 %v5415, %v5873
        %v5938 = vadd.f32 %v5416, %v5874
        %v5939 = vadd.f32 %v5417, %v5875
        %v5940 = vadd.f32 %v5418, %v5876
        %v5941 = vadd.f32 %v5419, %v5877
        %v5942 = vadd.f32 %v5420, %v5878
        %v5943 = vadd.f32 %v5421, %v5879
        %v5944 = vadd.f32 %v5422, %v5880
        %v5945 = vadd.f32 %v5423, %v5881
        %v5946 = vadd.f32 %v5424, %v5882
        %v5947 = vadd.f32 %v5425, %v5883
        %v5948 = vadd.f32 %v5426, %v5884
        %v5949 = vadd.f32 %v5427, %v5885
        %v5950 = vadd.f32 %v5428, %v5886
        %v5951 = vadd.f32 %v5429, %v5887
        %v5952 = vadd.f32 %v5430, %v5888
        %v5953 = vadd.f32 %v5431, %v5889
        %v5954 = vadd.f32 %v5432, %v5890
        %v5955 = vadd.f32 %v5433, %v5891
        %v5956 = vadd.f32 %v5434, %v5892
        %v5957 = vadd.f32 %v5435, %v5893
        %v5958 = vadd.f32 %v5436, %v5894
        %v5959 = vadd.f32 %v5437, %v5895
        %v5960 = vadd.f32 %v5438, %v5896
        %v5961 = vadd.f32 %v5439, %v5897
        %s5962 = sadd.s32 %s743, 10
        %s5963 = scalar_lea.vmem [#allocation2], %s5962
        %v5964 = vld [vmem:[%s5963] sm:$0xff]
        %v5965 = vld [vmem:[%s5963 + $0x8] sm:$0xff]
        %v5966 = vld [vmem:[%s5963 + $0x10] sm:$0xff]
        %v5967 = vld [vmem:[%s5963 + $0x18] sm:$0xff]
        %v5968 = vld [vmem:[%s5963 + $0x20] sm:$0xff]
        %v5969 = vld [vmem:[%s5963 + $0x28] sm:$0xff]
        %v5970 = vld [vmem:[%s5963 + $0x30] sm:$0xff]
        %v5971 = vld [vmem:[%s5963 + $0x38] sm:$0xff]
        %v5972 = vld [vmem:[%s5963 + $0x40] sm:$0xff]
        %v5973 = vld [vmem:[%s5963 + $0x48] sm:$0xff]
        %v5974 = vld [vmem:[%s5963 + $0x50] sm:$0xff]
        %v5975 = vld [vmem:[%s5963 + $0x58] sm:$0xff]
        %v5976 = vld [vmem:[%s5963 + $0x60] sm:$0xff]
        %v5977 = vld [vmem:[%s5963 + $0x68] sm:$0xff]
        %v5978 = vld [vmem:[%s5963 + $0x70] sm:$0xff]
        %v5979 = vld [vmem:[%s5963 + $0x78] sm:$0xff]
        %v5980 = vld [vmem:[%s5963 + $0x80] sm:$0xff]
        %v5981 = vld [vmem:[%s5963 + $0x88] sm:$0xff]
        %v5982 = vld [vmem:[%s5963 + $0x90] sm:$0xff]
        %v5983 = vld [vmem:[%s5963 + $0x98] sm:$0xff]
        %v5984 = vld [vmem:[%s5963 + $0xa0] sm:$0xff]
        %v5985 = vld [vmem:[%s5963 + $0xa8] sm:$0xff]
        %v5986 = vld [vmem:[%s5963 + $0xb0] sm:$0xff]
        %v5987 = vld [vmem:[%s5963 + $0xb8] sm:$0xff]
        %v5988 = vld [vmem:[%s5963 + $0xc0] sm:$0xff]
        %v5989 = vld [vmem:[%s5963 + $0xc8] sm:$0xff]
        %v5990 = vld [vmem:[%s5963 + $0xd0] sm:$0xff]
        %v5991 = vld [vmem:[%s5963 + $0xd8] sm:$0xff]
        %v5992 = vld [vmem:[%s5963 + $0xe0] sm:$0xff]
        %v5993 = vld [vmem:[%s5963 + $0xe8] sm:$0xff]
        %v5994 = vld [vmem:[%s5963 + $0xf0] sm:$0xff]
        %v5995 = vld [vmem:[%s5963 + $0xf8] sm:$0xff]
        %v5996 = vld [vmem:[%s5963 + $0x100] sm:$0xff]
        %v5997 = vld [vmem:[%s5963 + $0x108] sm:$0xff]
        %v5998 = vld [vmem:[%s5963 + $0x110] sm:$0xff]
        %v5999 = vld [vmem:[%s5963 + $0x118] sm:$0xff]
        %v6000 = vld [vmem:[%s5963 + $0x120] sm:$0xff]
        %v6001 = vld [vmem:[%s5963 + $0x128] sm:$0xff]
        %v6002 = vld [vmem:[%s5963 + $0x130] sm:$0xff]
        %v6003 = vld [vmem:[%s5963 + $0x138] sm:$0xff]
        %v6004 = vld [vmem:[%s5963 + $0x140] sm:$0xff]
        %v6005 = vld [vmem:[%s5963 + $0x148] sm:$0xff]
        %v6006 = vld [vmem:[%s5963 + $0x150] sm:$0xff]
        %v6007 = vld [vmem:[%s5963 + $0x158] sm:$0xff]
        %v6008 = vld [vmem:[%s5963 + $0x160] sm:$0xff]
        %v6009 = vld [vmem:[%s5963 + $0x168] sm:$0xff]
        %v6010 = vld [vmem:[%s5963 + $0x170] sm:$0xff]
        %v6011 = vld [vmem:[%s5963 + $0x178] sm:$0xff]
        %v6012 = vld [vmem:[%s5963 + $0x180] sm:$0xff]
        %v6013 = vld [vmem:[%s5963 + $0x188] sm:$0xff]
        %v6014 = vld [vmem:[%s5963 + $0x190] sm:$0xff]
        %v6015 = vld [vmem:[%s5963 + $0x198] sm:$0xff]
        %v6016 = vld [vmem:[%s5963 + $0x1a0] sm:$0xff]
        %v6017 = vld [vmem:[%s5963 + $0x1a8] sm:$0xff]
        %v6018 = vld [vmem:[%s5963 + $0x1b0] sm:$0xff]
        %v6019 = vld [vmem:[%s5963 + $0x1b8] sm:$0xff]
        %v6020 = vld [vmem:[%s5963 + $0x1c0] sm:$0xff]
        %v6021 = vld [vmem:[%s5963 + $0x1c8] sm:$0xff]
        %v6022 = vld [vmem:[%s5963 + $0x1d0] sm:$0xff]
        %v6023 = vld [vmem:[%s5963 + $0x1d8] sm:$0xff]
        %v6024 = vld [vmem:[%s5963 + $0x1e0] sm:$0xff]
        %v6025 = vld [vmem:[%s5963 + $0x1e8] sm:$0xff]
        %v6026 = vld [vmem:[%s5963 + $0x1f0] sm:$0xff]
        %v6027 = vld [vmem:[%s5963 + $0x1f8] sm:$0xff]
        %s6028 = scalar_lea.vmem %s216, 10
        %v6029 = vld [vmem:[%s6028] sm:$0x1]
        %6031 = vset.pattern.permute.xlu0 0
        %6032 = vperm.xlu0 %6031, %v5964
        %v6033 = vpop.permute.xlu0 %6032
        %6036 = vset.pattern.permute.xlu0 0
        %6037 = vperm.xlu0 %6036, %v5965
        %v6038 = vpop.permute.xlu0 %6037
        %6041 = vset.pattern.permute.xlu0 0
        %6042 = vperm.xlu0 %6041, %v5966
        %v6043 = vpop.permute.xlu0 %6042
        %6046 = vset.pattern.permute.xlu0 0
        %6047 = vperm.xlu0 %6046, %v5967
        %v6048 = vpop.permute.xlu0 %6047
        %6051 = vset.pattern.permute.xlu0 0
        %6052 = vperm.xlu0 %6051, %v5968
        %v6053 = vpop.permute.xlu0 %6052
        %6056 = vset.pattern.permute.xlu0 0
        %6057 = vperm.xlu0 %6056, %v5969
        %v6058 = vpop.permute.xlu0 %6057
        %6061 = vset.pattern.permute.xlu0 0
        %6062 = vperm.xlu0 %6061, %v5970
        %v6063 = vpop.permute.xlu0 %6062
        %6066 = vset.pattern.permute.xlu0 0
        %6067 = vperm.xlu0 %6066, %v5971
        %v6068 = vpop.permute.xlu0 %6067
        %6071 = vset.pattern.permute.xlu0 0
        %6072 = vperm.xlu0 %6071, %v5972
        %v6073 = vpop.permute.xlu0 %6072
        %6076 = vset.pattern.permute.xlu0 0
        %6077 = vperm.xlu0 %6076, %v5973
        %v6078 = vpop.permute.xlu0 %6077
        %6081 = vset.pattern.permute.xlu0 0
        %6082 = vperm.xlu0 %6081, %v5974
        %v6083 = vpop.permute.xlu0 %6082
        %6086 = vset.pattern.permute.xlu0 0
        %6087 = vperm.xlu0 %6086, %v5975
        %v6088 = vpop.permute.xlu0 %6087
        %6091 = vset.pattern.permute.xlu0 0
        %6092 = vperm.xlu0 %6091, %v5976
        %v6093 = vpop.permute.xlu0 %6092
        %6096 = vset.pattern.permute.xlu0 0
        %6097 = vperm.xlu0 %6096, %v5977
        %v6098 = vpop.permute.xlu0 %6097
        %6101 = vset.pattern.permute.xlu0 0
        %6102 = vperm.xlu0 %6101, %v5978
        %v6103 = vpop.permute.xlu0 %6102
        %6106 = vset.pattern.permute.xlu0 0
        %6107 = vperm.xlu0 %6106, %v5979
        %v6108 = vpop.permute.xlu0 %6107
        %6111 = vset.pattern.permute.xlu0 0
        %6112 = vperm.xlu0 %6111, %v5980
        %v6113 = vpop.permute.xlu0 %6112
        %6116 = vset.pattern.permute.xlu0 0
        %6117 = vperm.xlu0 %6116, %v5981
        %v6118 = vpop.permute.xlu0 %6117
        %6121 = vset.pattern.permute.xlu0 0
        %6122 = vperm.xlu0 %6121, %v5982
        %v6123 = vpop.permute.xlu0 %6122
        %6126 = vset.pattern.permute.xlu0 0
        %6127 = vperm.xlu0 %6126, %v5983
        %v6128 = vpop.permute.xlu0 %6127
        %6131 = vset.pattern.permute.xlu0 0
        %6132 = vperm.xlu0 %6131, %v5984
        %v6133 = vpop.permute.xlu0 %6132
        %6136 = vset.pattern.permute.xlu0 0
        %6137 = vperm.xlu0 %6136, %v5985
        %v6138 = vpop.permute.xlu0 %6137
        %6141 = vset.pattern.permute.xlu0 0
        %6142 = vperm.xlu0 %6141, %v5986
        %v6143 = vpop.permute.xlu0 %6142
        %6146 = vset.pattern.permute.xlu0 0
        %6147 = vperm.xlu0 %6146, %v5987
        %v6148 = vpop.permute.xlu0 %6147
        %6151 = vset.pattern.permute.xlu0 0
        %6152 = vperm.xlu0 %6151, %v5988
        %v6153 = vpop.permute.xlu0 %6152
        %6156 = vset.pattern.permute.xlu0 0
        %6157 = vperm.xlu0 %6156, %v5989
        %v6158 = vpop.permute.xlu0 %6157
        %6161 = vset.pattern.permute.xlu0 0
        %6162 = vperm.xlu0 %6161, %v5990
        %v6163 = vpop.permute.xlu0 %6162
        %6166 = vset.pattern.permute.xlu0 0
        %6167 = vperm.xlu0 %6166, %v5991
        %v6168 = vpop.permute.xlu0 %6167
        %6171 = vset.pattern.permute.xlu0 0
        %6172 = vperm.xlu0 %6171, %v5992
        %v6173 = vpop.permute.xlu0 %6172
        %6176 = vset.pattern.permute.xlu0 0
        %6177 = vperm.xlu0 %6176, %v5993
        %v6178 = vpop.permute.xlu0 %6177
        %6181 = vset.pattern.permute.xlu0 0
        %6182 = vperm.xlu0 %6181, %v5994
        %v6183 = vpop.permute.xlu0 %6182
        %6186 = vset.pattern.permute.xlu0 0
        %6187 = vperm.xlu0 %6186, %v5995
        %v6188 = vpop.permute.xlu0 %6187
        %6191 = vset.pattern.permute.xlu0 0
        %6192 = vperm.xlu0 %6191, %v5996
        %v6193 = vpop.permute.xlu0 %6192
        %6196 = vset.pattern.permute.xlu0 0
        %6197 = vperm.xlu0 %6196, %v5997
        %v6198 = vpop.permute.xlu0 %6197
        %6201 = vset.pattern.permute.xlu0 0
        %6202 = vperm.xlu0 %6201, %v5998
        %v6203 = vpop.permute.xlu0 %6202
        %6206 = vset.pattern.permute.xlu0 0
        %6207 = vperm.xlu0 %6206, %v5999
        %v6208 = vpop.permute.xlu0 %6207
        %6211 = vset.pattern.permute.xlu0 0
        %6212 = vperm.xlu0 %6211, %v6000
        %v6213 = vpop.permute.xlu0 %6212
        %6216 = vset.pattern.permute.xlu0 0
        %6217 = vperm.xlu0 %6216, %v6001
        %v6218 = vpop.permute.xlu0 %6217
        %6221 = vset.pattern.permute.xlu0 0
        %6222 = vperm.xlu0 %6221, %v6002
        %v6223 = vpop.permute.xlu0 %6222
        %6226 = vset.pattern.permute.xlu0 0
        %6227 = vperm.xlu0 %6226, %v6003
        %v6228 = vpop.permute.xlu0 %6227
        %6231 = vset.pattern.permute.xlu0 0
        %6232 = vperm.xlu0 %6231, %v6004
        %v6233 = vpop.permute.xlu0 %6232
        %6236 = vset.pattern.permute.xlu0 0
        %6237 = vperm.xlu0 %6236, %v6005
        %v6238 = vpop.permute.xlu0 %6237
        %6241 = vset.pattern.permute.xlu0 0
        %6242 = vperm.xlu0 %6241, %v6006
        %v6243 = vpop.permute.xlu0 %6242
        %6246 = vset.pattern.permute.xlu0 0
        %6247 = vperm.xlu0 %6246, %v6007
        %v6248 = vpop.permute.xlu0 %6247
        %6251 = vset.pattern.permute.xlu0 0
        %6252 = vperm.xlu0 %6251, %v6008
        %v6253 = vpop.permute.xlu0 %6252
        %6256 = vset.pattern.permute.xlu0 0
        %6257 = vperm.xlu0 %6256, %v6009
        %v6258 = vpop.permute.xlu0 %6257
        %6261 = vset.pattern.permute.xlu0 0
        %6262 = vperm.xlu0 %6261, %v6010
        %v6263 = vpop.permute.xlu0 %6262
        %6266 = vset.pattern.permute.xlu0 0
        %6267 = vperm.xlu0 %6266, %v6011
        %v6268 = vpop.permute.xlu0 %6267
        %6271 = vset.pattern.permute.xlu0 0
        %6272 = vperm.xlu0 %6271, %v6012
        %v6273 = vpop.permute.xlu0 %6272
        %6276 = vset.pattern.permute.xlu0 0
        %6277 = vperm.xlu0 %6276, %v6013
        %v6278 = vpop.permute.xlu0 %6277
        %6281 = vset.pattern.permute.xlu0 0
        %6282 = vperm.xlu0 %6281, %v6014
        %v6283 = vpop.permute.xlu0 %6282
        %6286 = vset.pattern.permute.xlu0 0
        %6287 = vperm.xlu0 %6286, %v6015
        %v6288 = vpop.permute.xlu0 %6287
        %6291 = vset.pattern.permute.xlu0 0
        %6292 = vperm.xlu0 %6291, %v6016
        %v6293 = vpop.permute.xlu0 %6292
        %6296 = vset.pattern.permute.xlu0 0
        %6297 = vperm.xlu0 %6296, %v6017
        %v6298 = vpop.permute.xlu0 %6297
        %6301 = vset.pattern.permute.xlu0 0
        %6302 = vperm.xlu0 %6301, %v6018
        %v6303 = vpop.permute.xlu0 %6302
        %6306 = vset.pattern.permute.xlu0 0
        %6307 = vperm.xlu0 %6306, %v6019
        %v6308 = vpop.permute.xlu0 %6307
        %6311 = vset.pattern.permute.xlu0 0
        %6312 = vperm.xlu0 %6311, %v6020
        %v6313 = vpop.permute.xlu0 %6312
        %6316 = vset.pattern.permute.xlu0 0
        %6317 = vperm.xlu0 %6316, %v6021
        %v6318 = vpop.permute.xlu0 %6317
        %6321 = vset.pattern.permute.xlu0 0
        %6322 = vperm.xlu0 %6321, %v6022
        %v6323 = vpop.permute.xlu0 %6322
        %6326 = vset.pattern.permute.xlu0 0
        %6327 = vperm.xlu0 %6326, %v6023
        %v6328 = vpop.permute.xlu0 %6327
        %6331 = vset.pattern.permute.xlu0 0
        %6332 = vperm.xlu0 %6331, %v6024
        %v6333 = vpop.permute.xlu0 %6332
        %6336 = vset.pattern.permute.xlu0 0
        %6337 = vperm.xlu0 %6336, %v6025
        %v6338 = vpop.permute.xlu0 %6337
        %6341 = vset.pattern.permute.xlu0 0
        %6342 = vperm.xlu0 %6341, %v6026
        %v6343 = vpop.permute.xlu0 %6342
        %6346 = vset.pattern.permute.xlu0 0
        %6347 = vperm.xlu0 %6346, %v6027
        %v6348 = vpop.permute.xlu0 %6347
        %v6351 = vlaneseq
        %v6352 = vshrl.u32 %v6351, 7
        %v6353 = vsub.s32 0, %v6352
        %v6354 = vrot.slane %v6029, %v6353
        %v6356 = vmul.f32 %v6033, %v6354
        %v6357 = vmul.f32 %v6038, %v6354
        %v6358 = vmul.f32 %v6043, %v6354
        %v6359 = vmul.f32 %v6048, %v6354
        %v6360 = vmul.f32 %v6053, %v6354
        %v6361 = vmul.f32 %v6058, %v6354
        %v6362 = vmul.f32 %v6063, %v6354
        %v6363 = vmul.f32 %v6068, %v6354
        %v6364 = vmul.f32 %v6073, %v6354
        %v6365 = vmul.f32 %v6078, %v6354
        %v6366 = vmul.f32 %v6083, %v6354
        %v6367 = vmul.f32 %v6088, %v6354
        %v6368 = vmul.f32 %v6093, %v6354
        %v6369 = vmul.f32 %v6098, %v6354
        %v6370 = vmul.f32 %v6103, %v6354
        %v6371 = vmul.f32 %v6108, %v6354
        %v6372 = vmul.f32 %v6113, %v6354
        %v6373 = vmul.f32 %v6118, %v6354
        %v6374 = vmul.f32 %v6123, %v6354
        %v6375 = vmul.f32 %v6128, %v6354
        %v6376 = vmul.f32 %v6133, %v6354
        %v6377 = vmul.f32 %v6138, %v6354
        %v6378 = vmul.f32 %v6143, %v6354
        %v6379 = vmul.f32 %v6148, %v6354
        %v6380 = vmul.f32 %v6153, %v6354
        %v6381 = vmul.f32 %v6158, %v6354
        %v6382 = vmul.f32 %v6163, %v6354
        %v6383 = vmul.f32 %v6168, %v6354
        %v6384 = vmul.f32 %v6173, %v6354
        %v6385 = vmul.f32 %v6178, %v6354
        %v6386 = vmul.f32 %v6183, %v6354
        %v6387 = vmul.f32 %v6188, %v6354
        %v6388 = vmul.f32 %v6193, %v6354
        %v6389 = vmul.f32 %v6198, %v6354
        %v6390 = vmul.f32 %v6203, %v6354
        %v6391 = vmul.f32 %v6208, %v6354
        %v6392 = vmul.f32 %v6213, %v6354
        %v6393 = vmul.f32 %v6218, %v6354
        %v6394 = vmul.f32 %v6223, %v6354
        %v6395 = vmul.f32 %v6228, %v6354
        %v6396 = vmul.f32 %v6233, %v6354
        %v6397 = vmul.f32 %v6238, %v6354
        %v6398 = vmul.f32 %v6243, %v6354
        %v6399 = vmul.f32 %v6248, %v6354
        %v6400 = vmul.f32 %v6253, %v6354
        %v6401 = vmul.f32 %v6258, %v6354
        %v6402 = vmul.f32 %v6263, %v6354
        %v6403 = vmul.f32 %v6268, %v6354
        %v6404 = vmul.f32 %v6273, %v6354
        %v6405 = vmul.f32 %v6278, %v6354
        %v6406 = vmul.f32 %v6283, %v6354
        %v6407 = vmul.f32 %v6288, %v6354
        %v6408 = vmul.f32 %v6293, %v6354
        %v6409 = vmul.f32 %v6298, %v6354
        %v6410 = vmul.f32 %v6303, %v6354
        %v6411 = vmul.f32 %v6308, %v6354
        %v6412 = vmul.f32 %v6313, %v6354
        %v6413 = vmul.f32 %v6318, %v6354
        %v6414 = vmul.f32 %v6323, %v6354
        %v6415 = vmul.f32 %v6328, %v6354
        %v6416 = vmul.f32 %v6333, %v6354
        %v6417 = vmul.f32 %v6338, %v6354
        %v6418 = vmul.f32 %v6343, %v6354
        %v6419 = vmul.f32 %v6348, %v6354
        %v6420 = vadd.f32 %v5898, %v6356
        %v6421 = vadd.f32 %v5899, %v6357
        %v6422 = vadd.f32 %v5900, %v6358
        %v6423 = vadd.f32 %v5901, %v6359
        %v6424 = vadd.f32 %v5902, %v6360
        %v6425 = vadd.f32 %v5903, %v6361
        %v6426 = vadd.f32 %v5904, %v6362
        %v6427 = vadd.f32 %v5905, %v6363
        %v6428 = vadd.f32 %v5906, %v6364
        %v6429 = vadd.f32 %v5907, %v6365
        %v6430 = vadd.f32 %v5908, %v6366
        %v6431 = vadd.f32 %v5909, %v6367
        %v6432 = vadd.f32 %v5910, %v6368
        %v6433 = vadd.f32 %v5911, %v6369
        %v6434 = vadd.f32 %v5912, %v6370
        %v6435 = vadd.f32 %v5913, %v6371
        %v6436 = vadd.f32 %v5914, %v6372
        %v6437 = vadd.f32 %v5915, %v6373
        %v6438 = vadd.f32 %v5916, %v6374
        %v6439 = vadd.f32 %v5917, %v6375
        %v6440 = vadd.f32 %v5918, %v6376
        %v6441 = vadd.f32 %v5919, %v6377
        %v6442 = vadd.f32 %v5920, %v6378
        %v6443 = vadd.f32 %v5921, %v6379
        %v6444 = vadd.f32 %v5922, %v6380
        %v6445 = vadd.f32 %v5923, %v6381
        %v6446 = vadd.f32 %v5924, %v6382
        %v6447 = vadd.f32 %v5925, %v6383
        %v6448 = vadd.f32 %v5926, %v6384
        %v6449 = vadd.f32 %v5927, %v6385
        %v6450 = vadd.f32 %v5928, %v6386
        %v6451 = vadd.f32 %v5929, %v6387
        %v6452 = vadd.f32 %v5930, %v6388
        %v6453 = vadd.f32 %v5931, %v6389
        %v6454 = vadd.f32 %v5932, %v6390
        %v6455 = vadd.f32 %v5933, %v6391
        %v6456 = vadd.f32 %v5934, %v6392
        %v6457 = vadd.f32 %v5935, %v6393
        %v6458 = vadd.f32 %v5936, %v6394
        %v6459 = vadd.f32 %v5937, %v6395
        %v6460 = vadd.f32 %v5938, %v6396
        %v6461 = vadd.f32 %v5939, %v6397
        %v6462 = vadd.f32 %v5940, %v6398
        %v6463 = vadd.f32 %v5941, %v6399
        %v6464 = vadd.f32 %v5942, %v6400
        %v6465 = vadd.f32 %v5943, %v6401
        %v6466 = vadd.f32 %v5944, %v6402
        %v6467 = vadd.f32 %v5945, %v6403
        %v6468 = vadd.f32 %v5946, %v6404
        %v6469 = vadd.f32 %v5947, %v6405
        %v6470 = vadd.f32 %v5948, %v6406
        %v6471 = vadd.f32 %v5949, %v6407
        %v6472 = vadd.f32 %v5950, %v6408
        %v6473 = vadd.f32 %v5951, %v6409
        %v6474 = vadd.f32 %v5952, %v6410
        %v6475 = vadd.f32 %v5953, %v6411
        %v6476 = vadd.f32 %v5954, %v6412
        %v6477 = vadd.f32 %v5955, %v6413
        %v6478 = vadd.f32 %v5956, %v6414
        %v6479 = vadd.f32 %v5957, %v6415
        %v6480 = vadd.f32 %v5958, %v6416
        %v6481 = vadd.f32 %v5959, %v6417
        %v6482 = vadd.f32 %v5960, %v6418
        %v6483 = vadd.f32 %v5961, %v6419
        %s6484 = sadd.s32 %s743, 11
        %s6485 = scalar_lea.vmem [#allocation2], %s6484
        %v6486 = vld [vmem:[%s6485] sm:$0xff]
        %v6487 = vld [vmem:[%s6485 + $0x8] sm:$0xff]
        %v6488 = vld [vmem:[%s6485 + $0x10] sm:$0xff]
        %v6489 = vld [vmem:[%s6485 + $0x18] sm:$0xff]
        %v6490 = vld [vmem:[%s6485 + $0x20] sm:$0xff]
        %v6491 = vld [vmem:[%s6485 + $0x28] sm:$0xff]
        %v6492 = vld [vmem:[%s6485 + $0x30] sm:$0xff]
        %v6493 = vld [vmem:[%s6485 + $0x38] sm:$0xff]
        %v6494 = vld [vmem:[%s6485 + $0x40] sm:$0xff]
        %v6495 = vld [vmem:[%s6485 + $0x48] sm:$0xff]
        %v6496 = vld [vmem:[%s6485 + $0x50] sm:$0xff]
        %v6497 = vld [vmem:[%s6485 + $0x58] sm:$0xff]
        %v6498 = vld [vmem:[%s6485 + $0x60] sm:$0xff]
        %v6499 = vld [vmem:[%s6485 + $0x68] sm:$0xff]
        %v6500 = vld [vmem:[%s6485 + $0x70] sm:$0xff]
        %v6501 = vld [vmem:[%s6485 + $0x78] sm:$0xff]
        %v6502 = vld [vmem:[%s6485 + $0x80] sm:$0xff]
        %v6503 = vld [vmem:[%s6485 + $0x88] sm:$0xff]
        %v6504 = vld [vmem:[%s6485 + $0x90] sm:$0xff]
        %v6505 = vld [vmem:[%s6485 + $0x98] sm:$0xff]
        %v6506 = vld [vmem:[%s6485 + $0xa0] sm:$0xff]
        %v6507 = vld [vmem:[%s6485 + $0xa8] sm:$0xff]
        %v6508 = vld [vmem:[%s6485 + $0xb0] sm:$0xff]
        %v6509 = vld [vmem:[%s6485 + $0xb8] sm:$0xff]
        %v6510 = vld [vmem:[%s6485 + $0xc0] sm:$0xff]
        %v6511 = vld [vmem:[%s6485 + $0xc8] sm:$0xff]
        %v6512 = vld [vmem:[%s6485 + $0xd0] sm:$0xff]
        %v6513 = vld [vmem:[%s6485 + $0xd8] sm:$0xff]
        %v6514 = vld [vmem:[%s6485 + $0xe0] sm:$0xff]
        %v6515 = vld [vmem:[%s6485 + $0xe8] sm:$0xff]
        %v6516 = vld [vmem:[%s6485 + $0xf0] sm:$0xff]
        %v6517 = vld [vmem:[%s6485 + $0xf8] sm:$0xff]
        %v6518 = vld [vmem:[%s6485 + $0x100] sm:$0xff]
        %v6519 = vld [vmem:[%s6485 + $0x108] sm:$0xff]
        %v6520 = vld [vmem:[%s6485 + $0x110] sm:$0xff]
        %v6521 = vld [vmem:[%s6485 + $0x118] sm:$0xff]
        %v6522 = vld [vmem:[%s6485 + $0x120] sm:$0xff]
        %v6523 = vld [vmem:[%s6485 + $0x128] sm:$0xff]
        %v6524 = vld [vmem:[%s6485 + $0x130] sm:$0xff]
        %v6525 = vld [vmem:[%s6485 + $0x138] sm:$0xff]
        %v6526 = vld [vmem:[%s6485 + $0x140] sm:$0xff]
        %v6527 = vld [vmem:[%s6485 + $0x148] sm:$0xff]
        %v6528 = vld [vmem:[%s6485 + $0x150] sm:$0xff]
        %v6529 = vld [vmem:[%s6485 + $0x158] sm:$0xff]
        %v6530 = vld [vmem:[%s6485 + $0x160] sm:$0xff]
        %v6531 = vld [vmem:[%s6485 + $0x168] sm:$0xff]
        %v6532 = vld [vmem:[%s6485 + $0x170] sm:$0xff]
        %v6533 = vld [vmem:[%s6485 + $0x178] sm:$0xff]
        %v6534 = vld [vmem:[%s6485 + $0x180] sm:$0xff]
        %v6535 = vld [vmem:[%s6485 + $0x188] sm:$0xff]
        %v6536 = vld [vmem:[%s6485 + $0x190] sm:$0xff]
        %v6537 = vld [vmem:[%s6485 + $0x198] sm:$0xff]
        %v6538 = vld [vmem:[%s6485 + $0x1a0] sm:$0xff]
        %v6539 = vld [vmem:[%s6485 + $0x1a8] sm:$0xff]
        %v6540 = vld [vmem:[%s6485 + $0x1b0] sm:$0xff]
        %v6541 = vld [vmem:[%s6485 + $0x1b8] sm:$0xff]
        %v6542 = vld [vmem:[%s6485 + $0x1c0] sm:$0xff]
        %v6543 = vld [vmem:[%s6485 + $0x1c8] sm:$0xff]
        %v6544 = vld [vmem:[%s6485 + $0x1d0] sm:$0xff]
        %v6545 = vld [vmem:[%s6485 + $0x1d8] sm:$0xff]
        %v6546 = vld [vmem:[%s6485 + $0x1e0] sm:$0xff]
        %v6547 = vld [vmem:[%s6485 + $0x1e8] sm:$0xff]
        %v6548 = vld [vmem:[%s6485 + $0x1f0] sm:$0xff]
        %v6549 = vld [vmem:[%s6485 + $0x1f8] sm:$0xff]
        %s6550 = scalar_lea.vmem %s216, 11
        %v6551 = vld [vmem:[%s6550] sm:$0x1]
        %6553 = vset.pattern.permute.xlu0 0
        %6554 = vperm.xlu0 %6553, %v6486
        %v6555 = vpop.permute.xlu0 %6554
        %6558 = vset.pattern.permute.xlu0 0
        %6559 = vperm.xlu0 %6558, %v6487
        %v6560 = vpop.permute.xlu0 %6559
        %6563 = vset.pattern.permute.xlu0 0
        %6564 = vperm.xlu0 %6563, %v6488
        %v6565 = vpop.permute.xlu0 %6564
        %6568 = vset.pattern.permute.xlu0 0
        %6569 = vperm.xlu0 %6568, %v6489
        %v6570 = vpop.permute.xlu0 %6569
        %6573 = vset.pattern.permute.xlu0 0
        %6574 = vperm.xlu0 %6573, %v6490
        %v6575 = vpop.permute.xlu0 %6574
        %6578 = vset.pattern.permute.xlu0 0
        %6579 = vperm.xlu0 %6578, %v6491
        %v6580 = vpop.permute.xlu0 %6579
        %6583 = vset.pattern.permute.xlu0 0
        %6584 = vperm.xlu0 %6583, %v6492
        %v6585 = vpop.permute.xlu0 %6584
        %6588 = vset.pattern.permute.xlu0 0
        %6589 = vperm.xlu0 %6588, %v6493
        %v6590 = vpop.permute.xlu0 %6589
        %6593 = vset.pattern.permute.xlu0 0
        %6594 = vperm.xlu0 %6593, %v6494
        %v6595 = vpop.permute.xlu0 %6594
        %6598 = vset.pattern.permute.xlu0 0
        %6599 = vperm.xlu0 %6598, %v6495
        %v6600 = vpop.permute.xlu0 %6599
        %6603 = vset.pattern.permute.xlu0 0
        %6604 = vperm.xlu0 %6603, %v6496
        %v6605 = vpop.permute.xlu0 %6604
        %6608 = vset.pattern.permute.xlu0 0
        %6609 = vperm.xlu0 %6608, %v6497
        %v6610 = vpop.permute.xlu0 %6609
        %6613 = vset.pattern.permute.xlu0 0
        %6614 = vperm.xlu0 %6613, %v6498
        %v6615 = vpop.permute.xlu0 %6614
        %6618 = vset.pattern.permute.xlu0 0
        %6619 = vperm.xlu0 %6618, %v6499
        %v6620 = vpop.permute.xlu0 %6619
        %6623 = vset.pattern.permute.xlu0 0
        %6624 = vperm.xlu0 %6623, %v6500
        %v6625 = vpop.permute.xlu0 %6624
        %6628 = vset.pattern.permute.xlu0 0
        %6629 = vperm.xlu0 %6628, %v6501
        %v6630 = vpop.permute.xlu0 %6629
        %6633 = vset.pattern.permute.xlu0 0
        %6634 = vperm.xlu0 %6633, %v6502
        %v6635 = vpop.permute.xlu0 %6634
        %6638 = vset.pattern.permute.xlu0 0
        %6639 = vperm.xlu0 %6638, %v6503
        %v6640 = vpop.permute.xlu0 %6639
        %6643 = vset.pattern.permute.xlu0 0
        %6644 = vperm.xlu0 %6643, %v6504
        %v6645 = vpop.permute.xlu0 %6644
        %6648 = vset.pattern.permute.xlu0 0
        %6649 = vperm.xlu0 %6648, %v6505
        %v6650 = vpop.permute.xlu0 %6649
        %6653 = vset.pattern.permute.xlu0 0
        %6654 = vperm.xlu0 %6653, %v6506
        %v6655 = vpop.permute.xlu0 %6654
        %6658 = vset.pattern.permute.xlu0 0
        %6659 = vperm.xlu0 %6658, %v6507
        %v6660 = vpop.permute.xlu0 %6659
        %6663 = vset.pattern.permute.xlu0 0
        %6664 = vperm.xlu0 %6663, %v6508
        %v6665 = vpop.permute.xlu0 %6664
        %6668 = vset.pattern.permute.xlu0 0
        %6669 = vperm.xlu0 %6668, %v6509
        %v6670 = vpop.permute.xlu0 %6669
        %6673 = vset.pattern.permute.xlu0 0
        %6674 = vperm.xlu0 %6673, %v6510
        %v6675 = vpop.permute.xlu0 %6674
        %6678 = vset.pattern.permute.xlu0 0
        %6679 = vperm.xlu0 %6678, %v6511
        %v6680 = vpop.permute.xlu0 %6679
        %6683 = vset.pattern.permute.xlu0 0
        %6684 = vperm.xlu0 %6683, %v6512
        %v6685 = vpop.permute.xlu0 %6684
        %6688 = vset.pattern.permute.xlu0 0
        %6689 = vperm.xlu0 %6688, %v6513
        %v6690 = vpop.permute.xlu0 %6689
        %6693 = vset.pattern.permute.xlu0 0
        %6694 = vperm.xlu0 %6693, %v6514
        %v6695 = vpop.permute.xlu0 %6694
        %6698 = vset.pattern.permute.xlu0 0
        %6699 = vperm.xlu0 %6698, %v6515
        %v6700 = vpop.permute.xlu0 %6699
        %6703 = vset.pattern.permute.xlu0 0
        %6704 = vperm.xlu0 %6703, %v6516
        %v6705 = vpop.permute.xlu0 %6704
        %6708 = vset.pattern.permute.xlu0 0
        %6709 = vperm.xlu0 %6708, %v6517
        %v6710 = vpop.permute.xlu0 %6709
        %6713 = vset.pattern.permute.xlu0 0
        %6714 = vperm.xlu0 %6713, %v6518
        %v6715 = vpop.permute.xlu0 %6714
        %6718 = vset.pattern.permute.xlu0 0
        %6719 = vperm.xlu0 %6718, %v6519
        %v6720 = vpop.permute.xlu0 %6719
        %6723 = vset.pattern.permute.xlu0 0
        %6724 = vperm.xlu0 %6723, %v6520
        %v6725 = vpop.permute.xlu0 %6724
        %6728 = vset.pattern.permute.xlu0 0
        %6729 = vperm.xlu0 %6728, %v6521
        %v6730 = vpop.permute.xlu0 %6729
        %6733 = vset.pattern.permute.xlu0 0
        %6734 = vperm.xlu0 %6733, %v6522
        %v6735 = vpop.permute.xlu0 %6734
        %6738 = vset.pattern.permute.xlu0 0
        %6739 = vperm.xlu0 %6738, %v6523
        %v6740 = vpop.permute.xlu0 %6739
        %6743 = vset.pattern.permute.xlu0 0
        %6744 = vperm.xlu0 %6743, %v6524
        %v6745 = vpop.permute.xlu0 %6744
        %6748 = vset.pattern.permute.xlu0 0
        %6749 = vperm.xlu0 %6748, %v6525
        %v6750 = vpop.permute.xlu0 %6749
        %6753 = vset.pattern.permute.xlu0 0
        %6754 = vperm.xlu0 %6753, %v6526
        %v6755 = vpop.permute.xlu0 %6754
        %6758 = vset.pattern.permute.xlu0 0
        %6759 = vperm.xlu0 %6758, %v6527
        %v6760 = vpop.permute.xlu0 %6759
        %6763 = vset.pattern.permute.xlu0 0
        %6764 = vperm.xlu0 %6763, %v6528
        %v6765 = vpop.permute.xlu0 %6764
        %6768 = vset.pattern.permute.xlu0 0
        %6769 = vperm.xlu0 %6768, %v6529
        %v6770 = vpop.permute.xlu0 %6769
        %6773 = vset.pattern.permute.xlu0 0
        %6774 = vperm.xlu0 %6773, %v6530
        %v6775 = vpop.permute.xlu0 %6774
        %6778 = vset.pattern.permute.xlu0 0
        %6779 = vperm.xlu0 %6778, %v6531
        %v6780 = vpop.permute.xlu0 %6779
        %6783 = vset.pattern.permute.xlu0 0
        %6784 = vperm.xlu0 %6783, %v6532
        %v6785 = vpop.permute.xlu0 %6784
        %6788 = vset.pattern.permute.xlu0 0
        %6789 = vperm.xlu0 %6788, %v6533
        %v6790 = vpop.permute.xlu0 %6789
        %6793 = vset.pattern.permute.xlu0 0
        %6794 = vperm.xlu0 %6793, %v6534
        %v6795 = vpop.permute.xlu0 %6794
        %6798 = vset.pattern.permute.xlu0 0
        %6799 = vperm.xlu0 %6798, %v6535
        %v6800 = vpop.permute.xlu0 %6799
        %6803 = vset.pattern.permute.xlu0 0
        %6804 = vperm.xlu0 %6803, %v6536
        %v6805 = vpop.permute.xlu0 %6804
        %6808 = vset.pattern.permute.xlu0 0
        %6809 = vperm.xlu0 %6808, %v6537
        %v6810 = vpop.permute.xlu0 %6809
        %6813 = vset.pattern.permute.xlu0 0
        %6814 = vperm.xlu0 %6813, %v6538
        %v6815 = vpop.permute.xlu0 %6814
        %6818 = vset.pattern.permute.xlu0 0
        %6819 = vperm.xlu0 %6818, %v6539
        %v6820 = vpop.permute.xlu0 %6819
        %6823 = vset.pattern.permute.xlu0 0
        %6824 = vperm.xlu0 %6823, %v6540
        %v6825 = vpop.permute.xlu0 %6824
        %6828 = vset.pattern.permute.xlu0 0
        %6829 = vperm.xlu0 %6828, %v6541
        %v6830 = vpop.permute.xlu0 %6829
        %6833 = vset.pattern.permute.xlu0 0
        %6834 = vperm.xlu0 %6833, %v6542
        %v6835 = vpop.permute.xlu0 %6834
        %6838 = vset.pattern.permute.xlu0 0
        %6839 = vperm.xlu0 %6838, %v6543
        %v6840 = vpop.permute.xlu0 %6839
        %6843 = vset.pattern.permute.xlu0 0
        %6844 = vperm.xlu0 %6843, %v6544
        %v6845 = vpop.permute.xlu0 %6844
        %6848 = vset.pattern.permute.xlu0 0
        %6849 = vperm.xlu0 %6848, %v6545
        %v6850 = vpop.permute.xlu0 %6849
        %6853 = vset.pattern.permute.xlu0 0
        %6854 = vperm.xlu0 %6853, %v6546
        %v6855 = vpop.permute.xlu0 %6854
        %6858 = vset.pattern.permute.xlu0 0
        %6859 = vperm.xlu0 %6858, %v6547
        %v6860 = vpop.permute.xlu0 %6859
        %6863 = vset.pattern.permute.xlu0 0
        %6864 = vperm.xlu0 %6863, %v6548
        %v6865 = vpop.permute.xlu0 %6864
        %6868 = vset.pattern.permute.xlu0 0
        %6869 = vperm.xlu0 %6868, %v6549
        %v6870 = vpop.permute.xlu0 %6869
        %v6873 = vlaneseq
        %v6874 = vshrl.u32 %v6873, 7
        %v6875 = vsub.s32 0, %v6874
        %v6876 = vrot.slane %v6551, %v6875
        %v6878 = vmul.f32 %v6555, %v6876
        %v6879 = vmul.f32 %v6560, %v6876
        %v6880 = vmul.f32 %v6565, %v6876
        %v6881 = vmul.f32 %v6570, %v6876
        %v6882 = vmul.f32 %v6575, %v6876
        %v6883 = vmul.f32 %v6580, %v6876
        %v6884 = vmul.f32 %v6585, %v6876
        %v6885 = vmul.f32 %v6590, %v6876
        %v6886 = vmul.f32 %v6595, %v6876
        %v6887 = vmul.f32 %v6600, %v6876
        %v6888 = vmul.f32 %v6605, %v6876
        %v6889 = vmul.f32 %v6610, %v6876
        %v6890 = vmul.f32 %v6615, %v6876
        %v6891 = vmul.f32 %v6620, %v6876
        %v6892 = vmul.f32 %v6625, %v6876
        %v6893 = vmul.f32 %v6630, %v6876
        %v6894 = vmul.f32 %v6635, %v6876
        %v6895 = vmul.f32 %v6640, %v6876
        %v6896 = vmul.f32 %v6645, %v6876
        %v6897 = vmul.f32 %v6650, %v6876
        %v6898 = vmul.f32 %v6655, %v6876
        %v6899 = vmul.f32 %v6660, %v6876
        %v6900 = vmul.f32 %v6665, %v6876
        %v6901 = vmul.f32 %v6670, %v6876
        %v6902 = vmul.f32 %v6675, %v6876
        %v6903 = vmul.f32 %v6680, %v6876
        %v6904 = vmul.f32 %v6685, %v6876
        %v6905 = vmul.f32 %v6690, %v6876
        %v6906 = vmul.f32 %v6695, %v6876
        %v6907 = vmul.f32 %v6700, %v6876
        %v6908 = vmul.f32 %v6705, %v6876
        %v6909 = vmul.f32 %v6710, %v6876
        %v6910 = vmul.f32 %v6715, %v6876
        %v6911 = vmul.f32 %v6720, %v6876
        %v6912 = vmul.f32 %v6725, %v6876
        %v6913 = vmul.f32 %v6730, %v6876
        %v6914 = vmul.f32 %v6735, %v6876
        %v6915 = vmul.f32 %v6740, %v6876
        %v6916 = vmul.f32 %v6745, %v6876
        %v6917 = vmul.f32 %v6750, %v6876
        %v6918 = vmul.f32 %v6755, %v6876
        %v6919 = vmul.f32 %v6760, %v6876
        %v6920 = vmul.f32 %v6765, %v6876
        %v6921 = vmul.f32 %v6770, %v6876
        %v6922 = vmul.f32 %v6775, %v6876
        %v6923 = vmul.f32 %v6780, %v6876
        %v6924 = vmul.f32 %v6785, %v6876
        %v6925 = vmul.f32 %v6790, %v6876
        %v6926 = vmul.f32 %v6795, %v6876
        %v6927 = vmul.f32 %v6800, %v6876
        %v6928 = vmul.f32 %v6805, %v6876
        %v6929 = vmul.f32 %v6810, %v6876
        %v6930 = vmul.f32 %v6815, %v6876
        %v6931 = vmul.f32 %v6820, %v6876
        %v6932 = vmul.f32 %v6825, %v6876
        %v6933 = vmul.f32 %v6830, %v6876
        %v6934 = vmul.f32 %v6835, %v6876
        %v6935 = vmul.f32 %v6840, %v6876
        %v6936 = vmul.f32 %v6845, %v6876
        %v6937 = vmul.f32 %v6850, %v6876
        %v6938 = vmul.f32 %v6855, %v6876
        %v6939 = vmul.f32 %v6860, %v6876
        %v6940 = vmul.f32 %v6865, %v6876
        %v6941 = vmul.f32 %v6870, %v6876
        %v6942 = vadd.f32 %v6420, %v6878
        %v6943 = vadd.f32 %v6421, %v6879
        %v6944 = vadd.f32 %v6422, %v6880
        %v6945 = vadd.f32 %v6423, %v6881
        %v6946 = vadd.f32 %v6424, %v6882
        %v6947 = vadd.f32 %v6425, %v6883
        %v6948 = vadd.f32 %v6426, %v6884
        %v6949 = vadd.f32 %v6427, %v6885
        %v6950 = vadd.f32 %v6428, %v6886
        %v6951 = vadd.f32 %v6429, %v6887
        %v6952 = vadd.f32 %v6430, %v6888
        %v6953 = vadd.f32 %v6431, %v6889
        %v6954 = vadd.f32 %v6432, %v6890
        %v6955 = vadd.f32 %v6433, %v6891
        %v6956 = vadd.f32 %v6434, %v6892
        %v6957 = vadd.f32 %v6435, %v6893
        %v6958 = vadd.f32 %v6436, %v6894
        %v6959 = vadd.f32 %v6437, %v6895
        %v6960 = vadd.f32 %v6438, %v6896
        %v6961 = vadd.f32 %v6439, %v6897
        %v6962 = vadd.f32 %v6440, %v6898
        %v6963 = vadd.f32 %v6441, %v6899
        %v6964 = vadd.f32 %v6442, %v6900
        %v6965 = vadd.f32 %v6443, %v6901
        %v6966 = vadd.f32 %v6444, %v6902
        %v6967 = vadd.f32 %v6445, %v6903
        %v6968 = vadd.f32 %v6446, %v6904
        %v6969 = vadd.f32 %v6447, %v6905
        %v6970 = vadd.f32 %v6448, %v6906
        %v6971 = vadd.f32 %v6449, %v6907
        %v6972 = vadd.f32 %v6450, %v6908
        %v6973 = vadd.f32 %v6451, %v6909
        %v6974 = vadd.f32 %v6452, %v6910
        %v6975 = vadd.f32 %v6453, %v6911
        %v6976 = vadd.f32 %v6454, %v6912
        %v6977 = vadd.f32 %v6455, %v6913
        %v6978 = vadd.f32 %v6456, %v6914
        %v6979 = vadd.f32 %v6457, %v6915
        %v6980 = vadd.f32 %v6458, %v6916
        %v6981 = vadd.f32 %v6459, %v6917
        %v6982 = vadd.f32 %v6460, %v6918
        %v6983 = vadd.f32 %v6461, %v6919
        %v6984 = vadd.f32 %v6462, %v6920
        %v6985 = vadd.f32 %v6463, %v6921
        %v6986 = vadd.f32 %v6464, %v6922
        %v6987 = vadd.f32 %v6465, %v6923
        %v6988 = vadd.f32 %v6466, %v6924
        %v6989 = vadd.f32 %v6467, %v6925
        %v6990 = vadd.f32 %v6468, %v6926
        %v6991 = vadd.f32 %v6469, %v6927
        %v6992 = vadd.f32 %v6470, %v6928
        %v6993 = vadd.f32 %v6471, %v6929
        %v6994 = vadd.f32 %v6472, %v6930
        %v6995 = vadd.f32 %v6473, %v6931
        %v6996 = vadd.f32 %v6474, %v6932
        %v6997 = vadd.f32 %v6475, %v6933
        %v6998 = vadd.f32 %v6476, %v6934
        %v6999 = vadd.f32 %v6477, %v6935
        %v7000 = vadd.f32 %v6478, %v6936
        %v7001 = vadd.f32 %v6479, %v6937
        %v7002 = vadd.f32 %v6480, %v6938
        %v7003 = vadd.f32 %v6481, %v6939
        %v7004 = vadd.f32 %v6482, %v6940
        %v7005 = vadd.f32 %v6483, %v6941
        %s7006 = sadd.s32 %s743, 12
        %s7007 = scalar_lea.vmem [#allocation2], %s7006
        %v7008 = vld [vmem:[%s7007] sm:$0xff]
        %v7009 = vld [vmem:[%s7007 + $0x8] sm:$0xff]
        %v7010 = vld [vmem:[%s7007 + $0x10] sm:$0xff]
        %v7011 = vld [vmem:[%s7007 + $0x18] sm:$0xff]
        %v7012 = vld [vmem:[%s7007 + $0x20] sm:$0xff]
        %v7013 = vld [vmem:[%s7007 + $0x28] sm:$0xff]
        %v7014 = vld [vmem:[%s7007 + $0x30] sm:$0xff]
        %v7015 = vld [vmem:[%s7007 + $0x38] sm:$0xff]
        %v7016 = vld [vmem:[%s7007 + $0x40] sm:$0xff]
        %v7017 = vld [vmem:[%s7007 + $0x48] sm:$0xff]
        %v7018 = vld [vmem:[%s7007 + $0x50] sm:$0xff]
        %v7019 = vld [vmem:[%s7007 + $0x58] sm:$0xff]
        %v7020 = vld [vmem:[%s7007 + $0x60] sm:$0xff]
        %v7021 = vld [vmem:[%s7007 + $0x68] sm:$0xff]
        %v7022 = vld [vmem:[%s7007 + $0x70] sm:$0xff]
        %v7023 = vld [vmem:[%s7007 + $0x78] sm:$0xff]
        %v7024 = vld [vmem:[%s7007 + $0x80] sm:$0xff]
        %v7025 = vld [vmem:[%s7007 + $0x88] sm:$0xff]
        %v7026 = vld [vmem:[%s7007 + $0x90] sm:$0xff]
        %v7027 = vld [vmem:[%s7007 + $0x98] sm:$0xff]
        %v7028 = vld [vmem:[%s7007 + $0xa0] sm:$0xff]
        %v7029 = vld [vmem:[%s7007 + $0xa8] sm:$0xff]
        %v7030 = vld [vmem:[%s7007 + $0xb0] sm:$0xff]
        %v7031 = vld [vmem:[%s7007 + $0xb8] sm:$0xff]
        %v7032 = vld [vmem:[%s7007 + $0xc0] sm:$0xff]
        %v7033 = vld [vmem:[%s7007 + $0xc8] sm:$0xff]
        %v7034 = vld [vmem:[%s7007 + $0xd0] sm:$0xff]
        %v7035 = vld [vmem:[%s7007 + $0xd8] sm:$0xff]
        %v7036 = vld [vmem:[%s7007 + $0xe0] sm:$0xff]
        %v7037 = vld [vmem:[%s7007 + $0xe8] sm:$0xff]
        %v7038 = vld [vmem:[%s7007 + $0xf0] sm:$0xff]
        %v7039 = vld [vmem:[%s7007 + $0xf8] sm:$0xff]
        %v7040 = vld [vmem:[%s7007 + $0x100] sm:$0xff]
        %v7041 = vld [vmem:[%s7007 + $0x108] sm:$0xff]
        %v7042 = vld [vmem:[%s7007 + $0x110] sm:$0xff]
        %v7043 = vld [vmem:[%s7007 + $0x118] sm:$0xff]
        %v7044 = vld [vmem:[%s7007 + $0x120] sm:$0xff]
        %v7045 = vld [vmem:[%s7007 + $0x128] sm:$0xff]
        %v7046 = vld [vmem:[%s7007 + $0x130] sm:$0xff]
        %v7047 = vld [vmem:[%s7007 + $0x138] sm:$0xff]
        %v7048 = vld [vmem:[%s7007 + $0x140] sm:$0xff]
        %v7049 = vld [vmem:[%s7007 + $0x148] sm:$0xff]
        %v7050 = vld [vmem:[%s7007 + $0x150] sm:$0xff]
        %v7051 = vld [vmem:[%s7007 + $0x158] sm:$0xff]
        %v7052 = vld [vmem:[%s7007 + $0x160] sm:$0xff]
        %v7053 = vld [vmem:[%s7007 + $0x168] sm:$0xff]
        %v7054 = vld [vmem:[%s7007 + $0x170] sm:$0xff]
        %v7055 = vld [vmem:[%s7007 + $0x178] sm:$0xff]
        %v7056 = vld [vmem:[%s7007 + $0x180] sm:$0xff]
        %v7057 = vld [vmem:[%s7007 + $0x188] sm:$0xff]
        %v7058 = vld [vmem:[%s7007 + $0x190] sm:$0xff]
        %v7059 = vld [vmem:[%s7007 + $0x198] sm:$0xff]
        %v7060 = vld [vmem:[%s7007 + $0x1a0] sm:$0xff]
        %v7061 = vld [vmem:[%s7007 + $0x1a8] sm:$0xff]
        %v7062 = vld [vmem:[%s7007 + $0x1b0] sm:$0xff]
        %v7063 = vld [vmem:[%s7007 + $0x1b8] sm:$0xff]
        %v7064 = vld [vmem:[%s7007 + $0x1c0] sm:$0xff]
        %v7065 = vld [vmem:[%s7007 + $0x1c8] sm:$0xff]
        %v7066 = vld [vmem:[%s7007 + $0x1d0] sm:$0xff]
        %v7067 = vld [vmem:[%s7007 + $0x1d8] sm:$0xff]
        %v7068 = vld [vmem:[%s7007 + $0x1e0] sm:$0xff]
        %v7069 = vld [vmem:[%s7007 + $0x1e8] sm:$0xff]
        %v7070 = vld [vmem:[%s7007 + $0x1f0] sm:$0xff]
        %v7071 = vld [vmem:[%s7007 + $0x1f8] sm:$0xff]
        %s7072 = scalar_lea.vmem %s216, 12
        %v7073 = vld [vmem:[%s7072] sm:$0x1]
        %7075 = vset.pattern.permute.xlu0 0
        %7076 = vperm.xlu0 %7075, %v7008
        %v7077 = vpop.permute.xlu0 %7076
        %7080 = vset.pattern.permute.xlu0 0
        %7081 = vperm.xlu0 %7080, %v7009
        %v7082 = vpop.permute.xlu0 %7081
        %7085 = vset.pattern.permute.xlu0 0
        %7086 = vperm.xlu0 %7085, %v7010
        %v7087 = vpop.permute.xlu0 %7086
        %7090 = vset.pattern.permute.xlu0 0
        %7091 = vperm.xlu0 %7090, %v7011
        %v7092 = vpop.permute.xlu0 %7091
        %7095 = vset.pattern.permute.xlu0 0
        %7096 = vperm.xlu0 %7095, %v7012
        %v7097 = vpop.permute.xlu0 %7096
        %7100 = vset.pattern.permute.xlu0 0
        %7101 = vperm.xlu0 %7100, %v7013
        %v7102 = vpop.permute.xlu0 %7101
        %7105 = vset.pattern.permute.xlu0 0
        %7106 = vperm.xlu0 %7105, %v7014
        %v7107 = vpop.permute.xlu0 %7106
        %7110 = vset.pattern.permute.xlu0 0
        %7111 = vperm.xlu0 %7110, %v7015
        %v7112 = vpop.permute.xlu0 %7111
        %7115 = vset.pattern.permute.xlu0 0
        %7116 = vperm.xlu0 %7115, %v7016
        %v7117 = vpop.permute.xlu0 %7116
        %7120 = vset.pattern.permute.xlu0 0
        %7121 = vperm.xlu0 %7120, %v7017
        %v7122 = vpop.permute.xlu0 %7121
        %7125 = vset.pattern.permute.xlu0 0
        %7126 = vperm.xlu0 %7125, %v7018
        %v7127 = vpop.permute.xlu0 %7126
        %7130 = vset.pattern.permute.xlu0 0
        %7131 = vperm.xlu0 %7130, %v7019
        %v7132 = vpop.permute.xlu0 %7131
        %7135 = vset.pattern.permute.xlu0 0
        %7136 = vperm.xlu0 %7135, %v7020
        %v7137 = vpop.permute.xlu0 %7136
        %7140 = vset.pattern.permute.xlu0 0
        %7141 = vperm.xlu0 %7140, %v7021
        %v7142 = vpop.permute.xlu0 %7141
        %7145 = vset.pattern.permute.xlu0 0
        %7146 = vperm.xlu0 %7145, %v7022
        %v7147 = vpop.permute.xlu0 %7146
        %7150 = vset.pattern.permute.xlu0 0
        %7151 = vperm.xlu0 %7150, %v7023
        %v7152 = vpop.permute.xlu0 %7151
        %7155 = vset.pattern.permute.xlu0 0
        %7156 = vperm.xlu0 %7155, %v7024
        %v7157 = vpop.permute.xlu0 %7156
        %7160 = vset.pattern.permute.xlu0 0
        %7161 = vperm.xlu0 %7160, %v7025
        %v7162 = vpop.permute.xlu0 %7161
        %7165 = vset.pattern.permute.xlu0 0
        %7166 = vperm.xlu0 %7165, %v7026
        %v7167 = vpop.permute.xlu0 %7166
        %7170 = vset.pattern.permute.xlu0 0
        %7171 = vperm.xlu0 %7170, %v7027
        %v7172 = vpop.permute.xlu0 %7171
        %7175 = vset.pattern.permute.xlu0 0
        %7176 = vperm.xlu0 %7175, %v7028
        %v7177 = vpop.permute.xlu0 %7176
        %7180 = vset.pattern.permute.xlu0 0
        %7181 = vperm.xlu0 %7180, %v7029
        %v7182 = vpop.permute.xlu0 %7181
        %7185 = vset.pattern.permute.xlu0 0
        %7186 = vperm.xlu0 %7185, %v7030
        %v7187 = vpop.permute.xlu0 %7186
        %7190 = vset.pattern.permute.xlu0 0
        %7191 = vperm.xlu0 %7190, %v7031
        %v7192 = vpop.permute.xlu0 %7191
        %7195 = vset.pattern.permute.xlu0 0
        %7196 = vperm.xlu0 %7195, %v7032
        %v7197 = vpop.permute.xlu0 %7196
        %7200 = vset.pattern.permute.xlu0 0
        %7201 = vperm.xlu0 %7200, %v7033
        %v7202 = vpop.permute.xlu0 %7201
        %7205 = vset.pattern.permute.xlu0 0
        %7206 = vperm.xlu0 %7205, %v7034
        %v7207 = vpop.permute.xlu0 %7206
        %7210 = vset.pattern.permute.xlu0 0
        %7211 = vperm.xlu0 %7210, %v7035
        %v7212 = vpop.permute.xlu0 %7211
        %7215 = vset.pattern.permute.xlu0 0
        %7216 = vperm.xlu0 %7215, %v7036
        %v7217 = vpop.permute.xlu0 %7216
        %7220 = vset.pattern.permute.xlu0 0
        %7221 = vperm.xlu0 %7220, %v7037
        %v7222 = vpop.permute.xlu0 %7221
        %7225 = vset.pattern.permute.xlu0 0
        %7226 = vperm.xlu0 %7225, %v7038
        %v7227 = vpop.permute.xlu0 %7226
        %7230 = vset.pattern.permute.xlu0 0
        %7231 = vperm.xlu0 %7230, %v7039
        %v7232 = vpop.permute.xlu0 %7231
        %7235 = vset.pattern.permute.xlu0 0
        %7236 = vperm.xlu0 %7235, %v7040
        %v7237 = vpop.permute.xlu0 %7236
        %7240 = vset.pattern.permute.xlu0 0
        %7241 = vperm.xlu0 %7240, %v7041
        %v7242 = vpop.permute.xlu0 %7241
        %7245 = vset.pattern.permute.xlu0 0
        %7246 = vperm.xlu0 %7245, %v7042
        %v7247 = vpop.permute.xlu0 %7246
        %7250 = vset.pattern.permute.xlu0 0
        %7251 = vperm.xlu0 %7250, %v7043
        %v7252 = vpop.permute.xlu0 %7251
        %7255 = vset.pattern.permute.xlu0 0
        %7256 = vperm.xlu0 %7255, %v7044
        %v7257 = vpop.permute.xlu0 %7256
        %7260 = vset.pattern.permute.xlu0 0
        %7261 = vperm.xlu0 %7260, %v7045
        %v7262 = vpop.permute.xlu0 %7261
        %7265 = vset.pattern.permute.xlu0 0
        %7266 = vperm.xlu0 %7265, %v7046
        %v7267 = vpop.permute.xlu0 %7266
        %7270 = vset.pattern.permute.xlu0 0
        %7271 = vperm.xlu0 %7270, %v7047
        %v7272 = vpop.permute.xlu0 %7271
        %7275 = vset.pattern.permute.xlu0 0
        %7276 = vperm.xlu0 %7275, %v7048
        %v7277 = vpop.permute.xlu0 %7276
        %7280 = vset.pattern.permute.xlu0 0
        %7281 = vperm.xlu0 %7280, %v7049
        %v7282 = vpop.permute.xlu0 %7281
        %7285 = vset.pattern.permute.xlu0 0
        %7286 = vperm.xlu0 %7285, %v7050
        %v7287 = vpop.permute.xlu0 %7286
        %7290 = vset.pattern.permute.xlu0 0
        %7291 = vperm.xlu0 %7290, %v7051
        %v7292 = vpop.permute.xlu0 %7291
        %7295 = vset.pattern.permute.xlu0 0
        %7296 = vperm.xlu0 %7295, %v7052
        %v7297 = vpop.permute.xlu0 %7296
        %7300 = vset.pattern.permute.xlu0 0
        %7301 = vperm.xlu0 %7300, %v7053
        %v7302 = vpop.permute.xlu0 %7301
        %7305 = vset.pattern.permute.xlu0 0
        %7306 = vperm.xlu0 %7305, %v7054
        %v7307 = vpop.permute.xlu0 %7306
        %7310 = vset.pattern.permute.xlu0 0
        %7311 = vperm.xlu0 %7310, %v7055
        %v7312 = vpop.permute.xlu0 %7311
        %7315 = vset.pattern.permute.xlu0 0
        %7316 = vperm.xlu0 %7315, %v7056
        %v7317 = vpop.permute.xlu0 %7316
        %7320 = vset.pattern.permute.xlu0 0
        %7321 = vperm.xlu0 %7320, %v7057
        %v7322 = vpop.permute.xlu0 %7321
        %7325 = vset.pattern.permute.xlu0 0
        %7326 = vperm.xlu0 %7325, %v7058
        %v7327 = vpop.permute.xlu0 %7326
        %7330 = vset.pattern.permute.xlu0 0
        %7331 = vperm.xlu0 %7330, %v7059
        %v7332 = vpop.permute.xlu0 %7331
        %7335 = vset.pattern.permute.xlu0 0
        %7336 = vperm.xlu0 %7335, %v7060
        %v7337 = vpop.permute.xlu0 %7336
        %7340 = vset.pattern.permute.xlu0 0
        %7341 = vperm.xlu0 %7340, %v7061
        %v7342 = vpop.permute.xlu0 %7341
        %7345 = vset.pattern.permute.xlu0 0
        %7346 = vperm.xlu0 %7345, %v7062
        %v7347 = vpop.permute.xlu0 %7346
        %7350 = vset.pattern.permute.xlu0 0
        %7351 = vperm.xlu0 %7350, %v7063
        %v7352 = vpop.permute.xlu0 %7351
        %7355 = vset.pattern.permute.xlu0 0
        %7356 = vperm.xlu0 %7355, %v7064
        %v7357 = vpop.permute.xlu0 %7356
        %7360 = vset.pattern.permute.xlu0 0
        %7361 = vperm.xlu0 %7360, %v7065
        %v7362 = vpop.permute.xlu0 %7361
        %7365 = vset.pattern.permute.xlu0 0
        %7366 = vperm.xlu0 %7365, %v7066
        %v7367 = vpop.permute.xlu0 %7366
        %7370 = vset.pattern.permute.xlu0 0
        %7371 = vperm.xlu0 %7370, %v7067
        %v7372 = vpop.permute.xlu0 %7371
        %7375 = vset.pattern.permute.xlu0 0
        %7376 = vperm.xlu0 %7375, %v7068
        %v7377 = vpop.permute.xlu0 %7376
        %7380 = vset.pattern.permute.xlu0 0
        %7381 = vperm.xlu0 %7380, %v7069
        %v7382 = vpop.permute.xlu0 %7381
        %7385 = vset.pattern.permute.xlu0 0
        %7386 = vperm.xlu0 %7385, %v7070
        %v7387 = vpop.permute.xlu0 %7386
        %7390 = vset.pattern.permute.xlu0 0
        %7391 = vperm.xlu0 %7390, %v7071
        %v7392 = vpop.permute.xlu0 %7391
        %v7395 = vlaneseq
        %v7396 = vshrl.u32 %v7395, 7
        %v7397 = vsub.s32 0, %v7396
        %v7398 = vrot.slane %v7073, %v7397
        %v7400 = vmul.f32 %v7077, %v7398
        %v7401 = vmul.f32 %v7082, %v7398
        %v7402 = vmul.f32 %v7087, %v7398
        %v7403 = vmul.f32 %v7092, %v7398
        %v7404 = vmul.f32 %v7097, %v7398
        %v7405 = vmul.f32 %v7102, %v7398
        %v7406 = vmul.f32 %v7107, %v7398
        %v7407 = vmul.f32 %v7112, %v7398
        %v7408 = vmul.f32 %v7117, %v7398
        %v7409 = vmul.f32 %v7122, %v7398
        %v7410 = vmul.f32 %v7127, %v7398
        %v7411 = vmul.f32 %v7132, %v7398
        %v7412 = vmul.f32 %v7137, %v7398
        %v7413 = vmul.f32 %v7142, %v7398
        %v7414 = vmul.f32 %v7147, %v7398
        %v7415 = vmul.f32 %v7152, %v7398
        %v7416 = vmul.f32 %v7157, %v7398
        %v7417 = vmul.f32 %v7162, %v7398
        %v7418 = vmul.f32 %v7167, %v7398
        %v7419 = vmul.f32 %v7172, %v7398
        %v7420 = vmul.f32 %v7177, %v7398
        %v7421 = vmul.f32 %v7182, %v7398
        %v7422 = vmul.f32 %v7187, %v7398
        %v7423 = vmul.f32 %v7192, %v7398
        %v7424 = vmul.f32 %v7197, %v7398
        %v7425 = vmul.f32 %v7202, %v7398
        %v7426 = vmul.f32 %v7207, %v7398
        %v7427 = vmul.f32 %v7212, %v7398
        %v7428 = vmul.f32 %v7217, %v7398
        %v7429 = vmul.f32 %v7222, %v7398
        %v7430 = vmul.f32 %v7227, %v7398
        %v7431 = vmul.f32 %v7232, %v7398
        %v7432 = vmul.f32 %v7237, %v7398
        %v7433 = vmul.f32 %v7242, %v7398
        %v7434 = vmul.f32 %v7247, %v7398
        %v7435 = vmul.f32 %v7252, %v7398
        %v7436 = vmul.f32 %v7257, %v7398
        %v7437 = vmul.f32 %v7262, %v7398
        %v7438 = vmul.f32 %v7267, %v7398
        %v7439 = vmul.f32 %v7272, %v7398
        %v7440 = vmul.f32 %v7277, %v7398
        %v7441 = vmul.f32 %v7282, %v7398
        %v7442 = vmul.f32 %v7287, %v7398
        %v7443 = vmul.f32 %v7292, %v7398
        %v7444 = vmul.f32 %v7297, %v7398
        %v7445 = vmul.f32 %v7302, %v7398
        %v7446 = vmul.f32 %v7307, %v7398
        %v7447 = vmul.f32 %v7312, %v7398
        %v7448 = vmul.f32 %v7317, %v7398
        %v7449 = vmul.f32 %v7322, %v7398
        %v7450 = vmul.f32 %v7327, %v7398
        %v7451 = vmul.f32 %v7332, %v7398
        %v7452 = vmul.f32 %v7337, %v7398
        %v7453 = vmul.f32 %v7342, %v7398
        %v7454 = vmul.f32 %v7347, %v7398
        %v7455 = vmul.f32 %v7352, %v7398
        %v7456 = vmul.f32 %v7357, %v7398
        %v7457 = vmul.f32 %v7362, %v7398
        %v7458 = vmul.f32 %v7367, %v7398
        %v7459 = vmul.f32 %v7372, %v7398
        %v7460 = vmul.f32 %v7377, %v7398
        %v7461 = vmul.f32 %v7382, %v7398
        %v7462 = vmul.f32 %v7387, %v7398
        %v7463 = vmul.f32 %v7392, %v7398
        %v7464 = vadd.f32 %v6942, %v7400
        %v7465 = vadd.f32 %v6943, %v7401
        %v7466 = vadd.f32 %v6944, %v7402
        %v7467 = vadd.f32 %v6945, %v7403
        %v7468 = vadd.f32 %v6946, %v7404
        %v7469 = vadd.f32 %v6947, %v7405
        %v7470 = vadd.f32 %v6948, %v7406
        %v7471 = vadd.f32 %v6949, %v7407
        %v7472 = vadd.f32 %v6950, %v7408
        %v7473 = vadd.f32 %v6951, %v7409
        %v7474 = vadd.f32 %v6952, %v7410
        %v7475 = vadd.f32 %v6953, %v7411
        %v7476 = vadd.f32 %v6954, %v7412
        %v7477 = vadd.f32 %v6955, %v7413
        %v7478 = vadd.f32 %v6956, %v7414
        %v7479 = vadd.f32 %v6957, %v7415
        %v7480 = vadd.f32 %v6958, %v7416
        %v7481 = vadd.f32 %v6959, %v7417
        %v7482 = vadd.f32 %v6960, %v7418
        %v7483 = vadd.f32 %v6961, %v7419
        %v7484 = vadd.f32 %v6962, %v7420
        %v7485 = vadd.f32 %v6963, %v7421
        %v7486 = vadd.f32 %v6964, %v7422
        %v7487 = vadd.f32 %v6965, %v7423
        %v7488 = vadd.f32 %v6966, %v7424
        %v7489 = vadd.f32 %v6967, %v7425
        %v7490 = vadd.f32 %v6968, %v7426
        %v7491 = vadd.f32 %v6969, %v7427
        %v7492 = vadd.f32 %v6970, %v7428
        %v7493 = vadd.f32 %v6971, %v7429
        %v7494 = vadd.f32 %v6972, %v7430
        %v7495 = vadd.f32 %v6973, %v7431
        %v7496 = vadd.f32 %v6974, %v7432
        %v7497 = vadd.f32 %v6975, %v7433
        %v7498 = vadd.f32 %v6976, %v7434
        %v7499 = vadd.f32 %v6977, %v7435
        %v7500 = vadd.f32 %v6978, %v7436
        %v7501 = vadd.f32 %v6979, %v7437
        %v7502 = vadd.f32 %v6980, %v7438
        %v7503 = vadd.f32 %v6981, %v7439
        %v7504 = vadd.f32 %v6982, %v7440
        %v7505 = vadd.f32 %v6983, %v7441
        %v7506 = vadd.f32 %v6984, %v7442
        %v7507 = vadd.f32 %v6985, %v7443
        %v7508 = vadd.f32 %v6986, %v7444
        %v7509 = vadd.f32 %v6987, %v7445
        %v7510 = vadd.f32 %v6988, %v7446
        %v7511 = vadd.f32 %v6989, %v7447
        %v7512 = vadd.f32 %v6990, %v7448
        %v7513 = vadd.f32 %v6991, %v7449
        %v7514 = vadd.f32 %v6992, %v7450
        %v7515 = vadd.f32 %v6993, %v7451
        %v7516 = vadd.f32 %v6994, %v7452
        %v7517 = vadd.f32 %v6995, %v7453
        %v7518 = vadd.f32 %v6996, %v7454
        %v7519 = vadd.f32 %v6997, %v7455
        %v7520 = vadd.f32 %v6998, %v7456
        %v7521 = vadd.f32 %v6999, %v7457
        %v7522 = vadd.f32 %v7000, %v7458
        %v7523 = vadd.f32 %v7001, %v7459
        %v7524 = vadd.f32 %v7002, %v7460
        %v7525 = vadd.f32 %v7003, %v7461
        %v7526 = vadd.f32 %v7004, %v7462
        %v7527 = vadd.f32 %v7005, %v7463
        %s7528 = sadd.s32 %s743, 13
        %s7529 = scalar_lea.vmem [#allocation2], %s7528
        %v7530 = vld [vmem:[%s7529] sm:$0xff]
        %v7531 = vld [vmem:[%s7529 + $0x8] sm:$0xff]
        %v7532 = vld [vmem:[%s7529 + $0x10] sm:$0xff]
        %v7533 = vld [vmem:[%s7529 + $0x18] sm:$0xff]
        %v7534 = vld [vmem:[%s7529 + $0x20] sm:$0xff]
        %v7535 = vld [vmem:[%s7529 + $0x28] sm:$0xff]
        %v7536 = vld [vmem:[%s7529 + $0x30] sm:$0xff]
        %v7537 = vld [vmem:[%s7529 + $0x38] sm:$0xff]
        %v7538 = vld [vmem:[%s7529 + $0x40] sm:$0xff]
        %v7539 = vld [vmem:[%s7529 + $0x48] sm:$0xff]
        %v7540 = vld [vmem:[%s7529 + $0x50] sm:$0xff]
        %v7541 = vld [vmem:[%s7529 + $0x58] sm:$0xff]
        %v7542 = vld [vmem:[%s7529 + $0x60] sm:$0xff]
        %v7543 = vld [vmem:[%s7529 + $0x68] sm:$0xff]
        %v7544 = vld [vmem:[%s7529 + $0x70] sm:$0xff]
        %v7545 = vld [vmem:[%s7529 + $0x78] sm:$0xff]
        %v7546 = vld [vmem:[%s7529 + $0x80] sm:$0xff]
        %v7547 = vld [vmem:[%s7529 + $0x88] sm:$0xff]
        %v7548 = vld [vmem:[%s7529 + $0x90] sm:$0xff]
        %v7549 = vld [vmem:[%s7529 + $0x98] sm:$0xff]
        %v7550 = vld [vmem:[%s7529 + $0xa0] sm:$0xff]
        %v7551 = vld [vmem:[%s7529 + $0xa8] sm:$0xff]
        %v7552 = vld [vmem:[%s7529 + $0xb0] sm:$0xff]
        %v7553 = vld [vmem:[%s7529 + $0xb8] sm:$0xff]
        %v7554 = vld [vmem:[%s7529 + $0xc0] sm:$0xff]
        %v7555 = vld [vmem:[%s7529 + $0xc8] sm:$0xff]
        %v7556 = vld [vmem:[%s7529 + $0xd0] sm:$0xff]
        %v7557 = vld [vmem:[%s7529 + $0xd8] sm:$0xff]
        %v7558 = vld [vmem:[%s7529 + $0xe0] sm:$0xff]
        %v7559 = vld [vmem:[%s7529 + $0xe8] sm:$0xff]
        %v7560 = vld [vmem:[%s7529 + $0xf0] sm:$0xff]
        %v7561 = vld [vmem:[%s7529 + $0xf8] sm:$0xff]
        %v7562 = vld [vmem:[%s7529 + $0x100] sm:$0xff]
        %v7563 = vld [vmem:[%s7529 + $0x108] sm:$0xff]
        %v7564 = vld [vmem:[%s7529 + $0x110] sm:$0xff]
        %v7565 = vld [vmem:[%s7529 + $0x118] sm:$0xff]
        %v7566 = vld [vmem:[%s7529 + $0x120] sm:$0xff]
        %v7567 = vld [vmem:[%s7529 + $0x128] sm:$0xff]
        %v7568 = vld [vmem:[%s7529 + $0x130] sm:$0xff]
        %v7569 = vld [vmem:[%s7529 + $0x138] sm:$0xff]
        %v7570 = vld [vmem:[%s7529 + $0x140] sm:$0xff]
        %v7571 = vld [vmem:[%s7529 + $0x148] sm:$0xff]
        %v7572 = vld [vmem:[%s7529 + $0x150] sm:$0xff]
        %v7573 = vld [vmem:[%s7529 + $0x158] sm:$0xff]
        %v7574 = vld [vmem:[%s7529 + $0x160] sm:$0xff]
        %v7575 = vld [vmem:[%s7529 + $0x168] sm:$0xff]
        %v7576 = vld [vmem:[%s7529 + $0x170] sm:$0xff]
        %v7577 = vld [vmem:[%s7529 + $0x178] sm:$0xff]
        %v7578 = vld [vmem:[%s7529 + $0x180] sm:$0xff]
        %v7579 = vld [vmem:[%s7529 + $0x188] sm:$0xff]
        %v7580 = vld [vmem:[%s7529 + $0x190] sm:$0xff]
        %v7581 = vld [vmem:[%s7529 + $0x198] sm:$0xff]
        %v7582 = vld [vmem:[%s7529 + $0x1a0] sm:$0xff]
        %v7583 = vld [vmem:[%s7529 + $0x1a8] sm:$0xff]
        %v7584 = vld [vmem:[%s7529 + $0x1b0] sm:$0xff]
        %v7585 = vld [vmem:[%s7529 + $0x1b8] sm:$0xff]
        %v7586 = vld [vmem:[%s7529 + $0x1c0] sm:$0xff]
        %v7587 = vld [vmem:[%s7529 + $0x1c8] sm:$0xff]
        %v7588 = vld [vmem:[%s7529 + $0x1d0] sm:$0xff]
        %v7589 = vld [vmem:[%s7529 + $0x1d8] sm:$0xff]
        %v7590 = vld [vmem:[%s7529 + $0x1e0] sm:$0xff]
        %v7591 = vld [vmem:[%s7529 + $0x1e8] sm:$0xff]
        %v7592 = vld [vmem:[%s7529 + $0x1f0] sm:$0xff]
        %v7593 = vld [vmem:[%s7529 + $0x1f8] sm:$0xff]
        %s7594 = scalar_lea.vmem %s216, 13
        %v7595 = vld [vmem:[%s7594] sm:$0x1]
        %7597 = vset.pattern.permute.xlu0 0
        %7598 = vperm.xlu0 %7597, %v7530
        %v7599 = vpop.permute.xlu0 %7598
        %7602 = vset.pattern.permute.xlu0 0
        %7603 = vperm.xlu0 %7602, %v7531
        %v7604 = vpop.permute.xlu0 %7603
        %7607 = vset.pattern.permute.xlu0 0
        %7608 = vperm.xlu0 %7607, %v7532
        %v7609 = vpop.permute.xlu0 %7608
        %7612 = vset.pattern.permute.xlu0 0
        %7613 = vperm.xlu0 %7612, %v7533
        %v7614 = vpop.permute.xlu0 %7613
        %7617 = vset.pattern.permute.xlu0 0
        %7618 = vperm.xlu0 %7617, %v7534
        %v7619 = vpop.permute.xlu0 %7618
        %7622 = vset.pattern.permute.xlu0 0
        %7623 = vperm.xlu0 %7622, %v7535
        %v7624 = vpop.permute.xlu0 %7623
        %7627 = vset.pattern.permute.xlu0 0
        %7628 = vperm.xlu0 %7627, %v7536
        %v7629 = vpop.permute.xlu0 %7628
        %7632 = vset.pattern.permute.xlu0 0
        %7633 = vperm.xlu0 %7632, %v7537
        %v7634 = vpop.permute.xlu0 %7633
        %7637 = vset.pattern.permute.xlu0 0
        %7638 = vperm.xlu0 %7637, %v7538
        %v7639 = vpop.permute.xlu0 %7638
        %7642 = vset.pattern.permute.xlu0 0
        %7643 = vperm.xlu0 %7642, %v7539
        %v7644 = vpop.permute.xlu0 %7643
        %7647 = vset.pattern.permute.xlu0 0
        %7648 = vperm.xlu0 %7647, %v7540
        %v7649 = vpop.permute.xlu0 %7648
        %7652 = vset.pattern.permute.xlu0 0
        %7653 = vperm.xlu0 %7652, %v7541
        %v7654 = vpop.permute.xlu0 %7653
        %7657 = vset.pattern.permute.xlu0 0
        %7658 = vperm.xlu0 %7657, %v7542
        %v7659 = vpop.permute.xlu0 %7658
        %7662 = vset.pattern.permute.xlu0 0
        %7663 = vperm.xlu0 %7662, %v7543
        %v7664 = vpop.permute.xlu0 %7663
        %7667 = vset.pattern.permute.xlu0 0
        %7668 = vperm.xlu0 %7667, %v7544
        %v7669 = vpop.permute.xlu0 %7668
        %7672 = vset.pattern.permute.xlu0 0
        %7673 = vperm.xlu0 %7672, %v7545
        %v7674 = vpop.permute.xlu0 %7673
        %7677 = vset.pattern.permute.xlu0 0
        %7678 = vperm.xlu0 %7677, %v7546
        %v7679 = vpop.permute.xlu0 %7678
        %7682 = vset.pattern.permute.xlu0 0
        %7683 = vperm.xlu0 %7682, %v7547
        %v7684 = vpop.permute.xlu0 %7683
        %7687 = vset.pattern.permute.xlu0 0
        %7688 = vperm.xlu0 %7687, %v7548
        %v7689 = vpop.permute.xlu0 %7688
        %7692 = vset.pattern.permute.xlu0 0
        %7693 = vperm.xlu0 %7692, %v7549
        %v7694 = vpop.permute.xlu0 %7693
        %7697 = vset.pattern.permute.xlu0 0
        %7698 = vperm.xlu0 %7697, %v7550
        %v7699 = vpop.permute.xlu0 %7698
        %7702 = vset.pattern.permute.xlu0 0
        %7703 = vperm.xlu0 %7702, %v7551
        %v7704 = vpop.permute.xlu0 %7703
        %7707 = vset.pattern.permute.xlu0 0
        %7708 = vperm.xlu0 %7707, %v7552
        %v7709 = vpop.permute.xlu0 %7708
        %7712 = vset.pattern.permute.xlu0 0
        %7713 = vperm.xlu0 %7712, %v7553
        %v7714 = vpop.permute.xlu0 %7713
        %7717 = vset.pattern.permute.xlu0 0
        %7718 = vperm.xlu0 %7717, %v7554
        %v7719 = vpop.permute.xlu0 %7718
        %7722 = vset.pattern.permute.xlu0 0
        %7723 = vperm.xlu0 %7722, %v7555
        %v7724 = vpop.permute.xlu0 %7723
        %7727 = vset.pattern.permute.xlu0 0
        %7728 = vperm.xlu0 %7727, %v7556
        %v7729 = vpop.permute.xlu0 %7728
        %7732 = vset.pattern.permute.xlu0 0
        %7733 = vperm.xlu0 %7732, %v7557
        %v7734 = vpop.permute.xlu0 %7733
        %7737 = vset.pattern.permute.xlu0 0
        %7738 = vperm.xlu0 %7737, %v7558
        %v7739 = vpop.permute.xlu0 %7738
        %7742 = vset.pattern.permute.xlu0 0
        %7743 = vperm.xlu0 %7742, %v7559
        %v7744 = vpop.permute.xlu0 %7743
        %7747 = vset.pattern.permute.xlu0 0
        %7748 = vperm.xlu0 %7747, %v7560
        %v7749 = vpop.permute.xlu0 %7748
        %7752 = vset.pattern.permute.xlu0 0
        %7753 = vperm.xlu0 %7752, %v7561
        %v7754 = vpop.permute.xlu0 %7753
        %7757 = vset.pattern.permute.xlu0 0
        %7758 = vperm.xlu0 %7757, %v7562
        %v7759 = vpop.permute.xlu0 %7758
        %7762 = vset.pattern.permute.xlu0 0
        %7763 = vperm.xlu0 %7762, %v7563
        %v7764 = vpop.permute.xlu0 %7763
        %7767 = vset.pattern.permute.xlu0 0
        %7768 = vperm.xlu0 %7767, %v7564
        %v7769 = vpop.permute.xlu0 %7768
        %7772 = vset.pattern.permute.xlu0 0
        %7773 = vperm.xlu0 %7772, %v7565
        %v7774 = vpop.permute.xlu0 %7773
        %7777 = vset.pattern.permute.xlu0 0
        %7778 = vperm.xlu0 %7777, %v7566
        %v7779 = vpop.permute.xlu0 %7778
        %7782 = vset.pattern.permute.xlu0 0
        %7783 = vperm.xlu0 %7782, %v7567
        %v7784 = vpop.permute.xlu0 %7783
        %7787 = vset.pattern.permute.xlu0 0
        %7788 = vperm.xlu0 %7787, %v7568
        %v7789 = vpop.permute.xlu0 %7788
        %7792 = vset.pattern.permute.xlu0 0
        %7793 = vperm.xlu0 %7792, %v7569
        %v7794 = vpop.permute.xlu0 %7793
        %7797 = vset.pattern.permute.xlu0 0
        %7798 = vperm.xlu0 %7797, %v7570
        %v7799 = vpop.permute.xlu0 %7798
        %7802 = vset.pattern.permute.xlu0 0
        %7803 = vperm.xlu0 %7802, %v7571
        %v7804 = vpop.permute.xlu0 %7803
        %7807 = vset.pattern.permute.xlu0 0
        %7808 = vperm.xlu0 %7807, %v7572
        %v7809 = vpop.permute.xlu0 %7808
        %7812 = vset.pattern.permute.xlu0 0
        %7813 = vperm.xlu0 %7812, %v7573
        %v7814 = vpop.permute.xlu0 %7813
        %7817 = vset.pattern.permute.xlu0 0
        %7818 = vperm.xlu0 %7817, %v7574
        %v7819 = vpop.permute.xlu0 %7818
        %7822 = vset.pattern.permute.xlu0 0
        %7823 = vperm.xlu0 %7822, %v7575
        %v7824 = vpop.permute.xlu0 %7823
        %7827 = vset.pattern.permute.xlu0 0
        %7828 = vperm.xlu0 %7827, %v7576
        %v7829 = vpop.permute.xlu0 %7828
        %7832 = vset.pattern.permute.xlu0 0
        %7833 = vperm.xlu0 %7832, %v7577
        %v7834 = vpop.permute.xlu0 %7833
        %7837 = vset.pattern.permute.xlu0 0
        %7838 = vperm.xlu0 %7837, %v7578
        %v7839 = vpop.permute.xlu0 %7838
        %7842 = vset.pattern.permute.xlu0 0
        %7843 = vperm.xlu0 %7842, %v7579
        %v7844 = vpop.permute.xlu0 %7843
        %7847 = vset.pattern.permute.xlu0 0
        %7848 = vperm.xlu0 %7847, %v7580
        %v7849 = vpop.permute.xlu0 %7848
        %7852 = vset.pattern.permute.xlu0 0
        %7853 = vperm.xlu0 %7852, %v7581
        %v7854 = vpop.permute.xlu0 %7853
        %7857 = vset.pattern.permute.xlu0 0
        %7858 = vperm.xlu0 %7857, %v7582
        %v7859 = vpop.permute.xlu0 %7858
        %7862 = vset.pattern.permute.xlu0 0
        %7863 = vperm.xlu0 %7862, %v7583
        %v7864 = vpop.permute.xlu0 %7863
        %7867 = vset.pattern.permute.xlu0 0
        %7868 = vperm.xlu0 %7867, %v7584
        %v7869 = vpop.permute.xlu0 %7868
        %7872 = vset.pattern.permute.xlu0 0
        %7873 = vperm.xlu0 %7872, %v7585
        %v7874 = vpop.permute.xlu0 %7873
        %7877 = vset.pattern.permute.xlu0 0
        %7878 = vperm.xlu0 %7877, %v7586
        %v7879 = vpop.permute.xlu0 %7878
        %7882 = vset.pattern.permute.xlu0 0
        %7883 = vperm.xlu0 %7882, %v7587
        %v7884 = vpop.permute.xlu0 %7883
        %7887 = vset.pattern.permute.xlu0 0
        %7888 = vperm.xlu0 %7887, %v7588
        %v7889 = vpop.permute.xlu0 %7888
        %7892 = vset.pattern.permute.xlu0 0
        %7893 = vperm.xlu0 %7892, %v7589
        %v7894 = vpop.permute.xlu0 %7893
        %7897 = vset.pattern.permute.xlu0 0
        %7898 = vperm.xlu0 %7897, %v7590
        %v7899 = vpop.permute.xlu0 %7898
        %7902 = vset.pattern.permute.xlu0 0
        %7903 = vperm.xlu0 %7902, %v7591
        %v7904 = vpop.permute.xlu0 %7903
        %7907 = vset.pattern.permute.xlu0 0
        %7908 = vperm.xlu0 %7907, %v7592
        %v7909 = vpop.permute.xlu0 %7908
        %7912 = vset.pattern.permute.xlu0 0
        %7913 = vperm.xlu0 %7912, %v7593
        %v7914 = vpop.permute.xlu0 %7913
        %v7917 = vlaneseq
        %v7918 = vshrl.u32 %v7917, 7
        %v7919 = vsub.s32 0, %v7918
        %v7920 = vrot.slane %v7595, %v7919
        %v7922 = vmul.f32 %v7599, %v7920
        %v7923 = vmul.f32 %v7604, %v7920
        %v7924 = vmul.f32 %v7609, %v7920
        %v7925 = vmul.f32 %v7614, %v7920
        %v7926 = vmul.f32 %v7619, %v7920
        %v7927 = vmul.f32 %v7624, %v7920
        %v7928 = vmul.f32 %v7629, %v7920
        %v7929 = vmul.f32 %v7634, %v7920
        %v7930 = vmul.f32 %v7639, %v7920
        %v7931 = vmul.f32 %v7644, %v7920
        %v7932 = vmul.f32 %v7649, %v7920
        %v7933 = vmul.f32 %v7654, %v7920
        %v7934 = vmul.f32 %v7659, %v7920
        %v7935 = vmul.f32 %v7664, %v7920
        %v7936 = vmul.f32 %v7669, %v7920
        %v7937 = vmul.f32 %v7674, %v7920
        %v7938 = vmul.f32 %v7679, %v7920
        %v7939 = vmul.f32 %v7684, %v7920
        %v7940 = vmul.f32 %v7689, %v7920
        %v7941 = vmul.f32 %v7694, %v7920
        %v7942 = vmul.f32 %v7699, %v7920
        %v7943 = vmul.f32 %v7704, %v7920
        %v7944 = vmul.f32 %v7709, %v7920
        %v7945 = vmul.f32 %v7714, %v7920
        %v7946 = vmul.f32 %v7719, %v7920
        %v7947 = vmul.f32 %v7724, %v7920
        %v7948 = vmul.f32 %v7729, %v7920
        %v7949 = vmul.f32 %v7734, %v7920
        %v7950 = vmul.f32 %v7739, %v7920
        %v7951 = vmul.f32 %v7744, %v7920
        %v7952 = vmul.f32 %v7749, %v7920
        %v7953 = vmul.f32 %v7754, %v7920
        %v7954 = vmul.f32 %v7759, %v7920
        %v7955 = vmul.f32 %v7764, %v7920
        %v7956 = vmul.f32 %v7769, %v7920
        %v7957 = vmul.f32 %v7774, %v7920
        %v7958 = vmul.f32 %v7779, %v7920
        %v7959 = vmul.f32 %v7784, %v7920
        %v7960 = vmul.f32 %v7789, %v7920
        %v7961 = vmul.f32 %v7794, %v7920
        %v7962 = vmul.f32 %v7799, %v7920
        %v7963 = vmul.f32 %v7804, %v7920
        %v7964 = vmul.f32 %v7809, %v7920
        %v7965 = vmul.f32 %v7814, %v7920
        %v7966 = vmul.f32 %v7819, %v7920
        %v7967 = vmul.f32 %v7824, %v7920
        %v7968 = vmul.f32 %v7829, %v7920
        %v7969 = vmul.f32 %v7834, %v7920
        %v7970 = vmul.f32 %v7839, %v7920
        %v7971 = vmul.f32 %v7844, %v7920
        %v7972 = vmul.f32 %v7849, %v7920
        %v7973 = vmul.f32 %v7854, %v7920
        %v7974 = vmul.f32 %v7859, %v7920
        %v7975 = vmul.f32 %v7864, %v7920
        %v7976 = vmul.f32 %v7869, %v7920
        %v7977 = vmul.f32 %v7874, %v7920
        %v7978 = vmul.f32 %v7879, %v7920
        %v7979 = vmul.f32 %v7884, %v7920
        %v7980 = vmul.f32 %v7889, %v7920
        %v7981 = vmul.f32 %v7894, %v7920
        %v7982 = vmul.f32 %v7899, %v7920
        %v7983 = vmul.f32 %v7904, %v7920
        %v7984 = vmul.f32 %v7909, %v7920
        %v7985 = vmul.f32 %v7914, %v7920
        %v7986 = vadd.f32 %v7464, %v7922
        %v7987 = vadd.f32 %v7465, %v7923
        %v7988 = vadd.f32 %v7466, %v7924
        %v7989 = vadd.f32 %v7467, %v7925
        %v7990 = vadd.f32 %v7468, %v7926
        %v7991 = vadd.f32 %v7469, %v7927
        %v7992 = vadd.f32 %v7470, %v7928
        %v7993 = vadd.f32 %v7471, %v7929
        %v7994 = vadd.f32 %v7472, %v7930
        %v7995 = vadd.f32 %v7473, %v7931
        %v7996 = vadd.f32 %v7474, %v7932
        %v7997 = vadd.f32 %v7475, %v7933
        %v7998 = vadd.f32 %v7476, %v7934
        %v7999 = vadd.f32 %v7477, %v7935
        %v8000 = vadd.f32 %v7478, %v7936
        %v8001 = vadd.f32 %v7479, %v7937
        %v8002 = vadd.f32 %v7480, %v7938
        %v8003 = vadd.f32 %v7481, %v7939
        %v8004 = vadd.f32 %v7482, %v7940
        %v8005 = vadd.f32 %v7483, %v7941
        %v8006 = vadd.f32 %v7484, %v7942
        %v8007 = vadd.f32 %v7485, %v7943
        %v8008 = vadd.f32 %v7486, %v7944
        %v8009 = vadd.f32 %v7487, %v7945
        %v8010 = vadd.f32 %v7488, %v7946
        %v8011 = vadd.f32 %v7489, %v7947
        %v8012 = vadd.f32 %v7490, %v7948
        %v8013 = vadd.f32 %v7491, %v7949
        %v8014 = vadd.f32 %v7492, %v7950
        %v8015 = vadd.f32 %v7493, %v7951
        %v8016 = vadd.f32 %v7494, %v7952
        %v8017 = vadd.f32 %v7495, %v7953
        %v8018 = vadd.f32 %v7496, %v7954
        %v8019 = vadd.f32 %v7497, %v7955
        %v8020 = vadd.f32 %v7498, %v7956
        %v8021 = vadd.f32 %v7499, %v7957
        %v8022 = vadd.f32 %v7500, %v7958
        %v8023 = vadd.f32 %v7501, %v7959
        %v8024 = vadd.f32 %v7502, %v7960
        %v8025 = vadd.f32 %v7503, %v7961
        %v8026 = vadd.f32 %v7504, %v7962
        %v8027 = vadd.f32 %v7505, %v7963
        %v8028 = vadd.f32 %v7506, %v7964
        %v8029 = vadd.f32 %v7507, %v7965
        %v8030 = vadd.f32 %v7508, %v7966
        %v8031 = vadd.f32 %v7509, %v7967
        %v8032 = vadd.f32 %v7510, %v7968
        %v8033 = vadd.f32 %v7511, %v7969
        %v8034 = vadd.f32 %v7512, %v7970
        %v8035 = vadd.f32 %v7513, %v7971
        %v8036 = vadd.f32 %v7514, %v7972
        %v8037 = vadd.f32 %v7515, %v7973
        %v8038 = vadd.f32 %v7516, %v7974
        %v8039 = vadd.f32 %v7517, %v7975
        %v8040 = vadd.f32 %v7518, %v7976
        %v8041 = vadd.f32 %v7519, %v7977
        %v8042 = vadd.f32 %v7520, %v7978
        %v8043 = vadd.f32 %v7521, %v7979
        %v8044 = vadd.f32 %v7522, %v7980
        %v8045 = vadd.f32 %v7523, %v7981
        %v8046 = vadd.f32 %v7524, %v7982
        %v8047 = vadd.f32 %v7525, %v7983
        %v8048 = vadd.f32 %v7526, %v7984
        %v8049 = vadd.f32 %v7527, %v7985
        %s8050 = sadd.s32 %s743, 14
        %s8051 = scalar_lea.vmem [#allocation2], %s8050
        %v8052 = vld [vmem:[%s8051] sm:$0xff]
        %v8053 = vld [vmem:[%s8051 + $0x8] sm:$0xff]
        %v8054 = vld [vmem:[%s8051 + $0x10] sm:$0xff]
        %v8055 = vld [vmem:[%s8051 + $0x18] sm:$0xff]
        %v8056 = vld [vmem:[%s8051 + $0x20] sm:$0xff]
        %v8057 = vld [vmem:[%s8051 + $0x28] sm:$0xff]
        %v8058 = vld [vmem:[%s8051 + $0x30] sm:$0xff]
        %v8059 = vld [vmem:[%s8051 + $0x38] sm:$0xff]
        %v8060 = vld [vmem:[%s8051 + $0x40] sm:$0xff]
        %v8061 = vld [vmem:[%s8051 + $0x48] sm:$0xff]
        %v8062 = vld [vmem:[%s8051 + $0x50] sm:$0xff]
        %v8063 = vld [vmem:[%s8051 + $0x58] sm:$0xff]
        %v8064 = vld [vmem:[%s8051 + $0x60] sm:$0xff]
        %v8065 = vld [vmem:[%s8051 + $0x68] sm:$0xff]
        %v8066 = vld [vmem:[%s8051 + $0x70] sm:$0xff]
        %v8067 = vld [vmem:[%s8051 + $0x78] sm:$0xff]
        %v8068 = vld [vmem:[%s8051 + $0x80] sm:$0xff]
        %v8069 = vld [vmem:[%s8051 + $0x88] sm:$0xff]
        %v8070 = vld [vmem:[%s8051 + $0x90] sm:$0xff]
        %v8071 = vld [vmem:[%s8051 + $0x98] sm:$0xff]
        %v8072 = vld [vmem:[%s8051 + $0xa0] sm:$0xff]
        %v8073 = vld [vmem:[%s8051 + $0xa8] sm:$0xff]
        %v8074 = vld [vmem:[%s8051 + $0xb0] sm:$0xff]
        %v8075 = vld [vmem:[%s8051 + $0xb8] sm:$0xff]
        %v8076 = vld [vmem:[%s8051 + $0xc0] sm:$0xff]
        %v8077 = vld [vmem:[%s8051 + $0xc8] sm:$0xff]
        %v8078 = vld [vmem:[%s8051 + $0xd0] sm:$0xff]
        %v8079 = vld [vmem:[%s8051 + $0xd8] sm:$0xff]
        %v8080 = vld [vmem:[%s8051 + $0xe0] sm:$0xff]
        %v8081 = vld [vmem:[%s8051 + $0xe8] sm:$0xff]
        %v8082 = vld [vmem:[%s8051 + $0xf0] sm:$0xff]
        %v8083 = vld [vmem:[%s8051 + $0xf8] sm:$0xff]
        %v8084 = vld [vmem:[%s8051 + $0x100] sm:$0xff]
        %v8085 = vld [vmem:[%s8051 + $0x108] sm:$0xff]
        %v8086 = vld [vmem:[%s8051 + $0x110] sm:$0xff]
        %v8087 = vld [vmem:[%s8051 + $0x118] sm:$0xff]
        %v8088 = vld [vmem:[%s8051 + $0x120] sm:$0xff]
        %v8089 = vld [vmem:[%s8051 + $0x128] sm:$0xff]
        %v8090 = vld [vmem:[%s8051 + $0x130] sm:$0xff]
        %v8091 = vld [vmem:[%s8051 + $0x138] sm:$0xff]
        %v8092 = vld [vmem:[%s8051 + $0x140] sm:$0xff]
        %v8093 = vld [vmem:[%s8051 + $0x148] sm:$0xff]
        %v8094 = vld [vmem:[%s8051 + $0x150] sm:$0xff]
        %v8095 = vld [vmem:[%s8051 + $0x158] sm:$0xff]
        %v8096 = vld [vmem:[%s8051 + $0x160] sm:$0xff]
        %v8097 = vld [vmem:[%s8051 + $0x168] sm:$0xff]
        %v8098 = vld [vmem:[%s8051 + $0x170] sm:$0xff]
        %v8099 = vld [vmem:[%s8051 + $0x178] sm:$0xff]
        %v8100 = vld [vmem:[%s8051 + $0x180] sm:$0xff]
        %v8101 = vld [vmem:[%s8051 + $0x188] sm:$0xff]
        %v8102 = vld [vmem:[%s8051 + $0x190] sm:$0xff]
        %v8103 = vld [vmem:[%s8051 + $0x198] sm:$0xff]
        %v8104 = vld [vmem:[%s8051 + $0x1a0] sm:$0xff]
        %v8105 = vld [vmem:[%s8051 + $0x1a8] sm:$0xff]
        %v8106 = vld [vmem:[%s8051 + $0x1b0] sm:$0xff]
        %v8107 = vld [vmem:[%s8051 + $0x1b8] sm:$0xff]
        %v8108 = vld [vmem:[%s8051 + $0x1c0] sm:$0xff]
        %v8109 = vld [vmem:[%s8051 + $0x1c8] sm:$0xff]
        %v8110 = vld [vmem:[%s8051 + $0x1d0] sm:$0xff]
        %v8111 = vld [vmem:[%s8051 + $0x1d8] sm:$0xff]
        %v8112 = vld [vmem:[%s8051 + $0x1e0] sm:$0xff]
        %v8113 = vld [vmem:[%s8051 + $0x1e8] sm:$0xff]
        %v8114 = vld [vmem:[%s8051 + $0x1f0] sm:$0xff]
        %v8115 = vld [vmem:[%s8051 + $0x1f8] sm:$0xff]
        %s8116 = scalar_lea.vmem %s216, 14
        %v8117 = vld [vmem:[%s8116] sm:$0x1]
        %8119 = vset.pattern.permute.xlu0 0
        %8120 = vperm.xlu0 %8119, %v8052
        %v8121 = vpop.permute.xlu0 %8120
        %8124 = vset.pattern.permute.xlu0 0
        %8125 = vperm.xlu0 %8124, %v8053
        %v8126 = vpop.permute.xlu0 %8125
        %8129 = vset.pattern.permute.xlu0 0
        %8130 = vperm.xlu0 %8129, %v8054
        %v8131 = vpop.permute.xlu0 %8130
        %8134 = vset.pattern.permute.xlu0 0
        %8135 = vperm.xlu0 %8134, %v8055
        %v8136 = vpop.permute.xlu0 %8135
        %8139 = vset.pattern.permute.xlu0 0
        %8140 = vperm.xlu0 %8139, %v8056
        %v8141 = vpop.permute.xlu0 %8140
        %8144 = vset.pattern.permute.xlu0 0
        %8145 = vperm.xlu0 %8144, %v8057
        %v8146 = vpop.permute.xlu0 %8145
        %8149 = vset.pattern.permute.xlu0 0
        %8150 = vperm.xlu0 %8149, %v8058
        %v8151 = vpop.permute.xlu0 %8150
        %8154 = vset.pattern.permute.xlu0 0
        %8155 = vperm.xlu0 %8154, %v8059
        %v8156 = vpop.permute.xlu0 %8155
        %8159 = vset.pattern.permute.xlu0 0
        %8160 = vperm.xlu0 %8159, %v8060
        %v8161 = vpop.permute.xlu0 %8160
        %8164 = vset.pattern.permute.xlu0 0
        %8165 = vperm.xlu0 %8164, %v8061
        %v8166 = vpop.permute.xlu0 %8165
        %8169 = vset.pattern.permute.xlu0 0
        %8170 = vperm.xlu0 %8169, %v8062
        %v8171 = vpop.permute.xlu0 %8170
        %8174 = vset.pattern.permute.xlu0 0
        %8175 = vperm.xlu0 %8174, %v8063
        %v8176 = vpop.permute.xlu0 %8175
        %8179 = vset.pattern.permute.xlu0 0
        %8180 = vperm.xlu0 %8179, %v8064
        %v8181 = vpop.permute.xlu0 %8180
        %8184 = vset.pattern.permute.xlu0 0
        %8185 = vperm.xlu0 %8184, %v8065
        %v8186 = vpop.permute.xlu0 %8185
        %8189 = vset.pattern.permute.xlu0 0
        %8190 = vperm.xlu0 %8189, %v8066
        %v8191 = vpop.permute.xlu0 %8190
        %8194 = vset.pattern.permute.xlu0 0
        %8195 = vperm.xlu0 %8194, %v8067
        %v8196 = vpop.permute.xlu0 %8195
        %8199 = vset.pattern.permute.xlu0 0
        %8200 = vperm.xlu0 %8199, %v8068
        %v8201 = vpop.permute.xlu0 %8200
        %8204 = vset.pattern.permute.xlu0 0
        %8205 = vperm.xlu0 %8204, %v8069
        %v8206 = vpop.permute.xlu0 %8205
        %8209 = vset.pattern.permute.xlu0 0
        %8210 = vperm.xlu0 %8209, %v8070
        %v8211 = vpop.permute.xlu0 %8210
        %8214 = vset.pattern.permute.xlu0 0
        %8215 = vperm.xlu0 %8214, %v8071
        %v8216 = vpop.permute.xlu0 %8215
        %8219 = vset.pattern.permute.xlu0 0
        %8220 = vperm.xlu0 %8219, %v8072
        %v8221 = vpop.permute.xlu0 %8220
        %8224 = vset.pattern.permute.xlu0 0
        %8225 = vperm.xlu0 %8224, %v8073
        %v8226 = vpop.permute.xlu0 %8225
        %8229 = vset.pattern.permute.xlu0 0
        %8230 = vperm.xlu0 %8229, %v8074
        %v8231 = vpop.permute.xlu0 %8230
        %8234 = vset.pattern.permute.xlu0 0
        %8235 = vperm.xlu0 %8234, %v8075
        %v8236 = vpop.permute.xlu0 %8235
        %8239 = vset.pattern.permute.xlu0 0
        %8240 = vperm.xlu0 %8239, %v8076
        %v8241 = vpop.permute.xlu0 %8240
        %8244 = vset.pattern.permute.xlu0 0
        %8245 = vperm.xlu0 %8244, %v8077
        %v8246 = vpop.permute.xlu0 %8245
        %8249 = vset.pattern.permute.xlu0 0
        %8250 = vperm.xlu0 %8249, %v8078
        %v8251 = vpop.permute.xlu0 %8250
        %8254 = vset.pattern.permute.xlu0 0
        %8255 = vperm.xlu0 %8254, %v8079
        %v8256 = vpop.permute.xlu0 %8255
        %8259 = vset.pattern.permute.xlu0 0
        %8260 = vperm.xlu0 %8259, %v8080
        %v8261 = vpop.permute.xlu0 %8260
        %8264 = vset.pattern.permute.xlu0 0
        %8265 = vperm.xlu0 %8264, %v8081
        %v8266 = vpop.permute.xlu0 %8265
        %8269 = vset.pattern.permute.xlu0 0
        %8270 = vperm.xlu0 %8269, %v8082
        %v8271 = vpop.permute.xlu0 %8270
        %8274 = vset.pattern.permute.xlu0 0
        %8275 = vperm.xlu0 %8274, %v8083
        %v8276 = vpop.permute.xlu0 %8275
        %8279 = vset.pattern.permute.xlu0 0
        %8280 = vperm.xlu0 %8279, %v8084
        %v8281 = vpop.permute.xlu0 %8280
        %8284 = vset.pattern.permute.xlu0 0
        %8285 = vperm.xlu0 %8284, %v8085
        %v8286 = vpop.permute.xlu0 %8285
        %8289 = vset.pattern.permute.xlu0 0
        %8290 = vperm.xlu0 %8289, %v8086
        %v8291 = vpop.permute.xlu0 %8290
        %8294 = vset.pattern.permute.xlu0 0
        %8295 = vperm.xlu0 %8294, %v8087
        %v8296 = vpop.permute.xlu0 %8295
        %8299 = vset.pattern.permute.xlu0 0
        %8300 = vperm.xlu0 %8299, %v8088
        %v8301 = vpop.permute.xlu0 %8300
        %8304 = vset.pattern.permute.xlu0 0
        %8305 = vperm.xlu0 %8304, %v8089
        %v8306 = vpop.permute.xlu0 %8305
        %8309 = vset.pattern.permute.xlu0 0
        %8310 = vperm.xlu0 %8309, %v8090
        %v8311 = vpop.permute.xlu0 %8310
        %8314 = vset.pattern.permute.xlu0 0
        %8315 = vperm.xlu0 %8314, %v8091
        %v8316 = vpop.permute.xlu0 %8315
        %8319 = vset.pattern.permute.xlu0 0
        %8320 = vperm.xlu0 %8319, %v8092
        %v8321 = vpop.permute.xlu0 %8320
        %8324 = vset.pattern.permute.xlu0 0
        %8325 = vperm.xlu0 %8324, %v8093
        %v8326 = vpop.permute.xlu0 %8325
        %8329 = vset.pattern.permute.xlu0 0
        %8330 = vperm.xlu0 %8329, %v8094
        %v8331 = vpop.permute.xlu0 %8330
        %8334 = vset.pattern.permute.xlu0 0
        %8335 = vperm.xlu0 %8334, %v8095
        %v8336 = vpop.permute.xlu0 %8335
        %8339 = vset.pattern.permute.xlu0 0
        %8340 = vperm.xlu0 %8339, %v8096
        %v8341 = vpop.permute.xlu0 %8340
        %8344 = vset.pattern.permute.xlu0 0
        %8345 = vperm.xlu0 %8344, %v8097
        %v8346 = vpop.permute.xlu0 %8345
        %8349 = vset.pattern.permute.xlu0 0
        %8350 = vperm.xlu0 %8349, %v8098
        %v8351 = vpop.permute.xlu0 %8350
        %8354 = vset.pattern.permute.xlu0 0
        %8355 = vperm.xlu0 %8354, %v8099
        %v8356 = vpop.permute.xlu0 %8355
        %8359 = vset.pattern.permute.xlu0 0
        %8360 = vperm.xlu0 %8359, %v8100
        %v8361 = vpop.permute.xlu0 %8360
        %8364 = vset.pattern.permute.xlu0 0
        %8365 = vperm.xlu0 %8364, %v8101
        %v8366 = vpop.permute.xlu0 %8365
        %8369 = vset.pattern.permute.xlu0 0
        %8370 = vperm.xlu0 %8369, %v8102
        %v8371 = vpop.permute.xlu0 %8370
        %8374 = vset.pattern.permute.xlu0 0
        %8375 = vperm.xlu0 %8374, %v8103
        %v8376 = vpop.permute.xlu0 %8375
        %8379 = vset.pattern.permute.xlu0 0
        %8380 = vperm.xlu0 %8379, %v8104
        %v8381 = vpop.permute.xlu0 %8380
        %8384 = vset.pattern.permute.xlu0 0
        %8385 = vperm.xlu0 %8384, %v8105
        %v8386 = vpop.permute.xlu0 %8385
        %8389 = vset.pattern.permute.xlu0 0
        %8390 = vperm.xlu0 %8389, %v8106
        %v8391 = vpop.permute.xlu0 %8390
        %8394 = vset.pattern.permute.xlu0 0
        %8395 = vperm.xlu0 %8394, %v8107
        %v8396 = vpop.permute.xlu0 %8395
        %8399 = vset.pattern.permute.xlu0 0
        %8400 = vperm.xlu0 %8399, %v8108
        %v8401 = vpop.permute.xlu0 %8400
        %8404 = vset.pattern.permute.xlu0 0
        %8405 = vperm.xlu0 %8404, %v8109
        %v8406 = vpop.permute.xlu0 %8405
        %8409 = vset.pattern.permute.xlu0 0
        %8410 = vperm.xlu0 %8409, %v8110
        %v8411 = vpop.permute.xlu0 %8410
        %8414 = vset.pattern.permute.xlu0 0
        %8415 = vperm.xlu0 %8414, %v8111
        %v8416 = vpop.permute.xlu0 %8415
        %8419 = vset.pattern.permute.xlu0 0
        %8420 = vperm.xlu0 %8419, %v8112
        %v8421 = vpop.permute.xlu0 %8420
        %8424 = vset.pattern.permute.xlu0 0
        %8425 = vperm.xlu0 %8424, %v8113
        %v8426 = vpop.permute.xlu0 %8425
        %8429 = vset.pattern.permute.xlu0 0
        %8430 = vperm.xlu0 %8429, %v8114
        %v8431 = vpop.permute.xlu0 %8430
        %8434 = vset.pattern.permute.xlu0 0
        %8435 = vperm.xlu0 %8434, %v8115
        %v8436 = vpop.permute.xlu0 %8435
        %v8439 = vlaneseq
        %v8440 = vshrl.u32 %v8439, 7
        %v8441 = vsub.s32 0, %v8440
        %v8442 = vrot.slane %v8117, %v8441
        %v8444 = vmul.f32 %v8121, %v8442
        %v8445 = vmul.f32 %v8126, %v8442
        %v8446 = vmul.f32 %v8131, %v8442
        %v8447 = vmul.f32 %v8136, %v8442
        %v8448 = vmul.f32 %v8141, %v8442
        %v8449 = vmul.f32 %v8146, %v8442
        %v8450 = vmul.f32 %v8151, %v8442
        %v8451 = vmul.f32 %v8156, %v8442
        %v8452 = vmul.f32 %v8161, %v8442
        %v8453 = vmul.f32 %v8166, %v8442
        %v8454 = vmul.f32 %v8171, %v8442
        %v8455 = vmul.f32 %v8176, %v8442
        %v8456 = vmul.f32 %v8181, %v8442
        %v8457 = vmul.f32 %v8186, %v8442
        %v8458 = vmul.f32 %v8191, %v8442
        %v8459 = vmul.f32 %v8196, %v8442
        %v8460 = vmul.f32 %v8201, %v8442
        %v8461 = vmul.f32 %v8206, %v8442
        %v8462 = vmul.f32 %v8211, %v8442
        %v8463 = vmul.f32 %v8216, %v8442
        %v8464 = vmul.f32 %v8221, %v8442
        %v8465 = vmul.f32 %v8226, %v8442
        %v8466 = vmul.f32 %v8231, %v8442
        %v8467 = vmul.f32 %v8236, %v8442
        %v8468 = vmul.f32 %v8241, %v8442
        %v8469 = vmul.f32 %v8246, %v8442
        %v8470 = vmul.f32 %v8251, %v8442
        %v8471 = vmul.f32 %v8256, %v8442
        %v8472 = vmul.f32 %v8261, %v8442
        %v8473 = vmul.f32 %v8266, %v8442
        %v8474 = vmul.f32 %v8271, %v8442
        %v8475 = vmul.f32 %v8276, %v8442
        %v8476 = vmul.f32 %v8281, %v8442
        %v8477 = vmul.f32 %v8286, %v8442
        %v8478 = vmul.f32 %v8291, %v8442
        %v8479 = vmul.f32 %v8296, %v8442
        %v8480 = vmul.f32 %v8301, %v8442
        %v8481 = vmul.f32 %v8306, %v8442
        %v8482 = vmul.f32 %v8311, %v8442
        %v8483 = vmul.f32 %v8316, %v8442
        %v8484 = vmul.f32 %v8321, %v8442
        %v8485 = vmul.f32 %v8326, %v8442
        %v8486 = vmul.f32 %v8331, %v8442
        %v8487 = vmul.f32 %v8336, %v8442
        %v8488 = vmul.f32 %v8341, %v8442
        %v8489 = vmul.f32 %v8346, %v8442
        %v8490 = vmul.f32 %v8351, %v8442
        %v8491 = vmul.f32 %v8356, %v8442
        %v8492 = vmul.f32 %v8361, %v8442
        %v8493 = vmul.f32 %v8366, %v8442
        %v8494 = vmul.f32 %v8371, %v8442
        %v8495 = vmul.f32 %v8376, %v8442
        %v8496 = vmul.f32 %v8381, %v8442
        %v8497 = vmul.f32 %v8386, %v8442
        %v8498 = vmul.f32 %v8391, %v8442
        %v8499 = vmul.f32 %v8396, %v8442
        %v8500 = vmul.f32 %v8401, %v8442
        %v8501 = vmul.f32 %v8406, %v8442
        %v8502 = vmul.f32 %v8411, %v8442
        %v8503 = vmul.f32 %v8416, %v8442
        %v8504 = vmul.f32 %v8421, %v8442
        %v8505 = vmul.f32 %v8426, %v8442
        %v8506 = vmul.f32 %v8431, %v8442
        %v8507 = vmul.f32 %v8436, %v8442
        %v8508 = vadd.f32 %v7986, %v8444
        %v8509 = vadd.f32 %v7987, %v8445
        %v8510 = vadd.f32 %v7988, %v8446
        %v8511 = vadd.f32 %v7989, %v8447
        %v8512 = vadd.f32 %v7990, %v8448
        %v8513 = vadd.f32 %v7991, %v8449
        %v8514 = vadd.f32 %v7992, %v8450
        %v8515 = vadd.f32 %v7993, %v8451
        %v8516 = vadd.f32 %v7994, %v8452
        %v8517 = vadd.f32 %v7995, %v8453
        %v8518 = vadd.f32 %v7996, %v8454
        %v8519 = vadd.f32 %v7997, %v8455
        %v8520 = vadd.f32 %v7998, %v8456
        %v8521 = vadd.f32 %v7999, %v8457
        %v8522 = vadd.f32 %v8000, %v8458
        %v8523 = vadd.f32 %v8001, %v8459
        %v8524 = vadd.f32 %v8002, %v8460
        %v8525 = vadd.f32 %v8003, %v8461
        %v8526 = vadd.f32 %v8004, %v8462
        %v8527 = vadd.f32 %v8005, %v8463
        %v8528 = vadd.f32 %v8006, %v8464
        %v8529 = vadd.f32 %v8007, %v8465
        %v8530 = vadd.f32 %v8008, %v8466
        %v8531 = vadd.f32 %v8009, %v8467
        %v8532 = vadd.f32 %v8010, %v8468
        %v8533 = vadd.f32 %v8011, %v8469
        %v8534 = vadd.f32 %v8012, %v8470
        %v8535 = vadd.f32 %v8013, %v8471
        %v8536 = vadd.f32 %v8014, %v8472
        %v8537 = vadd.f32 %v8015, %v8473
        %v8538 = vadd.f32 %v8016, %v8474
        %v8539 = vadd.f32 %v8017, %v8475
        %v8540 = vadd.f32 %v8018, %v8476
        %v8541 = vadd.f32 %v8019, %v8477
        %v8542 = vadd.f32 %v8020, %v8478
        %v8543 = vadd.f32 %v8021, %v8479
        %v8544 = vadd.f32 %v8022, %v8480
        %v8545 = vadd.f32 %v8023, %v8481
        %v8546 = vadd.f32 %v8024, %v8482
        %v8547 = vadd.f32 %v8025, %v8483
        %v8548 = vadd.f32 %v8026, %v8484
        %v8549 = vadd.f32 %v8027, %v8485
        %v8550 = vadd.f32 %v8028, %v8486
        %v8551 = vadd.f32 %v8029, %v8487
        %v8552 = vadd.f32 %v8030, %v8488
        %v8553 = vadd.f32 %v8031, %v8489
        %v8554 = vadd.f32 %v8032, %v8490
        %v8555 = vadd.f32 %v8033, %v8491
        %v8556 = vadd.f32 %v8034, %v8492
        %v8557 = vadd.f32 %v8035, %v8493
        %v8558 = vadd.f32 %v8036, %v8494
        %v8559 = vadd.f32 %v8037, %v8495
        %v8560 = vadd.f32 %v8038, %v8496
        %v8561 = vadd.f32 %v8039, %v8497
        %v8562 = vadd.f32 %v8040, %v8498
        %v8563 = vadd.f32 %v8041, %v8499
        %v8564 = vadd.f32 %v8042, %v8500
        %v8565 = vadd.f32 %v8043, %v8501
        %v8566 = vadd.f32 %v8044, %v8502
        %v8567 = vadd.f32 %v8045, %v8503
        %v8568 = vadd.f32 %v8046, %v8504
        %v8569 = vadd.f32 %v8047, %v8505
        %v8570 = vadd.f32 %v8048, %v8506
        %v8571 = vadd.f32 %v8049, %v8507
        %v8572 = vld [vmem:[%s219] sm:$0x1]
        %v8574 = vlaneseq
        %v8575 = vshrl.u32 %v8574, 7
        %v8576 = vsub.s32 0, %v8575
        %v8577 = vrot.slane %v8572, %v8576
        %v8579 = vadd.f32 %v8508, %v8577
        %v8580 = vadd.f32 %v8509, %v8577
        %v8581 = vadd.f32 %v8510, %v8577
        %v8582 = vadd.f32 %v8511, %v8577
        %v8583 = vadd.f32 %v8512, %v8577
        %v8584 = vadd.f32 %v8513, %v8577
        %v8585 = vadd.f32 %v8514, %v8577
        %v8586 = vadd.f32 %v8515, %v8577
        %v8587 = vadd.f32 %v8516, %v8577
        %v8588 = vadd.f32 %v8517, %v8577
        %v8589 = vadd.f32 %v8518, %v8577
        %v8590 = vadd.f32 %v8519, %v8577
        %v8591 = vadd.f32 %v8520, %v8577
        %v8592 = vadd.f32 %v8521, %v8577
        %v8593 = vadd.f32 %v8522, %v8577
        %v8594 = vadd.f32 %v8523, %v8577
        %v8595 = vadd.f32 %v8524, %v8577
        %v8596 = vadd.f32 %v8525, %v8577
        %v8597 = vadd.f32 %v8526, %v8577
        %v8598 = vadd.f32 %v8527, %v8577
        %v8599 = vadd.f32 %v8528, %v8577
        %v8600 = vadd.f32 %v8529, %v8577
        %v8601 = vadd.f32 %v8530, %v8577
        %v8602 = vadd.f32 %v8531, %v8577
        %v8603 = vadd.f32 %v8532, %v8577
        %v8604 = vadd.f32 %v8533, %v8577
        %v8605 = vadd.f32 %v8534, %v8577
        %v8606 = vadd.f32 %v8535, %v8577
        %v8607 = vadd.f32 %v8536, %v8577
        %v8608 = vadd.f32 %v8537, %v8577
        %v8609 = vadd.f32 %v8538, %v8577
        %v8610 = vadd.f32 %v8539, %v8577
        %v8611 = vadd.f32 %v8540, %v8577
        %v8612 = vadd.f32 %v8541, %v8577
        %v8613 = vadd.f32 %v8542, %v8577
        %v8614 = vadd.f32 %v8543, %v8577
        %v8615 = vadd.f32 %v8544, %v8577
        %v8616 = vadd.f32 %v8545, %v8577
        %v8617 = vadd.f32 %v8546, %v8577
        %v8618 = vadd.f32 %v8547, %v8577
        %v8619 = vadd.f32 %v8548, %v8577
        %v8620 = vadd.f32 %v8549, %v8577
        %v8621 = vadd.f32 %v8550, %v8577
        %v8622 = vadd.f32 %v8551, %v8577
        %v8623 = vadd.f32 %v8552, %v8577
        %v8624 = vadd.f32 %v8553, %v8577
        %v8625 = vadd.f32 %v8554, %v8577
        %v8626 = vadd.f32 %v8555, %v8577
        %v8627 = vadd.f32 %v8556, %v8577
        %v8628 = vadd.f32 %v8557, %v8577
        %v8629 = vadd.f32 %v8558, %v8577
        %v8630 = vadd.f32 %v8559, %v8577
        %v8631 = vadd.f32 %v8560, %v8577
        %v8632 = vadd.f32 %v8561, %v8577
        %v8633 = vadd.f32 %v8562, %v8577
        %v8634 = vadd.f32 %v8563, %v8577
        %v8635 = vadd.f32 %v8564, %v8577
        %v8636 = vadd.f32 %v8565, %v8577
        %v8637 = vadd.f32 %v8566, %v8577
        %v8638 = vadd.f32 %v8567, %v8577
        %v8639 = vadd.f32 %v8568, %v8577
        %v8640 = vadd.f32 %v8569, %v8577
        %v8641 = vadd.f32 %v8570, %v8577
        %v8642 = vadd.f32 %v8571, %v8577
        %8643 = vxpose.xlu0.b32.start [1/16] %v8579, 128
        %8644 = vxpose.xlu0.b32.cont [2/16] %v8580, 128
        %8645 = vxpose.xlu0.b32.cont [3/16] %v8581, 128
        %8646 = vxpose.xlu0.b32.cont [4/16] %v8582, 128
        %8647 = vxpose.xlu0.b32.cont [5/16] %v8583, 128
        %8648 = vxpose.xlu0.b32.cont [6/16] %v8584, 128
        %8649 = vxpose.xlu0.b32.cont [7/16] %v8585, 128
        %8650 = vxpose.xlu0.b32.cont [8/16] %v8586, 128
        %8651 = vxpose.xlu0.b32.cont [9/16] %v8587, 128
        %8652 = vxpose.xlu0.b32.cont [10/16] %v8588, 128
        %8653 = vxpose.xlu0.b32.cont [11/16] %v8589, 128
        %8654 = vxpose.xlu0.b32.cont [12/16] %v8590, 128
        %8655 = vxpose.xlu0.b32.cont [13/16] %v8591, 128
        %8656 = vxpose.xlu0.b32.cont [14/16] %v8592, 128
        %8657 = vxpose.xlu0.b32.cont [15/16] %v8593, 128
        %8658 = vxpose.xlu0.b32.end [16/16] %v8594, 128
        %v8659 = vpop.trf.xlu0
        %v8660 = vpop.trf.xlu0
        %v8661 = vpop.trf.xlu0
        %v8662 = vpop.trf.xlu0
        %v8663 = vpop.trf.xlu0
        %v8664 = vpop.trf.xlu0
        %v8665 = vpop.trf.xlu0
        %v8666 = vpop.trf.xlu0
        %v8667 = vpop.trf.xlu0
        %v8668 = vpop.trf.xlu0
        %v8669 = vpop.trf.xlu0
        %v8670 = vpop.trf.xlu0
        %v8671 = vpop.trf.xlu0
        %v8672 = vpop.trf.xlu0
        %v8673 = vpop.trf.xlu0
        %v8674 = vpop.trf.xlu0
        %8675 = vxpose.xlu0.b32.start [1/16] %v8595, 128
        %8676 = vxpose.xlu0.b32.cont [2/16] %v8596, 128
        %8677 = vxpose.xlu0.b32.cont [3/16] %v8597, 128
        %8678 = vxpose.xlu0.b32.cont [4/16] %v8598, 128
        %8679 = vxpose.xlu0.b32.cont [5/16] %v8599, 128
        %8680 = vxpose.xlu0.b32.cont [6/16] %v8600, 128
        %8681 = vxpose.xlu0.b32.cont [7/16] %v8601, 128
        %8682 = vxpose.xlu0.b32.cont [8/16] %v8602, 128
        %8683 = vxpose.xlu0.b32.cont [9/16] %v8603, 128
        %8684 = vxpose.xlu0.b32.cont [10/16] %v8604, 128
        %8685 = vxpose.xlu0.b32.cont [11/16] %v8605, 128
        %8686 = vxpose.xlu0.b32.cont [12/16] %v8606, 128
        %8687 = vxpose.xlu0.b32.cont [13/16] %v8607, 128
        %8688 = vxpose.xlu0.b32.cont [14/16] %v8608, 128
        %8689 = vxpose.xlu0.b32.cont [15/16] %v8609, 128
        %8690 = vxpose.xlu0.b32.end [16/16] %v8610, 128
        %v8691 = vpop.trf.xlu0
        %v8692 = vpop.trf.xlu0
        %v8693 = vpop.trf.xlu0
        %v8694 = vpop.trf.xlu0
        %v8695 = vpop.trf.xlu0
        %v8696 = vpop.trf.xlu0
        %v8697 = vpop.trf.xlu0
        %v8698 = vpop.trf.xlu0
        %v8699 = vpop.trf.xlu0
        %v8700 = vpop.trf.xlu0
        %v8701 = vpop.trf.xlu0
        %v8702 = vpop.trf.xlu0
        %v8703 = vpop.trf.xlu0
        %v8704 = vpop.trf.xlu0
        %v8705 = vpop.trf.xlu0
        %v8706 = vpop.trf.xlu0
        %8707 = vxpose.xlu0.b32.start [1/16] %v8611, 128
        %8708 = vxpose.xlu0.b32.cont [2/16] %v8612, 128
        %8709 = vxpose.xlu0.b32.cont [3/16] %v8613, 128
        %8710 = vxpose.xlu0.b32.cont [4/16] %v8614, 128
        %8711 = vxpose.xlu0.b32.cont [5/16] %v8615, 128
        %8712 = vxpose.xlu0.b32.cont [6/16] %v8616, 128
        %8713 = vxpose.xlu0.b32.cont [7/16] %v8617, 128
        %8714 = vxpose.xlu0.b32.cont [8/16] %v8618, 128
        %8715 = vxpose.xlu0.b32.cont [9/16] %v8619, 128
        %8716 = vxpose.xlu0.b32.cont [10/16] %v8620, 128
        %8717 = vxpose.xlu0.b32.cont [11/16] %v8621, 128
        %8718 = vxpose.xlu0.b32.cont [12/16] %v8622, 128
        %8719 = vxpose.xlu0.b32.cont [13/16] %v8623, 128
        %8720 = vxpose.xlu0.b32.cont [14/16] %v8624, 128
        %8721 = vxpose.xlu0.b32.cont [15/16] %v8625, 128
        %8722 = vxpose.xlu0.b32.end [16/16] %v8626, 128
        %v8723 = vpop.trf.xlu0
        %v8724 = vpop.trf.xlu0
        %v8725 = vpop.trf.xlu0
        %v8726 = vpop.trf.xlu0
        %v8727 = vpop.trf.xlu0
        %v8728 = vpop.trf.xlu0
        %v8729 = vpop.trf.xlu0
        %v8730 = vpop.trf.xlu0
        %v8731 = vpop.trf.xlu0
        %v8732 = vpop.trf.xlu0
        %v8733 = vpop.trf.xlu0
        %v8734 = vpop.trf.xlu0
        %v8735 = vpop.trf.xlu0
        %v8736 = vpop.trf.xlu0
        %v8737 = vpop.trf.xlu0
        %v8738 = vpop.trf.xlu0
        %8739 = vxpose.xlu0.b32.start [1/16] %v8627, 128
        %8740 = vxpose.xlu0.b32.cont [2/16] %v8628, 128
        %8741 = vxpose.xlu0.b32.cont [3/16] %v8629, 128
        %8742 = vxpose.xlu0.b32.cont [4/16] %v8630, 128
        %8743 = vxpose.xlu0.b32.cont [5/16] %v8631, 128
        %8744 = vxpose.xlu0.b32.cont [6/16] %v8632, 128
        %8745 = vxpose.xlu0.b32.cont [7/16] %v8633, 128
        %8746 = vxpose.xlu0.b32.cont [8/16] %v8634, 128
        %8747 = vxpose.xlu0.b32.cont [9/16] %v8635, 128
        %8748 = vxpose.xlu0.b32.cont [10/16] %v8636, 128
        %8749 = vxpose.xlu0.b32.cont [11/16] %v8637, 128
        %8750 = vxpose.xlu0.b32.cont [12/16] %v8638, 128
        %8751 = vxpose.xlu0.b32.cont [13/16] %v8639, 128
        %8752 = vxpose.xlu0.b32.cont [14/16] %v8640, 128
        %8753 = vxpose.xlu0.b32.cont [15/16] %v8641, 128
        %8754 = vxpose.xlu0.b32.end [16/16] %v8642, 128
        %v8755 = vpop.trf.xlu0
        %v8756 = vpop.trf.xlu0
        %v8757 = vpop.trf.xlu0
        %v8758 = vpop.trf.xlu0
        %v8759 = vpop.trf.xlu0
        %v8760 = vpop.trf.xlu0
        %v8761 = vpop.trf.xlu0
        %v8762 = vpop.trf.xlu0
        %v8763 = vpop.trf.xlu0
        %v8764 = vpop.trf.xlu0
        %v8765 = vpop.trf.xlu0
        %v8766 = vpop.trf.xlu0
        %v8767 = vpop.trf.xlu0
        %v8768 = vpop.trf.xlu0
        %v8769 = vpop.trf.xlu0
        %v8770 = vpop.trf.xlu0
        %v8775 = vcombine.low %v8659, %v8691
        %v8776 = vcombine.low %v8723, %v8755
        %8779 = vst [vmem:[%s208] sm:$0xff] %v8775
        %8780 = vst [vmem:[%s208 + $0x8] sm:$0xff] %v8776
        %s8781 = sand.u32 %s126, 1
        %s8782 = scalar_lea.sflag [#allocation4], %s8781
        %s8783 = sand.u32 %s126, 1
        %s8784 = smul.addr %s8783, 16
        %s8785 = scalar_lea.vmem [#allocation3], %s8784
        // Predicated region
        $region37: #{tpu_custom_call.1} parent=31 // pred_check
          %p8786 = pneg %p136
        $region38: #{tpu_custom_call.1} parent=31 // pred_check_branch
          %8788 = sbr.rel (%p8786) target = $region40
        $region39: #{tpu_custom_call.1} parent=31 // pred_region
          %s8789 = smul.u32 4, %s24
          %s8791 = ssub.s32 256, 256
          %8792 = vsyncadd %s8782, %s8791
          %s8793 = smul.addr %s23, 16
          %s8794 = sadd.s32 %s8789, %s8793
          %s8795 = smul.addr %s22, 16
          %s8796 = sadd.s32 %s8794, %s8795
          %s8797 = smul.addr %s8796, 64
          %s8798 = scalar_lea.hbm %s3, %s8797
          %s8800 = sshll.u32 %s8785, 4
          %s8801 = int_to_ptr.vmem [resolvable:$true] %s8800
          %8803 = dma.vmem_to_hbm [thread:$0]  %s8801, 256, %s8798, %s8782
        $region40: #{tpu_custom_call.1} parent=31 // pred_fallthru
          _
      $region32: #{tpu_custom_call.1} parent=5 // pred_fallthru
        _
      %p8804 = scmp.le.s32.totalorder 2, %s12
      // Predicated region
      $region41: #{tpu_custom_call.1} parent=5 // pred_check
        %p8805 = pneg %p8804
      $region42: #{tpu_custom_call.1} parent=5 // pred_check_branch
        %8807 = sbr.rel (%p8805) target = $region44
      $region43: #{tpu_custom_call.1} parent=5 // pred_region
        %s8808 = ssub.s32 %s12, 2
        // Predicated region
        $region45: #{tpu_custom_call.1} parent=43 // pred_check
          %p8809 = pneg %p142
        $region46: #{tpu_custom_call.1} parent=43 // pred_check_branch
          %8811 = sbr.rel (%p8809) target = $region48
        $region47: #{tpu_custom_call.1} parent=43 // pred_region
          %s8812 = sand.u32 %s127, 1
          %s8813 = scalar_lea.sflag [#allocation4], %s8812
          %s8814 = sand.u32 %s127, 1
          %s8815 = smul.addr %s8814, 16
          %s8816 = scalar_lea.vmem [#allocation3], %s8815
          %8817 = dma.done %s8813, 256
        $region48: #{tpu_custom_call.1} parent=43 // pred_fallthru
          _
      $region44: #{tpu_custom_call.1} parent=5 // pred_fallthru
        _
    $region6: #{tpu_custom_call.1} parent=1 // loop_footer
      %s16 = sadd.s32 1, %s12
    $region7: #{tpu_custom_call.1} parent=1 // loop_footer_branch
      %11 = sbr.rel target = $region3
    $region8: #{tpu_custom_call.1} parent=1 // loop_exit
      _
    %8818 = vsyncpa [#allocation4], 1
    %s8819 = scalar_lea.sflag [#allocation4], 1
    %8820 = vsyncpa %s8819, 1

</llo_original>
